<compile_context>
chip_gen: v6e
topology: v6e:2x2x1
jax: 0.10.0
libtpu: 0.0.40
codegen_flags: <defaults>
</compile_context>

<pallas_src>
import jax
import jax.numpy as jnp
from jax import lax
from jax.experimental import pallas as pl
from jax.experimental.pallas import tpu as pltpu

LANE = 128  # TPU lane width; channel / flat-spatial dims are padded up to this.


def _round_up(x, m):
    return (x + m - 1) // m * m


# --------------------------------------------------------------------------- #
# Fused double_conv Pallas kernel: (conv3x3 -> BN(eval) -> ReLU) * 2, one call.
# --------------------------------------------------------------------------- #

def _make_double_conv_kernel(L, OFF0, Wp, H, W, Cin, CP, C2out, Y1R):
    # Tap offsets on the flattened padded grid (row stride Wp).
    offs1 = [dy * Wp + dx for dy in range(3) for dx in range(3)]            # conv1
    offs2 = [(dy - 1) * Wp + (dx - 1) for dy in range(3) for dx in range(3)]  # conv2
    inv_wp = 1.0 / Wp

    def kernel(x_ref, w1_ref, s1_ref, b1_ref, w2_ref, s2_ref, b2_ref,
               o_ref, p1_buf, y1_buf):
        # Zero only the conv2 halo rows; the staging window [OFF0, OFF0+L) is
        # fully overwritten below.  Done every step (cheap: ~halo rows only)
        # so correctness is independent of megacore grid sharding.
        y1_buf[0:OFF0, :] = jnp.zeros((OFF0, CP), jnp.bfloat16)
        y1_buf[OFF0 + L:Y1R, :] = jnp.zeros((Y1R - OFF0 - L, CP), jnp.bfloat16)

        # ---- conv1: in-kernel im2col (9 sublane shifts) + ONE MXU matmul ---- #
        for t, off in enumerate(offs1):
            p1_buf[:, t * Cin:(t + 1) * Cin] = x_ref[0, off:off + L, :]
        acc1 = jnp.dot(p1_buf[...], w1_ref[...],
                       preferred_element_type=jnp.float32)            # (L, CP)
        y1 = jnp.maximum(acc1 * s1_ref[...] + b1_ref[...], 0.0)        # BN+ReLU

        # In-kernel validity mask over flat positions (zero the pad rows/cols).
        # col = flat % Wp computed exactly via reciprocal-multiply + fixup
        # (avoids vector integer division); row < H is just flat < H*Wp.
        flat = lax.broadcasted_iota(jnp.int32, (L, 1), 0)
        q = jnp.floor(flat.astype(jnp.float32) * inv_wp).astype(jnp.int32)
        col = flat - q * Wp
        col = jnp.where(col >= Wp, col - Wp, col)
        col = jnp.where(col < 0, col + Wp, col)
        valid = jnp.logical_and(flat < H * Wp, col < W)
        y1 = jnp.where(valid, y1, 0.0)

        # Stage bf16 y1 inside the zero-haloed flat buffer.
        y1_buf[OFF0:OFF0 + L, :] = y1.astype(jnp.bfloat16)

        # ---- conv2: 9 accumulating K=CP MXU matmuls straight off y1_buf ----- #
        acc2 = None
        for t, off in enumerate(offs2):
            s = OFF0 + off                           # static, >= 0 by construction
            part = jnp.dot(y1_buf[s:s + L, :], w2_ref[t],
                           preferred_element_type=jnp.float32)         # (L, CP)
            acc2 = part if acc2 is None else acc2 + part
        y2 = jnp.maximum(acc2 * s2_ref[...] + b2_ref[...], 0.0)

        # Lane-dense (L % 128 == 0), sublane-aligned (C2out % 8 == 0) output:
        # channels on sublanes, flat spatial on lanes == NCHW-flat layout.
        o_ref[0] = y2.T[:C2out, :].astype(o_ref.dtype)

    return kernel


def _bn_fold(p, eps):
    """Fold eval-mode BatchNorm (+ conv bias) into per-channel scale/bias."""
    scale = p["gamma"] / jnp.sqrt(p["var"] + eps)
    bias = p["beta"] + (p["b"] - p["mean"]) * scale
    return scale, bias


def fused_double_conv(x_nhwc, params, eps=1e-5):
    """(Conv2d 3x3 pad=1 -> BatchNorm2d(eval) -> ReLU) * 2 in one Pallas call.

    Input NHWC; returns NCHW (kernel output layout is already channels-major).
    """
    p1, p2 = params["conv1"], params["conv2"]
    N, H, W, Cin = x_nhwc.shape
    C1 = p1["w"].shape[-1]            # conv1 out channels (= conv2 in channels)
    C2 = p2["w"].shape[-1]            # conv2 out channels
    CP = _round_up(max(C1, C2), LANE)  # lane-padded channel width
    C2out = _round_up(C2, 8)           # sublane-aligned stored output channels

    # Flattened-spatial geometry: flat index p = r*Wp + c over the 1-pixel
    # zero-padded (Hp, Wp) grid.  A 3x3 tap (dy, dx) is a static shift dy*Wp+dx.
    Hp, Wp = H + 2, W + 2
    P = Hp * Wp
    L = _round_up(P, LANE)                    # lane-dense flat output length
    PIN = _round_up(L + 2 * Wp + 2, 8)        # flat input rows incl. tap slack
    OFF0 = _round_up(Wp + 1, 8)               # zero halo in front of staged y1
    Y1R = _round_up(OFF0 + L + Wp + 1, 8)     # staged-y1 buffer rows

    # ---- zero-padded flat input: the ONLY per-image tensor DMA'd to VMEM ---- #
    x_pad = jnp.pad(x_nhwc, ((0, 0), (1, 1), (1, 1), (0, 0)))
    x_flat = jnp.pad(x_pad.reshape(N, P, Cin), ((0, 0), (0, PIN - P), (0, 0)))
    x_flat = x_flat.astype(jnp.bfloat16)

    # ---- weights packed host-side into lane-friendly matrices --------------- #
    K1 = 9 * Cin
    w1 = p1["w"].reshape(K1, C1)
    w1p = jnp.zeros((K1, CP), jnp.float32).at[:, :C1].set(w1).astype(jnp.bfloat16)
    s1, b1 = _bn_fold(p1, eps)
    s1p = jnp.zeros((1, CP), jnp.float32).at[0, :C1].set(s1)
    b1p = jnp.zeros((1, CP), jnp.float32).at[0, :C1].set(b1)

    w2 = p2["w"].reshape(9, C1, C2)
    w2p = (jnp.zeros((9, CP, CP), jnp.float32).at[:, :C1, :C2].set(w2)
           .astype(jnp.bfloat16))                       # per-tap (CP, CP) tiles
    s2, b2 = _bn_fold(p2, eps)
    s2p = jnp.zeros((1, CP), jnp.float32).at[0, :C2].set(s2)
    b2p = jnp.zeros((1, CP), jnp.float32).at[0, :C2].set(b2)

    kernel = _make_double_conv_kernel(L, OFF0, Wp, H, W, Cin, CP, C2out, Y1R)

    out_flat = pl.pallas_call(
        kernel,
        out_shape=jax.ShapeDtypeStruct((N, C2out, L), jnp.float32),
        grid_spec=pltpu.PrefetchScalarGridSpec(
            num_scalar_prefetch=0,
            grid=(N,),
            in_specs=[
                pl.BlockSpec((1, PIN, Cin), lambda n: (n, 0, 0)),  # flat input
                pl.BlockSpec((K1, CP), lambda n: (0, 0)),          # conv1 weights
                pl.BlockSpec((1, CP), lambda n: (0, 0)),           # conv1 BN scale
                pl.BlockSpec((1, CP), lambda n: (0, 0)),           # conv1 BN bias
                pl.BlockSpec((9, CP, CP), lambda n: (0, 0, 0)),    # conv2 weights
                pl.BlockSpec((1, CP), lambda n: (0, 0)),           # conv2 BN scale
                pl.BlockSpec((1, CP), lambda n: (0, 0)),           # conv2 BN bias
            ],
            out_specs=pl.BlockSpec((1, C2out, L), lambda n: (n, 0, 0)),
            scratch_shapes=[
                pltpu.VMEM((L, K1), jnp.bfloat16),     # conv1 im2col patches
                pltpu.VMEM((Y1R, CP), jnp.bfloat16),   # haloed staged conv1 out
            ],
        ),
        compiler_params=pltpu.CompilerParams(
            dimension_semantics=("parallel",)),
    )(x_flat, w1p, s1p, b1p, w2p, s2p, b2p)

    # Crop to NCHW.  TODO(synk): let the consumer accept the padded
    # (C2out, H, Wp) flat layout to avoid this extra XLA pass over the output.
    return out_flat[:, :C2, :H * Wp].reshape(N, C2, H, Wp)[:, :, :, :W]


# ------------------------------- JAX glue ----------------------------------- #

def _interp_axis_x2_align_corners(x, axis, n_in):
    """Linear interpolation along `axis` to size 2*n_in, align_corners=True."""
    n_out = 2 * n_in
    if n_in == 1:
        return jnp.repeat(x, n_out, axis=axis)
    src = jnp.arange(n_out, dtype=jnp.float32) * (n_in - 1) / (n_out - 1)
    i0 = jnp.clip(jnp.floor(src).astype(jnp.int32), 0, n_in - 2)
    frac = src - i0.astype(jnp.float32)
    x0 = jnp.take(x, i0, axis=axis)
    x1 = jnp.take(x, i0 + 1, axis=axis)
    shp = [1] * x.ndim
    shp[axis] = n_out
    frac = frac.reshape(shp)
    return x0 * (1.0 - frac) + x1 * frac


def bilinear_upsample_x2(x_nhwc):
    """nn.Upsample(scale_factor=2, mode='bilinear', align_corners=True)."""
    _, H, W, _ = x_nhwc.shape
    y = _interp_axis_x2_align_corners(x_nhwc, axis=1, n_in=H)
    y = _interp_axis_x2_align_corners(y, axis=2, n_in=W)
    return y


def _pad_axis(x, axis, before, after):
    """F.pad semantics on one axis: negative pad amounts crop."""
    if before < 0:
        x = lax.slice_in_dim(x, -before, x.shape[axis], axis=axis)
        before = 0
    if after < 0:
        x = lax.slice_in_dim(x, 0, x.shape[axis] + after, axis=axis)
        after = 0
    pads = [(0, 0)] * x.ndim
    pads[axis] = (before, after)
    return jnp.pad(x, pads)


def _prep_input(x1_nchw, x2_nchw):
    """Upsample x1, pad/crop to x2's spatial size, concat channels (NHWC)."""
    # TODO(synk): fold this prep into conv1 (split w1 along K) to avoid
    # materializing the full-resolution concatenated tensor in HBM.
    x1 = jnp.transpose(x1_nchw, (0, 2, 3, 1))
    x2 = jnp.transpose(x2_nchw, (0, 2, 3, 1))
    x1 = bilinear_upsample_x2(x1)
    diffY = x2.shape[1] - x1.shape[1]
    diffX = x2.shape[2] - x1.shape[2]
    x1 = _pad_axis(x1, 1, diffY // 2, diffY - diffY // 2)
    x1 = _pad_axis(x1, 2, diffX // 2, diffX - diffX // 2)
    return jnp.concatenate([x2, x1], axis=-1)      # torch.cat(..., dim=1)


def up_forward(x1_nchw, x2_nchw, params):
    """Forward pass of `up(in_ch, out_ch, bilinear=True)`; NCHW in / NCHW out."""
    x = _prep_input(x1_nchw, x2_nchw)
    return fused_double_conv(x, params)


# Plain-XLA reference (for an in-script numerical cross-check).
def _double_conv_ref(x_nhwc, params, eps=1e-5):
    y = x_nhwc
    for p in (params["conv1"], params["conv2"]):
        y = lax.conv_general_dilated(
            y, p["w"], window_strides=(1, 1), padding=((1, 1), (1, 1)),
            dimension_numbers=("NHWC", "HWIO", "NHWC"))
        scale, bias = _bn_fold(p, eps)
        y = jnp.maximum(y * scale + bias, 0.0)
    return jnp.transpose(y, (0, 3, 1, 2))


def up_forward_ref(x1_nchw, x2_nchw, params):
    return _double_conv_ref(_prep_input(x1_nchw, x2_nchw), params)


def init_up_params(key, in_ch, out_ch):
    """Deterministic synthetic parameters for double_conv(in_ch, out_ch)."""
    ks = jax.random.split(key, 12)

    def conv_block(kw, kb, kg, kbe, km, kv, cin, cout):
        return {
            "w": 0.1 * jax.random.normal(kw, (3, 3, cin, cout), jnp.float32),
            "b": 0.05 * jax.random.normal(kb, (cout,), jnp.float32),
            "gamma": 1.0 + 0.1 * jax.random.normal(kg, (cout,), jnp.float32),
            "beta": 0.1 * jax.random.normal(kbe, (cout,), jnp.float32),
            "mean": 0.05 * jax.random.normal(km, (cout,), jnp.float32),
            "var": 0.5 + jnp.abs(jax.random.normal(kv, (cout,), jnp.float32)) * 0.1,
        }

    return {
        "conv1": conv_block(*ks[0:6], in_ch, out_ch),
        "conv2": conv_block(*ks[6:12], out_ch, out_ch),
    }


# --------------------------------- main -------------------------------------- #

if __name__ == "__main__":
    key = jax.random.PRNGKey(0)
    in_ch, out_ch = 8, 4                 # up(in_ch=8, out_ch=4, bilinear=True)
    k1, k2, kp = jax.random.split(key, 3)

    # x1: low-res feature map (in_ch//2 channels), x2: skip connection.
    x1 = jax.random.normal(k1, (2, in_ch // 2, 8, 8), jnp.float32)     # NCHW
    x2 = jax.random.normal(k2, (2, in_ch // 2, 16, 16), jnp.float32)   # NCHW
    params = init_up_params(kp, in_ch, out_ch)

    out = jax.jit(up_forward)(x1, x2, params)
    out = jax.block_until_ready(out)

    assert out.shape == (2, out_ch, 16, 16), out.shape
    assert bool(jnp.all(jnp.isfinite(out)))

    # Cross-check against a plain-XLA f32 reference (bf16 MXU operands in the
    # Pallas path give only a small numeric difference).
    ref = up_forward_ref(x1, x2, params)
    assert float(jnp.max(jnp.abs(out - ref))) < 1e-1

    print("KERNEL_OK")
</pallas_src>

<mosaic_0001>
module attributes {stable_mosaic.version = 11 : i64} {
  func.func @kernel(%arg0: i32, %arg1: memref<1x424x8xbf16, #tpu.memory_space<vmem>>, %arg2: memref<72x128xbf16, #tpu.memory_space<vmem>>, %arg3: memref<1x128xf32, #tpu.memory_space<vmem>>, %arg4: memref<1x128xf32, #tpu.memory_space<vmem>>, %arg5: memref<9x128x128xbf16, #tpu.memory_space<vmem>>, %arg6: memref<1x128xf32, #tpu.memory_space<vmem>>, %arg7: memref<1x128xf32, #tpu.memory_space<vmem>>, %arg8: memref<1x8x384xf32, #tpu.memory_space<vmem>>, %arg9: memref<384x72xbf16, #tpu.memory_space<vmem>>, %arg10: memref<432x128xbf16, #tpu.memory_space<vmem>>) attributes {dimension_semantics = [#tpu.dimension_semantics<parallel>], iteration_bounds = array<i64: 2>, scalar_prefetch = 0 : i64, scratch_operands = 2 : i64, tpu.core_type = #tpu.core_type<tc>, window_params = [{transform_indices = @transform_0, window_bounds = array<i64: 1, 424, 8>}, {pipeline_mode = #tpu.pipeline_mode<synchronous>, transform_indices = @transform_1, window_bounds = array<i64: 72, 128>}, {pipeline_mode = #tpu.pipeline_mode<synchronous>, transform_indices = @transform_2, window_bounds = array<i64: 1, 128>}, {pipeline_mode = #tpu.pipeline_mode<synchronous>, transform_indices = @transform_3, window_bounds = array<i64: 1, 128>}, {pipeline_mode = #tpu.pipeline_mode<synchronous>, transform_indices = @transform_4, window_bounds = array<i64: 9, 128, 128>}, {pipeline_mode = #tpu.pipeline_mode<synchronous>, transform_indices = @transform_5, window_bounds = array<i64: 1, 128>}, {pipeline_mode = #tpu.pipeline_mode<synchronous>, transform_indices = @transform_6, window_bounds = array<i64: 1, 128>}, {transform_indices = @transform_7, window_bounds = array<i64: 1, 8, 384>}]} {
    %cst = arith.constant 0.000000e+00 : bf16
    %0 = vector.broadcast %cst : bf16 to vector<24x128xbf16>
    %c0 = arith.constant 0 : index
    %c0_0 = arith.constant 0 : index
    %1 = vector.load %arg10[%c0, %c0_0] : memref<432x128xbf16, #tpu.memory_space<vmem>>, vector<24x128xbf16>
    tpu.vector_store %arg10[%c0, %c0_0], %0 {strides = array<i32>} : memref<432x128xbf16, #tpu.memory_space<vmem>>, vector<24x128xbf16>,
    %cst_1 = arith.constant 0.000000e+00 : bf16
    %2 = vector.broadcast %cst_1 : bf16 to vector<24x128xbf16>
    %c408 = arith.constant 408 : index
    %c0_2 = arith.constant 0 : index
    %3 = vector.load %arg10[%c408, %c0_2] : memref<432x128xbf16, #tpu.memory_space<vmem>>, vector<24x128xbf16>
    tpu.vector_store %arg10[%c408, %c0_2], %2 {strides = array<i32>} : memref<432x128xbf16, #tpu.memory_space<vmem>>, vector<24x128xbf16>,
    %c0_3 = arith.constant 0 : index
    %c0_4 = arith.constant 0 : index
    %c0_5 = arith.constant 0 : index
    %4 = vector.load %arg1[%c0_3, %c0_4, %c0_5] : memref<1x424x8xbf16, #tpu.memory_space<vmem>>, vector<1x384x8xbf16>
    %5 = vector.shape_cast %4 : vector<1x384x8xbf16> to vector<384x8xbf16>
    %c0_6 = arith.constant 0 : index
    %c0_7 = arith.constant 0 : index
    %6 = vector.load %arg9[%c0_6, %c0_7] : memref<384x72xbf16, #tpu.memory_space<vmem>>, vector<384x8xbf16>
    tpu.vector_store %arg9[%c0_6, %c0_7], %5 {strides = array<i32>} : memref<384x72xbf16, #tpu.memory_space<vmem>>, vector<384x8xbf16>,
    %c0_8 = arith.constant 0 : index
    %c1 = arith.constant 1 : index
    %c0_9 = arith.constant 0 : index
    %7 = vector.load %arg1[%c0_8, %c1, %c0_9] : memref<1x424x8xbf16, #tpu.memory_space<vmem>>, vector<1x384x8xbf16>
    %8 = vector.shape_cast %7 : vector<1x384x8xbf16> to vector<384x8xbf16>
    %c0_10 = arith.constant 0 : index
    %c8 = arith.constant 8 : index
    %9 = vector.load %arg9[%c0_10, %c8] : memref<384x72xbf16, #tpu.memory_space<vmem>>, vector<384x8xbf16>
    tpu.vector_store %arg9[%c0_10, %c8], %8 {strides = array<i32>} : memref<384x72xbf16, #tpu.memory_space<vmem>>, vector<384x8xbf16>,
    %c0_11 = arith.constant 0 : index
    %c2 = arith.constant 2 : index
    %c0_12 = arith.constant 0 : index
    %10 = vector.load %arg1[%c0_11, %c2, %c0_12] : memref<1x424x8xbf16, #tpu.memory_space<vmem>>, vector<1x384x8xbf16>
    %11 = vector.shape_cast %10 : vector<1x384x8xbf16> to vector<384x8xbf16>
    %c0_13 = arith.constant 0 : index
    %c16 = arith.constant 16 : index
    %12 = vector.load %arg9[%c0_13, %c16] : memref<384x72xbf16, #tpu.memory_space<vmem>>, vector<384x8xbf16>
    tpu.vector_store %arg9[%c0_13, %c16], %11 {strides = array<i32>} : memref<384x72xbf16, #tpu.memory_space<vmem>>, vector<384x8xbf16>,
    %c0_14 = arith.constant 0 : index
    %c18 = arith.constant 18 : index
    %c0_15 = arith.constant 0 : index
    %13 = vector.load %arg1[%c0_14, %c18, %c0_15] : memref<1x424x8xbf16, #tpu.memory_space<vmem>>, vector<1x384x8xbf16>
    %14 = vector.shape_cast %13 : vector<1x384x8xbf16> to vector<384x8xbf16>
    %c0_16 = arith.constant 0 : index
    %c24 = arith.constant 24 : index
    %15 = vector.load %arg9[%c0_16, %c24] : memref<384x72xbf16, #tpu.memory_space<vmem>>, vector<384x8xbf16>
    tpu.vector_store %arg9[%c0_16, %c24], %14 {strides = array<i32>} : memref<384x72xbf16, #tpu.memory_space<vmem>>, vector<384x8xbf16>,
    %c0_17 = arith.constant 0 : index
    %c19 = arith.constant 19 : index
    %c0_18 = arith.constant 0 : index
    %16 = vector.load %arg1[%c0_17, %c19, %c0_18] : memref<1x424x8xbf16, #tpu.memory_space<vmem>>, vector<1x384x8xbf16>
    %17 = vector.shape_cast %16 : vector<1x384x8xbf16> to vector<384x8xbf16>
    %c0_19 = arith.constant 0 : index
    %c32 = arith.constant 32 : index
    %18 = vector.load %arg9[%c0_19, %c32] : memref<384x72xbf16, #tpu.memory_space<vmem>>, vector<384x8xbf16>
    tpu.vector_store %arg9[%c0_19, %c32], %17 {strides = array<i32>} : memref<384x72xbf16, #tpu.memory_space<vmem>>, vector<384x8xbf16>,
    %c0_20 = arith.constant 0 : index
    %c20 = arith.constant 20 : index
    %c0_21 = arith.constant 0 : index
    %19 = vector.load %arg1[%c0_20, %c20, %c0_21] : memref<1x424x8xbf16, #tpu.memory_space<vmem>>, vector<1x384x8xbf16>
    %20 = vector.shape_cast %19 : vector<1x384x8xbf16> to vector<384x8xbf16>
    %c0_22 = arith.constant 0 : index
    %c40 = arith.constant 40 : index
    %21 = vector.load %arg9[%c0_22, %c40] : memref<384x72xbf16, #tpu.memory_space<vmem>>, vector<384x8xbf16>
    tpu.vector_store %arg9[%c0_22, %c40], %20 {strides = array<i32>} : memref<384x72xbf16, #tpu.memory_space<vmem>>, vector<384x8xbf16>,
    %c0_23 = arith.constant 0 : index
    %c36 = arith.constant 36 : index
    %c0_24 = arith.constant 0 : index
    %22 = vector.load %arg1[%c0_23, %c36, %c0_24] : memref<1x424x8xbf16, #tpu.memory_space<vmem>>, vector<1x384x8xbf16>
    %23 = vector.shape_cast %22 : vector<1x384x8xbf16> to vector<384x8xbf16>
    %c0_25 = arith.constant 0 : index
    %c48 = arith.constant 48 : index
    %24 = vector.load %arg9[%c0_25, %c48] : memref<384x72xbf16, #tpu.memory_space<vmem>>, vector<384x8xbf16>
    tpu.vector_store %arg9[%c0_25, %c48], %23 {strides = array<i32>} : memref<384x72xbf16, #tpu.memory_space<vmem>>, vector<384x8xbf16>,
    %c0_26 = arith.constant 0 : index
    %c37 = arith.constant 37 : index
    %c0_27 = arith.constant 0 : index
    %25 = vector.load %arg1[%c0_26, %c37, %c0_27] : memref<1x424x8xbf16, #tpu.memory_space<vmem>>, vector<1x384x8xbf16>
    %26 = vector.shape_cast %25 : vector<1x384x8xbf16> to vector<384x8xbf16>
    %c0_28 = arith.constant 0 : index
    %c56 = arith.constant 56 : index
    %27 = vector.load %arg9[%c0_28, %c56] : memref<384x72xbf16, #tpu.memory_space<vmem>>, vector<384x8xbf16>
    tpu.vector_store %arg9[%c0_28, %c56], %26 {strides = array<i32>} : memref<384x72xbf16, #tpu.memory_space<vmem>>, vector<384x8xbf16>,
    %c0_29 = arith.constant 0 : index
    %c38 = arith.constant 38 : index
    %c0_30 = arith.constant 0 : index
    %28 = vector.load %arg1[%c0_29, %c38, %c0_30] : memref<1x424x8xbf16, #tpu.memory_space<vmem>>, vector<1x384x8xbf16>
    %29 = vector.shape_cast %28 : vector<1x384x8xbf16> to vector<384x8xbf16>
    %c0_31 = arith.constant 0 : index
    %c64 = arith.constant 64 : index
    %30 = vector.load %arg9[%c0_31, %c64] : memref<384x72xbf16, #tpu.memory_space<vmem>>, vector<384x8xbf16>
    tpu.vector_store %arg9[%c0_31, %c64], %29 {strides = array<i32>} : memref<384x72xbf16, #tpu.memory_space<vmem>>, vector<384x8xbf16>,
    %c0_32 = arith.constant 0 : index
    %c0_33 = arith.constant 0 : index
    %31 = vector.load %arg9[%c0_32, %c0_33] : memref<384x72xbf16, #tpu.memory_space<vmem>>, vector<384x72xbf16>
    %c0_34 = arith.constant 0 : index
    %c0_35 = arith.constant 0 : index
    %32 = vector.load %arg2[%c0_34, %c0_35] : memref<72x128xbf16, #tpu.memory_space<vmem>>, vector<72x128xbf16>
    %cst_36 = arith.constant dense<0.000000e+00> : vector<384x128xf32>
    %33 = tpu.matmul %31, %32, %cst_36 {dimension_numbers = #tpu.dot_dimension_numbers<[1], [0], [0], [1], [0, 0, 1, 1], [], []>} : vector<384x72xbf16>, vector<72x128xbf16>, vector<384x128xf32> -> vector<384x128xf32>
    %c0_37 = arith.constant 0 : index
    %c0_38 = arith.constant 0 : index
    %34 = vector.load %arg3[%c0_37, %c0_38] : memref<1x128xf32, #tpu.memory_space<vmem>>, vector<1x128xf32>
    %35 = vector.broadcast %34 : vector<1x128xf32> to vector<384x128xf32>
    %36 = arith.mulf %33, %35 : vector<384x128xf32>
    %c0_39 = arith.constant 0 : index
    %c0_40 = arith.constant 0 : index
    %37 = vector.load %arg4[%c0_39, %c0_40] : memref<1x128xf32, #tpu.memory_space<vmem>>, vector<1x128xf32>
    %38 = vector.broadcast %37 : vector<1x128xf32> to vector<384x128xf32>
    %39 = arith.addf %36, %38 : vector<384x128xf32>
    %cst_41 = arith.constant 0.000000e+00 : f32
    %40 = vector.broadcast %cst_41 : f32 to vector<384x128xf32>
    %41 = arith.maximumf %39, %40 : vector<384x128xf32>
    %42 = tpu.iota {dimensions = array<i32: 0>} : vector<384x1xi32>
    %43 = arith.sitofp %42 : vector<384x1xi32> to vector<384x1xf32>
    %cst_42 = arith.constant 0.055555556 : f32
    %44 = vector.broadcast %cst_42 : f32 to vector<384x1xf32>
    %45 = arith.mulf %43, %44 : vector<384x1xf32>
    %46 = math.floor %45 : vector<384x1xf32>
    %47 = arith.fptosi %46 : vector<384x1xf32> to vector<384x1xi32>
    %c18_i32 = arith.constant 18 : i32
    %48 = vector.broadcast %c18_i32 : i32 to vector<384x1xi32>
    %49 = arith.muli %47, %48 : vector<384x1xi32>
    %50 = arith.subi %42, %49 : vector<384x1xi32>
    %c18_i32_43 = arith.constant 18 : i32
    %51 = vector.broadcast %c18_i32_43 : i32 to vector<384x1xi32>
    %52 = arith.cmpi sge, %50, %51 : vector<384x1xi32>
    %c18_i32_44 = arith.constant 18 : i32
    %53 = vector.broadcast %c18_i32_44 : i32 to vector<384x1xi32>
    %54 = arith.subi %50, %53 : vector<384x1xi32>
    %55 = arith.select %52, %54, %50 : vector<384x1xi1>, vector<384x1xi32>
    %c0_i32 = arith.constant 0 : i32
    %56 = vector.broadcast %c0_i32 : i32 to vector<384x1xi32>
    %57 = arith.cmpi slt, %55, %56 : vector<384x1xi32>
    %c18_i32_45 = arith.constant 18 : i32
    %58 = vector.broadcast %c18_i32_45 : i32 to vector<384x1xi32>
    %59 = arith.addi %55, %58 : vector<384x1xi32>
    %60 = arith.select %57, %59, %55 : vector<384x1xi1>, vector<384x1xi32>
    %c288_i32 = arith.constant 288 : i32
    %61 = vector.broadcast %c288_i32 : i32 to vector<384x1xi32>
    %62 = arith.cmpi slt, %42, %61 : vector<384x1xi32>
    %c16_i32 = arith.constant 16 : i32
    %63 = vector.broadcast %c16_i32 : i32 to vector<384x1xi32>
    %64 = arith.cmpi slt, %60, %63 : vector<384x1xi32>
    %65 = arith.andi %62, %64 : vector<384x1xi1>
    %cst_46 = arith.constant 0.000000e+00 : f32
    %66 = vector.shape_cast %65 : vector<384x1xi1> to vector<384x1xi1>
    %67 = vector.broadcast %66 : vector<384x1xi1> to vector<384x128xi1>
    %68 = vector.broadcast %cst_46 : f32 to vector<384x128xf32>
    %69 = arith.select %67, %41, %68 : vector<384x128xi1>, vector<384x128xf32>
    %70 = arith.truncf %69 : vector<384x128xf32> to vector<384x128xbf16>
    %c24_47 = arith.constant 24 : index
    %c0_48 = arith.constant 0 : index
    %71 = vector.load %arg10[%c24_47, %c0_48] : memref<432x128xbf16, #tpu.memory_space<vmem>>, vector<384x128xbf16>
    tpu.vector_store %arg10[%c24_47, %c0_48], %70 {strides = array<i32>} : memref<432x128xbf16, #tpu.memory_space<vmem>>, vector<384x128xbf16>,
    %c5 = arith.constant 5 : index
    %c0_49 = arith.constant 0 : index
    %72 = vector.load %arg10[%c5, %c0_49] : memref<432x128xbf16, #tpu.memory_space<vmem>>, vector<384x128xbf16>
    %c0_50 = arith.constant 0 : index
    %c0_51 = arith.constant 0 : index
    %c0_52 = arith.constant 0 : index
    %73 = vector.load %arg5[%c0_50, %c0_51, %c0_52] : memref<9x128x128xbf16, #tpu.memory_space<vmem>>, vector<1x128x128xbf16>
    %74 = vector.shape_cast %73 : vector<1x128x128xbf16> to vector<128x128xbf16>
    %cst_53 = arith.constant dense<0.000000e+00> : vector<384x128xf32>
    %75 = tpu.matmul %72, %74, %cst_53 {dimension_numbers = #tpu.dot_dimension_numbers<[1], [0], [0], [1], [0, 0, 1, 1], [], []>} : vector<384x128xbf16>, vector<128x128xbf16>, vector<384x128xf32> -> vector<384x128xf32>
    %c6 = arith.constant 6 : index
    %c0_54 = arith.constant 0 : index
    %76 = vector.load %arg10[%c6, %c0_54] : memref<432x128xbf16, #tpu.memory_space<vmem>>, vector<384x128xbf16>
    %c1_55 = arith.constant 1 : index
    %c0_56 = arith.constant 0 : index
    %c0_57 = arith.constant 0 : index
    %77 = vector.load %arg5[%c1_55, %c0_56, %c0_57] : memref<9x128x128xbf16, #tpu.memory_space<vmem>>, vector<1x128x128xbf16>
    %78 = vector.shape_cast %77 : vector<1x128x128xbf16> to vector<128x128xbf16>
    %cst_58 = arith.constant dense<0.000000e+00> : vector<384x128xf32>
    %79 = tpu.matmul %76, %78, %cst_58 {dimension_numbers = #tpu.dot_dimension_numbers<[1], [0], [0], [1], [0, 0, 1, 1], [], []>} : vector<384x128xbf16>, vector<128x128xbf16>, vector<384x128xf32> -> vector<384x128xf32>
    %80 = arith.addf %75, %79 : vector<384x128xf32>
    %c7 = arith.constant 7 : index
    %c0_59 = arith.constant 0 : index
    %81 = vector.load %arg10[%c7, %c0_59] : memref<432x128xbf16, #tpu.memory_space<vmem>>, vector<384x128xbf16>
    %c2_60 = arith.constant 2 : index
    %c0_61 = arith.constant 0 : index
    %c0_62 = arith.constant 0 : index
    %82 = vector.load %arg5[%c2_60, %c0_61, %c0_62] : memref<9x128x128xbf16, #tpu.memory_space<vmem>>, vector<1x128x128xbf16>
    %83 = vector.shape_cast %82 : vector<1x128x128xbf16> to vector<128x128xbf16>
    %cst_63 = arith.constant dense<0.000000e+00> : vector<384x128xf32>
    %84 = tpu.matmul %81, %83, %cst_63 {dimension_numbers = #tpu.dot_dimension_numbers<[1], [0], [0], [1], [0, 0, 1, 1], [], []>} : vector<384x128xbf16>, vector<128x128xbf16>, vector<384x128xf32> -> vector<384x128xf32>
    %85 = arith.addf %80, %84 : vector<384x128xf32>
    %c23 = arith.constant 23 : index
    %c0_64 = arith.constant 0 : index
    %86 = vector.load %arg10[%c23, %c0_64] : memref<432x128xbf16, #tpu.memory_space<vmem>>, vector<384x128xbf16>
    %c3 = arith.constant 3 : index
    %c0_65 = arith.constant 0 : index
    %c0_66 = arith.constant 0 : index
    %87 = vector.load %arg5[%c3, %c0_65, %c0_66] : memref<9x128x128xbf16, #tpu.memory_space<vmem>>, vector<1x128x128xbf16>
    %88 = vector.shape_cast %87 : vector<1x128x128xbf16> to vector<128x128xbf16>
    %cst_67 = arith.constant dense<0.000000e+00> : vector<384x128xf32>
    %89 = tpu.matmul %86, %88, %cst_67 {dimension_numbers = #tpu.dot_dimension_numbers<[1], [0], [0], [1], [0, 0, 1, 1], [], []>} : vector<384x128xbf16>, vector<128x128xbf16>, vector<384x128xf32> -> vector<384x128xf32>
    %90 = arith.addf %85, %89 : vector<384x128xf32>
    %c24_68 = arith.constant 24 : index
    %c0_69 = arith.constant 0 : index
    %91 = vector.load %arg10[%c24_68, %c0_69] : memref<432x128xbf16, #tpu.memory_space<vmem>>, vector<384x128xbf16>
    %c4 = arith.constant 4 : index
    %c0_70 = arith.constant 0 : index
    %c0_71 = arith.constant 0 : index
    %92 = vector.load %arg5[%c4, %c0_70, %c0_71] : memref<9x128x128xbf16, #tpu.memory_space<vmem>>, vector<1x128x128xbf16>
    %93 = vector.shape_cast %92 : vector<1x128x128xbf16> to vector<128x128xbf16>
    %cst_72 = arith.constant dense<0.000000e+00> : vector<384x128xf32>
    %94 = tpu.matmul %91, %93, %cst_72 {dimension_numbers = #tpu.dot_dimension_numbers<[1], [0], [0], [1], [0, 0, 1, 1], [], []>} : vector<384x128xbf16>, vector<128x128xbf16>, vector<384x128xf32> -> vector<384x128xf32>
    %95 = arith.addf %90, %94 : vector<384x128xf32>
    %c25 = arith.constant 25 : index
    %c0_73 = arith.constant 0 : index
    %96 = vector.load %arg10[%c25, %c0_73] : memref<432x128xbf16, #tpu.memory_space<vmem>>, vector<384x128xbf16>
    %c5_74 = arith.constant 5 : index
    %c0_75 = arith.constant 0 : index
    %c0_76 = arith.constant 0 : index
    %97 = vector.load %arg5[%c5_74, %c0_75, %c0_76] : memref<9x128x128xbf16, #tpu.memory_space<vmem>>, vector<1x128x128xbf16>
    %98 = vector.shape_cast %97 : vector<1x128x128xbf16> to vector<128x128xbf16>
    %cst_77 = arith.constant dense<0.000000e+00> : vector<384x128xf32>
    %99 = tpu.matmul %96, %98, %cst_77 {dimension_numbers = #tpu.dot_dimension_numbers<[1], [0], [0], [1], [0, 0, 1, 1], [], []>} : vector<384x128xbf16>, vector<128x128xbf16>, vector<384x128xf32> -> vector<384x128xf32>
    %100 = arith.addf %95, %99 : vector<384x128xf32>
    %c41 = arith.constant 41 : index
    %c0_78 = arith.constant 0 : index
    %101 = vector.load %arg10[%c41, %c0_78] : memref<432x128xbf16, #tpu.memory_space<vmem>>, vector<384x128xbf16>
    %c6_79 = arith.constant 6 : index
    %c0_80 = arith.constant 0 : index
    %c0_81 = arith.constant 0 : index
    %102 = vector.load %arg5[%c6_79, %c0_80, %c0_81] : memref<9x128x128xbf16, #tpu.memory_space<vmem>>, vector<1x128x128xbf16>
    %103 = vector.shape_cast %102 : vector<1x128x128xbf16> to vector<128x128xbf16>
    %cst_82 = arith.constant dense<0.000000e+00> : vector<384x128xf32>
    %104 = tpu.matmul %101, %103, %cst_82 {dimension_numbers = #tpu.dot_dimension_numbers<[1], [0], [0], [1], [0, 0, 1, 1], [], []>} : vector<384x128xbf16>, vector<128x128xbf16>, vector<384x128xf32> -> vector<384x128xf32>
    %105 = arith.addf %100, %104 : vector<384x128xf32>
    %c42 = arith.constant 42 : index
    %c0_83 = arith.constant 0 : index
    %106 = vector.load %arg10[%c42, %c0_83] : memref<432x128xbf16, #tpu.memory_space<vmem>>, vector<384x128xbf16>
    %c7_84 = arith.constant 7 : index
    %c0_85 = arith.constant 0 : index
    %c0_86 = arith.constant 0 : index
    %107 = vector.load %arg5[%c7_84, %c0_85, %c0_86] : memref<9x128x128xbf16, #tpu.memory_space<vmem>>, vector<1x128x128xbf16>
    %108 = vector.shape_cast %107 : vector<1x128x128xbf16> to vector<128x128xbf16>
    %cst_87 = arith.constant dense<0.000000e+00> : vector<384x128xf32>
    %109 = tpu.matmul %106, %108, %cst_87 {dimension_numbers = #tpu.dot_dimension_numbers<[1], [0], [0], [1], [0, 0, 1, 1], [], []>} : vector<384x128xbf16>, vector<128x128xbf16>, vector<384x128xf32> -> vector<384x128xf32>
    %110 = arith.addf %105, %109 : vector<384x128xf32>
    %c43 = arith.constant 43 : index
    %c0_88 = arith.constant 0 : index
    %111 = vector.load %arg10[%c43, %c0_88] : memref<432x128xbf16, #tpu.memory_space<vmem>>, vector<384x128xbf16>
    %c8_89 = arith.constant 8 : index
    %c0_90 = arith.constant 0 : index
    %c0_91 = arith.constant 0 : index
    %112 = vector.load %arg5[%c8_89, %c0_90, %c0_91] : memref<9x128x128xbf16, #tpu.memory_space<vmem>>, vector<1x128x128xbf16>
    %113 = vector.shape_cast %112 : vector<1x128x128xbf16> to vector<128x128xbf16>
    %cst_92 = arith.constant dense<0.000000e+00> : vector<384x128xf32>
    %114 = tpu.matmul %111, %113, %cst_92 {dimension_numbers = #tpu.dot_dimension_numbers<[1], [0], [0], [1], [0, 0, 1, 1], [], []>} : vector<384x128xbf16>, vector<128x128xbf16>, vector<384x128xf32> -> vector<384x128xf32>
    %115 = arith.addf %110, %114 : vector<384x128xf32>
    %c0_93 = arith.constant 0 : index
    %c0_94 = arith.constant 0 : index
    %116 = vector.load %arg6[%c0_93, %c0_94] : memref<1x128xf32, #tpu.memory_space<vmem>>, vector<1x128xf32>
    %117 = vector.broadcast %116 : vector<1x128xf32> to vector<384x128xf32>
    %118 = arith.mulf %115, %117 : vector<384x128xf32>
    %c0_95 = arith.constant 0 : index
    %c0_96 = arith.constant 0 : index
    %119 = vector.load %arg7[%c0_95, %c0_96] : memref<1x128xf32, #tpu.memory_space<vmem>>, vector<1x128xf32>
    %120 = vector.broadcast %119 : vector<1x128xf32> to vector<384x128xf32>
    %121 = arith.addf %118, %120 : vector<384x128xf32>
    %cst_97 = arith.constant 0.000000e+00 : f32
    %122 = vector.broadcast %cst_97 : f32 to vector<384x128xf32>
    %123 = arith.maximumf %121, %122 : vector<384x128xf32>
    %124 = tpu.transpose %123, [1, 0] : vector<384x128xf32> -> vector<128x384xf32>
    %125 = vector.extract_strided_slice %124 {offsets = [0, 0], sizes = [8, 384], strides = [1, 1]} : vector<128x384xf32> to vector<8x384xf32>
    %c0_98 = arith.constant 0 : index
    %c0_99 = arith.constant 0 : index
    %c0_100 = arith.constant 0 : index
    %126 = vector.load %arg8[%c0_98, %c0_99, %c0_100] : memref<1x8x384xf32, #tpu.memory_space<vmem>>, vector<1x8x384xf32>
    %127 = vector.shape_cast %126 : vector<1x8x384xf32> to vector<8x384xf32>
    %128 = vector.shape_cast %125 : vector<8x384xf32> to vector<1x8x384xf32>
    tpu.vector_store %arg8[%c0_98, %c0_99, %c0_100], %128 {strides = array<i32>} : memref<1x8x384xf32, #tpu.memory_space<vmem>>, vector<1x8x384xf32>,
    return
  }
  func.func @transform_0(%arg0: i32) -> (i32, i32, i32) {
    %c0_i32 = arith.constant 0 : i32
    %c0_i32_0 = arith.constant 0 : i32
    %c0_i32_1 = arith.constant 0 : i32
    return %arg0, %c0_i32, %c0_i32_0 : i32, i32, i32
  }
  func.func @transform_1(%arg0: i32) -> (i32, i32) {
    %c0_i32 = arith.constant 0 : i32
    %c0_i32_0 = arith.constant 0 : i32
    %c0_i32_1 = arith.constant 0 : i32
    return %c0_i32, %c0_i32_0 : i32, i32
  }
  func.func @transform_2(%arg0: i32) -> (i32, i32) {
    %c0_i32 = arith.constant 0 : i32
    %c0_i32_0 = arith.constant 0 : i32
    %c0_i32_1 = arith.constant 0 : i32
    return %c0_i32, %c0_i32_0 : i32, i32
  }
  func.func @transform_3(%arg0: i32) -> (i32, i32) {
    %c0_i32 = arith.constant 0 : i32
    %c0_i32_0 = arith.constant 0 : i32
    %c0_i32_1 = arith.constant 0 : i32
    return %c0_i32, %c0_i32_0 : i32, i32
  }
  func.func @transform_4(%arg0: i32) -> (i32, i32, i32) {
    %c0_i32 = arith.constant 0 : i32
    %c0_i32_0 = arith.constant 0 : i32
    %c0_i32_1 = arith.constant 0 : i32
    %c0_i32_2 = arith.constant 0 : i32
    return %c0_i32, %c0_i32_0, %c0_i32_1 : i32, i32, i32
  }
  func.func @transform_5(%arg0: i32) -> (i32, i32) {
    %c0_i32 = arith.constant 0 : i32
    %c0_i32_0 = arith.constant 0 : i32
    %c0_i32_1 = arith.constant 0 : i32
    return %c0_i32, %c0_i32_0 : i32, i32
  }
  func.func @transform_6(%arg0: i32) -> (i32, i32) {
    %c0_i32 = arith.constant 0 : i32
    %c0_i32_0 = arith.constant 0 : i32
    %c0_i32_1 = arith.constant 0 : i32
    return %c0_i32, %c0_i32_0 : i32, i32
  }
  func.func @transform_7(%arg0: i32) -> (i32, i32, i32) {
    %c0_i32 = arith.constant 0 : i32
    %c0_i32_0 = arith.constant 0 : i32
    %c0_i32_1 = arith.constant 0 : i32
    return %arg0, %c0_i32, %c0_i32_0 : i32, i32, i32
  }
}

</mosaic_0001>

<llo_original>
// kernel: up_forward.1
$region0: #{up_forward.1}
  #allocation0 [shape = 'u32[]', space=smem, size = 0x4, offset = 0x4, fixed_abs, tag = 'smem constant byte address 0x4 - core index']
  #allocation1 [shape = 'u32[144,128]{1,0:T(1,128)}', space=vmem, size = 0x12000, scoped, tag = 'internal scratch']
  #allocation2 [shape = 'bf16[384,72]{1,0:T(8,128)(2,1)}', space=vmem, size = 0x18000, scoped, tag = 'scratch operand']
  #allocation3 [shape = 'bf16[432,128]{1,0:T(8,128)(2,1)}', space=vmem, size = 0x1b000, scoped, tag = 'scratch operand']
  %s0 = inlined_call_operand.vmem [shape: bf16[2,424,8], index: 0, kind: input, shape index: {}]
  %s1 = inlined_call_operand.vmem [shape: bf16[72,128], index: 1, kind: input, shape index: {}]
  %s2 = inlined_call_operand.vmem [shape: f32[1,128], index: 2, kind: input, shape index: {}]
  %s3 = inlined_call_operand.vmem [shape: f32[1,128], index: 3, kind: input, shape index: {}]
  %s4 = inlined_call_operand.vmem [shape: bf16[9,128,128], index: 4, kind: input, shape index: {}]
  %s5 = inlined_call_operand.vmem [shape: f32[1,128], index: 5, kind: input, shape index: {}]
  %s6 = inlined_call_operand.vmem [shape: f32[1,128], index: 6, kind: input, shape index: {}]
  %s7 = inlined_call_operand.vmem [shape: f32[2,8,384], index: 7, kind: output, shape index: {}]
  %s8 = sld [smem:[#allocation0]]
  $region61: #{up_forward.1} parent=0
    _
  %s10 = ssub.s32 1, %s8
  %s11 = scalar_select 0, %s10, %s8
  loop: start=0, step=1, limit=4
  $region2: #{up_forward.1} parent=0 // loop_pre_header
    _
  $region3: #{up_forward.1} parent=0 // loop_header
    %s13 = sphi 0, %s17
    %p14 = scmp.ge.s32.totalorder %s13, 4
    %s23 = sphi 0, %s25
    %s26 = sphi 0, %s23
    %s27 = sphi 0, %s26
    %s43 = sphi 0, %s27
    %s47 = sphi 0, %s47
    %s49 = sphi 0, %s47
    %s50 = sphi 0, %s49
    %s64 = sphi 0, %s50
    %s68 = sphi 0, %s68
    %s70 = sphi 0, %s68
    %s71 = sphi 0, %s70
    %s85 = sphi 0, %s71
    %s89 = sphi 0, %s89
    %s91 = sphi 0, %s89
    %s92 = sphi 0, %s91
    %s106 = sphi 0, %s92
    %s110 = sphi 0, %s110
    %s112 = sphi 0, %s110
    %s113 = sphi 0, %s112
    %s127 = sphi 0, %s113
    %s131 = sphi 0, %s131
    %s133 = sphi 0, %s131
    %s134 = sphi 0, %s133
    %s148 = sphi 0, %s134
    %s152 = sphi 0, %s152
    %s154 = sphi 0, %s152
    %s155 = sphi 0, %s154
    %s169 = sphi 0, %s155
    %s175 = sphi 0, %s177
    %s178 = sphi 0, %s175
    %s179 = sphi 0, %s178
    %s195 = sphi 0, %s179
  $region4: #{up_forward.1} parent=0 // loop_header_branch
    %16 = sbr.rel (%p14) target = $region8
  $region5: #{up_forward.1} parent=0 // loop_body
    %s18 = ssub.s32 %s13, 1
    %s19 = ssub.s32 %s13, 2
    %s20 = sadd.s32 %s13, 1
    %s21 = ssub.s32 %s13, %s20
    %p22 = scmp.eq.s32.totalorder %s21, 0
    %s24 = sadd.s32 %s23, 1
    %s25 = scalar_select %p22, %s23, %s24
    %p28 = pneg %p22
    %p29 = scmp.eq.s32.totalorder %s13, 1
    %p30 = por %p28, %p29
    %p31 = scmp.ne.s32.totalorder %s23, %s26
    %p32 = scmp.eq.s32.totalorder %s13, 0
    %p33 = por %p31, %p32
    %p34 = scmp.ne.s32.totalorder %s23, %s26
    %p35 = scmp.eq.s32.totalorder %s18, 1
    %p36 = por %p34, %p35
    %p37 = scmp.ne.s32.totalorder %s26, %s27
    %p38 = scmp.eq.s32.totalorder %s18, 0
    %p39 = por %p37, %p38
    %p40 = scmp.ne.s32.totalorder %s26, %s27
    %p41 = scmp.eq.s32.totalorder %s19, 1
    %p42 = por %p40, %p41
    %p44 = scmp.ne.s32.totalorder %s27, %s43
    %p45 = scmp.eq.s32.totalorder %s19, 0
    %p46 = por %p44, %p45
    %s48 = sadd.s32 %s47, 1
    %p51 = scmp.eq.s32.totalorder %s13, 1
    %p52 = scmp.ne.s32.totalorder %s47, %s49
    %p53 = scmp.eq.s32.totalorder %s13, 0
    %p54 = por %p52, %p53
    %p55 = scmp.ne.s32.totalorder %s47, %s49
    %p56 = scmp.eq.s32.totalorder %s18, 1
    %p57 = por %p55, %p56
    %p58 = scmp.ne.s32.totalorder %s49, %s50
    %p59 = scmp.eq.s32.totalorder %s18, 0
    %p60 = por %p58, %p59
    %p61 = scmp.ne.s32.totalorder %s49, %s50
    %p62 = scmp.eq.s32.totalorder %s19, 1
    %p63 = por %p61, %p62
    %p65 = scmp.ne.s32.totalorder %s50, %s64
    %p66 = scmp.eq.s32.totalorder %s19, 0
    %p67 = por %p65, %p66
    %s69 = sadd.s32 %s68, 1
    %p72 = scmp.eq.s32.totalorder %s13, 1
    %p73 = scmp.ne.s32.totalorder %s68, %s70
    %p74 = scmp.eq.s32.totalorder %s13, 0
    %p75 = por %p73, %p74
    %p76 = scmp.ne.s32.totalorder %s68, %s70
    %p77 = scmp.eq.s32.totalorder %s18, 1
    %p78 = por %p76, %p77
    %p79 = scmp.ne.s32.totalorder %s70, %s71
    %p80 = scmp.eq.s32.totalorder %s18, 0
    %p81 = por %p79, %p80
    %p82 = scmp.ne.s32.totalorder %s70, %s71
    %p83 = scmp.eq.s32.totalorder %s19, 1
    %p84 = por %p82, %p83
    %p86 = scmp.ne.s32.totalorder %s71, %s85
    %p87 = scmp.eq.s32.totalorder %s19, 0
    %p88 = por %p86, %p87
    %s90 = sadd.s32 %s89, 1
    %p93 = scmp.eq.s32.totalorder %s13, 1
    %p94 = scmp.ne.s32.totalorder %s89, %s91
    %p95 = scmp.eq.s32.totalorder %s13, 0
    %p96 = por %p94, %p95
    %p97 = scmp.ne.s32.totalorder %s89, %s91
    %p98 = scmp.eq.s32.totalorder %s18, 1
    %p99 = por %p97, %p98
    %p100 = scmp.ne.s32.totalorder %s91, %s92
    %p101 = scmp.eq.s32.totalorder %s18, 0
    %p102 = por %p100, %p101
    %p103 = scmp.ne.s32.totalorder %s91, %s92
    %p104 = scmp.eq.s32.totalorder %s19, 1
    %p105 = por %p103, %p104
    %p107 = scmp.ne.s32.totalorder %s92, %s106
    %p108 = scmp.eq.s32.totalorder %s19, 0
    %p109 = por %p107, %p108
    %s111 = sadd.s32 %s110, 1
    %p114 = scmp.eq.s32.totalorder %s13, 1
    %p115 = scmp.ne.s32.totalorder %s110, %s112
    %p116 = scmp.eq.s32.totalorder %s13, 0
    %p117 = por %p115, %p116
    %p118 = scmp.ne.s32.totalorder %s110, %s112
    %p119 = scmp.eq.s32.totalorder %s18, 1
    %p120 = por %p118, %p119
    %p121 = scmp.ne.s32.totalorder %s112, %s113
    %p122 = scmp.eq.s32.totalorder %s18, 0
    %p123 = por %p121, %p122
    %p124 = scmp.ne.s32.totalorder %s112, %s113
    %p125 = scmp.eq.s32.totalorder %s19, 1
    %p126 = por %p124, %p125
    %p128 = scmp.ne.s32.totalorder %s113, %s127
    %p129 = scmp.eq.s32.totalorder %s19, 0
    %p130 = por %p128, %p129
    %s132 = sadd.s32 %s131, 1
    %p135 = scmp.eq.s32.totalorder %s13, 1
    %p136 = scmp.ne.s32.totalorder %s131, %s133
    %p137 = scmp.eq.s32.totalorder %s13, 0
    %p138 = por %p136, %p137
    %p139 = scmp.ne.s32.totalorder %s131, %s133
    %p140 = scmp.eq.s32.totalorder %s18, 1
    %p141 = por %p139, %p140
    %p142 = scmp.ne.s32.totalorder %s133, %s134
    %p143 = scmp.eq.s32.totalorder %s18, 0
    %p144 = por %p142, %p143
    %p145 = scmp.ne.s32.totalorder %s133, %s134
    %p146 = scmp.eq.s32.totalorder %s19, 1
    %p147 = por %p145, %p146
    %p149 = scmp.ne.s32.totalorder %s134, %s148
    %p150 = scmp.eq.s32.totalorder %s19, 0
    %p151 = por %p149, %p150
    %s153 = sadd.s32 %s152, 1
    %p156 = scmp.eq.s32.totalorder %s13, 1
    %p157 = scmp.ne.s32.totalorder %s152, %s154
    %p158 = scmp.eq.s32.totalorder %s13, 0
    %p159 = por %p157, %p158
    %p160 = scmp.ne.s32.totalorder %s152, %s154
    %p161 = scmp.eq.s32.totalorder %s18, 1
    %p162 = por %p160, %p161
    %p163 = scmp.ne.s32.totalorder %s154, %s155
    %p164 = scmp.eq.s32.totalorder %s18, 0
    %p165 = por %p163, %p164
    %p166 = scmp.ne.s32.totalorder %s154, %s155
    %p167 = scmp.eq.s32.totalorder %s19, 1
    %p168 = por %p166, %p167
    %p170 = scmp.ne.s32.totalorder %s155, %s169
    %p171 = scmp.eq.s32.totalorder %s19, 0
    %p172 = por %p170, %p171
    %s173 = ssub.s32 %s13, %s20
    %p174 = scmp.eq.s32.totalorder %s173, 0
    %s176 = sadd.s32 %s175, 1
    %s177 = scalar_select %p174, %s175, %s176
    %p180 = pneg %p174
    %p181 = scmp.eq.s32.totalorder %s13, 1
    %p182 = por %p180, %p181
    %p183 = scmp.ne.s32.totalorder %s175, %s178
    %p184 = scmp.eq.s32.totalorder %s13, 0
    %p185 = por %p183, %p184
    %p186 = scmp.ne.s32.totalorder %s175, %s178
    %p187 = scmp.eq.s32.totalorder %s18, 1
    %p188 = por %p186, %p187
    %p189 = scmp.ne.s32.totalorder %s178, %s179
    %p190 = scmp.eq.s32.totalorder %s18, 0
    %p191 = por %p189, %p190
    %p192 = scmp.ne.s32.totalorder %s178, %s179
    %p193 = scmp.eq.s32.totalorder %s19, 1
    %p194 = por %p192, %p193
    %p196 = scmp.ne.s32.totalorder %s179, %s195
    %p197 = scmp.eq.s32.totalorder %s19, 0
    %p198 = por %p196, %p197
    %p199 = scmp.le.s32.totalorder 1, %s13
    %p200 = scmp.lt.s32.totalorder %s13, 3
    %p201 = pnand %p199, %p200
    %p202 = pneg %p201
    // Predicated region
    $region9: #{up_forward.1} parent=5 // pred_check
      _
    $region10: #{up_forward.1} parent=5 // pred_check_branch
      %204 = sbr.rel (%p201) target = $region12
    $region11: #{up_forward.1} parent=5 // pred_region
      %s205 = ssub.s32 %s13, 1
      // Predicated region
      $region13: #{up_forward.1} parent=11 // pred_check
        %p206 = pneg %p60
      $region14: #{up_forward.1} parent=11 // pred_check_branch
        %208 = sbr.rel (%p206) target = $region16
      $region15: #{up_forward.1} parent=11 // pred_region
        _
      $region16: #{up_forward.1} parent=11 // pred_fallthru
        _
      // Predicated region
      $region17: #{up_forward.1} parent=11 // pred_check
        %p209 = pneg %p81
      $region18: #{up_forward.1} parent=11 // pred_check_branch
        %211 = sbr.rel (%p209) target = $region20
      $region19: #{up_forward.1} parent=11 // pred_region
        _
      $region20: #{up_forward.1} parent=11 // pred_fallthru
        _
      // Predicated region
      $region21: #{up_forward.1} parent=11 // pred_check
        %p212 = pneg %p102
      $region22: #{up_forward.1} parent=11 // pred_check_branch
        %214 = sbr.rel (%p212) target = $region24
      $region23: #{up_forward.1} parent=11 // pred_region
        _
      $region24: #{up_forward.1} parent=11 // pred_fallthru
        _
      // Predicated region
      $region25: #{up_forward.1} parent=11 // pred_check
        %p215 = pneg %p123
      $region26: #{up_forward.1} parent=11 // pred_check_branch
        %217 = sbr.rel (%p215) target = $region28
      $region27: #{up_forward.1} parent=11 // pred_region
        _
      $region28: #{up_forward.1} parent=11 // pred_fallthru
        _
      // Predicated region
      $region29: #{up_forward.1} parent=11 // pred_check
        %p218 = pneg %p144
      $region30: #{up_forward.1} parent=11 // pred_check_branch
        %220 = sbr.rel (%p218) target = $region32
      $region31: #{up_forward.1} parent=11 // pred_region
        _
      $region32: #{up_forward.1} parent=11 // pred_fallthru
        _
      // Predicated region
      $region33: #{up_forward.1} parent=11 // pred_check
        %p221 = pneg %p165
      $region34: #{up_forward.1} parent=11 // pred_check_branch
        %223 = sbr.rel (%p221) target = $region36
      $region35: #{up_forward.1} parent=11 // pred_region
        _
      $region36: #{up_forward.1} parent=11 // pred_fallthru
        _
    $region12: #{up_forward.1} parent=5 // pred_fallthru
      _
    %p224 = scmp.lt.s32.totalorder %s13, 2
    // Predicated region
    $region37: #{up_forward.1} parent=5 // pred_check
      %p225 = pneg %p224
    $region38: #{up_forward.1} parent=5 // pred_check_branch
      %227 = sbr.rel (%p225) target = $region40
    $region39: #{up_forward.1} parent=5 // pred_region
      // Predicated region
      $region41: #{up_forward.1} parent=39 // pred_check
        %p228 = pneg %p33
      $region42: #{up_forward.1} parent=39 // pred_check_branch
        %230 = sbr.rel (%p228) target = $region44
      $region43: #{up_forward.1} parent=39 // pred_region
        %p231 = scmp.lt.s32.totalorder %s13, 1
        %s232 = scalar_select %p231, %s13, 1
        %s233 = smul.addr %s232, 53
        %s234 = smul.addr %s233, 4
        %s235 = scalar_lea.vmem %s0, %s234
      $region44: #{up_forward.1} parent=39 // pred_fallthru
        _
    $region40: #{up_forward.1} parent=5 // pred_fallthru
      _
    %p236 = scmp.le.s32.totalorder 1, %s13
    %p237 = scmp.lt.s32.totalorder %s13, 3
    %p238 = pnand %p236, %p237
    %p239 = pneg %p238
    // Predicated region
    $region45: #{up_forward.1} parent=5 // pred_check
      _
    $region46: #{up_forward.1} parent=5 // pred_check_branch
      %241 = sbr.rel (%p238) target = $region48
    $region47: #{up_forward.1} parent=5 // pred_region
      %s242 = ssub.s32 %s13, 1
      %p243 = scmp.lt.s32.totalorder %s18, 1
      %s244 = scalar_select %p243, %s18, 1
      %s245 = smul.addr %s244, 53
      %s246 = smul.addr %s245, 4
      %s247 = scalar_lea.vmem %s0, %s246
      %p248 = pneg %p39
      %p249 = pneg %p36
      %p250 = pneg %p60
      %p251 = pneg %p57
      %p252 = pneg %p81
      %p253 = pneg %p78
      %p254 = pneg %p102
      %p255 = pneg %p99
      %p256 = pneg %p123
      %p257 = pneg %p120
      %p258 = pneg %p144
      %p259 = pneg %p141
      %p260 = pneg %p165
      %p261 = pneg %p162
      %p262 = pneg %p191
      %p263 = pneg %p188
      %p264 = scmp.lt.s32.totalorder %s18, 1
      %s265 = scalar_select %p264, %s18, 1
      %s266 = smul.addr %s265, 3
      %s267 = smul.addr %s266, 8
      %s268 = scalar_lea.vmem %s7, %s267
      %p269 = scmp.lt.s32.totalorder %s18, 1
      %s270 = scalar_select %p269, %s18, 1
      %s271 = smul.addr %s270, 53
      %s272 = smul.addr %s271, 4
      %s273 = scalar_lea.vmem %s0, %s272
      %p274 = scmp.lt.s32.totalorder %s18, 1
      %s275 = scalar_select %p274, %s18, 1
      %s276 = smul.addr %s275, 3
      %s277 = smul.addr %s276, 8
      %s278 = scalar_lea.vmem %s7, %s277
      %280 = vst [vmem:[#allocation3] sm:$0xf] 0
      %281 = vst [vmem:[#allocation3 + $0x4] sm:$0xf] 0
      %282 = vst [vmem:[#allocation3 + $0x8] sm:$0xf] 0
      %283 = vst [vmem:[#allocation3 + $0xcc] sm:$0xf] 0
      %284 = vst [vmem:[#allocation3 + $0xd0] sm:$0xf] 0
      %285 = vst [vmem:[#allocation3 + $0xd4] sm:$0xf] 0
      %v286 = vld [vmem:[%s273] sm:$0xf]
      %v287 = vld [vmem:[%s273 + $0x4] sm:$0xf]
      %v288 = vld [vmem:[%s273 + $0x8] sm:$0xf]
      %v289 = vld [vmem:[%s273 + $0xc] sm:$0xf]
      %v290 = vld [vmem:[%s273 + $0x10] sm:$0xf]
      %v291 = vld [vmem:[%s273 + $0x14] sm:$0xf]
      %v292 = vld [vmem:[%s273 + $0x18] sm:$0xf]
      %v293 = vld [vmem:[%s273 + $0x1c] sm:$0xf]
      %v294 = vld [vmem:[%s273 + $0x20] sm:$0xf]
      %v295 = vld [vmem:[%s273 + $0x24] sm:$0xf]
      %v296 = vld [vmem:[%s273 + $0x28] sm:$0xf]
      %v297 = vld [vmem:[%s273 + $0x2c] sm:$0xf]
      %v298 = vld [vmem:[%s273 + $0x30] sm:$0xf]
      %v299 = vld [vmem:[%s273 + $0x34] sm:$0xf]
      %v300 = vld [vmem:[%s273 + $0x38] sm:$0xf]
      %v301 = vld [vmem:[%s273 + $0x3c] sm:$0xf]
      %v302 = vld [vmem:[%s273 + $0x40] sm:$0xf]
      %v303 = vld [vmem:[%s273 + $0x44] sm:$0xf]
      %v304 = vld [vmem:[%s273 + $0x48] sm:$0xf]
      %v305 = vld [vmem:[%s273 + $0x4c] sm:$0xf]
      %v306 = vld [vmem:[%s273 + $0x50] sm:$0xf]
      %v307 = vld [vmem:[%s273 + $0x54] sm:$0xf]
      %v308 = vld [vmem:[%s273 + $0x58] sm:$0xf]
      %v309 = vld [vmem:[%s273 + $0x5c] sm:$0xf]
      %v310 = vld [vmem:[%s273 + $0x60] sm:$0xf]
      %v311 = vld [vmem:[%s273 + $0x64] sm:$0xf]
      %v312 = vld [vmem:[%s273 + $0x68] sm:$0xf]
      %v313 = vld [vmem:[%s273 + $0x6c] sm:$0xf]
      %v314 = vld [vmem:[%s273 + $0x70] sm:$0xf]
      %v315 = vld [vmem:[%s273 + $0x74] sm:$0xf]
      %v316 = vld [vmem:[%s273 + $0x78] sm:$0xf]
      %v317 = vld [vmem:[%s273 + $0x7c] sm:$0xf]
      %v318 = vld [vmem:[%s273 + $0x80] sm:$0xf]
      %v319 = vld [vmem:[%s273 + $0x84] sm:$0xf]
      %v320 = vld [vmem:[%s273 + $0x88] sm:$0xf]
      %v321 = vld [vmem:[%s273 + $0x8c] sm:$0xf]
      %v322 = vld [vmem:[%s273 + $0x90] sm:$0xf]
      %v323 = vld [vmem:[%s273 + $0x94] sm:$0xf]
      %v324 = vld [vmem:[%s273 + $0x98] sm:$0xf]
      %v325 = vld [vmem:[%s273 + $0x9c] sm:$0xf]
      %v326 = vld [vmem:[%s273 + $0xa0] sm:$0xf]
      %v327 = vld [vmem:[%s273 + $0xa4] sm:$0xf]
      %v328 = vld [vmem:[%s273 + $0xa8] sm:$0xf]
      %v329 = vld [vmem:[%s273 + $0xac] sm:$0xf]
      %v330 = vld [vmem:[%s273 + $0xb0] sm:$0xf]
      %v331 = vld [vmem:[%s273 + $0xb4] sm:$0xf]
      %v332 = vld [vmem:[%s273 + $0xb8] sm:$0xf]
      %v333 = vld [vmem:[%s273 + $0xbc] sm:$0xf]
      %vm334 = vcmask 60416
      %335 = vst.msk [vmem:[#allocation2] sm:$0xf] %vm334, %v286
      %336 = vst.msk [vmem:[#allocation2 + $0x4] sm:$0xf] %vm334, %v287
      %337 = vst.msk [vmem:[#allocation2 + $0x8] sm:$0xf] %vm334, %v288
      %338 = vst.msk [vmem:[#allocation2 + $0xc] sm:$0xf] %vm334, %v289
      %339 = vst.msk [vmem:[#allocation2 + $0x10] sm:$0xf] %vm334, %v290
      %340 = vst.msk [vmem:[#allocation2 + $0x14] sm:$0xf] %vm334, %v291
      %341 = vst.msk [vmem:[#allocation2 + $0x18] sm:$0xf] %vm334, %v292
      %342 = vst.msk [vmem:[#allocation2 + $0x1c] sm:$0xf] %vm334, %v293
      %343 = vst.msk [vmem:[#allocation2 + $0x20] sm:$0xf] %vm334, %v294
      %344 = vst.msk [vmem:[#allocation2 + $0x24] sm:$0xf] %vm334, %v295
      %345 = vst.msk [vmem:[#allocation2 + $0x28] sm:$0xf] %vm334, %v296
      %346 = vst.msk [vmem:[#allocation2 + $0x2c] sm:$0xf] %vm334, %v297
      %347 = vst.msk [vmem:[#allocation2 + $0x30] sm:$0xf] %vm334, %v298
      %348 = vst.msk [vmem:[#allocation2 + $0x34] sm:$0xf] %vm334, %v299
      %349 = vst.msk [vmem:[#allocation2 + $0x38] sm:$0xf] %vm334, %v300
      %350 = vst.msk [vmem:[#allocation2 + $0x3c] sm:$0xf] %vm334, %v301
      %351 = vst.msk [vmem:[#allocation2 + $0x40] sm:$0xf] %vm334, %v302
      %352 = vst.msk [vmem:[#allocation2 + $0x44] sm:$0xf] %vm334, %v303
      %353 = vst.msk [vmem:[#allocation2 + $0x48] sm:$0xf] %vm334, %v304
      %354 = vst.msk [vmem:[#allocation2 + $0x4c] sm:$0xf] %vm334, %v305
      %355 = vst.msk [vmem:[#allocation2 + $0x50] sm:$0xf] %vm334, %v306
      %356 = vst.msk [vmem:[#allocation2 + $0x54] sm:$0xf] %vm334, %v307
      %357 = vst.msk [vmem:[#allocation2 + $0x58] sm:$0xf] %vm334, %v308
      %358 = vst.msk [vmem:[#allocation2 + $0x5c] sm:$0xf] %vm334, %v309
      %359 = vst.msk [vmem:[#allocation2 + $0x60] sm:$0xf] %vm334, %v310
      %360 = vst.msk [vmem:[#allocation2 + $0x64] sm:$0xf] %vm334, %v311
      %361 = vst.msk [vmem:[#allocation2 + $0x68] sm:$0xf] %vm334, %v312
      %362 = vst.msk [vmem:[#allocation2 + $0x6c] sm:$0xf] %vm334, %v313
      %363 = vst.msk [vmem:[#allocation2 + $0x70] sm:$0xf] %vm334, %v314
      %364 = vst.msk [vmem:[#allocation2 + $0x74] sm:$0xf] %vm334, %v315
      %365 = vst.msk [vmem:[#allocation2 + $0x78] sm:$0xf] %vm334, %v316
      %366 = vst.msk [vmem:[#allocation2 + $0x7c] sm:$0xf] %vm334, %v317
      %367 = vst.msk [vmem:[#allocation2 + $0x80] sm:$0xf] %vm334, %v318
      %368 = vst.msk [vmem:[#allocation2 + $0x84] sm:$0xf] %vm334, %v319
      %369 = vst.msk [vmem:[#allocation2 + $0x88] sm:$0xf] %vm334, %v320
      %370 = vst.msk [vmem:[#allocation2 + $0x8c] sm:$0xf] %vm334, %v321
      %371 = vst.msk [vmem:[#allocation2 + $0x90] sm:$0xf] %vm334, %v322
      %372 = vst.msk [vmem:[#allocation2 + $0x94] sm:$0xf] %vm334, %v323
      %373 = vst.msk [vmem:[#allocation2 + $0x98] sm:$0xf] %vm334, %v324
      %374 = vst.msk [vmem:[#allocation2 + $0x9c] sm:$0xf] %vm334, %v325
      %375 = vst.msk [vmem:[#allocation2 + $0xa0] sm:$0xf] %vm334, %v326
      %376 = vst.msk [vmem:[#allocation2 + $0xa4] sm:$0xf] %vm334, %v327
      %377 = vst.msk [vmem:[#allocation2 + $0xa8] sm:$0xf] %vm334, %v328
      %378 = vst.msk [vmem:[#allocation2 + $0xac] sm:$0xf] %vm334, %v329
      %379 = vst.msk [vmem:[#allocation2 + $0xb0] sm:$0xf] %vm334, %v330
      %380 = vst.msk [vmem:[#allocation2 + $0xb4] sm:$0xf] %vm334, %v331
      %381 = vst.msk [vmem:[#allocation2 + $0xb8] sm:$0xf] %vm334, %v332
      %382 = vst.msk [vmem:[#allocation2 + $0xbc] sm:$0xf] %vm334, %v333
      %v383 = vld [vmem:[%s273] sm:$0xf]
      %v384 = vld [vmem:[%s273 + $0x4] sm:$0xf]
      %v385 = vld [vmem:[%s273 + $0x8] sm:$0xf]
      %v386 = vld [vmem:[%s273 + $0xc] sm:$0xf]
      %v387 = vld [vmem:[%s273 + $0x10] sm:$0xf]
      %v388 = vld [vmem:[%s273 + $0x14] sm:$0xf]
      %v389 = vld [vmem:[%s273 + $0x18] sm:$0xf]
      %v390 = vld [vmem:[%s273 + $0x1c] sm:$0xf]
      %v391 = vld [vmem:[%s273 + $0x20] sm:$0xf]
      %v392 = vld [vmem:[%s273 + $0x24] sm:$0xf]
      %v393 = vld [vmem:[%s273 + $0x28] sm:$0xf]
      %v394 = vld [vmem:[%s273 + $0x2c] sm:$0xf]
      %v395 = vld [vmem:[%s273 + $0x30] sm:$0xf]
      %v396 = vld [vmem:[%s273 + $0x34] sm:$0xf]
      %v397 = vld [vmem:[%s273 + $0x38] sm:$0xf]
      %v398 = vld [vmem:[%s273 + $0x3c] sm:$0xf]
      %v399 = vld [vmem:[%s273 + $0x40] sm:$0xf]
      %v400 = vld [vmem:[%s273 + $0x44] sm:$0xf]
      %v401 = vld [vmem:[%s273 + $0x48] sm:$0xf]
      %v402 = vld [vmem:[%s273 + $0x4c] sm:$0xf]
      %v403 = vld [vmem:[%s273 + $0x50] sm:$0xf]
      %v404 = vld [vmem:[%s273 + $0x54] sm:$0xf]
      %v405 = vld [vmem:[%s273 + $0x58] sm:$0xf]
      %v406 = vld [vmem:[%s273 + $0x5c] sm:$0xf]
      %v407 = vld [vmem:[%s273 + $0x60] sm:$0xf]
      %v408 = vld [vmem:[%s273 + $0x64] sm:$0xf]
      %v409 = vld [vmem:[%s273 + $0x68] sm:$0xf]
      %v410 = vld [vmem:[%s273 + $0x6c] sm:$0xf]
      %v411 = vld [vmem:[%s273 + $0x70] sm:$0xf]
      %v412 = vld [vmem:[%s273 + $0x74] sm:$0xf]
      %v413 = vld [vmem:[%s273 + $0x78] sm:$0xf]
      %v414 = vld [vmem:[%s273 + $0x7c] sm:$0xf]
      %v415 = vld [vmem:[%s273 + $0x80] sm:$0xf]
      %v416 = vld [vmem:[%s273 + $0x84] sm:$0xf]
      %v417 = vld [vmem:[%s273 + $0x88] sm:$0xf]
      %v418 = vld [vmem:[%s273 + $0x8c] sm:$0xf]
      %v419 = vld [vmem:[%s273 + $0x90] sm:$0xf]
      %v420 = vld [vmem:[%s273 + $0x94] sm:$0xf]
      %v421 = vld [vmem:[%s273 + $0x98] sm:$0xf]
      %v422 = vld [vmem:[%s273 + $0x9c] sm:$0xf]
      %v423 = vld [vmem:[%s273 + $0xa0] sm:$0xf]
      %v424 = vld [vmem:[%s273 + $0xa4] sm:$0xf]
      %v425 = vld [vmem:[%s273 + $0xa8] sm:$0xf]
      %v426 = vld [vmem:[%s273 + $0xac] sm:$0xf]
      %v427 = vld [vmem:[%s273 + $0xb0] sm:$0xf]
      %v428 = vld [vmem:[%s273 + $0xb4] sm:$0xf]
      %v429 = vld [vmem:[%s273 + $0xb8] sm:$0xf]
      %v430 = vld [vmem:[%s273 + $0xbc] sm:$0xf]
      %v431 = vld [vmem:[%s273 + $0xc0] sm:$0x1]
      %vm432 = vsmask.f32 3328
      %vm433 = vsmask.f32 7440
      %vm434 = vmor %vm432, %vm433
      %v436 = vshrl.u32 %v383, 16
      %v438 = vrot.slane %v436, 4
      %v439 = vshll.u32 %v383, 16
      %v441 = vrot.slane %v439, 5
      %v442 = vor.u32 %v438, %v441
      %v443 = vrot.slane %v442, 4
      %v445 = vshll.u32 %v384, 16
      %v447 = vrot.slane %v445, 5
      %v448 = vsel %vm434, %v443, %v447
      %v449 = vshrl.u32 %v384, 16
      %v451 = vrot.slane %v449, 4
      %v452 = vor.u32 %v451, %v447
      %v453 = vrot.slane %v452, 4
      %v455 = vshll.u32 %v385, 16
      %v457 = vrot.slane %v455, 5
      %v458 = vsel %vm434, %v453, %v457
      %v459 = vshrl.u32 %v385, 16
      %v461 = vrot.slane %v459, 4
      %v462 = vor.u32 %v461, %v457
      %v463 = vrot.slane %v462, 4
      %v465 = vshll.u32 %v386, 16
      %v467 = vrot.slane %v465, 5
      %v468 = vsel %vm434, %v463, %v467
      %v469 = vshrl.u32 %v386, 16
      %v471 = vrot.slane %v469, 4
      %v472 = vor.u32 %v471, %v467
      %v473 = vrot.slane %v472, 4
      %v475 = vshll.u32 %v387, 16
      %v477 = vrot.slane %v475, 5
      %v478 = vsel %vm434, %v473, %v477
      %v479 = vshrl.u32 %v387, 16
      %v481 = vrot.slane %v479, 4
      %v482 = vor.u32 %v481, %v477
      %v483 = vrot.slane %v482, 4
      %v485 = vshll.u32 %v388, 16
      %v487 = vrot.slane %v485, 5
      %v488 = vsel %vm434, %v483, %v487
      %v489 = vshrl.u32 %v388, 16
      %v491 = vrot.slane %v489, 4
      %v492 = vor.u32 %v491, %v487
      %v493 = vrot.slane %v492, 4
      %v495 = vshll.u32 %v389, 16
      %v497 = vrot.slane %v495, 5
      %v498 = vsel %vm434, %v493, %v497
      %v499 = vshrl.u32 %v389, 16
      %v501 = vrot.slane %v499, 4
      %v502 = vor.u32 %v501, %v497
      %v503 = vrot.slane %v502, 4
      %v505 = vshll.u32 %v390, 16
      %v507 = vrot.slane %v505, 5
      %v508 = vsel %vm434, %v503, %v507
      %v509 = vshrl.u32 %v390, 16
      %v511 = vrot.slane %v509, 4
      %v512 = vor.u32 %v511, %v507
      %v513 = vrot.slane %v512, 4
      %v515 = vshll.u32 %v391, 16
      %v517 = vrot.slane %v515, 5
      %v518 = vsel %vm434, %v513, %v517
      %v519 = vshrl.u32 %v391, 16
      %v521 = vrot.slane %v519, 4
      %v522 = vor.u32 %v521, %v517
      %v523 = vrot.slane %v522, 4
      %v525 = vshll.u32 %v392, 16
      %v527 = vrot.slane %v525, 5
      %v528 = vsel %vm434, %v523, %v527
      %v529 = vshrl.u32 %v392, 16
      %v531 = vrot.slane %v529, 4
      %v532 = vor.u32 %v531, %v527
      %v533 = vrot.slane %v532, 4
      %v535 = vshll.u32 %v393, 16
      %v537 = vrot.slane %v535, 5
      %v538 = vsel %vm434, %v533, %v537
      %v539 = vshrl.u32 %v393, 16
      %v541 = vrot.slane %v539, 4
      %v542 = vor.u32 %v541, %v537
      %v543 = vrot.slane %v542, 4
      %v545 = vshll.u32 %v394, 16
      %v547 = vrot.slane %v545, 5
      %v548 = vsel %vm434, %v543, %v547
      %v549 = vshrl.u32 %v394, 16
      %v551 = vrot.slane %v549, 4
      %v552 = vor.u32 %v551, %v547
      %v553 = vrot.slane %v552, 4
      %v555 = vshll.u32 %v395, 16
      %v557 = vrot.slane %v555, 5
      %v558 = vsel %vm434, %v553, %v557
      %v559 = vshrl.u32 %v395, 16
      %v561 = vrot.slane %v559, 4
      %v562 = vor.u32 %v561, %v557
      %v563 = vrot.slane %v562, 4
      %v565 = vshll.u32 %v396, 16
      %v567 = vrot.slane %v565, 5
      %v568 = vsel %vm434, %v563, %v567
      %v569 = vshrl.u32 %v396, 16
      %v571 = vrot.slane %v569, 4
      %v572 = vor.u32 %v571, %v567
      %v573 = vrot.slane %v572, 4
      %v575 = vshll.u32 %v397, 16
      %v577 = vrot.slane %v575, 5
      %v578 = vsel %vm434, %v573, %v577
      %v579 = vshrl.u32 %v397, 16
      %v581 = vrot.slane %v579, 4
      %v582 = vor.u32 %v581, %v577
      %v583 = vrot.slane %v582, 4
      %v585 = vshll.u32 %v398, 16
      %v587 = vrot.slane %v585, 5
      %v588 = vsel %vm434, %v583, %v587
      %v589 = vshrl.u32 %v398, 16
      %v591 = vrot.slane %v589, 4
      %v592 = vor.u32 %v591, %v587
      %v593 = vrot.slane %v592, 4
      %v595 = vshll.u32 %v399, 16
      %v597 = vrot.slane %v595, 5
      %v598 = vsel %vm434, %v593, %v597
      %v599 = vshrl.u32 %v399, 16
      %v601 = vrot.slane %v599, 4
      %v602 = vor.u32 %v601, %v597
      %v603 = vrot.slane %v602, 4
      %v605 = vshll.u32 %v400, 16
      %v607 = vrot.slane %v605, 5
      %v608 = vsel %vm434, %v603, %v607
      %v609 = vshrl.u32 %v400, 16
      %v611 = vrot.slane %v609, 4
      %v612 = vor.u32 %v611, %v607
      %v613 = vrot.slane %v612, 4
      %v615 = vshll.u32 %v401, 16
      %v617 = vrot.slane %v615, 5
      %v618 = vsel %vm434, %v613, %v617
      %v619 = vshrl.u32 %v401, 16
      %v621 = vrot.slane %v619, 4
      %v622 = vor.u32 %v621, %v617
      %v623 = vrot.slane %v622, 4
      %v625 = vshll.u32 %v402, 16
      %v627 = vrot.slane %v625, 5
      %v628 = vsel %vm434, %v623, %v627
      %v629 = vshrl.u32 %v402, 16
      %v631 = vrot.slane %v629, 4
      %v632 = vor.u32 %v631, %v627
      %v633 = vrot.slane %v632, 4
      %v635 = vshll.u32 %v403, 16
      %v637 = vrot.slane %v635, 5
      %v638 = vsel %vm434, %v633, %v637
      %v639 = vshrl.u32 %v403, 16
      %v641 = vrot.slane %v639, 4
      %v642 = vor.u32 %v641, %v637
      %v643 = vrot.slane %v642, 4
      %v645 = vshll.u32 %v404, 16
      %v647 = vrot.slane %v645, 5
      %v648 = vsel %vm434, %v643, %v647
      %v649 = vshrl.u32 %v404, 16
      %v651 = vrot.slane %v649, 4
      %v652 = vor.u32 %v651, %v647
      %v653 = vrot.slane %v652, 4
      %v655 = vshll.u32 %v405, 16
      %v657 = vrot.slane %v655, 5
      %v658 = vsel %vm434, %v653, %v657
      %v659 = vshrl.u32 %v405, 16
      %v661 = vrot.slane %v659, 4
      %v662 = vor.u32 %v661, %v657
      %v663 = vrot.slane %v662, 4
      %v665 = vshll.u32 %v406, 16
      %v667 = vrot.slane %v665, 5
      %v668 = vsel %vm434, %v663, %v667
      %v669 = vshrl.u32 %v406, 16
      %v671 = vrot.slane %v669, 4
      %v672 = vor.u32 %v671, %v667
      %v673 = vrot.slane %v672, 4
      %v675 = vshll.u32 %v407, 16
      %v677 = vrot.slane %v675, 5
      %v678 = vsel %vm434, %v673, %v677
      %v679 = vshrl.u32 %v407, 16
      %v681 = vrot.slane %v679, 4
      %v682 = vor.u32 %v681, %v677
      %v683 = vrot.slane %v682, 4
      %v685 = vshll.u32 %v408, 16
      %v687 = vrot.slane %v685, 5
      %v688 = vsel %vm434, %v683, %v687
      %v689 = vshrl.u32 %v408, 16
      %v691 = vrot.slane %v689, 4
      %v692 = vor.u32 %v691, %v687
      %v693 = vrot.slane %v692, 4
      %v695 = vshll.u32 %v409, 16
      %v697 = vrot.slane %v695, 5
      %v698 = vsel %vm434, %v693, %v697
      %v699 = vshrl.u32 %v409, 16
      %v701 = vrot.slane %v699, 4
      %v702 = vor.u32 %v701, %v697
      %v703 = vrot.slane %v702, 4
      %v705 = vshll.u32 %v410, 16
      %v707 = vrot.slane %v705, 5
      %v708 = vsel %vm434, %v703, %v707
      %v709 = vshrl.u32 %v410, 16
      %v711 = vrot.slane %v709, 4
      %v712 = vor.u32 %v711, %v707
      %v713 = vrot.slane %v712, 4
      %v715 = vshll.u32 %v411, 16
      %v717 = vrot.slane %v715, 5
      %v718 = vsel %vm434, %v713, %v717
      %v719 = vshrl.u32 %v411, 16
      %v721 = vrot.slane %v719, 4
      %v722 = vor.u32 %v721, %v717
      %v723 = vrot.slane %v722, 4
      %v725 = vshll.u32 %v412, 16
      %v727 = vrot.slane %v725, 5
      %v728 = vsel %vm434, %v723, %v727
      %v729 = vshrl.u32 %v412, 16
      %v731 = vrot.slane %v729, 4
      %v732 = vor.u32 %v731, %v727
      %v733 = vrot.slane %v732, 4
      %v735 = vshll.u32 %v413, 16
      %v737 = vrot.slane %v735, 5
      %v738 = vsel %vm434, %v733, %v737
      %v739 = vshrl.u32 %v413, 16
      %v741 = vrot.slane %v739, 4
      %v742 = vor.u32 %v741, %v737
      %v743 = vrot.slane %v742, 4
      %v745 = vshll.u32 %v414, 16
      %v747 = vrot.slane %v745, 5
      %v748 = vsel %vm434, %v743, %v747
      %v749 = vshrl.u32 %v414, 16
      %v751 = vrot.slane %v749, 4
      %v752 = vor.u32 %v751, %v747
      %v753 = vrot.slane %v752, 4
      %v755 = vshll.u32 %v415, 16
      %v757 = vrot.slane %v755, 5
      %v758 = vsel %vm434, %v753, %v757
      %v759 = vshrl.u32 %v415, 16
      %v761 = vrot.slane %v759, 4
      %v762 = vor.u32 %v761, %v757
      %v763 = vrot.slane %v762, 4
      %v765 = vshll.u32 %v416, 16
      %v767 = vrot.slane %v765, 5
      %v768 = vsel %vm434, %v763, %v767
      %v769 = vshrl.u32 %v416, 16
      %v771 = vrot.slane %v769, 4
      %v772 = vor.u32 %v771, %v767
      %v773 = vrot.slane %v772, 4
      %v775 = vshll.u32 %v417, 16
      %v777 = vrot.slane %v775, 5
      %v778 = vsel %vm434, %v773, %v777
      %v779 = vshrl.u32 %v417, 16
      %v781 = vrot.slane %v779, 4
      %v782 = vor.u32 %v781, %v777
      %v783 = vrot.slane %v782, 4
      %v785 = vshll.u32 %v418, 16
      %v787 = vrot.slane %v785, 5
      %v788 = vsel %vm434, %v783, %v787
      %v789 = vshrl.u32 %v418, 16
      %v791 = vrot.slane %v789, 4
      %v792 = vor.u32 %v791, %v787
      %v793 = vrot.slane %v792, 4
      %v795 = vshll.u32 %v419, 16
      %v797 = vrot.slane %v795, 5
      %v798 = vsel %vm434, %v793, %v797
      %v799 = vshrl.u32 %v419, 16
      %v801 = vrot.slane %v799, 4
      %v802 = vor.u32 %v801, %v797
      %v803 = vrot.slane %v802, 4
      %v805 = vshll.u32 %v420, 16
      %v807 = vrot.slane %v805, 5
      %v808 = vsel %vm434, %v803, %v807
      %v809 = vshrl.u32 %v420, 16
      %v811 = vrot.slane %v809, 4
      %v812 = vor.u32 %v811, %v807
      %v813 = vrot.slane %v812, 4
      %v815 = vshll.u32 %v421, 16
      %v817 = vrot.slane %v815, 5
      %v818 = vsel %vm434, %v813, %v817
      %v819 = vshrl.u32 %v421, 16
      %v821 = vrot.slane %v819, 4
      %v822 = vor.u32 %v821, %v817
      %v823 = vrot.slane %v822, 4
      %v825 = vshll.u32 %v422, 16
      %v827 = vrot.slane %v825, 5
      %v828 = vsel %vm434, %v823, %v827
      %v829 = vshrl.u32 %v422, 16
      %v831 = vrot.slane %v829, 4
      %v832 = vor.u32 %v831, %v827
      %v833 = vrot.slane %v832, 4
      %v835 = vshll.u32 %v423, 16
      %v837 = vrot.slane %v835, 5
      %v838 = vsel %vm434, %v833, %v837
      %v839 = vshrl.u32 %v423, 16
      %v841 = vrot.slane %v839, 4
      %v842 = vor.u32 %v841, %v837
      %v843 = vrot.slane %v842, 4
      %v845 = vshll.u32 %v424, 16
      %v847 = vrot.slane %v845, 5
      %v848 = vsel %vm434, %v843, %v847
      %v849 = vshrl.u32 %v424, 16
      %v851 = vrot.slane %v849, 4
      %v852 = vor.u32 %v851, %v847
      %v853 = vrot.slane %v852, 4
      %v855 = vshll.u32 %v425, 16
      %v857 = vrot.slane %v855, 5
      %v858 = vsel %vm434, %v853, %v857
      %v859 = vshrl.u32 %v425, 16
      %v861 = vrot.slane %v859, 4
      %v862 = vor.u32 %v861, %v857
      %v863 = vrot.slane %v862, 4
      %v865 = vshll.u32 %v426, 16
      %v867 = vrot.slane %v865, 5
      %v868 = vsel %vm434, %v863, %v867
      %v869 = vshrl.u32 %v426, 16
      %v871 = vrot.slane %v869, 4
      %v872 = vor.u32 %v871, %v867
      %v873 = vrot.slane %v872, 4
      %v875 = vshll.u32 %v427, 16
      %v877 = vrot.slane %v875, 5
      %v878 = vsel %vm434, %v873, %v877
      %v879 = vshrl.u32 %v427, 16
      %v881 = vrot.slane %v879, 4
      %v882 = vor.u32 %v881, %v877
      %v883 = vrot.slane %v882, 4
      %v885 = vshll.u32 %v428, 16
      %v887 = vrot.slane %v885, 5
      %v888 = vsel %vm434, %v883, %v887
      %v889 = vshrl.u32 %v428, 16
      %v891 = vrot.slane %v889, 4
      %v892 = vor.u32 %v891, %v887
      %v893 = vrot.slane %v892, 4
      %v895 = vshll.u32 %v429, 16
      %v897 = vrot.slane %v895, 5
      %v898 = vsel %vm434, %v893, %v897
      %v899 = vshrl.u32 %v429, 16
      %v901 = vrot.slane %v899, 4
      %v902 = vor.u32 %v901, %v897
      %v903 = vrot.slane %v902, 4
      %v905 = vshll.u32 %v430, 16
      %v907 = vrot.slane %v905, 5
      %v908 = vsel %vm434, %v903, %v907
      %v909 = vshrl.u32 %v430, 16
      %v911 = vrot.slane %v909, 4
      %v912 = vor.u32 %v911, %v907
      %v913 = vrot.slane %v912, 4
      %v915 = vshll.u32 %v431, 16
      %v917 = vrot.slane %v915, 5
      %v918 = vsel %vm434, %v913, %v917
      %919 = vrot.lane.b32.xlu0 %v448, 8
      %v920 = vpop.permute.xlu0 %919
      %921 = vrot.lane.b32.xlu0 %v458, 8
      %v922 = vpop.permute.xlu0 %921
      %923 = vrot.lane.b32.xlu0 %v468, 8
      %v924 = vpop.permute.xlu0 %923
      %925 = vrot.lane.b32.xlu0 %v478, 8
      %v926 = vpop.permute.xlu0 %925
      %927 = vrot.lane.b32.xlu0 %v488, 8
      %v928 = vpop.permute.xlu0 %927
      %929 = vrot.lane.b32.xlu0 %v498, 8
      %v930 = vpop.permute.xlu0 %929
      %931 = vrot.lane.b32.xlu0 %v508, 8
      %v932 = vpop.permute.xlu0 %931
      %933 = vrot.lane.b32.xlu0 %v518, 8
      %v934 = vpop.permute.xlu0 %933
      %935 = vrot.lane.b32.xlu0 %v528, 8
      %v936 = vpop.permute.xlu0 %935
      %937 = vrot.lane.b32.xlu0 %v538, 8
      %v938 = vpop.permute.xlu0 %937
      %939 = vrot.lane.b32.xlu0 %v548, 8
      %v940 = vpop.permute.xlu0 %939
      %941 = vrot.lane.b32.xlu0 %v558, 8
      %v942 = vpop.permute.xlu0 %941
      %943 = vrot.lane.b32.xlu0 %v568, 8
      %v944 = vpop.permute.xlu0 %943
      %945 = vrot.lane.b32.xlu0 %v578, 8
      %v946 = vpop.permute.xlu0 %945
      %947 = vrot.lane.b32.xlu0 %v588, 8
      %v948 = vpop.permute.xlu0 %947
      %949 = vrot.lane.b32.xlu0 %v598, 8
      %v950 = vpop.permute.xlu0 %949
      %951 = vrot.lane.b32.xlu0 %v608, 8
      %v952 = vpop.permute.xlu0 %951
      %953 = vrot.lane.b32.xlu0 %v618, 8
      %v954 = vpop.permute.xlu0 %953
      %955 = vrot.lane.b32.xlu0 %v628, 8
      %v956 = vpop.permute.xlu0 %955
      %957 = vrot.lane.b32.xlu0 %v638, 8
      %v958 = vpop.permute.xlu0 %957
      %959 = vrot.lane.b32.xlu0 %v648, 8
      %v960 = vpop.permute.xlu0 %959
      %961 = vrot.lane.b32.xlu0 %v658, 8
      %v962 = vpop.permute.xlu0 %961
      %963 = vrot.lane.b32.xlu0 %v668, 8
      %v964 = vpop.permute.xlu0 %963
      %965 = vrot.lane.b32.xlu0 %v678, 8
      %v966 = vpop.permute.xlu0 %965
      %967 = vrot.lane.b32.xlu0 %v688, 8
      %v968 = vpop.permute.xlu0 %967
      %969 = vrot.lane.b32.xlu0 %v698, 8
      %v970 = vpop.permute.xlu0 %969
      %971 = vrot.lane.b32.xlu0 %v708, 8
      %v972 = vpop.permute.xlu0 %971
      %973 = vrot.lane.b32.xlu0 %v718, 8
      %v974 = vpop.permute.xlu0 %973
      %975 = vrot.lane.b32.xlu0 %v728, 8
      %v976 = vpop.permute.xlu0 %975
      %977 = vrot.lane.b32.xlu0 %v738, 8
      %v978 = vpop.permute.xlu0 %977
      %979 = vrot.lane.b32.xlu0 %v748, 8
      %v980 = vpop.permute.xlu0 %979
      %981 = vrot.lane.b32.xlu0 %v758, 8
      %v982 = vpop.permute.xlu0 %981
      %983 = vrot.lane.b32.xlu0 %v768, 8
      %v984 = vpop.permute.xlu0 %983
      %985 = vrot.lane.b32.xlu0 %v778, 8
      %v986 = vpop.permute.xlu0 %985
      %987 = vrot.lane.b32.xlu0 %v788, 8
      %v988 = vpop.permute.xlu0 %987
      %989 = vrot.lane.b32.xlu0 %v798, 8
      %v990 = vpop.permute.xlu0 %989
      %991 = vrot.lane.b32.xlu0 %v808, 8
      %v992 = vpop.permute.xlu0 %991
      %993 = vrot.lane.b32.xlu0 %v818, 8
      %v994 = vpop.permute.xlu0 %993
      %995 = vrot.lane.b32.xlu0 %v828, 8
      %v996 = vpop.permute.xlu0 %995
      %997 = vrot.lane.b32.xlu0 %v838, 8
      %v998 = vpop.permute.xlu0 %997
      %999 = vrot.lane.b32.xlu0 %v848, 8
      %v1000 = vpop.permute.xlu0 %999
      %1001 = vrot.lane.b32.xlu0 %v858, 8
      %v1002 = vpop.permute.xlu0 %1001
      %1003 = vrot.lane.b32.xlu0 %v868, 8
      %v1004 = vpop.permute.xlu0 %1003
      %1005 = vrot.lane.b32.xlu0 %v878, 8
      %v1006 = vpop.permute.xlu0 %1005
      %1007 = vrot.lane.b32.xlu0 %v888, 8
      %v1008 = vpop.permute.xlu0 %1007
      %1009 = vrot.lane.b32.xlu0 %v898, 8
      %v1010 = vpop.permute.xlu0 %1009
      %1011 = vrot.lane.b32.xlu0 %v908, 8
      %v1012 = vpop.permute.xlu0 %1011
      %1013 = vrot.lane.b32.xlu0 %v918, 8
      %v1014 = vpop.permute.xlu0 %1013
      %vm1063 = vcmask 126016
      %1064 = vst.msk [vmem:[#allocation2] sm:$0xf] %vm1063, %v920
      %1065 = vst.msk [vmem:[#allocation2 + $0x4] sm:$0xf] %vm1063, %v922
      %1066 = vst.msk [vmem:[#allocation2 + $0x8] sm:$0xf] %vm1063, %v924
      %1067 = vst.msk [vmem:[#allocation2 + $0xc] sm:$0xf] %vm1063, %v926
      %1068 = vst.msk [vmem:[#allocation2 + $0x10] sm:$0xf] %vm1063, %v928
      %1069 = vst.msk [vmem:[#allocation2 + $0x14] sm:$0xf] %vm1063, %v930
      %1070 = vst.msk [vmem:[#allocation2 + $0x18] sm:$0xf] %vm1063, %v932
      %1071 = vst.msk [vmem:[#allocation2 + $0x1c] sm:$0xf] %vm1063, %v934
      %1072 = vst.msk [vmem:[#allocation2 + $0x20] sm:$0xf] %vm1063, %v936
      %1073 = vst.msk [vmem:[#allocation2 + $0x24] sm:$0xf] %vm1063, %v938
      %1074 = vst.msk [vmem:[#allocation2 + $0x28] sm:$0xf] %vm1063, %v940
      %1075 = vst.msk [vmem:[#allocation2 + $0x2c] sm:$0xf] %vm1063, %v942
      %1076 = vst.msk [vmem:[#allocation2 + $0x30] sm:$0xf] %vm1063, %v944
      %1077 = vst.msk [vmem:[#allocation2 + $0x34] sm:$0xf] %vm1063, %v946
      %1078 = vst.msk [vmem:[#allocation2 + $0x38] sm:$0xf] %vm1063, %v948
      %1079 = vst.msk [vmem:[#allocation2 + $0x3c] sm:$0xf] %vm1063, %v950
      %1080 = vst.msk [vmem:[#allocation2 + $0x40] sm:$0xf] %vm1063, %v952
      %1081 = vst.msk [vmem:[#allocation2 + $0x44] sm:$0xf] %vm1063, %v954
      %1082 = vst.msk [vmem:[#allocation2 + $0x48] sm:$0xf] %vm1063, %v956
      %1083 = vst.msk [vmem:[#allocation2 + $0x4c] sm:$0xf] %vm1063, %v958
      %1084 = vst.msk [vmem:[#allocation2 + $0x50] sm:$0xf] %vm1063, %v960
      %1085 = vst.msk [vmem:[#allocation2 + $0x54] sm:$0xf] %vm1063, %v962
      %1086 = vst.msk [vmem:[#allocation2 + $0x58] sm:$0xf] %vm1063, %v964
      %1087 = vst.msk [vmem:[#allocation2 + $0x5c] sm:$0xf] %vm1063, %v966
      %1088 = vst.msk [vmem:[#allocation2 + $0x60] sm:$0xf] %vm1063, %v968
      %1089 = vst.msk [vmem:[#allocation2 + $0x64] sm:$0xf] %vm1063, %v970
      %1090 = vst.msk [vmem:[#allocation2 + $0x68] sm:$0xf] %vm1063, %v972
      %1091 = vst.msk [vmem:[#allocation2 + $0x6c] sm:$0xf] %vm1063, %v974
      %1092 = vst.msk [vmem:[#allocation2 + $0x70] sm:$0xf] %vm1063, %v976
      %1093 = vst.msk [vmem:[#allocation2 + $0x74] sm:$0xf] %vm1063, %v978
      %1094 = vst.msk [vmem:[#allocation2 + $0x78] sm:$0xf] %vm1063, %v980
      %1095 = vst.msk [vmem:[#allocation2 + $0x7c] sm:$0xf] %vm1063, %v982
      %1096 = vst.msk [vmem:[#allocation2 + $0x80] sm:$0xf] %vm1063, %v984
      %1097 = vst.msk [vmem:[#allocation2 + $0x84] sm:$0xf] %vm1063, %v986
      %1098 = vst.msk [vmem:[#allocation2 + $0x88] sm:$0xf] %vm1063, %v988
      %1099 = vst.msk [vmem:[#allocation2 + $0x8c] sm:$0xf] %vm1063, %v990
      %1100 = vst.msk [vmem:[#allocation2 + $0x90] sm:$0xf] %vm1063, %v992
      %1101 = vst.msk [vmem:[#allocation2 + $0x94] sm:$0xf] %vm1063, %v994
      %1102 = vst.msk [vmem:[#allocation2 + $0x98] sm:$0xf] %vm1063, %v996
      %1103 = vst.msk [vmem:[#allocation2 + $0x9c] sm:$0xf] %vm1063, %v998
      %1104 = vst.msk [vmem:[#allocation2 + $0xa0] sm:$0xf] %vm1063, %v1000
      %1105 = vst.msk [vmem:[#allocation2 + $0xa4] sm:$0xf] %vm1063, %v1002
      %1106 = vst.msk [vmem:[#allocation2 + $0xa8] sm:$0xf] %vm1063, %v1004
      %1107 = vst.msk [vmem:[#allocation2 + $0xac] sm:$0xf] %vm1063, %v1006
      %1108 = vst.msk [vmem:[#allocation2 + $0xb0] sm:$0xf] %vm1063, %v1008
      %1109 = vst.msk [vmem:[#allocation2 + $0xb4] sm:$0xf] %vm1063, %v1010
      %1110 = vst.msk [vmem:[#allocation2 + $0xb8] sm:$0xf] %vm1063, %v1012
      %1111 = vst.msk [vmem:[#allocation2 + $0xbc] sm:$0xf] %vm1063, %v1014
      %v1112 = vld [vmem:[%s273] sm:$0xe]
      %v1113 = vld [vmem:[%s273 + $0x4] sm:$0xf]
      %v1114 = vld [vmem:[%s273 + $0x8] sm:$0xf]
      %v1115 = vld [vmem:[%s273 + $0xc] sm:$0xf]
      %v1116 = vld [vmem:[%s273 + $0x10] sm:$0xf]
      %v1117 = vld [vmem:[%s273 + $0x14] sm:$0xf]
      %v1118 = vld [vmem:[%s273 + $0x18] sm:$0xf]
      %v1119 = vld [vmem:[%s273 + $0x1c] sm:$0xf]
      %v1120 = vld [vmem:[%s273 + $0x20] sm:$0xf]
      %v1121 = vld [vmem:[%s273 + $0x24] sm:$0xf]
      %v1122 = vld [vmem:[%s273 + $0x28] sm:$0xf]
      %v1123 = vld [vmem:[%s273 + $0x2c] sm:$0xf]
      %v1124 = vld [vmem:[%s273 + $0x30] sm:$0xf]
      %v1125 = vld [vmem:[%s273 + $0x34] sm:$0xf]
      %v1126 = vld [vmem:[%s273 + $0x38] sm:$0xf]
      %v1127 = vld [vmem:[%s273 + $0x3c] sm:$0xf]
      %v1128 = vld [vmem:[%s273 + $0x40] sm:$0xf]
      %v1129 = vld [vmem:[%s273 + $0x44] sm:$0xf]
      %v1130 = vld [vmem:[%s273 + $0x48] sm:$0xf]
      %v1131 = vld [vmem:[%s273 + $0x4c] sm:$0xf]
      %v1132 = vld [vmem:[%s273 + $0x50] sm:$0xf]
      %v1133 = vld [vmem:[%s273 + $0x54] sm:$0xf]
      %v1134 = vld [vmem:[%s273 + $0x58] sm:$0xf]
      %v1135 = vld [vmem:[%s273 + $0x5c] sm:$0xf]
      %v1136 = vld [vmem:[%s273 + $0x60] sm:$0xf]
      %v1137 = vld [vmem:[%s273 + $0x64] sm:$0xf]
      %v1138 = vld [vmem:[%s273 + $0x68] sm:$0xf]
      %v1139 = vld [vmem:[%s273 + $0x6c] sm:$0xf]
      %v1140 = vld [vmem:[%s273 + $0x70] sm:$0xf]
      %v1141 = vld [vmem:[%s273 + $0x74] sm:$0xf]
      %v1142 = vld [vmem:[%s273 + $0x78] sm:$0xf]
      %v1143 = vld [vmem:[%s273 + $0x7c] sm:$0xf]
      %v1144 = vld [vmem:[%s273 + $0x80] sm:$0xf]
      %v1145 = vld [vmem:[%s273 + $0x84] sm:$0xf]
      %v1146 = vld [vmem:[%s273 + $0x88] sm:$0xf]
      %v1147 = vld [vmem:[%s273 + $0x8c] sm:$0xf]
      %v1148 = vld [vmem:[%s273 + $0x90] sm:$0xf]
      %v1149 = vld [vmem:[%s273 + $0x94] sm:$0xf]
      %v1150 = vld [vmem:[%s273 + $0x98] sm:$0xf]
      %v1151 = vld [vmem:[%s273 + $0x9c] sm:$0xf]
      %v1152 = vld [vmem:[%s273 + $0xa0] sm:$0xf]
      %v1153 = vld [vmem:[%s273 + $0xa4] sm:$0xf]
      %v1154 = vld [vmem:[%s273 + $0xa8] sm:$0xf]
      %v1155 = vld [vmem:[%s273 + $0xac] sm:$0xf]
      %v1156 = vld [vmem:[%s273 + $0xb0] sm:$0xf]
      %v1157 = vld [vmem:[%s273 + $0xb4] sm:$0xf]
      %v1158 = vld [vmem:[%s273 + $0xb8] sm:$0xf]
      %v1159 = vld [vmem:[%s273 + $0xbc] sm:$0xf]
      %v1160 = vld [vmem:[%s273 + $0xc0] sm:$0x1]
      %vm1210 = vcmask 1042432
      %vm1211 = vcmask 1046532
      %vm1212 = vmor %vm1210, %vm1211
      %v1213 = vrot.slane %v1112, 5
      %v1214 = vrot.slane %v1213, 4
      %v1215 = vrot.slane %v1113, 5
      %v1216 = vsel %vm1212, %v1214, %v1215
      %v1217 = vrot.slane %v1215, 4
      %v1218 = vrot.slane %v1114, 5
      %v1219 = vsel %vm1212, %v1217, %v1218
      %v1220 = vrot.slane %v1218, 4
      %v1221 = vrot.slane %v1115, 5
      %v1222 = vsel %vm1212, %v1220, %v1221
      %v1223 = vrot.slane %v1221, 4
      %v1224 = vrot.slane %v1116, 5
      %v1225 = vsel %vm1212, %v1223, %v1224
      %v1226 = vrot.slane %v1224, 4
      %v1227 = vrot.slane %v1117, 5
      %v1228 = vsel %vm1212, %v1226, %v1227
      %v1229 = vrot.slane %v1227, 4
      %v1230 = vrot.slane %v1118, 5
      %v1231 = vsel %vm1212, %v1229, %v1230
      %v1232 = vrot.slane %v1230, 4
      %v1233 = vrot.slane %v1119, 5
      %v1234 = vsel %vm1212, %v1232, %v1233
      %v1235 = vrot.slane %v1233, 4
      %v1236 = vrot.slane %v1120, 5
      %v1237 = vsel %vm1212, %v1235, %v1236
      %v1238 = vrot.slane %v1236, 4
      %v1239 = vrot.slane %v1121, 5
      %v1240 = vsel %vm1212, %v1238, %v1239
      %v1241 = vrot.slane %v1239, 4
      %v1242 = vrot.slane %v1122, 5
      %v1243 = vsel %vm1212, %v1241, %v1242
      %v1244 = vrot.slane %v1242, 4
      %v1245 = vrot.slane %v1123, 5
      %v1246 = vsel %vm1212, %v1244, %v1245
      %v1247 = vrot.slane %v1245, 4
      %v1248 = vrot.slane %v1124, 5
      %v1249 = vsel %vm1212, %v1247, %v1248
      %v1250 = vrot.slane %v1248, 4
      %v1251 = vrot.slane %v1125, 5
      %v1252 = vsel %vm1212, %v1250, %v1251
      %v1253 = vrot.slane %v1251, 4
      %v1254 = vrot.slane %v1126, 5
      %v1255 = vsel %vm1212, %v1253, %v1254
      %v1256 = vrot.slane %v1254, 4
      %v1257 = vrot.slane %v1127, 5
      %v1258 = vsel %vm1212, %v1256, %v1257
      %v1259 = vrot.slane %v1257, 4
      %v1260 = vrot.slane %v1128, 5
      %v1261 = vsel %vm1212, %v1259, %v1260
      %v1262 = vrot.slane %v1260, 4
      %v1263 = vrot.slane %v1129, 5
      %v1264 = vsel %vm1212, %v1262, %v1263
      %v1265 = vrot.slane %v1263, 4
      %v1266 = vrot.slane %v1130, 5
      %v1267 = vsel %vm1212, %v1265, %v1266
      %v1268 = vrot.slane %v1266, 4
      %v1269 = vrot.slane %v1131, 5
      %v1270 = vsel %vm1212, %v1268, %v1269
      %v1271 = vrot.slane %v1269, 4
      %v1272 = vrot.slane %v1132, 5
      %v1273 = vsel %vm1212, %v1271, %v1272
      %v1274 = vrot.slane %v1272, 4
      %v1275 = vrot.slane %v1133, 5
      %v1276 = vsel %vm1212, %v1274, %v1275
      %v1277 = vrot.slane %v1275, 4
      %v1278 = vrot.slane %v1134, 5
      %v1279 = vsel %vm1212, %v1277, %v1278
      %v1280 = vrot.slane %v1278, 4
      %v1281 = vrot.slane %v1135, 5
      %v1282 = vsel %vm1212, %v1280, %v1281
      %v1283 = vrot.slane %v1281, 4
      %v1284 = vrot.slane %v1136, 5
      %v1285 = vsel %vm1212, %v1283, %v1284
      %v1286 = vrot.slane %v1284, 4
      %v1287 = vrot.slane %v1137, 5
      %v1288 = vsel %vm1212, %v1286, %v1287
      %v1289 = vrot.slane %v1287, 4
      %v1290 = vrot.slane %v1138, 5
      %v1291 = vsel %vm1212, %v1289, %v1290
      %v1292 = vrot.slane %v1290, 4
      %v1293 = vrot.slane %v1139, 5
      %v1294 = vsel %vm1212, %v1292, %v1293
      %v1295 = vrot.slane %v1293, 4
      %v1296 = vrot.slane %v1140, 5
      %v1297 = vsel %vm1212, %v1295, %v1296
      %v1298 = vrot.slane %v1296, 4
      %v1299 = vrot.slane %v1141, 5
      %v1300 = vsel %vm1212, %v1298, %v1299
      %v1301 = vrot.slane %v1299, 4
      %v1302 = vrot.slane %v1142, 5
      %v1303 = vsel %vm1212, %v1301, %v1302
      %v1304 = vrot.slane %v1302, 4
      %v1305 = vrot.slane %v1143, 5
      %v1306 = vsel %vm1212, %v1304, %v1305
      %v1307 = vrot.slane %v1305, 4
      %v1308 = vrot.slane %v1144, 5
      %v1309 = vsel %vm1212, %v1307, %v1308
      %v1310 = vrot.slane %v1308, 4
      %v1311 = vrot.slane %v1145, 5
      %v1312 = vsel %vm1212, %v1310, %v1311
      %v1313 = vrot.slane %v1311, 4
      %v1314 = vrot.slane %v1146, 5
      %v1315 = vsel %vm1212, %v1313, %v1314
      %v1316 = vrot.slane %v1314, 4
      %v1317 = vrot.slane %v1147, 5
      %v1318 = vsel %vm1212, %v1316, %v1317
      %v1319 = vrot.slane %v1317, 4
      %v1320 = vrot.slane %v1148, 5
      %v1321 = vsel %vm1212, %v1319, %v1320
      %v1322 = vrot.slane %v1320, 4
      %v1323 = vrot.slane %v1149, 5
      %v1324 = vsel %vm1212, %v1322, %v1323
      %v1325 = vrot.slane %v1323, 4
      %v1326 = vrot.slane %v1150, 5
      %v1327 = vsel %vm1212, %v1325, %v1326
      %v1328 = vrot.slane %v1326, 4
      %v1329 = vrot.slane %v1151, 5
      %v1330 = vsel %vm1212, %v1328, %v1329
      %v1331 = vrot.slane %v1329, 4
      %v1332 = vrot.slane %v1152, 5
      %v1333 = vsel %vm1212, %v1331, %v1332
      %v1334 = vrot.slane %v1332, 4
      %v1335 = vrot.slane %v1153, 5
      %v1336 = vsel %vm1212, %v1334, %v1335
      %v1337 = vrot.slane %v1335, 4
      %v1338 = vrot.slane %v1154, 5
      %v1339 = vsel %vm1212, %v1337, %v1338
      %v1340 = vrot.slane %v1338, 4
      %v1341 = vrot.slane %v1155, 5
      %v1342 = vsel %vm1212, %v1340, %v1341
      %v1343 = vrot.slane %v1341, 4
      %v1344 = vrot.slane %v1156, 5
      %v1345 = vsel %vm1212, %v1343, %v1344
      %v1346 = vrot.slane %v1344, 4
      %v1347 = vrot.slane %v1157, 5
      %v1348 = vsel %vm1212, %v1346, %v1347
      %v1349 = vrot.slane %v1347, 4
      %v1350 = vrot.slane %v1158, 5
      %v1351 = vsel %vm1212, %v1349, %v1350
      %v1352 = vrot.slane %v1350, 4
      %v1353 = vrot.slane %v1159, 5
      %v1354 = vsel %vm1212, %v1352, %v1353
      %v1355 = vrot.slane %v1353, 4
      %v1356 = vrot.slane %v1160, 5
      %v1357 = vsel %vm1212, %v1355, %v1356
      %1358 = vrot.lane.b32.xlu0 %v1216, 16
      %v1359 = vpop.permute.xlu0 %1358
      %1360 = vrot.lane.b32.xlu0 %v1219, 16
      %v1361 = vpop.permute.xlu0 %1360
      %1362 = vrot.lane.b32.xlu0 %v1222, 16
      %v1363 = vpop.permute.xlu0 %1362
      %1364 = vrot.lane.b32.xlu0 %v1225, 16
      %v1365 = vpop.permute.xlu0 %1364
      %1366 = vrot.lane.b32.xlu0 %v1228, 16
      %v1367 = vpop.permute.xlu0 %1366
      %1368 = vrot.lane.b32.xlu0 %v1231, 16
      %v1369 = vpop.permute.xlu0 %1368
      %1370 = vrot.lane.b32.xlu0 %v1234, 16
      %v1371 = vpop.permute.xlu0 %1370
      %1372 = vrot.lane.b32.xlu0 %v1237, 16
      %v1373 = vpop.permute.xlu0 %1372
      %1374 = vrot.lane.b32.xlu0 %v1240, 16
      %v1375 = vpop.permute.xlu0 %1374
      %1376 = vrot.lane.b32.xlu0 %v1243, 16
      %v1377 = vpop.permute.xlu0 %1376
      %1378 = vrot.lane.b32.xlu0 %v1246, 16
      %v1379 = vpop.permute.xlu0 %1378
      %1380 = vrot.lane.b32.xlu0 %v1249, 16
      %v1381 = vpop.permute.xlu0 %1380
      %1382 = vrot.lane.b32.xlu0 %v1252, 16
      %v1383 = vpop.permute.xlu0 %1382
      %1384 = vrot.lane.b32.xlu0 %v1255, 16
      %v1385 = vpop.permute.xlu0 %1384
      %1386 = vrot.lane.b32.xlu0 %v1258, 16
      %v1387 = vpop.permute.xlu0 %1386
      %1388 = vrot.lane.b32.xlu0 %v1261, 16
      %v1389 = vpop.permute.xlu0 %1388
      %1390 = vrot.lane.b32.xlu0 %v1264, 16
      %v1391 = vpop.permute.xlu0 %1390
      %1392 = vrot.lane.b32.xlu0 %v1267, 16
      %v1393 = vpop.permute.xlu0 %1392
      %1394 = vrot.lane.b32.xlu0 %v1270, 16
      %v1395 = vpop.permute.xlu0 %1394
      %1396 = vrot.lane.b32.xlu0 %v1273, 16
      %v1397 = vpop.permute.xlu0 %1396
      %1398 = vrot.lane.b32.xlu0 %v1276, 16
      %v1399 = vpop.permute.xlu0 %1398
      %1400 = vrot.lane.b32.xlu0 %v1279, 16
      %v1401 = vpop.permute.xlu0 %1400
      %1402 = vrot.lane.b32.xlu0 %v1282, 16
      %v1403 = vpop.permute.xlu0 %1402
      %1404 = vrot.lane.b32.xlu0 %v1285, 16
      %v1405 = vpop.permute.xlu0 %1404
      %1406 = vrot.lane.b32.xlu0 %v1288, 16
      %v1407 = vpop.permute.xlu0 %1406
      %1408 = vrot.lane.b32.xlu0 %v1291, 16
      %v1409 = vpop.permute.xlu0 %1408
      %1410 = vrot.lane.b32.xlu0 %v1294, 16
      %v1411 = vpop.permute.xlu0 %1410
      %1412 = vrot.lane.b32.xlu0 %v1297, 16
      %v1413 = vpop.permute.xlu0 %1412
      %1414 = vrot.lane.b32.xlu0 %v1300, 16
      %v1415 = vpop.permute.xlu0 %1414
      %1416 = vrot.lane.b32.xlu0 %v1303, 16
      %v1417 = vpop.permute.xlu0 %1416
      %1418 = vrot.lane.b32.xlu0 %v1306, 16
      %v1419 = vpop.permute.xlu0 %1418
      %1420 = vrot.lane.b32.xlu0 %v1309, 16
      %v1421 = vpop.permute.xlu0 %1420
      %1422 = vrot.lane.b32.xlu0 %v1312, 16
      %v1423 = vpop.permute.xlu0 %1422
      %1424 = vrot.lane.b32.xlu0 %v1315, 16
      %v1425 = vpop.permute.xlu0 %1424
      %1426 = vrot.lane.b32.xlu0 %v1318, 16
      %v1427 = vpop.permute.xlu0 %1426
      %1428 = vrot.lane.b32.xlu0 %v1321, 16
      %v1429 = vpop.permute.xlu0 %1428
      %1430 = vrot.lane.b32.xlu0 %v1324, 16
      %v1431 = vpop.permute.xlu0 %1430
      %1432 = vrot.lane.b32.xlu0 %v1327, 16
      %v1433 = vpop.permute.xlu0 %1432
      %1434 = vrot.lane.b32.xlu0 %v1330, 16
      %v1435 = vpop.permute.xlu0 %1434
      %1436 = vrot.lane.b32.xlu0 %v1333, 16
      %v1437 = vpop.permute.xlu0 %1436
      %1438 = vrot.lane.b32.xlu0 %v1336, 16
      %v1439 = vpop.permute.xlu0 %1438
      %1440 = vrot.lane.b32.xlu0 %v1339, 16
      %v1441 = vpop.permute.xlu0 %1440
      %1442 = vrot.lane.b32.xlu0 %v1342, 16
      %v1443 = vpop.permute.xlu0 %1442
      %1444 = vrot.lane.b32.xlu0 %v1345, 16
      %v1445 = vpop.permute.xlu0 %1444
      %1446 = vrot.lane.b32.xlu0 %v1348, 16
      %v1447 = vpop.permute.xlu0 %1446
      %1448 = vrot.lane.b32.xlu0 %v1351, 16
      %v1449 = vpop.permute.xlu0 %1448
      %1450 = vrot.lane.b32.xlu0 %v1354, 16
      %v1451 = vpop.permute.xlu0 %1450
      %1452 = vrot.lane.b32.xlu0 %v1357, 16
      %v1453 = vpop.permute.xlu0 %1452
      %vm1502 = vcmask 191616
      %1503 = vst.msk [vmem:[#allocation2] sm:$0xf] %vm1502, %v1359
      %1504 = vst.msk [vmem:[#allocation2 + $0x4] sm:$0xf] %vm1502, %v1361
      %1505 = vst.msk [vmem:[#allocation2 + $0x8] sm:$0xf] %vm1502, %v1363
      %1506 = vst.msk [vmem:[#allocation2 + $0xc] sm:$0xf] %vm1502, %v1365
      %1507 = vst.msk [vmem:[#allocation2 + $0x10] sm:$0xf] %vm1502, %v1367
      %1508 = vst.msk [vmem:[#allocation2 + $0x14] sm:$0xf] %vm1502, %v1369
      %1509 = vst.msk [vmem:[#allocation2 + $0x18] sm:$0xf] %vm1502, %v1371
      %1510 = vst.msk [vmem:[#allocation2 + $0x1c] sm:$0xf] %vm1502, %v1373
      %1511 = vst.msk [vmem:[#allocation2 + $0x20] sm:$0xf] %vm1502, %v1375
      %1512 = vst.msk [vmem:[#allocation2 + $0x24] sm:$0xf] %vm1502, %v1377
      %1513 = vst.msk [vmem:[#allocation2 + $0x28] sm:$0xf] %vm1502, %v1379
      %1514 = vst.msk [vmem:[#allocation2 + $0x2c] sm:$0xf] %vm1502, %v1381
      %1515 = vst.msk [vmem:[#allocation2 + $0x30] sm:$0xf] %vm1502, %v1383
      %1516 = vst.msk [vmem:[#allocation2 + $0x34] sm:$0xf] %vm1502, %v1385
      %1517 = vst.msk [vmem:[#allocation2 + $0x38] sm:$0xf] %vm1502, %v1387
      %1518 = vst.msk [vmem:[#allocation2 + $0x3c] sm:$0xf] %vm1502, %v1389
      %1519 = vst.msk [vmem:[#allocation2 + $0x40] sm:$0xf] %vm1502, %v1391
      %1520 = vst.msk [vmem:[#allocation2 + $0x44] sm:$0xf] %vm1502, %v1393
      %1521 = vst.msk [vmem:[#allocation2 + $0x48] sm:$0xf] %vm1502, %v1395
      %1522 = vst.msk [vmem:[#allocation2 + $0x4c] sm:$0xf] %vm1502, %v1397
      %1523 = vst.msk [vmem:[#allocation2 + $0x50] sm:$0xf] %vm1502, %v1399
      %1524 = vst.msk [vmem:[#allocation2 + $0x54] sm:$0xf] %vm1502, %v1401
      %1525 = vst.msk [vmem:[#allocation2 + $0x58] sm:$0xf] %vm1502, %v1403
      %1526 = vst.msk [vmem:[#allocation2 + $0x5c] sm:$0xf] %vm1502, %v1405
      %1527 = vst.msk [vmem:[#allocation2 + $0x60] sm:$0xf] %vm1502, %v1407
      %1528 = vst.msk [vmem:[#allocation2 + $0x64] sm:$0xf] %vm1502, %v1409
      %1529 = vst.msk [vmem:[#allocation2 + $0x68] sm:$0xf] %vm1502, %v1411
      %1530 = vst.msk [vmem:[#allocation2 + $0x6c] sm:$0xf] %vm1502, %v1413
      %1531 = vst.msk [vmem:[#allocation2 + $0x70] sm:$0xf] %vm1502, %v1415
      %1532 = vst.msk [vmem:[#allocation2 + $0x74] sm:$0xf] %vm1502, %v1417
      %1533 = vst.msk [vmem:[#allocation2 + $0x78] sm:$0xf] %vm1502, %v1419
      %1534 = vst.msk [vmem:[#allocation2 + $0x7c] sm:$0xf] %vm1502, %v1421
      %1535 = vst.msk [vmem:[#allocation2 + $0x80] sm:$0xf] %vm1502, %v1423
      %1536 = vst.msk [vmem:[#allocation2 + $0x84] sm:$0xf] %vm1502, %v1425
      %1537 = vst.msk [vmem:[#allocation2 + $0x88] sm:$0xf] %vm1502, %v1427
      %1538 = vst.msk [vmem:[#allocation2 + $0x8c] sm:$0xf] %vm1502, %v1429
      %1539 = vst.msk [vmem:[#allocation2 + $0x90] sm:$0xf] %vm1502, %v1431
      %1540 = vst.msk [vmem:[#allocation2 + $0x94] sm:$0xf] %vm1502, %v1433
      %1541 = vst.msk [vmem:[#allocation2 + $0x98] sm:$0xf] %vm1502, %v1435
      %1542 = vst.msk [vmem:[#allocation2 + $0x9c] sm:$0xf] %vm1502, %v1437
      %1543 = vst.msk [vmem:[#allocation2 + $0xa0] sm:$0xf] %vm1502, %v1439
      %1544 = vst.msk [vmem:[#allocation2 + $0xa4] sm:$0xf] %vm1502, %v1441
      %1545 = vst.msk [vmem:[#allocation2 + $0xa8] sm:$0xf] %vm1502, %v1443
      %1546 = vst.msk [vmem:[#allocation2 + $0xac] sm:$0xf] %vm1502, %v1445
      %1547 = vst.msk [vmem:[#allocation2 + $0xb0] sm:$0xf] %vm1502, %v1447
      %1548 = vst.msk [vmem:[#allocation2 + $0xb4] sm:$0xf] %vm1502, %v1449
      %1549 = vst.msk [vmem:[#allocation2 + $0xb8] sm:$0xf] %vm1502, %v1451
      %1550 = vst.msk [vmem:[#allocation2 + $0xbc] sm:$0xf] %vm1502, %v1453
      %v1551 = vld [vmem:[%s273 + $0x8] sm:$0xe]
      %v1552 = vld [vmem:[%s273 + $0xc] sm:$0xf]
      %v1553 = vld [vmem:[%s273 + $0x10] sm:$0xf]
      %v1554 = vld [vmem:[%s273 + $0x14] sm:$0xf]
      %v1555 = vld [vmem:[%s273 + $0x18] sm:$0xf]
      %v1556 = vld [vmem:[%s273 + $0x1c] sm:$0xf]
      %v1557 = vld [vmem:[%s273 + $0x20] sm:$0xf]
      %v1558 = vld [vmem:[%s273 + $0x24] sm:$0xf]
      %v1559 = vld [vmem:[%s273 + $0x28] sm:$0xf]
      %v1560 = vld [vmem:[%s273 + $0x2c] sm:$0xf]
      %v1561 = vld [vmem:[%s273 + $0x30] sm:$0xf]
      %v1562 = vld [vmem:[%s273 + $0x34] sm:$0xf]
      %v1563 = vld [vmem:[%s273 + $0x38] sm:$0xf]
      %v1564 = vld [vmem:[%s273 + $0x3c] sm:$0xf]
      %v1565 = vld [vmem:[%s273 + $0x40] sm:$0xf]
      %v1566 = vld [vmem:[%s273 + $0x44] sm:$0xf]
      %v1567 = vld [vmem:[%s273 + $0x48] sm:$0xf]
      %v1568 = vld [vmem:[%s273 + $0x4c] sm:$0xf]
      %v1569 = vld [vmem:[%s273 + $0x50] sm:$0xf]
      %v1570 = vld [vmem:[%s273 + $0x54] sm:$0xf]
      %v1571 = vld [vmem:[%s273 + $0x58] sm:$0xf]
      %v1572 = vld [vmem:[%s273 + $0x5c] sm:$0xf]
      %v1573 = vld [vmem:[%s273 + $0x60] sm:$0xf]
      %v1574 = vld [vmem:[%s273 + $0x64] sm:$0xf]
      %v1575 = vld [vmem:[%s273 + $0x68] sm:$0xf]
      %v1576 = vld [vmem:[%s273 + $0x6c] sm:$0xf]
      %v1577 = vld [vmem:[%s273 + $0x70] sm:$0xf]
      %v1578 = vld [vmem:[%s273 + $0x74] sm:$0xf]
      %v1579 = vld [vmem:[%s273 + $0x78] sm:$0xf]
      %v1580 = vld [vmem:[%s273 + $0x7c] sm:$0xf]
      %v1581 = vld [vmem:[%s273 + $0x80] sm:$0xf]
      %v1582 = vld [vmem:[%s273 + $0x84] sm:$0xf]
      %v1583 = vld [vmem:[%s273 + $0x88] sm:$0xf]
      %v1584 = vld [vmem:[%s273 + $0x8c] sm:$0xf]
      %v1585 = vld [vmem:[%s273 + $0x90] sm:$0xf]
      %v1586 = vld [vmem:[%s273 + $0x94] sm:$0xf]
      %v1587 = vld [vmem:[%s273 + $0x98] sm:$0xf]
      %v1588 = vld [vmem:[%s273 + $0x9c] sm:$0xf]
      %v1589 = vld [vmem:[%s273 + $0xa0] sm:$0xf]
      %v1590 = vld [vmem:[%s273 + $0xa4] sm:$0xf]
      %v1591 = vld [vmem:[%s273 + $0xa8] sm:$0xf]
      %v1592 = vld [vmem:[%s273 + $0xac] sm:$0xf]
      %v1593 = vld [vmem:[%s273 + $0xb0] sm:$0xf]
      %v1594 = vld [vmem:[%s273 + $0xb4] sm:$0xf]
      %v1595 = vld [vmem:[%s273 + $0xb8] sm:$0xf]
      %v1596 = vld [vmem:[%s273 + $0xbc] sm:$0xf]
      %v1597 = vld [vmem:[%s273 + $0xc0] sm:$0xf]
      %v1598 = vld [vmem:[%s273 + $0xc4] sm:$0xf]
      %v1599 = vld [vmem:[%s273 + $0xc8] sm:$0x1]
      %v1649 = vrot.slane %v1551, 5
      %v1650 = vrot.slane %v1649, 4
      %v1651 = vrot.slane %v1552, 5
      %v1652 = vsel %vm1212, %v1650, %v1651
      %v1653 = vrot.slane %v1651, 4
      %v1654 = vrot.slane %v1553, 5
      %v1655 = vsel %vm1212, %v1653, %v1654
      %v1656 = vrot.slane %v1654, 4
      %v1657 = vrot.slane %v1554, 5
      %v1658 = vsel %vm1212, %v1656, %v1657
      %v1659 = vrot.slane %v1657, 4
      %v1660 = vrot.slane %v1555, 5
      %v1661 = vsel %vm1212, %v1659, %v1660
      %v1662 = vrot.slane %v1660, 4
      %v1663 = vrot.slane %v1556, 5
      %v1664 = vsel %vm1212, %v1662, %v1663
      %v1665 = vrot.slane %v1663, 4
      %v1666 = vrot.slane %v1557, 5
      %v1667 = vsel %vm1212, %v1665, %v1666
      %v1668 = vrot.slane %v1666, 4
      %v1669 = vrot.slane %v1558, 5
      %v1670 = vsel %vm1212, %v1668, %v1669
      %v1671 = vrot.slane %v1669, 4
      %v1672 = vrot.slane %v1559, 5
      %v1673 = vsel %vm1212, %v1671, %v1672
      %v1674 = vrot.slane %v1672, 4
      %v1675 = vrot.slane %v1560, 5
      %v1676 = vsel %vm1212, %v1674, %v1675
      %v1677 = vrot.slane %v1675, 4
      %v1678 = vrot.slane %v1561, 5
      %v1679 = vsel %vm1212, %v1677, %v1678
      %v1680 = vrot.slane %v1678, 4
      %v1681 = vrot.slane %v1562, 5
      %v1682 = vsel %vm1212, %v1680, %v1681
      %v1683 = vrot.slane %v1681, 4
      %v1684 = vrot.slane %v1563, 5
      %v1685 = vsel %vm1212, %v1683, %v1684
      %v1686 = vrot.slane %v1684, 4
      %v1687 = vrot.slane %v1564, 5
      %v1688 = vsel %vm1212, %v1686, %v1687
      %v1689 = vrot.slane %v1687, 4
      %v1690 = vrot.slane %v1565, 5
      %v1691 = vsel %vm1212, %v1689, %v1690
      %v1692 = vrot.slane %v1690, 4
      %v1693 = vrot.slane %v1566, 5
      %v1694 = vsel %vm1212, %v1692, %v1693
      %v1695 = vrot.slane %v1693, 4
      %v1696 = vrot.slane %v1567, 5
      %v1697 = vsel %vm1212, %v1695, %v1696
      %v1698 = vrot.slane %v1696, 4
      %v1699 = vrot.slane %v1568, 5
      %v1700 = vsel %vm1212, %v1698, %v1699
      %v1701 = vrot.slane %v1699, 4
      %v1702 = vrot.slane %v1569, 5
      %v1703 = vsel %vm1212, %v1701, %v1702
      %v1704 = vrot.slane %v1702, 4
      %v1705 = vrot.slane %v1570, 5
      %v1706 = vsel %vm1212, %v1704, %v1705
      %v1707 = vrot.slane %v1705, 4
      %v1708 = vrot.slane %v1571, 5
      %v1709 = vsel %vm1212, %v1707, %v1708
      %v1710 = vrot.slane %v1708, 4
      %v1711 = vrot.slane %v1572, 5
      %v1712 = vsel %vm1212, %v1710, %v1711
      %v1713 = vrot.slane %v1711, 4
      %v1714 = vrot.slane %v1573, 5
      %v1715 = vsel %vm1212, %v1713, %v1714
      %v1716 = vrot.slane %v1714, 4
      %v1717 = vrot.slane %v1574, 5
      %v1718 = vsel %vm1212, %v1716, %v1717
      %v1719 = vrot.slane %v1717, 4
      %v1720 = vrot.slane %v1575, 5
      %v1721 = vsel %vm1212, %v1719, %v1720
      %v1722 = vrot.slane %v1720, 4
      %v1723 = vrot.slane %v1576, 5
      %v1724 = vsel %vm1212, %v1722, %v1723
      %v1725 = vrot.slane %v1723, 4
      %v1726 = vrot.slane %v1577, 5
      %v1727 = vsel %vm1212, %v1725, %v1726
      %v1728 = vrot.slane %v1726, 4
      %v1729 = vrot.slane %v1578, 5
      %v1730 = vsel %vm1212, %v1728, %v1729
      %v1731 = vrot.slane %v1729, 4
      %v1732 = vrot.slane %v1579, 5
      %v1733 = vsel %vm1212, %v1731, %v1732
      %v1734 = vrot.slane %v1732, 4
      %v1735 = vrot.slane %v1580, 5
      %v1736 = vsel %vm1212, %v1734, %v1735
      %v1737 = vrot.slane %v1735, 4
      %v1738 = vrot.slane %v1581, 5
      %v1739 = vsel %vm1212, %v1737, %v1738
      %v1740 = vrot.slane %v1738, 4
      %v1741 = vrot.slane %v1582, 5
      %v1742 = vsel %vm1212, %v1740, %v1741
      %v1743 = vrot.slane %v1741, 4
      %v1744 = vrot.slane %v1583, 5
      %v1745 = vsel %vm1212, %v1743, %v1744
      %v1746 = vrot.slane %v1744, 4
      %v1747 = vrot.slane %v1584, 5
      %v1748 = vsel %vm1212, %v1746, %v1747
      %v1749 = vrot.slane %v1747, 4
      %v1750 = vrot.slane %v1585, 5
      %v1751 = vsel %vm1212, %v1749, %v1750
      %v1752 = vrot.slane %v1750, 4
      %v1753 = vrot.slane %v1586, 5
      %v1754 = vsel %vm1212, %v1752, %v1753
      %v1755 = vrot.slane %v1753, 4
      %v1756 = vrot.slane %v1587, 5
      %v1757 = vsel %vm1212, %v1755, %v1756
      %v1758 = vrot.slane %v1756, 4
      %v1759 = vrot.slane %v1588, 5
      %v1760 = vsel %vm1212, %v1758, %v1759
      %v1761 = vrot.slane %v1759, 4
      %v1762 = vrot.slane %v1589, 5
      %v1763 = vsel %vm1212, %v1761, %v1762
      %v1764 = vrot.slane %v1762, 4
      %v1765 = vrot.slane %v1590, 5
      %v1766 = vsel %vm1212, %v1764, %v1765
      %v1767 = vrot.slane %v1765, 4
      %v1768 = vrot.slane %v1591, 5
      %v1769 = vsel %vm1212, %v1767, %v1768
      %v1770 = vrot.slane %v1768, 4
      %v1771 = vrot.slane %v1592, 5
      %v1772 = vsel %vm1212, %v1770, %v1771
      %v1773 = vrot.slane %v1771, 4
      %v1774 = vrot.slane %v1593, 5
      %v1775 = vsel %vm1212, %v1773, %v1774
      %v1776 = vrot.slane %v1774, 4
      %v1777 = vrot.slane %v1594, 5
      %v1778 = vsel %vm1212, %v1776, %v1777
      %v1779 = vrot.slane %v1777, 4
      %v1780 = vrot.slane %v1595, 5
      %v1781 = vsel %vm1212, %v1779, %v1780
      %v1782 = vrot.slane %v1780, 4
      %v1783 = vrot.slane %v1596, 5
      %v1784 = vsel %vm1212, %v1782, %v1783
      %v1785 = vrot.slane %v1783, 4
      %v1786 = vrot.slane %v1597, 5
      %v1787 = vsel %vm1212, %v1785, %v1786
      %v1788 = vrot.slane %v1786, 4
      %v1789 = vrot.slane %v1598, 5
      %v1790 = vsel %vm1212, %v1788, %v1789
      %v1791 = vrot.slane %v1789, 4
      %v1792 = vrot.slane %v1599, 5
      %v1793 = vsel %vm1212, %v1791, %v1792
      %1794 = vrot.lane.b32.xlu0 %v1652, 24
      %v1795 = vpop.permute.xlu0 %1794
      %1796 = vrot.lane.b32.xlu0 %v1655, 24
      %v1797 = vpop.permute.xlu0 %1796
      %1798 = vrot.lane.b32.xlu0 %v1658, 24
      %v1799 = vpop.permute.xlu0 %1798
      %1800 = vrot.lane.b32.xlu0 %v1661, 24
      %v1801 = vpop.permute.xlu0 %1800
      %1802 = vrot.lane.b32.xlu0 %v1664, 24
      %v1803 = vpop.permute.xlu0 %1802
      %1804 = vrot.lane.b32.xlu0 %v1667, 24
      %v1805 = vpop.permute.xlu0 %1804
      %1806 = vrot.lane.b32.xlu0 %v1670, 24
      %v1807 = vpop.permute.xlu0 %1806
      %1808 = vrot.lane.b32.xlu0 %v1673, 24
      %v1809 = vpop.permute.xlu0 %1808
      %1810 = vrot.lane.b32.xlu0 %v1676, 24
      %v1811 = vpop.permute.xlu0 %1810
      %1812 = vrot.lane.b32.xlu0 %v1679, 24
      %v1813 = vpop.permute.xlu0 %1812
      %1814 = vrot.lane.b32.xlu0 %v1682, 24
      %v1815 = vpop.permute.xlu0 %1814
      %1816 = vrot.lane.b32.xlu0 %v1685, 24
      %v1817 = vpop.permute.xlu0 %1816
      %1818 = vrot.lane.b32.xlu0 %v1688, 24
      %v1819 = vpop.permute.xlu0 %1818
      %1820 = vrot.lane.b32.xlu0 %v1691, 24
      %v1821 = vpop.permute.xlu0 %1820
      %1822 = vrot.lane.b32.xlu0 %v1694, 24
      %v1823 = vpop.permute.xlu0 %1822
      %1824 = vrot.lane.b32.xlu0 %v1697, 24
      %v1825 = vpop.permute.xlu0 %1824
      %1826 = vrot.lane.b32.xlu0 %v1700, 24
      %v1827 = vpop.permute.xlu0 %1826
      %1828 = vrot.lane.b32.xlu0 %v1703, 24
      %v1829 = vpop.permute.xlu0 %1828
      %1830 = vrot.lane.b32.xlu0 %v1706, 24
      %v1831 = vpop.permute.xlu0 %1830
      %1832 = vrot.lane.b32.xlu0 %v1709, 24
      %v1833 = vpop.permute.xlu0 %1832
      %1834 = vrot.lane.b32.xlu0 %v1712, 24
      %v1835 = vpop.permute.xlu0 %1834
      %1836 = vrot.lane.b32.xlu0 %v1715, 24
      %v1837 = vpop.permute.xlu0 %1836
      %1838 = vrot.lane.b32.xlu0 %v1718, 24
      %v1839 = vpop.permute.xlu0 %1838
      %1840 = vrot.lane.b32.xlu0 %v1721, 24
      %v1841 = vpop.permute.xlu0 %1840
      %1842 = vrot.lane.b32.xlu0 %v1724, 24
      %v1843 = vpop.permute.xlu0 %1842
      %1844 = vrot.lane.b32.xlu0 %v1727, 24
      %v1845 = vpop.permute.xlu0 %1844
      %1846 = vrot.lane.b32.xlu0 %v1730, 24
      %v1847 = vpop.permute.xlu0 %1846
      %1848 = vrot.lane.b32.xlu0 %v1733, 24
      %v1849 = vpop.permute.xlu0 %1848
      %1850 = vrot.lane.b32.xlu0 %v1736, 24
      %v1851 = vpop.permute.xlu0 %1850
      %1852 = vrot.lane.b32.xlu0 %v1739, 24
      %v1853 = vpop.permute.xlu0 %1852
      %1854 = vrot.lane.b32.xlu0 %v1742, 24
      %v1855 = vpop.permute.xlu0 %1854
      %1856 = vrot.lane.b32.xlu0 %v1745, 24
      %v1857 = vpop.permute.xlu0 %1856
      %1858 = vrot.lane.b32.xlu0 %v1748, 24
      %v1859 = vpop.permute.xlu0 %1858
      %1860 = vrot.lane.b32.xlu0 %v1751, 24
      %v1861 = vpop.permute.xlu0 %1860
      %1862 = vrot.lane.b32.xlu0 %v1754, 24
      %v1863 = vpop.permute.xlu0 %1862
      %1864 = vrot.lane.b32.xlu0 %v1757, 24
      %v1865 = vpop.permute.xlu0 %1864
      %1866 = vrot.lane.b32.xlu0 %v1760, 24
      %v1867 = vpop.permute.xlu0 %1866
      %1868 = vrot.lane.b32.xlu0 %v1763, 24
      %v1869 = vpop.permute.xlu0 %1868
      %1870 = vrot.lane.b32.xlu0 %v1766, 24
      %v1871 = vpop.permute.xlu0 %1870
      %1872 = vrot.lane.b32.xlu0 %v1769, 24
      %v1873 = vpop.permute.xlu0 %1872
      %1874 = vrot.lane.b32.xlu0 %v1772, 24
      %v1875 = vpop.permute.xlu0 %1874
      %1876 = vrot.lane.b32.xlu0 %v1775, 24
      %v1877 = vpop.permute.xlu0 %1876
      %1878 = vrot.lane.b32.xlu0 %v1778, 24
      %v1879 = vpop.permute.xlu0 %1878
      %1880 = vrot.lane.b32.xlu0 %v1781, 24
      %v1881 = vpop.permute.xlu0 %1880
      %1882 = vrot.lane.b32.xlu0 %v1784, 24
      %v1883 = vpop.permute.xlu0 %1882
      %1884 = vrot.lane.b32.xlu0 %v1787, 24
      %v1885 = vpop.permute.xlu0 %1884
      %1886 = vrot.lane.b32.xlu0 %v1790, 24
      %v1887 = vpop.permute.xlu0 %1886
      %1888 = vrot.lane.b32.xlu0 %v1793, 24
      %v1889 = vpop.permute.xlu0 %1888
      %vm1938 = vcmask 257216
      %1939 = vst.msk [vmem:[#allocation2] sm:$0xf] %vm1938, %v1795
      %1940 = vst.msk [vmem:[#allocation2 + $0x4] sm:$0xf] %vm1938, %v1797
      %1941 = vst.msk [vmem:[#allocation2 + $0x8] sm:$0xf] %vm1938, %v1799
      %1942 = vst.msk [vmem:[#allocation2 + $0xc] sm:$0xf] %vm1938, %v1801
      %1943 = vst.msk [vmem:[#allocation2 + $0x10] sm:$0xf] %vm1938, %v1803
      %1944 = vst.msk [vmem:[#allocation2 + $0x14] sm:$0xf] %vm1938, %v1805
      %1945 = vst.msk [vmem:[#allocation2 + $0x18] sm:$0xf] %vm1938, %v1807
      %1946 = vst.msk [vmem:[#allocation2 + $0x1c] sm:$0xf] %vm1938, %v1809
      %1947 = vst.msk [vmem:[#allocation2 + $0x20] sm:$0xf] %vm1938, %v1811
      %1948 = vst.msk [vmem:[#allocation2 + $0x24] sm:$0xf] %vm1938, %v1813
      %1949 = vst.msk [vmem:[#allocation2 + $0x28] sm:$0xf] %vm1938, %v1815
      %1950 = vst.msk [vmem:[#allocation2 + $0x2c] sm:$0xf] %vm1938, %v1817
      %1951 = vst.msk [vmem:[#allocation2 + $0x30] sm:$0xf] %vm1938, %v1819
      %1952 = vst.msk [vmem:[#allocation2 + $0x34] sm:$0xf] %vm1938, %v1821
      %1953 = vst.msk [vmem:[#allocation2 + $0x38] sm:$0xf] %vm1938, %v1823
      %1954 = vst.msk [vmem:[#allocation2 + $0x3c] sm:$0xf] %vm1938, %v1825
      %1955 = vst.msk [vmem:[#allocation2 + $0x40] sm:$0xf] %vm1938, %v1827
      %1956 = vst.msk [vmem:[#allocation2 + $0x44] sm:$0xf] %vm1938, %v1829
      %1957 = vst.msk [vmem:[#allocation2 + $0x48] sm:$0xf] %vm1938, %v1831
      %1958 = vst.msk [vmem:[#allocation2 + $0x4c] sm:$0xf] %vm1938, %v1833
      %1959 = vst.msk [vmem:[#allocation2 + $0x50] sm:$0xf] %vm1938, %v1835
      %1960 = vst.msk [vmem:[#allocation2 + $0x54] sm:$0xf] %vm1938, %v1837
      %1961 = vst.msk [vmem:[#allocation2 + $0x58] sm:$0xf] %vm1938, %v1839
      %1962 = vst.msk [vmem:[#allocation2 + $0x5c] sm:$0xf] %vm1938, %v1841
      %1963 = vst.msk [vmem:[#allocation2 + $0x60] sm:$0xf] %vm1938, %v1843
      %1964 = vst.msk [vmem:[#allocation2 + $0x64] sm:$0xf] %vm1938, %v1845
      %1965 = vst.msk [vmem:[#allocation2 + $0x68] sm:$0xf] %vm1938, %v1847
      %1966 = vst.msk [vmem:[#allocation2 + $0x6c] sm:$0xf] %vm1938, %v1849
      %1967 = vst.msk [vmem:[#allocation2 + $0x70] sm:$0xf] %vm1938, %v1851
      %1968 = vst.msk [vmem:[#allocation2 + $0x74] sm:$0xf] %vm1938, %v1853
      %1969 = vst.msk [vmem:[#allocation2 + $0x78] sm:$0xf] %vm1938, %v1855
      %1970 = vst.msk [vmem:[#allocation2 + $0x7c] sm:$0xf] %vm1938, %v1857
      %1971 = vst.msk [vmem:[#allocation2 + $0x80] sm:$0xf] %vm1938, %v1859
      %1972 = vst.msk [vmem:[#allocation2 + $0x84] sm:$0xf] %vm1938, %v1861
      %1973 = vst.msk [vmem:[#allocation2 + $0x88] sm:$0xf] %vm1938, %v1863
      %1974 = vst.msk [vmem:[#allocation2 + $0x8c] sm:$0xf] %vm1938, %v1865
      %1975 = vst.msk [vmem:[#allocation2 + $0x90] sm:$0xf] %vm1938, %v1867
      %1976 = vst.msk [vmem:[#allocation2 + $0x94] sm:$0xf] %vm1938, %v1869
      %1977 = vst.msk [vmem:[#allocation2 + $0x98] sm:$0xf] %vm1938, %v1871
      %1978 = vst.msk [vmem:[#allocation2 + $0x9c] sm:$0xf] %vm1938, %v1873
      %1979 = vst.msk [vmem:[#allocation2 + $0xa0] sm:$0xf] %vm1938, %v1875
      %1980 = vst.msk [vmem:[#allocation2 + $0xa4] sm:$0xf] %vm1938, %v1877
      %1981 = vst.msk [vmem:[#allocation2 + $0xa8] sm:$0xf] %vm1938, %v1879
      %1982 = vst.msk [vmem:[#allocation2 + $0xac] sm:$0xf] %vm1938, %v1881
      %1983 = vst.msk [vmem:[#allocation2 + $0xb0] sm:$0xf] %vm1938, %v1883
      %1984 = vst.msk [vmem:[#allocation2 + $0xb4] sm:$0xf] %vm1938, %v1885
      %1985 = vst.msk [vmem:[#allocation2 + $0xb8] sm:$0xf] %vm1938, %v1887
      %1986 = vst.msk [vmem:[#allocation2 + $0xbc] sm:$0xf] %vm1938, %v1889
      %v1987 = vld [vmem:[%s273 + $0x8] sm:$0xe]
      %v1988 = vld [vmem:[%s273 + $0xc] sm:$0xf]
      %v1989 = vld [vmem:[%s273 + $0x10] sm:$0xf]
      %v1990 = vld [vmem:[%s273 + $0x14] sm:$0xf]
      %v1991 = vld [vmem:[%s273 + $0x18] sm:$0xf]
      %v1992 = vld [vmem:[%s273 + $0x1c] sm:$0xf]
      %v1993 = vld [vmem:[%s273 + $0x20] sm:$0xf]
      %v1994 = vld [vmem:[%s273 + $0x24] sm:$0xf]
      %v1995 = vld [vmem:[%s273 + $0x28] sm:$0xf]
      %v1996 = vld [vmem:[%s273 + $0x2c] sm:$0xf]
      %v1997 = vld [vmem:[%s273 + $0x30] sm:$0xf]
      %v1998 = vld [vmem:[%s273 + $0x34] sm:$0xf]
      %v1999 = vld [vmem:[%s273 + $0x38] sm:$0xf]
      %v2000 = vld [vmem:[%s273 + $0x3c] sm:$0xf]
      %v2001 = vld [vmem:[%s273 + $0x40] sm:$0xf]
      %v2002 = vld [vmem:[%s273 + $0x44] sm:$0xf]
      %v2003 = vld [vmem:[%s273 + $0x48] sm:$0xf]
      %v2004 = vld [vmem:[%s273 + $0x4c] sm:$0xf]
      %v2005 = vld [vmem:[%s273 + $0x50] sm:$0xf]
      %v2006 = vld [vmem:[%s273 + $0x54] sm:$0xf]
      %v2007 = vld [vmem:[%s273 + $0x58] sm:$0xf]
      %v2008 = vld [vmem:[%s273 + $0x5c] sm:$0xf]
      %v2009 = vld [vmem:[%s273 + $0x60] sm:$0xf]
      %v2010 = vld [vmem:[%s273 + $0x64] sm:$0xf]
      %v2011 = vld [vmem:[%s273 + $0x68] sm:$0xf]
      %v2012 = vld [vmem:[%s273 + $0x6c] sm:$0xf]
      %v2013 = vld [vmem:[%s273 + $0x70] sm:$0xf]
      %v2014 = vld [vmem:[%s273 + $0x74] sm:$0xf]
      %v2015 = vld [vmem:[%s273 + $0x78] sm:$0xf]
      %v2016 = vld [vmem:[%s273 + $0x7c] sm:$0xf]
      %v2017 = vld [vmem:[%s273 + $0x80] sm:$0xf]
      %v2018 = vld [vmem:[%s273 + $0x84] sm:$0xf]
      %v2019 = vld [vmem:[%s273 + $0x88] sm:$0xf]
      %v2020 = vld [vmem:[%s273 + $0x8c] sm:$0xf]
      %v2021 = vld [vmem:[%s273 + $0x90] sm:$0xf]
      %v2022 = vld [vmem:[%s273 + $0x94] sm:$0xf]
      %v2023 = vld [vmem:[%s273 + $0x98] sm:$0xf]
      %v2024 = vld [vmem:[%s273 + $0x9c] sm:$0xf]
      %v2025 = vld [vmem:[%s273 + $0xa0] sm:$0xf]
      %v2026 = vld [vmem:[%s273 + $0xa4] sm:$0xf]
      %v2027 = vld [vmem:[%s273 + $0xa8] sm:$0xf]
      %v2028 = vld [vmem:[%s273 + $0xac] sm:$0xf]
      %v2029 = vld [vmem:[%s273 + $0xb0] sm:$0xf]
      %v2030 = vld [vmem:[%s273 + $0xb4] sm:$0xf]
      %v2031 = vld [vmem:[%s273 + $0xb8] sm:$0xf]
      %v2032 = vld [vmem:[%s273 + $0xbc] sm:$0xf]
      %v2033 = vld [vmem:[%s273 + $0xc0] sm:$0xf]
      %v2034 = vld [vmem:[%s273 + $0xc4] sm:$0xf]
      %v2035 = vld [vmem:[%s273 + $0xc8] sm:$0x3]
      %vm2036 = vsmask.f32 2304
      %vm2037 = vsmask.f32 6416
      %vm2038 = vmor %vm2036, %vm2037
      %v2040 = vshrl.u32 %v1987, 16
      %v2042 = vrot.slane %v2040, 5
      %v2043 = vshll.u32 %v1987, 16
      %v2045 = vrot.slane %v2043, 6
      %v2046 = vor.u32 %v2042, %v2045
      %v2047 = vrot.slane %v2046, 4
      %v2049 = vshrl.u32 %v1988, 16
      %v2051 = vrot.slane %v2049, 5
      %v2052 = vshll.u32 %v1988, 16
      %v2054 = vrot.slane %v2052, 6
      %v2055 = vor.u32 %v2051, %v2054
      %v2056 = vsel %vm2038, %v2047, %v2055
      %v2057 = vrot.slane %v2055, 4
      %v2059 = vshrl.u32 %v1989, 16
      %v2061 = vrot.slane %v2059, 5
      %v2062 = vshll.u32 %v1989, 16
      %v2064 = vrot.slane %v2062, 6
      %v2065 = vor.u32 %v2061, %v2064
      %v2066 = vsel %vm2038, %v2057, %v2065
      %v2067 = vrot.slane %v2065, 4
      %v2069 = vshrl.u32 %v1990, 16
      %v2071 = vrot.slane %v2069, 5
      %v2072 = vshll.u32 %v1990, 16
      %v2074 = vrot.slane %v2072, 6
      %v2075 = vor.u32 %v2071, %v2074
      %v2076 = vsel %vm2038, %v2067, %v2075
      %v2077 = vrot.slane %v2075, 4
      %v2079 = vshrl.u32 %v1991, 16
      %v2081 = vrot.slane %v2079, 5
      %v2082 = vshll.u32 %v1991, 16
      %v2084 = vrot.slane %v2082, 6
      %v2085 = vor.u32 %v2081, %v2084
      %v2086 = vsel %vm2038, %v2077, %v2085
      %v2087 = vrot.slane %v2085, 4
      %v2089 = vshrl.u32 %v1992, 16
      %v2091 = vrot.slane %v2089, 5
      %v2092 = vshll.u32 %v1992, 16
      %v2094 = vrot.slane %v2092, 6
      %v2095 = vor.u32 %v2091, %v2094
      %v2096 = vsel %vm2038, %v2087, %v2095
      %v2097 = vrot.slane %v2095, 4
      %v2099 = vshrl.u32 %v1993, 16
      %v2101 = vrot.slane %v2099, 5
      %v2102 = vshll.u32 %v1993, 16
      %v2104 = vrot.slane %v2102, 6
      %v2105 = vor.u32 %v2101, %v2104
      %v2106 = vsel %vm2038, %v2097, %v2105
      %v2107 = vrot.slane %v2105, 4
      %v2109 = vshrl.u32 %v1994, 16
      %v2111 = vrot.slane %v2109, 5
      %v2112 = vshll.u32 %v1994, 16
      %v2114 = vrot.slane %v2112, 6
      %v2115 = vor.u32 %v2111, %v2114
      %v2116 = vsel %vm2038, %v2107, %v2115
      %v2117 = vrot.slane %v2115, 4
      %v2119 = vshrl.u32 %v1995, 16
      %v2121 = vrot.slane %v2119, 5
      %v2122 = vshll.u32 %v1995, 16
      %v2124 = vrot.slane %v2122, 6
      %v2125 = vor.u32 %v2121, %v2124
      %v2126 = vsel %vm2038, %v2117, %v2125
      %v2127 = vrot.slane %v2125, 4
      %v2129 = vshrl.u32 %v1996, 16
      %v2131 = vrot.slane %v2129, 5
      %v2132 = vshll.u32 %v1996, 16
      %v2134 = vrot.slane %v2132, 6
      %v2135 = vor.u32 %v2131, %v2134
      %v2136 = vsel %vm2038, %v2127, %v2135
      %v2137 = vrot.slane %v2135, 4
      %v2139 = vshrl.u32 %v1997, 16
      %v2141 = vrot.slane %v2139, 5
      %v2142 = vshll.u32 %v1997, 16
      %v2144 = vrot.slane %v2142, 6
      %v2145 = vor.u32 %v2141, %v2144
      %v2146 = vsel %vm2038, %v2137, %v2145
      %v2147 = vrot.slane %v2145, 4
      %v2149 = vshrl.u32 %v1998, 16
      %v2151 = vrot.slane %v2149, 5
      %v2152 = vshll.u32 %v1998, 16
      %v2154 = vrot.slane %v2152, 6
      %v2155 = vor.u32 %v2151, %v2154
      %v2156 = vsel %vm2038, %v2147, %v2155
      %v2157 = vrot.slane %v2155, 4
      %v2159 = vshrl.u32 %v1999, 16
      %v2161 = vrot.slane %v2159, 5
      %v2162 = vshll.u32 %v1999, 16
      %v2164 = vrot.slane %v2162, 6
      %v2165 = vor.u32 %v2161, %v2164
      %v2166 = vsel %vm2038, %v2157, %v2165
      %v2167 = vrot.slane %v2165, 4
      %v2169 = vshrl.u32 %v2000, 16
      %v2171 = vrot.slane %v2169, 5
      %v2172 = vshll.u32 %v2000, 16
      %v2174 = vrot.slane %v2172, 6
      %v2175 = vor.u32 %v2171, %v2174
      %v2176 = vsel %vm2038, %v2167, %v2175
      %v2177 = vrot.slane %v2175, 4
      %v2179 = vshrl.u32 %v2001, 16
      %v2181 = vrot.slane %v2179, 5
      %v2182 = vshll.u32 %v2001, 16
      %v2184 = vrot.slane %v2182, 6
      %v2185 = vor.u32 %v2181, %v2184
      %v2186 = vsel %vm2038, %v2177, %v2185
      %v2187 = vrot.slane %v2185, 4
      %v2189 = vshrl.u32 %v2002, 16
      %v2191 = vrot.slane %v2189, 5
      %v2192 = vshll.u32 %v2002, 16
      %v2194 = vrot.slane %v2192, 6
      %v2195 = vor.u32 %v2191, %v2194
      %v2196 = vsel %vm2038, %v2187, %v2195
      %v2197 = vrot.slane %v2195, 4
      %v2199 = vshrl.u32 %v2003, 16
      %v2201 = vrot.slane %v2199, 5
      %v2202 = vshll.u32 %v2003, 16
      %v2204 = vrot.slane %v2202, 6
      %v2205 = vor.u32 %v2201, %v2204
      %v2206 = vsel %vm2038, %v2197, %v2205
      %v2207 = vrot.slane %v2205, 4
      %v2209 = vshrl.u32 %v2004, 16
      %v2211 = vrot.slane %v2209, 5
      %v2212 = vshll.u32 %v2004, 16
      %v2214 = vrot.slane %v2212, 6
      %v2215 = vor.u32 %v2211, %v2214
      %v2216 = vsel %vm2038, %v2207, %v2215
      %v2217 = vrot.slane %v2215, 4
      %v2219 = vshrl.u32 %v2005, 16
      %v2221 = vrot.slane %v2219, 5
      %v2222 = vshll.u32 %v2005, 16
      %v2224 = vrot.slane %v2222, 6
      %v2225 = vor.u32 %v2221, %v2224
      %v2226 = vsel %vm2038, %v2217, %v2225
      %v2227 = vrot.slane %v2225, 4
      %v2229 = vshrl.u32 %v2006, 16
      %v2231 = vrot.slane %v2229, 5
      %v2232 = vshll.u32 %v2006, 16
      %v2234 = vrot.slane %v2232, 6
      %v2235 = vor.u32 %v2231, %v2234
      %v2236 = vsel %vm2038, %v2227, %v2235
      %v2237 = vrot.slane %v2235, 4
      %v2239 = vshrl.u32 %v2007, 16
      %v2241 = vrot.slane %v2239, 5
      %v2242 = vshll.u32 %v2007, 16
      %v2244 = vrot.slane %v2242, 6
      %v2245 = vor.u32 %v2241, %v2244
      %v2246 = vsel %vm2038, %v2237, %v2245
      %v2247 = vrot.slane %v2245, 4
      %v2249 = vshrl.u32 %v2008, 16
      %v2251 = vrot.slane %v2249, 5
      %v2252 = vshll.u32 %v2008, 16
      %v2254 = vrot.slane %v2252, 6
      %v2255 = vor.u32 %v2251, %v2254
      %v2256 = vsel %vm2038, %v2247, %v2255
      %v2257 = vrot.slane %v2255, 4
      %v2259 = vshrl.u32 %v2009, 16
      %v2261 = vrot.slane %v2259, 5
      %v2262 = vshll.u32 %v2009, 16
      %v2264 = vrot.slane %v2262, 6
      %v2265 = vor.u32 %v2261, %v2264
      %v2266 = vsel %vm2038, %v2257, %v2265
      %v2267 = vrot.slane %v2265, 4
      %v2269 = vshrl.u32 %v2010, 16
      %v2271 = vrot.slane %v2269, 5
      %v2272 = vshll.u32 %v2010, 16
      %v2274 = vrot.slane %v2272, 6
      %v2275 = vor.u32 %v2271, %v2274
      %v2276 = vsel %vm2038, %v2267, %v2275
      %v2277 = vrot.slane %v2275, 4
      %v2279 = vshrl.u32 %v2011, 16
      %v2281 = vrot.slane %v2279, 5
      %v2282 = vshll.u32 %v2011, 16
      %v2284 = vrot.slane %v2282, 6
      %v2285 = vor.u32 %v2281, %v2284
      %v2286 = vsel %vm2038, %v2277, %v2285
      %v2287 = vrot.slane %v2285, 4
      %v2289 = vshrl.u32 %v2012, 16
      %v2291 = vrot.slane %v2289, 5
      %v2292 = vshll.u32 %v2012, 16
      %v2294 = vrot.slane %v2292, 6
      %v2295 = vor.u32 %v2291, %v2294
      %v2296 = vsel %vm2038, %v2287, %v2295
      %v2297 = vrot.slane %v2295, 4
      %v2299 = vshrl.u32 %v2013, 16
      %v2301 = vrot.slane %v2299, 5
      %v2302 = vshll.u32 %v2013, 16
      %v2304 = vrot.slane %v2302, 6
      %v2305 = vor.u32 %v2301, %v2304
      %v2306 = vsel %vm2038, %v2297, %v2305
      %v2307 = vrot.slane %v2305, 4
      %v2309 = vshrl.u32 %v2014, 16
      %v2311 = vrot.slane %v2309, 5
      %v2312 = vshll.u32 %v2014, 16
      %v2314 = vrot.slane %v2312, 6
      %v2315 = vor.u32 %v2311, %v2314
      %v2316 = vsel %vm2038, %v2307, %v2315
      %v2317 = vrot.slane %v2315, 4
      %v2319 = vshrl.u32 %v2015, 16
      %v2321 = vrot.slane %v2319, 5
      %v2322 = vshll.u32 %v2015, 16
      %v2324 = vrot.slane %v2322, 6
      %v2325 = vor.u32 %v2321, %v2324
      %v2326 = vsel %vm2038, %v2317, %v2325
      %v2327 = vrot.slane %v2325, 4
      %v2329 = vshrl.u32 %v2016, 16
      %v2331 = vrot.slane %v2329, 5
      %v2332 = vshll.u32 %v2016, 16
      %v2334 = vrot.slane %v2332, 6
      %v2335 = vor.u32 %v2331, %v2334
      %v2336 = vsel %vm2038, %v2327, %v2335
      %v2337 = vrot.slane %v2335, 4
      %v2339 = vshrl.u32 %v2017, 16
      %v2341 = vrot.slane %v2339, 5
      %v2342 = vshll.u32 %v2017, 16
      %v2344 = vrot.slane %v2342, 6
      %v2345 = vor.u32 %v2341, %v2344
      %v2346 = vsel %vm2038, %v2337, %v2345
      %v2347 = vrot.slane %v2345, 4
      %v2349 = vshrl.u32 %v2018, 16
      %v2351 = vrot.slane %v2349, 5
      %v2352 = vshll.u32 %v2018, 16
      %v2354 = vrot.slane %v2352, 6
      %v2355 = vor.u32 %v2351, %v2354
      %v2356 = vsel %vm2038, %v2347, %v2355
      %v2357 = vrot.slane %v2355, 4
      %v2359 = vshrl.u32 %v2019, 16
      %v2361 = vrot.slane %v2359, 5
      %v2362 = vshll.u32 %v2019, 16
      %v2364 = vrot.slane %v2362, 6
      %v2365 = vor.u32 %v2361, %v2364
      %v2366 = vsel %vm2038, %v2357, %v2365
      %v2367 = vrot.slane %v2365, 4
      %v2369 = vshrl.u32 %v2020, 16
      %v2371 = vrot.slane %v2369, 5
      %v2372 = vshll.u32 %v2020, 16
      %v2374 = vrot.slane %v2372, 6
      %v2375 = vor.u32 %v2371, %v2374
      %v2376 = vsel %vm2038, %v2367, %v2375
      %v2377 = vrot.slane %v2375, 4
      %v2379 = vshrl.u32 %v2021, 16
      %v2381 = vrot.slane %v2379, 5
      %v2382 = vshll.u32 %v2021, 16
      %v2384 = vrot.slane %v2382, 6
      %v2385 = vor.u32 %v2381, %v2384
      %v2386 = vsel %vm2038, %v2377, %v2385
      %v2387 = vrot.slane %v2385, 4
      %v2389 = vshrl.u32 %v2022, 16
      %v2391 = vrot.slane %v2389, 5
      %v2392 = vshll.u32 %v2022, 16
      %v2394 = vrot.slane %v2392, 6
      %v2395 = vor.u32 %v2391, %v2394
      %v2396 = vsel %vm2038, %v2387, %v2395
      %v2397 = vrot.slane %v2395, 4
      %v2399 = vshrl.u32 %v2023, 16
      %v2401 = vrot.slane %v2399, 5
      %v2402 = vshll.u32 %v2023, 16
      %v2404 = vrot.slane %v2402, 6
      %v2405 = vor.u32 %v2401, %v2404
      %v2406 = vsel %vm2038, %v2397, %v2405
      %v2407 = vrot.slane %v2405, 4
      %v2409 = vshrl.u32 %v2024, 16
      %v2411 = vrot.slane %v2409, 5
      %v2412 = vshll.u32 %v2024, 16
      %v2414 = vrot.slane %v2412, 6
      %v2415 = vor.u32 %v2411, %v2414
      %v2416 = vsel %vm2038, %v2407, %v2415
      %v2417 = vrot.slane %v2415, 4
      %v2419 = vshrl.u32 %v2025, 16
      %v2421 = vrot.slane %v2419, 5
      %v2422 = vshll.u32 %v2025, 16
      %v2424 = vrot.slane %v2422, 6
      %v2425 = vor.u32 %v2421, %v2424
      %v2426 = vsel %vm2038, %v2417, %v2425
      %v2427 = vrot.slane %v2425, 4
      %v2429 = vshrl.u32 %v2026, 16
      %v2431 = vrot.slane %v2429, 5
      %v2432 = vshll.u32 %v2026, 16
      %v2434 = vrot.slane %v2432, 6
      %v2435 = vor.u32 %v2431, %v2434
      %v2436 = vsel %vm2038, %v2427, %v2435
      %v2437 = vrot.slane %v2435, 4
      %v2439 = vshrl.u32 %v2027, 16
      %v2441 = vrot.slane %v2439, 5
      %v2442 = vshll.u32 %v2027, 16
      %v2444 = vrot.slane %v2442, 6
      %v2445 = vor.u32 %v2441, %v2444
      %v2446 = vsel %vm2038, %v2437, %v2445
      %v2447 = vrot.slane %v2445, 4
      %v2449 = vshrl.u32 %v2028, 16
      %v2451 = vrot.slane %v2449, 5
      %v2452 = vshll.u32 %v2028, 16
      %v2454 = vrot.slane %v2452, 6
      %v2455 = vor.u32 %v2451, %v2454
      %v2456 = vsel %vm2038, %v2447, %v2455
      %v2457 = vrot.slane %v2455, 4
      %v2459 = vshrl.u32 %v2029, 16
      %v2461 = vrot.slane %v2459, 5
      %v2462 = vshll.u32 %v2029, 16
      %v2464 = vrot.slane %v2462, 6
      %v2465 = vor.u32 %v2461, %v2464
      %v2466 = vsel %vm2038, %v2457, %v2465
      %v2467 = vrot.slane %v2465, 4
      %v2469 = vshrl.u32 %v2030, 16
      %v2471 = vrot.slane %v2469, 5
      %v2472 = vshll.u32 %v2030, 16
      %v2474 = vrot.slane %v2472, 6
      %v2475 = vor.u32 %v2471, %v2474
      %v2476 = vsel %vm2038, %v2467, %v2475
      %v2477 = vrot.slane %v2475, 4
      %v2479 = vshrl.u32 %v2031, 16
      %v2481 = vrot.slane %v2479, 5
      %v2482 = vshll.u32 %v2031, 16
      %v2484 = vrot.slane %v2482, 6
      %v2485 = vor.u32 %v2481, %v2484
      %v2486 = vsel %vm2038, %v2477, %v2485
      %v2487 = vrot.slane %v2485, 4
      %v2489 = vshrl.u32 %v2032, 16
      %v2491 = vrot.slane %v2489, 5
      %v2492 = vshll.u32 %v2032, 16
      %v2494 = vrot.slane %v2492, 6
      %v2495 = vor.u32 %v2491, %v2494
      %v2496 = vsel %vm2038, %v2487, %v2495
      %v2497 = vrot.slane %v2495, 4
      %v2499 = vshrl.u32 %v2033, 16
      %v2501 = vrot.slane %v2499, 5
      %v2502 = vshll.u32 %v2033, 16
      %v2504 = vrot.slane %v2502, 6
      %v2505 = vor.u32 %v2501, %v2504
      %v2506 = vsel %vm2038, %v2497, %v2505
      %v2507 = vrot.slane %v2505, 4
      %v2509 = vshrl.u32 %v2034, 16
      %v2511 = vrot.slane %v2509, 5
      %v2512 = vshll.u32 %v2034, 16
      %v2514 = vrot.slane %v2512, 6
      %v2515 = vor.u32 %v2511, %v2514
      %v2516 = vsel %vm2038, %v2507, %v2515
      %v2517 = vrot.slane %v2515, 4
      %v2519 = vshrl.u32 %v2035, 16
      %v2521 = vrot.slane %v2519, 5
      %v2522 = vshll.u32 %v2035, 16
      %v2524 = vrot.slane %v2522, 6
      %v2525 = vor.u32 %v2521, %v2524
      %v2526 = vsel %vm2038, %v2517, %v2525
      %2527 = vrot.lane.b32.xlu0 %v2056, 32
      %v2528 = vpop.permute.xlu0 %2527
      %2529 = vrot.lane.b32.xlu0 %v2066, 32
      %v2530 = vpop.permute.xlu0 %2529
      %2531 = vrot.lane.b32.xlu0 %v2076, 32
      %v2532 = vpop.permute.xlu0 %2531
      %2533 = vrot.lane.b32.xlu0 %v2086, 32
      %v2534 = vpop.permute.xlu0 %2533
      %2535 = vrot.lane.b32.xlu0 %v2096, 32
      %v2536 = vpop.permute.xlu0 %2535
      %2537 = vrot.lane.b32.xlu0 %v2106, 32
      %v2538 = vpop.permute.xlu0 %2537
      %2539 = vrot.lane.b32.xlu0 %v2116, 32
      %v2540 = vpop.permute.xlu0 %2539
      %2541 = vrot.lane.b32.xlu0 %v2126, 32
      %v2542 = vpop.permute.xlu0 %2541
      %2543 = vrot.lane.b32.xlu0 %v2136, 32
      %v2544 = vpop.permute.xlu0 %2543
      %2545 = vrot.lane.b32.xlu0 %v2146, 32
      %v2546 = vpop.permute.xlu0 %2545
      %2547 = vrot.lane.b32.xlu0 %v2156, 32
      %v2548 = vpop.permute.xlu0 %2547
      %2549 = vrot.lane.b32.xlu0 %v2166, 32
      %v2550 = vpop.permute.xlu0 %2549
      %2551 = vrot.lane.b32.xlu0 %v2176, 32
      %v2552 = vpop.permute.xlu0 %2551
      %2553 = vrot.lane.b32.xlu0 %v2186, 32
      %v2554 = vpop.permute.xlu0 %2553
      %2555 = vrot.lane.b32.xlu0 %v2196, 32
      %v2556 = vpop.permute.xlu0 %2555
      %2557 = vrot.lane.b32.xlu0 %v2206, 32
      %v2558 = vpop.permute.xlu0 %2557
      %2559 = vrot.lane.b32.xlu0 %v2216, 32
      %v2560 = vpop.permute.xlu0 %2559
      %2561 = vrot.lane.b32.xlu0 %v2226, 32
      %v2562 = vpop.permute.xlu0 %2561
      %2563 = vrot.lane.b32.xlu0 %v2236, 32
      %v2564 = vpop.permute.xlu0 %2563
      %2565 = vrot.lane.b32.xlu0 %v2246, 32
      %v2566 = vpop.permute.xlu0 %2565
      %2567 = vrot.lane.b32.xlu0 %v2256, 32
      %v2568 = vpop.permute.xlu0 %2567
      %2569 = vrot.lane.b32.xlu0 %v2266, 32
      %v2570 = vpop.permute.xlu0 %2569
      %2571 = vrot.lane.b32.xlu0 %v2276, 32
      %v2572 = vpop.permute.xlu0 %2571
      %2573 = vrot.lane.b32.xlu0 %v2286, 32
      %v2574 = vpop.permute.xlu0 %2573
      %2575 = vrot.lane.b32.xlu0 %v2296, 32
      %v2576 = vpop.permute.xlu0 %2575
      %2577 = vrot.lane.b32.xlu0 %v2306, 32
      %v2578 = vpop.permute.xlu0 %2577
      %2579 = vrot.lane.b32.xlu0 %v2316, 32
      %v2580 = vpop.permute.xlu0 %2579
      %2581 = vrot.lane.b32.xlu0 %v2326, 32
      %v2582 = vpop.permute.xlu0 %2581
      %2583 = vrot.lane.b32.xlu0 %v2336, 32
      %v2584 = vpop.permute.xlu0 %2583
      %2585 = vrot.lane.b32.xlu0 %v2346, 32
      %v2586 = vpop.permute.xlu0 %2585
      %2587 = vrot.lane.b32.xlu0 %v2356, 32
      %v2588 = vpop.permute.xlu0 %2587
      %2589 = vrot.lane.b32.xlu0 %v2366, 32
      %v2590 = vpop.permute.xlu0 %2589
      %2591 = vrot.lane.b32.xlu0 %v2376, 32
      %v2592 = vpop.permute.xlu0 %2591
      %2593 = vrot.lane.b32.xlu0 %v2386, 32
      %v2594 = vpop.permute.xlu0 %2593
      %2595 = vrot.lane.b32.xlu0 %v2396, 32
      %v2596 = vpop.permute.xlu0 %2595
      %2597 = vrot.lane.b32.xlu0 %v2406, 32
      %v2598 = vpop.permute.xlu0 %2597
      %2599 = vrot.lane.b32.xlu0 %v2416, 32
      %v2600 = vpop.permute.xlu0 %2599
      %2601 = vrot.lane.b32.xlu0 %v2426, 32
      %v2602 = vpop.permute.xlu0 %2601
      %2603 = vrot.lane.b32.xlu0 %v2436, 32
      %v2604 = vpop.permute.xlu0 %2603
      %2605 = vrot.lane.b32.xlu0 %v2446, 32
      %v2606 = vpop.permute.xlu0 %2605
      %2607 = vrot.lane.b32.xlu0 %v2456, 32
      %v2608 = vpop.permute.xlu0 %2607
      %2609 = vrot.lane.b32.xlu0 %v2466, 32
      %v2610 = vpop.permute.xlu0 %2609
      %2611 = vrot.lane.b32.xlu0 %v2476, 32
      %v2612 = vpop.permute.xlu0 %2611
      %2613 = vrot.lane.b32.xlu0 %v2486, 32
      %v2614 = vpop.permute.xlu0 %2613
      %2615 = vrot.lane.b32.xlu0 %v2496, 32
      %v2616 = vpop.permute.xlu0 %2615
      %2617 = vrot.lane.b32.xlu0 %v2506, 32
      %v2618 = vpop.permute.xlu0 %2617
      %2619 = vrot.lane.b32.xlu0 %v2516, 32
      %v2620 = vpop.permute.xlu0 %2619
      %2621 = vrot.lane.b32.xlu0 %v2526, 32
      %v2622 = vpop.permute.xlu0 %2621
      %vm2671 = vcmask 322816
      %2672 = vst.msk [vmem:[#allocation2] sm:$0xf] %vm2671, %v2528
      %2673 = vst.msk [vmem:[#allocation2 + $0x4] sm:$0xf] %vm2671, %v2530
      %2674 = vst.msk [vmem:[#allocation2 + $0x8] sm:$0xf] %vm2671, %v2532
      %2675 = vst.msk [vmem:[#allocation2 + $0xc] sm:$0xf] %vm2671, %v2534
      %2676 = vst.msk [vmem:[#allocation2 + $0x10] sm:$0xf] %vm2671, %v2536
      %2677 = vst.msk [vmem:[#allocation2 + $0x14] sm:$0xf] %vm2671, %v2538
      %2678 = vst.msk [vmem:[#allocation2 + $0x18] sm:$0xf] %vm2671, %v2540
      %2679 = vst.msk [vmem:[#allocation2 + $0x1c] sm:$0xf] %vm2671, %v2542
      %2680 = vst.msk [vmem:[#allocation2 + $0x20] sm:$0xf] %vm2671, %v2544
      %2681 = vst.msk [vmem:[#allocation2 + $0x24] sm:$0xf] %vm2671, %v2546
      %2682 = vst.msk [vmem:[#allocation2 + $0x28] sm:$0xf] %vm2671, %v2548
      %2683 = vst.msk [vmem:[#allocation2 + $0x2c] sm:$0xf] %vm2671, %v2550
      %2684 = vst.msk [vmem:[#allocation2 + $0x30] sm:$0xf] %vm2671, %v2552
      %2685 = vst.msk [vmem:[#allocation2 + $0x34] sm:$0xf] %vm2671, %v2554
      %2686 = vst.msk [vmem:[#allocation2 + $0x38] sm:$0xf] %vm2671, %v2556
      %2687 = vst.msk [vmem:[#allocation2 + $0x3c] sm:$0xf] %vm2671, %v2558
      %2688 = vst.msk [vmem:[#allocation2 + $0x40] sm:$0xf] %vm2671, %v2560
      %2689 = vst.msk [vmem:[#allocation2 + $0x44] sm:$0xf] %vm2671, %v2562
      %2690 = vst.msk [vmem:[#allocation2 + $0x48] sm:$0xf] %vm2671, %v2564
      %2691 = vst.msk [vmem:[#allocation2 + $0x4c] sm:$0xf] %vm2671, %v2566
      %2692 = vst.msk [vmem:[#allocation2 + $0x50] sm:$0xf] %vm2671, %v2568
      %2693 = vst.msk [vmem:[#allocation2 + $0x54] sm:$0xf] %vm2671, %v2570
      %2694 = vst.msk [vmem:[#allocation2 + $0x58] sm:$0xf] %vm2671, %v2572
      %2695 = vst.msk [vmem:[#allocation2 + $0x5c] sm:$0xf] %vm2671, %v2574
      %2696 = vst.msk [vmem:[#allocation2 + $0x60] sm:$0xf] %vm2671, %v2576
      %2697 = vst.msk [vmem:[#allocation2 + $0x64] sm:$0xf] %vm2671, %v2578
      %2698 = vst.msk [vmem:[#allocation2 + $0x68] sm:$0xf] %vm2671, %v2580
      %2699 = vst.msk [vmem:[#allocation2 + $0x6c] sm:$0xf] %vm2671, %v2582
      %2700 = vst.msk [vmem:[#allocation2 + $0x70] sm:$0xf] %vm2671, %v2584
      %2701 = vst.msk [vmem:[#allocation2 + $0x74] sm:$0xf] %vm2671, %v2586
      %2702 = vst.msk [vmem:[#allocation2 + $0x78] sm:$0xf] %vm2671, %v2588
      %2703 = vst.msk [vmem:[#allocation2 + $0x7c] sm:$0xf] %vm2671, %v2590
      %2704 = vst.msk [vmem:[#allocation2 + $0x80] sm:$0xf] %vm2671, %v2592
      %2705 = vst.msk [vmem:[#allocation2 + $0x84] sm:$0xf] %vm2671, %v2594
      %2706 = vst.msk [vmem:[#allocation2 + $0x88] sm:$0xf] %vm2671, %v2596
      %2707 = vst.msk [vmem:[#allocation2 + $0x8c] sm:$0xf] %vm2671, %v2598
      %2708 = vst.msk [vmem:[#allocation2 + $0x90] sm:$0xf] %vm2671, %v2600
      %2709 = vst.msk [vmem:[#allocation2 + $0x94] sm:$0xf] %vm2671, %v2602
      %2710 = vst.msk [vmem:[#allocation2 + $0x98] sm:$0xf] %vm2671, %v2604
      %2711 = vst.msk [vmem:[#allocation2 + $0x9c] sm:$0xf] %vm2671, %v2606
      %2712 = vst.msk [vmem:[#allocation2 + $0xa0] sm:$0xf] %vm2671, %v2608
      %2713 = vst.msk [vmem:[#allocation2 + $0xa4] sm:$0xf] %vm2671, %v2610
      %2714 = vst.msk [vmem:[#allocation2 + $0xa8] sm:$0xf] %vm2671, %v2612
      %2715 = vst.msk [vmem:[#allocation2 + $0xac] sm:$0xf] %vm2671, %v2614
      %2716 = vst.msk [vmem:[#allocation2 + $0xb0] sm:$0xf] %vm2671, %v2616
      %2717 = vst.msk [vmem:[#allocation2 + $0xb4] sm:$0xf] %vm2671, %v2618
      %2718 = vst.msk [vmem:[#allocation2 + $0xb8] sm:$0xf] %vm2671, %v2620
      %2719 = vst.msk [vmem:[#allocation2 + $0xbc] sm:$0xf] %vm2671, %v2622
      %v2720 = vld [vmem:[%s273 + $0x8] sm:$0xc]
      %v2721 = vld [vmem:[%s273 + $0xc] sm:$0xf]
      %v2722 = vld [vmem:[%s273 + $0x10] sm:$0xf]
      %v2723 = vld [vmem:[%s273 + $0x14] sm:$0xf]
      %v2724 = vld [vmem:[%s273 + $0x18] sm:$0xf]
      %v2725 = vld [vmem:[%s273 + $0x1c] sm:$0xf]
      %v2726 = vld [vmem:[%s273 + $0x20] sm:$0xf]
      %v2727 = vld [vmem:[%s273 + $0x24] sm:$0xf]
      %v2728 = vld [vmem:[%s273 + $0x28] sm:$0xf]
      %v2729 = vld [vmem:[%s273 + $0x2c] sm:$0xf]
      %v2730 = vld [vmem:[%s273 + $0x30] sm:$0xf]
      %v2731 = vld [vmem:[%s273 + $0x34] sm:$0xf]
      %v2732 = vld [vmem:[%s273 + $0x38] sm:$0xf]
      %v2733 = vld [vmem:[%s273 + $0x3c] sm:$0xf]
      %v2734 = vld [vmem:[%s273 + $0x40] sm:$0xf]
      %v2735 = vld [vmem:[%s273 + $0x44] sm:$0xf]
      %v2736 = vld [vmem:[%s273 + $0x48] sm:$0xf]
      %v2737 = vld [vmem:[%s273 + $0x4c] sm:$0xf]
      %v2738 = vld [vmem:[%s273 + $0x50] sm:$0xf]
      %v2739 = vld [vmem:[%s273 + $0x54] sm:$0xf]
      %v2740 = vld [vmem:[%s273 + $0x58] sm:$0xf]
      %v2741 = vld [vmem:[%s273 + $0x5c] sm:$0xf]
      %v2742 = vld [vmem:[%s273 + $0x60] sm:$0xf]
      %v2743 = vld [vmem:[%s273 + $0x64] sm:$0xf]
      %v2744 = vld [vmem:[%s273 + $0x68] sm:$0xf]
      %v2745 = vld [vmem:[%s273 + $0x6c] sm:$0xf]
      %v2746 = vld [vmem:[%s273 + $0x70] sm:$0xf]
      %v2747 = vld [vmem:[%s273 + $0x74] sm:$0xf]
      %v2748 = vld [vmem:[%s273 + $0x78] sm:$0xf]
      %v2749 = vld [vmem:[%s273 + $0x7c] sm:$0xf]
      %v2750 = vld [vmem:[%s273 + $0x80] sm:$0xf]
      %v2751 = vld [vmem:[%s273 + $0x84] sm:$0xf]
      %v2752 = vld [vmem:[%s273 + $0x88] sm:$0xf]
      %v2753 = vld [vmem:[%s273 + $0x8c] sm:$0xf]
      %v2754 = vld [vmem:[%s273 + $0x90] sm:$0xf]
      %v2755 = vld [vmem:[%s273 + $0x94] sm:$0xf]
      %v2756 = vld [vmem:[%s273 + $0x98] sm:$0xf]
      %v2757 = vld [vmem:[%s273 + $0x9c] sm:$0xf]
      %v2758 = vld [vmem:[%s273 + $0xa0] sm:$0xf]
      %v2759 = vld [vmem:[%s273 + $0xa4] sm:$0xf]
      %v2760 = vld [vmem:[%s273 + $0xa8] sm:$0xf]
      %v2761 = vld [vmem:[%s273 + $0xac] sm:$0xf]
      %v2762 = vld [vmem:[%s273 + $0xb0] sm:$0xf]
      %v2763 = vld [vmem:[%s273 + $0xb4] sm:$0xf]
      %v2764 = vld [vmem:[%s273 + $0xb8] sm:$0xf]
      %v2765 = vld [vmem:[%s273 + $0xbc] sm:$0xf]
      %v2766 = vld [vmem:[%s273 + $0xc0] sm:$0xf]
      %v2767 = vld [vmem:[%s273 + $0xc4] sm:$0xf]
      %v2768 = vld [vmem:[%s273 + $0xc8] sm:$0x3]
      %vm2818 = vcmask 1041408
      %vm2819 = vcmask 1045508
      %vm2820 = vmor %vm2818, %vm2819
      %v2821 = vrot.slane %v2720, 6
      %v2822 = vrot.slane %v2821, 4
      %v2823 = vrot.slane %v2721, 6
      %v2824 = vsel %vm2820, %v2822, %v2823
      %v2825 = vrot.slane %v2823, 4
      %v2826 = vrot.slane %v2722, 6
      %v2827 = vsel %vm2820, %v2825, %v2826
      %v2828 = vrot.slane %v2826, 4
      %v2829 = vrot.slane %v2723, 6
      %v2830 = vsel %vm2820, %v2828, %v2829
      %v2831 = vrot.slane %v2829, 4
      %v2832 = vrot.slane %v2724, 6
      %v2833 = vsel %vm2820, %v2831, %v2832
      %v2834 = vrot.slane %v2832, 4
      %v2835 = vrot.slane %v2725, 6
      %v2836 = vsel %vm2820, %v2834, %v2835
      %v2837 = vrot.slane %v2835, 4
      %v2838 = vrot.slane %v2726, 6
      %v2839 = vsel %vm2820, %v2837, %v2838
      %v2840 = vrot.slane %v2838, 4
      %v2841 = vrot.slane %v2727, 6
      %v2842 = vsel %vm2820, %v2840, %v2841
      %v2843 = vrot.slane %v2841, 4
      %v2844 = vrot.slane %v2728, 6
      %v2845 = vsel %vm2820, %v2843, %v2844
      %v2846 = vrot.slane %v2844, 4
      %v2847 = vrot.slane %v2729, 6
      %v2848 = vsel %vm2820, %v2846, %v2847
      %v2849 = vrot.slane %v2847, 4
      %v2850 = vrot.slane %v2730, 6
      %v2851 = vsel %vm2820, %v2849, %v2850
      %v2852 = vrot.slane %v2850, 4
      %v2853 = vrot.slane %v2731, 6
      %v2854 = vsel %vm2820, %v2852, %v2853
      %v2855 = vrot.slane %v2853, 4
      %v2856 = vrot.slane %v2732, 6
      %v2857 = vsel %vm2820, %v2855, %v2856
      %v2858 = vrot.slane %v2856, 4
      %v2859 = vrot.slane %v2733, 6
      %v2860 = vsel %vm2820, %v2858, %v2859
      %v2861 = vrot.slane %v2859, 4
      %v2862 = vrot.slane %v2734, 6
      %v2863 = vsel %vm2820, %v2861, %v2862
      %v2864 = vrot.slane %v2862, 4
      %v2865 = vrot.slane %v2735, 6
      %v2866 = vsel %vm2820, %v2864, %v2865
      %v2867 = vrot.slane %v2865, 4
      %v2868 = vrot.slane %v2736, 6
      %v2869 = vsel %vm2820, %v2867, %v2868
      %v2870 = vrot.slane %v2868, 4
      %v2871 = vrot.slane %v2737, 6
      %v2872 = vsel %vm2820, %v2870, %v2871
      %v2873 = vrot.slane %v2871, 4
      %v2874 = vrot.slane %v2738, 6
      %v2875 = vsel %vm2820, %v2873, %v2874
      %v2876 = vrot.slane %v2874, 4
      %v2877 = vrot.slane %v2739, 6
      %v2878 = vsel %vm2820, %v2876, %v2877
      %v2879 = vrot.slane %v2877, 4
      %v2880 = vrot.slane %v2740, 6
      %v2881 = vsel %vm2820, %v2879, %v2880
      %v2882 = vrot.slane %v2880, 4
      %v2883 = vrot.slane %v2741, 6
      %v2884 = vsel %vm2820, %v2882, %v2883
      %v2885 = vrot.slane %v2883, 4
      %v2886 = vrot.slane %v2742, 6
      %v2887 = vsel %vm2820, %v2885, %v2886
      %v2888 = vrot.slane %v2886, 4
      %v2889 = vrot.slane %v2743, 6
      %v2890 = vsel %vm2820, %v2888, %v2889
      %v2891 = vrot.slane %v2889, 4
      %v2892 = vrot.slane %v2744, 6
      %v2893 = vsel %vm2820, %v2891, %v2892
      %v2894 = vrot.slane %v2892, 4
      %v2895 = vrot.slane %v2745, 6
      %v2896 = vsel %vm2820, %v2894, %v2895
      %v2897 = vrot.slane %v2895, 4
      %v2898 = vrot.slane %v2746, 6
      %v2899 = vsel %vm2820, %v2897, %v2898
      %v2900 = vrot.slane %v2898, 4
      %v2901 = vrot.slane %v2747, 6
      %v2902 = vsel %vm2820, %v2900, %v2901
      %v2903 = vrot.slane %v2901, 4
      %v2904 = vrot.slane %v2748, 6
      %v2905 = vsel %vm2820, %v2903, %v2904
      %v2906 = vrot.slane %v2904, 4
      %v2907 = vrot.slane %v2749, 6
      %v2908 = vsel %vm2820, %v2906, %v2907
      %v2909 = vrot.slane %v2907, 4
      %v2910 = vrot.slane %v2750, 6
      %v2911 = vsel %vm2820, %v2909, %v2910
      %v2912 = vrot.slane %v2910, 4
      %v2913 = vrot.slane %v2751, 6
      %v2914 = vsel %vm2820, %v2912, %v2913
      %v2915 = vrot.slane %v2913, 4
      %v2916 = vrot.slane %v2752, 6
      %v2917 = vsel %vm2820, %v2915, %v2916
      %v2918 = vrot.slane %v2916, 4
      %v2919 = vrot.slane %v2753, 6
      %v2920 = vsel %vm2820, %v2918, %v2919
      %v2921 = vrot.slane %v2919, 4
      %v2922 = vrot.slane %v2754, 6
      %v2923 = vsel %vm2820, %v2921, %v2922
      %v2924 = vrot.slane %v2922, 4
      %v2925 = vrot.slane %v2755, 6
      %v2926 = vsel %vm2820, %v2924, %v2925
      %v2927 = vrot.slane %v2925, 4
      %v2928 = vrot.slane %v2756, 6
      %v2929 = vsel %vm2820, %v2927, %v2928
      %v2930 = vrot.slane %v2928, 4
      %v2931 = vrot.slane %v2757, 6
      %v2932 = vsel %vm2820, %v2930, %v2931
      %v2933 = vrot.slane %v2931, 4
      %v2934 = vrot.slane %v2758, 6
      %v2935 = vsel %vm2820, %v2933, %v2934
      %v2936 = vrot.slane %v2934, 4
      %v2937 = vrot.slane %v2759, 6
      %v2938 = vsel %vm2820, %v2936, %v2937
      %v2939 = vrot.slane %v2937, 4
      %v2940 = vrot.slane %v2760, 6
      %v2941 = vsel %vm2820, %v2939, %v2940
      %v2942 = vrot.slane %v2940, 4
      %v2943 = vrot.slane %v2761, 6
      %v2944 = vsel %vm2820, %v2942, %v2943
      %v2945 = vrot.slane %v2943, 4
      %v2946 = vrot.slane %v2762, 6
      %v2947 = vsel %vm2820, %v2945, %v2946
      %v2948 = vrot.slane %v2946, 4
      %v2949 = vrot.slane %v2763, 6
      %v2950 = vsel %vm2820, %v2948, %v2949
      %v2951 = vrot.slane %v2949, 4
      %v2952 = vrot.slane %v2764, 6
      %v2953 = vsel %vm2820, %v2951, %v2952
      %v2954 = vrot.slane %v2952, 4
      %v2955 = vrot.slane %v2765, 6
      %v2956 = vsel %vm2820, %v2954, %v2955
      %v2957 = vrot.slane %v2955, 4
      %v2958 = vrot.slane %v2766, 6
      %v2959 = vsel %vm2820, %v2957, %v2958
      %v2960 = vrot.slane %v2958, 4
      %v2961 = vrot.slane %v2767, 6
      %v2962 = vsel %vm2820, %v2960, %v2961
      %v2963 = vrot.slane %v2961, 4
      %v2964 = vrot.slane %v2768, 6
      %v2965 = vsel %vm2820, %v2963, %v2964
      %2966 = vrot.lane.b32.xlu0 %v2824, 40
      %v2967 = vpop.permute.xlu0 %2966
      %2968 = vrot.lane.b32.xlu0 %v2827, 40
      %v2969 = vpop.permute.xlu0 %2968
      %2970 = vrot.lane.b32.xlu0 %v2830, 40
      %v2971 = vpop.permute.xlu0 %2970
      %2972 = vrot.lane.b32.xlu0 %v2833, 40
      %v2973 = vpop.permute.xlu0 %2972
      %2974 = vrot.lane.b32.xlu0 %v2836, 40
      %v2975 = vpop.permute.xlu0 %2974
      %2976 = vrot.lane.b32.xlu0 %v2839, 40
      %v2977 = vpop.permute.xlu0 %2976
      %2978 = vrot.lane.b32.xlu0 %v2842, 40
      %v2979 = vpop.permute.xlu0 %2978
      %2980 = vrot.lane.b32.xlu0 %v2845, 40
      %v2981 = vpop.permute.xlu0 %2980
      %2982 = vrot.lane.b32.xlu0 %v2848, 40
      %v2983 = vpop.permute.xlu0 %2982
      %2984 = vrot.lane.b32.xlu0 %v2851, 40
      %v2985 = vpop.permute.xlu0 %2984
      %2986 = vrot.lane.b32.xlu0 %v2854, 40
      %v2987 = vpop.permute.xlu0 %2986
      %2988 = vrot.lane.b32.xlu0 %v2857, 40
      %v2989 = vpop.permute.xlu0 %2988
      %2990 = vrot.lane.b32.xlu0 %v2860, 40
      %v2991 = vpop.permute.xlu0 %2990
      %2992 = vrot.lane.b32.xlu0 %v2863, 40
      %v2993 = vpop.permute.xlu0 %2992
      %2994 = vrot.lane.b32.xlu0 %v2866, 40
      %v2995 = vpop.permute.xlu0 %2994
      %2996 = vrot.lane.b32.xlu0 %v2869, 40
      %v2997 = vpop.permute.xlu0 %2996
      %2998 = vrot.lane.b32.xlu0 %v2872, 40
      %v2999 = vpop.permute.xlu0 %2998
      %3000 = vrot.lane.b32.xlu0 %v2875, 40
      %v3001 = vpop.permute.xlu0 %3000
      %3002 = vrot.lane.b32.xlu0 %v2878, 40
      %v3003 = vpop.permute.xlu0 %3002
      %3004 = vrot.lane.b32.xlu0 %v2881, 40
      %v3005 = vpop.permute.xlu0 %3004
      %3006 = vrot.lane.b32.xlu0 %v2884, 40
      %v3007 = vpop.permute.xlu0 %3006
      %3008 = vrot.lane.b32.xlu0 %v2887, 40
      %v3009 = vpop.permute.xlu0 %3008
      %3010 = vrot.lane.b32.xlu0 %v2890, 40
      %v3011 = vpop.permute.xlu0 %3010
      %3012 = vrot.lane.b32.xlu0 %v2893, 40
      %v3013 = vpop.permute.xlu0 %3012
      %3014 = vrot.lane.b32.xlu0 %v2896, 40
      %v3015 = vpop.permute.xlu0 %3014
      %3016 = vrot.lane.b32.xlu0 %v2899, 40
      %v3017 = vpop.permute.xlu0 %3016
      %3018 = vrot.lane.b32.xlu0 %v2902, 40
      %v3019 = vpop.permute.xlu0 %3018
      %3020 = vrot.lane.b32.xlu0 %v2905, 40
      %v3021 = vpop.permute.xlu0 %3020
      %3022 = vrot.lane.b32.xlu0 %v2908, 40
      %v3023 = vpop.permute.xlu0 %3022
      %3024 = vrot.lane.b32.xlu0 %v2911, 40
      %v3025 = vpop.permute.xlu0 %3024
      %3026 = vrot.lane.b32.xlu0 %v2914, 40
      %v3027 = vpop.permute.xlu0 %3026
      %3028 = vrot.lane.b32.xlu0 %v2917, 40
      %v3029 = vpop.permute.xlu0 %3028
      %3030 = vrot.lane.b32.xlu0 %v2920, 40
      %v3031 = vpop.permute.xlu0 %3030
      %3032 = vrot.lane.b32.xlu0 %v2923, 40
      %v3033 = vpop.permute.xlu0 %3032
      %3034 = vrot.lane.b32.xlu0 %v2926, 40
      %v3035 = vpop.permute.xlu0 %3034
      %3036 = vrot.lane.b32.xlu0 %v2929, 40
      %v3037 = vpop.permute.xlu0 %3036
      %3038 = vrot.lane.b32.xlu0 %v2932, 40
      %v3039 = vpop.permute.xlu0 %3038
      %3040 = vrot.lane.b32.xlu0 %v2935, 40
      %v3041 = vpop.permute.xlu0 %3040
      %3042 = vrot.lane.b32.xlu0 %v2938, 40
      %v3043 = vpop.permute.xlu0 %3042
      %3044 = vrot.lane.b32.xlu0 %v2941, 40
      %v3045 = vpop.permute.xlu0 %3044
      %3046 = vrot.lane.b32.xlu0 %v2944, 40
      %v3047 = vpop.permute.xlu0 %3046
      %3048 = vrot.lane.b32.xlu0 %v2947, 40
      %v3049 = vpop.permute.xlu0 %3048
      %3050 = vrot.lane.b32.xlu0 %v2950, 40
      %v3051 = vpop.permute.xlu0 %3050
      %3052 = vrot.lane.b32.xlu0 %v2953, 40
      %v3053 = vpop.permute.xlu0 %3052
      %3054 = vrot.lane.b32.xlu0 %v2956, 40
      %v3055 = vpop.permute.xlu0 %3054
      %3056 = vrot.lane.b32.xlu0 %v2959, 40
      %v3057 = vpop.permute.xlu0 %3056
      %3058 = vrot.lane.b32.xlu0 %v2962, 40
      %v3059 = vpop.permute.xlu0 %3058
      %3060 = vrot.lane.b32.xlu0 %v2965, 40
      %v3061 = vpop.permute.xlu0 %3060
      %vm3110 = vcmask 388416
      %3111 = vst.msk [vmem:[#allocation2] sm:$0xf] %vm3110, %v2967
      %3112 = vst.msk [vmem:[#allocation2 + $0x4] sm:$0xf] %vm3110, %v2969
      %3113 = vst.msk [vmem:[#allocation2 + $0x8] sm:$0xf] %vm3110, %v2971
      %3114 = vst.msk [vmem:[#allocation2 + $0xc] sm:$0xf] %vm3110, %v2973
      %3115 = vst.msk [vmem:[#allocation2 + $0x10] sm:$0xf] %vm3110, %v2975
      %3116 = vst.msk [vmem:[#allocation2 + $0x14] sm:$0xf] %vm3110, %v2977
      %3117 = vst.msk [vmem:[#allocation2 + $0x18] sm:$0xf] %vm3110, %v2979
      %3118 = vst.msk [vmem:[#allocation2 + $0x1c] sm:$0xf] %vm3110, %v2981
      %3119 = vst.msk [vmem:[#allocation2 + $0x20] sm:$0xf] %vm3110, %v2983
      %3120 = vst.msk [vmem:[#allocation2 + $0x24] sm:$0xf] %vm3110, %v2985
      %3121 = vst.msk [vmem:[#allocation2 + $0x28] sm:$0xf] %vm3110, %v2987
      %3122 = vst.msk [vmem:[#allocation2 + $0x2c] sm:$0xf] %vm3110, %v2989
      %3123 = vst.msk [vmem:[#allocation2 + $0x30] sm:$0xf] %vm3110, %v2991
      %3124 = vst.msk [vmem:[#allocation2 + $0x34] sm:$0xf] %vm3110, %v2993
      %3125 = vst.msk [vmem:[#allocation2 + $0x38] sm:$0xf] %vm3110, %v2995
      %3126 = vst.msk [vmem:[#allocation2 + $0x3c] sm:$0xf] %vm3110, %v2997
      %3127 = vst.msk [vmem:[#allocation2 + $0x40] sm:$0xf] %vm3110, %v2999
      %3128 = vst.msk [vmem:[#allocation2 + $0x44] sm:$0xf] %vm3110, %v3001
      %3129 = vst.msk [vmem:[#allocation2 + $0x48] sm:$0xf] %vm3110, %v3003
      %3130 = vst.msk [vmem:[#allocation2 + $0x4c] sm:$0xf] %vm3110, %v3005
      %3131 = vst.msk [vmem:[#allocation2 + $0x50] sm:$0xf] %vm3110, %v3007
      %3132 = vst.msk [vmem:[#allocation2 + $0x54] sm:$0xf] %vm3110, %v3009
      %3133 = vst.msk [vmem:[#allocation2 + $0x58] sm:$0xf] %vm3110, %v3011
      %3134 = vst.msk [vmem:[#allocation2 + $0x5c] sm:$0xf] %vm3110, %v3013
      %3135 = vst.msk [vmem:[#allocation2 + $0x60] sm:$0xf] %vm3110, %v3015
      %3136 = vst.msk [vmem:[#allocation2 + $0x64] sm:$0xf] %vm3110, %v3017
      %3137 = vst.msk [vmem:[#allocation2 + $0x68] sm:$0xf] %vm3110, %v3019
      %3138 = vst.msk [vmem:[#allocation2 + $0x6c] sm:$0xf] %vm3110, %v3021
      %3139 = vst.msk [vmem:[#allocation2 + $0x70] sm:$0xf] %vm3110, %v3023
      %3140 = vst.msk [vmem:[#allocation2 + $0x74] sm:$0xf] %vm3110, %v3025
      %3141 = vst.msk [vmem:[#allocation2 + $0x78] sm:$0xf] %vm3110, %v3027
      %3142 = vst.msk [vmem:[#allocation2 + $0x7c] sm:$0xf] %vm3110, %v3029
      %3143 = vst.msk [vmem:[#allocation2 + $0x80] sm:$0xf] %vm3110, %v3031
      %3144 = vst.msk [vmem:[#allocation2 + $0x84] sm:$0xf] %vm3110, %v3033
      %3145 = vst.msk [vmem:[#allocation2 + $0x88] sm:$0xf] %vm3110, %v3035
      %3146 = vst.msk [vmem:[#allocation2 + $0x8c] sm:$0xf] %vm3110, %v3037
      %3147 = vst.msk [vmem:[#allocation2 + $0x90] sm:$0xf] %vm3110, %v3039
      %3148 = vst.msk [vmem:[#allocation2 + $0x94] sm:$0xf] %vm3110, %v3041
      %3149 = vst.msk [vmem:[#allocation2 + $0x98] sm:$0xf] %vm3110, %v3043
      %3150 = vst.msk [vmem:[#allocation2 + $0x9c] sm:$0xf] %vm3110, %v3045
      %3151 = vst.msk [vmem:[#allocation2 + $0xa0] sm:$0xf] %vm3110, %v3047
      %3152 = vst.msk [vmem:[#allocation2 + $0xa4] sm:$0xf] %vm3110, %v3049
      %3153 = vst.msk [vmem:[#allocation2 + $0xa8] sm:$0xf] %vm3110, %v3051
      %3154 = vst.msk [vmem:[#allocation2 + $0xac] sm:$0xf] %vm3110, %v3053
      %3155 = vst.msk [vmem:[#allocation2 + $0xb0] sm:$0xf] %vm3110, %v3055
      %3156 = vst.msk [vmem:[#allocation2 + $0xb4] sm:$0xf] %vm3110, %v3057
      %3157 = vst.msk [vmem:[#allocation2 + $0xb8] sm:$0xf] %vm3110, %v3059
      %3158 = vst.msk [vmem:[#allocation2 + $0xbc] sm:$0xf] %vm3110, %v3061
      %v3159 = vld [vmem:[%s273 + $0x10] sm:$0xc]
      %v3160 = vld [vmem:[%s273 + $0x14] sm:$0xf]
      %v3161 = vld [vmem:[%s273 + $0x18] sm:$0xf]
      %v3162 = vld [vmem:[%s273 + $0x1c] sm:$0xf]
      %v3163 = vld [vmem:[%s273 + $0x20] sm:$0xf]
      %v3164 = vld [vmem:[%s273 + $0x24] sm:$0xf]
      %v3165 = vld [vmem:[%s273 + $0x28] sm:$0xf]
      %v3166 = vld [vmem:[%s273 + $0x2c] sm:$0xf]
      %v3167 = vld [vmem:[%s273 + $0x30] sm:$0xf]
      %v3168 = vld [vmem:[%s273 + $0x34] sm:$0xf]
      %v3169 = vld [vmem:[%s273 + $0x38] sm:$0xf]
      %v3170 = vld [vmem:[%s273 + $0x3c] sm:$0xf]
      %v3171 = vld [vmem:[%s273 + $0x40] sm:$0xf]
      %v3172 = vld [vmem:[%s273 + $0x44] sm:$0xf]
      %v3173 = vld [vmem:[%s273 + $0x48] sm:$0xf]
      %v3174 = vld [vmem:[%s273 + $0x4c] sm:$0xf]
      %v3175 = vld [vmem:[%s273 + $0x50] sm:$0xf]
      %v3176 = vld [vmem:[%s273 + $0x54] sm:$0xf]
      %v3177 = vld [vmem:[%s273 + $0x58] sm:$0xf]
      %v3178 = vld [vmem:[%s273 + $0x5c] sm:$0xf]
      %v3179 = vld [vmem:[%s273 + $0x60] sm:$0xf]
      %v3180 = vld [vmem:[%s273 + $0x64] sm:$0xf]
      %v3181 = vld [vmem:[%s273 + $0x68] sm:$0xf]
      %v3182 = vld [vmem:[%s273 + $0x6c] sm:$0xf]
      %v3183 = vld [vmem:[%s273 + $0x70] sm:$0xf]
      %v3184 = vld [vmem:[%s273 + $0x74] sm:$0xf]
      %v3185 = vld [vmem:[%s273 + $0x78] sm:$0xf]
      %v3186 = vld [vmem:[%s273 + $0x7c] sm:$0xf]
      %v3187 = vld [vmem:[%s273 + $0x80] sm:$0xf]
      %v3188 = vld [vmem:[%s273 + $0x84] sm:$0xf]
      %v3189 = vld [vmem:[%s273 + $0x88] sm:$0xf]
      %v3190 = vld [vmem:[%s273 + $0x8c] sm:$0xf]
      %v3191 = vld [vmem:[%s273 + $0x90] sm:$0xf]
      %v3192 = vld [vmem:[%s273 + $0x94] sm:$0xf]
      %v3193 = vld [vmem:[%s273 + $0x98] sm:$0xf]
      %v3194 = vld [vmem:[%s273 + $0x9c] sm:$0xf]
      %v3195 = vld [vmem:[%s273 + $0xa0] sm:$0xf]
      %v3196 = vld [vmem:[%s273 + $0xa4] sm:$0xf]
      %v3197 = vld [vmem:[%s273 + $0xa8] sm:$0xf]
      %v3198 = vld [vmem:[%s273 + $0xac] sm:$0xf]
      %v3199 = vld [vmem:[%s273 + $0xb0] sm:$0xf]
      %v3200 = vld [vmem:[%s273 + $0xb4] sm:$0xf]
      %v3201 = vld [vmem:[%s273 + $0xb8] sm:$0xf]
      %v3202 = vld [vmem:[%s273 + $0xbc] sm:$0xf]
      %v3203 = vld [vmem:[%s273 + $0xc0] sm:$0xf]
      %v3204 = vld [vmem:[%s273 + $0xc4] sm:$0xf]
      %v3205 = vld [vmem:[%s273 + $0xc8] sm:$0xf]
      %v3206 = vld [vmem:[%s273 + $0xcc] sm:$0xf]
      %v3207 = vld [vmem:[%s273 + $0xd0] sm:$0x3]
      %v3257 = vrot.slane %v3159, 6
      %v3258 = vrot.slane %v3257, 4
      %v3259 = vrot.slane %v3160, 6
      %v3260 = vsel %vm2820, %v3258, %v3259
      %v3261 = vrot.slane %v3259, 4
      %v3262 = vrot.slane %v3161, 6
      %v3263 = vsel %vm2820, %v3261, %v3262
      %v3264 = vrot.slane %v3262, 4
      %v3265 = vrot.slane %v3162, 6
      %v3266 = vsel %vm2820, %v3264, %v3265
      %v3267 = vrot.slane %v3265, 4
      %v3268 = vrot.slane %v3163, 6
      %v3269 = vsel %vm2820, %v3267, %v3268
      %v3270 = vrot.slane %v3268, 4
      %v3271 = vrot.slane %v3164, 6
      %v3272 = vsel %vm2820, %v3270, %v3271
      %v3273 = vrot.slane %v3271, 4
      %v3274 = vrot.slane %v3165, 6
      %v3275 = vsel %vm2820, %v3273, %v3274
      %v3276 = vrot.slane %v3274, 4
      %v3277 = vrot.slane %v3166, 6
      %v3278 = vsel %vm2820, %v3276, %v3277
      %v3279 = vrot.slane %v3277, 4
      %v3280 = vrot.slane %v3167, 6
      %v3281 = vsel %vm2820, %v3279, %v3280
      %v3282 = vrot.slane %v3280, 4
      %v3283 = vrot.slane %v3168, 6
      %v3284 = vsel %vm2820, %v3282, %v3283
      %v3285 = vrot.slane %v3283, 4
      %v3286 = vrot.slane %v3169, 6
      %v3287 = vsel %vm2820, %v3285, %v3286
      %v3288 = vrot.slane %v3286, 4
      %v3289 = vrot.slane %v3170, 6
      %v3290 = vsel %vm2820, %v3288, %v3289
      %v3291 = vrot.slane %v3289, 4
      %v3292 = vrot.slane %v3171, 6
      %v3293 = vsel %vm2820, %v3291, %v3292
      %v3294 = vrot.slane %v3292, 4
      %v3295 = vrot.slane %v3172, 6
      %v3296 = vsel %vm2820, %v3294, %v3295
      %v3297 = vrot.slane %v3295, 4
      %v3298 = vrot.slane %v3173, 6
      %v3299 = vsel %vm2820, %v3297, %v3298
      %v3300 = vrot.slane %v3298, 4
      %v3301 = vrot.slane %v3174, 6
      %v3302 = vsel %vm2820, %v3300, %v3301
      %v3303 = vrot.slane %v3301, 4
      %v3304 = vrot.slane %v3175, 6
      %v3305 = vsel %vm2820, %v3303, %v3304
      %v3306 = vrot.slane %v3304, 4
      %v3307 = vrot.slane %v3176, 6
      %v3308 = vsel %vm2820, %v3306, %v3307
      %v3309 = vrot.slane %v3307, 4
      %v3310 = vrot.slane %v3177, 6
      %v3311 = vsel %vm2820, %v3309, %v3310
      %v3312 = vrot.slane %v3310, 4
      %v3313 = vrot.slane %v3178, 6
      %v3314 = vsel %vm2820, %v3312, %v3313
      %v3315 = vrot.slane %v3313, 4
      %v3316 = vrot.slane %v3179, 6
      %v3317 = vsel %vm2820, %v3315, %v3316
      %v3318 = vrot.slane %v3316, 4
      %v3319 = vrot.slane %v3180, 6
      %v3320 = vsel %vm2820, %v3318, %v3319
      %v3321 = vrot.slane %v3319, 4
      %v3322 = vrot.slane %v3181, 6
      %v3323 = vsel %vm2820, %v3321, %v3322
      %v3324 = vrot.slane %v3322, 4
      %v3325 = vrot.slane %v3182, 6
      %v3326 = vsel %vm2820, %v3324, %v3325
      %v3327 = vrot.slane %v3325, 4
      %v3328 = vrot.slane %v3183, 6
      %v3329 = vsel %vm2820, %v3327, %v3328
      %v3330 = vrot.slane %v3328, 4
      %v3331 = vrot.slane %v3184, 6
      %v3332 = vsel %vm2820, %v3330, %v3331
      %v3333 = vrot.slane %v3331, 4
      %v3334 = vrot.slane %v3185, 6
      %v3335 = vsel %vm2820, %v3333, %v3334
      %v3336 = vrot.slane %v3334, 4
      %v3337 = vrot.slane %v3186, 6
      %v3338 = vsel %vm2820, %v3336, %v3337
      %v3339 = vrot.slane %v3337, 4
      %v3340 = vrot.slane %v3187, 6
      %v3341 = vsel %vm2820, %v3339, %v3340
      %v3342 = vrot.slane %v3340, 4
      %v3343 = vrot.slane %v3188, 6
      %v3344 = vsel %vm2820, %v3342, %v3343
      %v3345 = vrot.slane %v3343, 4
      %v3346 = vrot.slane %v3189, 6
      %v3347 = vsel %vm2820, %v3345, %v3346
      %v3348 = vrot.slane %v3346, 4
      %v3349 = vrot.slane %v3190, 6
      %v3350 = vsel %vm2820, %v3348, %v3349
      %v3351 = vrot.slane %v3349, 4
      %v3352 = vrot.slane %v3191, 6
      %v3353 = vsel %vm2820, %v3351, %v3352
      %v3354 = vrot.slane %v3352, 4
      %v3355 = vrot.slane %v3192, 6
      %v3356 = vsel %vm2820, %v3354, %v3355
      %v3357 = vrot.slane %v3355, 4
      %v3358 = vrot.slane %v3193, 6
      %v3359 = vsel %vm2820, %v3357, %v3358
      %v3360 = vrot.slane %v3358, 4
      %v3361 = vrot.slane %v3194, 6
      %v3362 = vsel %vm2820, %v3360, %v3361
      %v3363 = vrot.slane %v3361, 4
      %v3364 = vrot.slane %v3195, 6
      %v3365 = vsel %vm2820, %v3363, %v3364
      %v3366 = vrot.slane %v3364, 4
      %v3367 = vrot.slane %v3196, 6
      %v3368 = vsel %vm2820, %v3366, %v3367
      %v3369 = vrot.slane %v3367, 4
      %v3370 = vrot.slane %v3197, 6
      %v3371 = vsel %vm2820, %v3369, %v3370
      %v3372 = vrot.slane %v3370, 4
      %v3373 = vrot.slane %v3198, 6
      %v3374 = vsel %vm2820, %v3372, %v3373
      %v3375 = vrot.slane %v3373, 4
      %v3376 = vrot.slane %v3199, 6
      %v3377 = vsel %vm2820, %v3375, %v3376
      %v3378 = vrot.slane %v3376, 4
      %v3379 = vrot.slane %v3200, 6
      %v3380 = vsel %vm2820, %v3378, %v3379
      %v3381 = vrot.slane %v3379, 4
      %v3382 = vrot.slane %v3201, 6
      %v3383 = vsel %vm2820, %v3381, %v3382
      %v3384 = vrot.slane %v3382, 4
      %v3385 = vrot.slane %v3202, 6
      %v3386 = vsel %vm2820, %v3384, %v3385
      %v3387 = vrot.slane %v3385, 4
      %v3388 = vrot.slane %v3203, 6
      %v3389 = vsel %vm2820, %v3387, %v3388
      %v3390 = vrot.slane %v3388, 4
      %v3391 = vrot.slane %v3204, 6
      %v3392 = vsel %vm2820, %v3390, %v3391
      %v3393 = vrot.slane %v3391, 4
      %v3394 = vrot.slane %v3205, 6
      %v3395 = vsel %vm2820, %v3393, %v3394
      %v3396 = vrot.slane %v3394, 4
      %v3397 = vrot.slane %v3206, 6
      %v3398 = vsel %vm2820, %v3396, %v3397
      %v3399 = vrot.slane %v3397, 4
      %v3400 = vrot.slane %v3207, 6
      %v3401 = vsel %vm2820, %v3399, %v3400
      %3402 = vrot.lane.b32.xlu0 %v3260, 48
      %v3403 = vpop.permute.xlu0 %3402
      %3404 = vrot.lane.b32.xlu0 %v3263, 48
      %v3405 = vpop.permute.xlu0 %3404
      %3406 = vrot.lane.b32.xlu0 %v3266, 48
      %v3407 = vpop.permute.xlu0 %3406
      %3408 = vrot.lane.b32.xlu0 %v3269, 48
      %v3409 = vpop.permute.xlu0 %3408
      %3410 = vrot.lane.b32.xlu0 %v3272, 48
      %v3411 = vpop.permute.xlu0 %3410
      %3412 = vrot.lane.b32.xlu0 %v3275, 48
      %v3413 = vpop.permute.xlu0 %3412
      %3414 = vrot.lane.b32.xlu0 %v3278, 48
      %v3415 = vpop.permute.xlu0 %3414
      %3416 = vrot.lane.b32.xlu0 %v3281, 48
      %v3417 = vpop.permute.xlu0 %3416
      %3418 = vrot.lane.b32.xlu0 %v3284, 48
      %v3419 = vpop.permute.xlu0 %3418
      %3420 = vrot.lane.b32.xlu0 %v3287, 48
      %v3421 = vpop.permute.xlu0 %3420
      %3422 = vrot.lane.b32.xlu0 %v3290, 48
      %v3423 = vpop.permute.xlu0 %3422
      %3424 = vrot.lane.b32.xlu0 %v3293, 48
      %v3425 = vpop.permute.xlu0 %3424
      %3426 = vrot.lane.b32.xlu0 %v3296, 48
      %v3427 = vpop.permute.xlu0 %3426
      %3428 = vrot.lane.b32.xlu0 %v3299, 48
      %v3429 = vpop.permute.xlu0 %3428
      %3430 = vrot.lane.b32.xlu0 %v3302, 48
      %v3431 = vpop.permute.xlu0 %3430
      %3432 = vrot.lane.b32.xlu0 %v3305, 48
      %v3433 = vpop.permute.xlu0 %3432
      %3434 = vrot.lane.b32.xlu0 %v3308, 48
      %v3435 = vpop.permute.xlu0 %3434
      %3436 = vrot.lane.b32.xlu0 %v3311, 48
      %v3437 = vpop.permute.xlu0 %3436
      %3438 = vrot.lane.b32.xlu0 %v3314, 48
      %v3439 = vpop.permute.xlu0 %3438
      %3440 = vrot.lane.b32.xlu0 %v3317, 48
      %v3441 = vpop.permute.xlu0 %3440
      %3442 = vrot.lane.b32.xlu0 %v3320, 48
      %v3443 = vpop.permute.xlu0 %3442
      %3444 = vrot.lane.b32.xlu0 %v3323, 48
      %v3445 = vpop.permute.xlu0 %3444
      %3446 = vrot.lane.b32.xlu0 %v3326, 48
      %v3447 = vpop.permute.xlu0 %3446
      %3448 = vrot.lane.b32.xlu0 %v3329, 48
      %v3449 = vpop.permute.xlu0 %3448
      %3450 = vrot.lane.b32.xlu0 %v3332, 48
      %v3451 = vpop.permute.xlu0 %3450
      %3452 = vrot.lane.b32.xlu0 %v3335, 48
      %v3453 = vpop.permute.xlu0 %3452
      %3454 = vrot.lane.b32.xlu0 %v3338, 48
      %v3455 = vpop.permute.xlu0 %3454
      %3456 = vrot.lane.b32.xlu0 %v3341, 48
      %v3457 = vpop.permute.xlu0 %3456
      %3458 = vrot.lane.b32.xlu0 %v3344, 48
      %v3459 = vpop.permute.xlu0 %3458
      %3460 = vrot.lane.b32.xlu0 %v3347, 48
      %v3461 = vpop.permute.xlu0 %3460
      %3462 = vrot.lane.b32.xlu0 %v3350, 48
      %v3463 = vpop.permute.xlu0 %3462
      %3464 = vrot.lane.b32.xlu0 %v3353, 48
      %v3465 = vpop.permute.xlu0 %3464
      %3466 = vrot.lane.b32.xlu0 %v3356, 48
      %v3467 = vpop.permute.xlu0 %3466
      %3468 = vrot.lane.b32.xlu0 %v3359, 48
      %v3469 = vpop.permute.xlu0 %3468
      %3470 = vrot.lane.b32.xlu0 %v3362, 48
      %v3471 = vpop.permute.xlu0 %3470
      %3472 = vrot.lane.b32.xlu0 %v3365, 48
      %v3473 = vpop.permute.xlu0 %3472
      %3474 = vrot.lane.b32.xlu0 %v3368, 48
      %v3475 = vpop.permute.xlu0 %3474
      %3476 = vrot.lane.b32.xlu0 %v3371, 48
      %v3477 = vpop.permute.xlu0 %3476
      %3478 = vrot.lane.b32.xlu0 %v3374, 48
      %v3479 = vpop.permute.xlu0 %3478
      %3480 = vrot.lane.b32.xlu0 %v3377, 48
      %v3481 = vpop.permute.xlu0 %3480
      %3482 = vrot.lane.b32.xlu0 %v3380, 48
      %v3483 = vpop.permute.xlu0 %3482
      %3484 = vrot.lane.b32.xlu0 %v3383, 48
      %v3485 = vpop.permute.xlu0 %3484
      %3486 = vrot.lane.b32.xlu0 %v3386, 48
      %v3487 = vpop.permute.xlu0 %3486
      %3488 = vrot.lane.b32.xlu0 %v3389, 48
      %v3489 = vpop.permute.xlu0 %3488
      %3490 = vrot.lane.b32.xlu0 %v3392, 48
      %v3491 = vpop.permute.xlu0 %3490
      %3492 = vrot.lane.b32.xlu0 %v3395, 48
      %v3493 = vpop.permute.xlu0 %3492
      %3494 = vrot.lane.b32.xlu0 %v3398, 48
      %v3495 = vpop.permute.xlu0 %3494
      %3496 = vrot.lane.b32.xlu0 %v3401, 48
      %v3497 = vpop.permute.xlu0 %3496
      %vm3546 = vcmask 454016
      %3547 = vst.msk [vmem:[#allocation2] sm:$0xf] %vm3546, %v3403
      %3548 = vst.msk [vmem:[#allocation2 + $0x4] sm:$0xf] %vm3546, %v3405
      %3549 = vst.msk [vmem:[#allocation2 + $0x8] sm:$0xf] %vm3546, %v3407
      %3550 = vst.msk [vmem:[#allocation2 + $0xc] sm:$0xf] %vm3546, %v3409
      %3551 = vst.msk [vmem:[#allocation2 + $0x10] sm:$0xf] %vm3546, %v3411
      %3552 = vst.msk [vmem:[#allocation2 + $0x14] sm:$0xf] %vm3546, %v3413
      %3553 = vst.msk [vmem:[#allocation2 + $0x18] sm:$0xf] %vm3546, %v3415
      %3554 = vst.msk [vmem:[#allocation2 + $0x1c] sm:$0xf] %vm3546, %v3417
      %3555 = vst.msk [vmem:[#allocation2 + $0x20] sm:$0xf] %vm3546, %v3419
      %3556 = vst.msk [vmem:[#allocation2 + $0x24] sm:$0xf] %vm3546, %v3421
      %3557 = vst.msk [vmem:[#allocation2 + $0x28] sm:$0xf] %vm3546, %v3423
      %3558 = vst.msk [vmem:[#allocation2 + $0x2c] sm:$0xf] %vm3546, %v3425
      %3559 = vst.msk [vmem:[#allocation2 + $0x30] sm:$0xf] %vm3546, %v3427
      %3560 = vst.msk [vmem:[#allocation2 + $0x34] sm:$0xf] %vm3546, %v3429
      %3561 = vst.msk [vmem:[#allocation2 + $0x38] sm:$0xf] %vm3546, %v3431
      %3562 = vst.msk [vmem:[#allocation2 + $0x3c] sm:$0xf] %vm3546, %v3433
      %3563 = vst.msk [vmem:[#allocation2 + $0x40] sm:$0xf] %vm3546, %v3435
      %3564 = vst.msk [vmem:[#allocation2 + $0x44] sm:$0xf] %vm3546, %v3437
      %3565 = vst.msk [vmem:[#allocation2 + $0x48] sm:$0xf] %vm3546, %v3439
      %3566 = vst.msk [vmem:[#allocation2 + $0x4c] sm:$0xf] %vm3546, %v3441
      %3567 = vst.msk [vmem:[#allocation2 + $0x50] sm:$0xf] %vm3546, %v3443
      %3568 = vst.msk [vmem:[#allocation2 + $0x54] sm:$0xf] %vm3546, %v3445
      %3569 = vst.msk [vmem:[#allocation2 + $0x58] sm:$0xf] %vm3546, %v3447
      %3570 = vst.msk [vmem:[#allocation2 + $0x5c] sm:$0xf] %vm3546, %v3449
      %3571 = vst.msk [vmem:[#allocation2 + $0x60] sm:$0xf] %vm3546, %v3451
      %3572 = vst.msk [vmem:[#allocation2 + $0x64] sm:$0xf] %vm3546, %v3453
      %3573 = vst.msk [vmem:[#allocation2 + $0x68] sm:$0xf] %vm3546, %v3455
      %3574 = vst.msk [vmem:[#allocation2 + $0x6c] sm:$0xf] %vm3546, %v3457
      %3575 = vst.msk [vmem:[#allocation2 + $0x70] sm:$0xf] %vm3546, %v3459
      %3576 = vst.msk [vmem:[#allocation2 + $0x74] sm:$0xf] %vm3546, %v3461
      %3577 = vst.msk [vmem:[#allocation2 + $0x78] sm:$0xf] %vm3546, %v3463
      %3578 = vst.msk [vmem:[#allocation2 + $0x7c] sm:$0xf] %vm3546, %v3465
      %3579 = vst.msk [vmem:[#allocation2 + $0x80] sm:$0xf] %vm3546, %v3467
      %3580 = vst.msk [vmem:[#allocation2 + $0x84] sm:$0xf] %vm3546, %v3469
      %3581 = vst.msk [vmem:[#allocation2 + $0x88] sm:$0xf] %vm3546, %v3471
      %3582 = vst.msk [vmem:[#allocation2 + $0x8c] sm:$0xf] %vm3546, %v3473
      %3583 = vst.msk [vmem:[#allocation2 + $0x90] sm:$0xf] %vm3546, %v3475
      %3584 = vst.msk [vmem:[#allocation2 + $0x94] sm:$0xf] %vm3546, %v3477
      %3585 = vst.msk [vmem:[#allocation2 + $0x98] sm:$0xf] %vm3546, %v3479
      %3586 = vst.msk [vmem:[#allocation2 + $0x9c] sm:$0xf] %vm3546, %v3481
      %3587 = vst.msk [vmem:[#allocation2 + $0xa0] sm:$0xf] %vm3546, %v3483
      %3588 = vst.msk [vmem:[#allocation2 + $0xa4] sm:$0xf] %vm3546, %v3485
      %3589 = vst.msk [vmem:[#allocation2 + $0xa8] sm:$0xf] %vm3546, %v3487
      %3590 = vst.msk [vmem:[#allocation2 + $0xac] sm:$0xf] %vm3546, %v3489
      %3591 = vst.msk [vmem:[#allocation2 + $0xb0] sm:$0xf] %vm3546, %v3491
      %3592 = vst.msk [vmem:[#allocation2 + $0xb4] sm:$0xf] %vm3546, %v3493
      %3593 = vst.msk [vmem:[#allocation2 + $0xb8] sm:$0xf] %vm3546, %v3495
      %3594 = vst.msk [vmem:[#allocation2 + $0xbc] sm:$0xf] %vm3546, %v3497
      %v3595 = vld [vmem:[%s273 + $0x10] sm:$0xc]
      %v3596 = vld [vmem:[%s273 + $0x14] sm:$0xf]
      %v3597 = vld [vmem:[%s273 + $0x18] sm:$0xf]
      %v3598 = vld [vmem:[%s273 + $0x1c] sm:$0xf]
      %v3599 = vld [vmem:[%s273 + $0x20] sm:$0xf]
      %v3600 = vld [vmem:[%s273 + $0x24] sm:$0xf]
      %v3601 = vld [vmem:[%s273 + $0x28] sm:$0xf]
      %v3602 = vld [vmem:[%s273 + $0x2c] sm:$0xf]
      %v3603 = vld [vmem:[%s273 + $0x30] sm:$0xf]
      %v3604 = vld [vmem:[%s273 + $0x34] sm:$0xf]
      %v3605 = vld [vmem:[%s273 + $0x38] sm:$0xf]
      %v3606 = vld [vmem:[%s273 + $0x3c] sm:$0xf]
      %v3607 = vld [vmem:[%s273 + $0x40] sm:$0xf]
      %v3608 = vld [vmem:[%s273 + $0x44] sm:$0xf]
      %v3609 = vld [vmem:[%s273 + $0x48] sm:$0xf]
      %v3610 = vld [vmem:[%s273 + $0x4c] sm:$0xf]
      %v3611 = vld [vmem:[%s273 + $0x50] sm:$0xf]
      %v3612 = vld [vmem:[%s273 + $0x54] sm:$0xf]
      %v3613 = vld [vmem:[%s273 + $0x58] sm:$0xf]
      %v3614 = vld [vmem:[%s273 + $0x5c] sm:$0xf]
      %v3615 = vld [vmem:[%s273 + $0x60] sm:$0xf]
      %v3616 = vld [vmem:[%s273 + $0x64] sm:$0xf]
      %v3617 = vld [vmem:[%s273 + $0x68] sm:$0xf]
      %v3618 = vld [vmem:[%s273 + $0x6c] sm:$0xf]
      %v3619 = vld [vmem:[%s273 + $0x70] sm:$0xf]
      %v3620 = vld [vmem:[%s273 + $0x74] sm:$0xf]
      %v3621 = vld [vmem:[%s273 + $0x78] sm:$0xf]
      %v3622 = vld [vmem:[%s273 + $0x7c] sm:$0xf]
      %v3623 = vld [vmem:[%s273 + $0x80] sm:$0xf]
      %v3624 = vld [vmem:[%s273 + $0x84] sm:$0xf]
      %v3625 = vld [vmem:[%s273 + $0x88] sm:$0xf]
      %v3626 = vld [vmem:[%s273 + $0x8c] sm:$0xf]
      %v3627 = vld [vmem:[%s273 + $0x90] sm:$0xf]
      %v3628 = vld [vmem:[%s273 + $0x94] sm:$0xf]
      %v3629 = vld [vmem:[%s273 + $0x98] sm:$0xf]
      %v3630 = vld [vmem:[%s273 + $0x9c] sm:$0xf]
      %v3631 = vld [vmem:[%s273 + $0xa0] sm:$0xf]
      %v3632 = vld [vmem:[%s273 + $0xa4] sm:$0xf]
      %v3633 = vld [vmem:[%s273 + $0xa8] sm:$0xf]
      %v3634 = vld [vmem:[%s273 + $0xac] sm:$0xf]
      %v3635 = vld [vmem:[%s273 + $0xb0] sm:$0xf]
      %v3636 = vld [vmem:[%s273 + $0xb4] sm:$0xf]
      %v3637 = vld [vmem:[%s273 + $0xb8] sm:$0xf]
      %v3638 = vld [vmem:[%s273 + $0xbc] sm:$0xf]
      %v3639 = vld [vmem:[%s273 + $0xc0] sm:$0xf]
      %v3640 = vld [vmem:[%s273 + $0xc4] sm:$0xf]
      %v3641 = vld [vmem:[%s273 + $0xc8] sm:$0xf]
      %v3642 = vld [vmem:[%s273 + $0xcc] sm:$0xf]
      %v3643 = vld [vmem:[%s273 + $0xd0] sm:$0x7]
      %vm3644 = vsmask.f32 1280
      %vm3645 = vsmask.f32 5392
      %vm3646 = vmor %vm3644, %vm3645
      %v3648 = vshrl.u32 %v3595, 16
      %v3650 = vrot.slane %v3648, 6
      %v3651 = vshll.u32 %v3595, 16
      %v3653 = vrot.slane %v3651, 7
      %v3654 = vor.u32 %v3650, %v3653
      %v3655 = vrot.slane %v3654, 4
      %v3657 = vshrl.u32 %v3596, 16
      %v3659 = vrot.slane %v3657, 6
      %v3660 = vshll.u32 %v3596, 16
      %v3662 = vrot.slane %v3660, 7
      %v3663 = vor.u32 %v3659, %v3662
      %v3664 = vsel %vm3646, %v3655, %v3663
      %v3665 = vrot.slane %v3663, 4
      %v3667 = vshrl.u32 %v3597, 16
      %v3669 = vrot.slane %v3667, 6
      %v3670 = vshll.u32 %v3597, 16
      %v3672 = vrot.slane %v3670, 7
      %v3673 = vor.u32 %v3669, %v3672
      %v3674 = vsel %vm3646, %v3665, %v3673
      %v3675 = vrot.slane %v3673, 4
      %v3677 = vshrl.u32 %v3598, 16
      %v3679 = vrot.slane %v3677, 6
      %v3680 = vshll.u32 %v3598, 16
      %v3682 = vrot.slane %v3680, 7
      %v3683 = vor.u32 %v3679, %v3682
      %v3684 = vsel %vm3646, %v3675, %v3683
      %v3685 = vrot.slane %v3683, 4
      %v3687 = vshrl.u32 %v3599, 16
      %v3689 = vrot.slane %v3687, 6
      %v3690 = vshll.u32 %v3599, 16
      %v3692 = vrot.slane %v3690, 7
      %v3693 = vor.u32 %v3689, %v3692
      %v3694 = vsel %vm3646, %v3685, %v3693
      %v3695 = vrot.slane %v3693, 4
      %v3697 = vshrl.u32 %v3600, 16
      %v3699 = vrot.slane %v3697, 6
      %v3700 = vshll.u32 %v3600, 16
      %v3702 = vrot.slane %v3700, 7
      %v3703 = vor.u32 %v3699, %v3702
      %v3704 = vsel %vm3646, %v3695, %v3703
      %v3705 = vrot.slane %v3703, 4
      %v3707 = vshrl.u32 %v3601, 16
      %v3709 = vrot.slane %v3707, 6
      %v3710 = vshll.u32 %v3601, 16
      %v3712 = vrot.slane %v3710, 7
      %v3713 = vor.u32 %v3709, %v3712
      %v3714 = vsel %vm3646, %v3705, %v3713
      %v3715 = vrot.slane %v3713, 4
      %v3717 = vshrl.u32 %v3602, 16
      %v3719 = vrot.slane %v3717, 6
      %v3720 = vshll.u32 %v3602, 16
      %v3722 = vrot.slane %v3720, 7
      %v3723 = vor.u32 %v3719, %v3722
      %v3724 = vsel %vm3646, %v3715, %v3723
      %v3725 = vrot.slane %v3723, 4
      %v3727 = vshrl.u32 %v3603, 16
      %v3729 = vrot.slane %v3727, 6
      %v3730 = vshll.u32 %v3603, 16
      %v3732 = vrot.slane %v3730, 7
      %v3733 = vor.u32 %v3729, %v3732
      %v3734 = vsel %vm3646, %v3725, %v3733
      %v3735 = vrot.slane %v3733, 4
      %v3737 = vshrl.u32 %v3604, 16
      %v3739 = vrot.slane %v3737, 6
      %v3740 = vshll.u32 %v3604, 16
      %v3742 = vrot.slane %v3740, 7
      %v3743 = vor.u32 %v3739, %v3742
      %v3744 = vsel %vm3646, %v3735, %v3743
      %v3745 = vrot.slane %v3743, 4
      %v3747 = vshrl.u32 %v3605, 16
      %v3749 = vrot.slane %v3747, 6
      %v3750 = vshll.u32 %v3605, 16
      %v3752 = vrot.slane %v3750, 7
      %v3753 = vor.u32 %v3749, %v3752
      %v3754 = vsel %vm3646, %v3745, %v3753
      %v3755 = vrot.slane %v3753, 4
      %v3757 = vshrl.u32 %v3606, 16
      %v3759 = vrot.slane %v3757, 6
      %v3760 = vshll.u32 %v3606, 16
      %v3762 = vrot.slane %v3760, 7
      %v3763 = vor.u32 %v3759, %v3762
      %v3764 = vsel %vm3646, %v3755, %v3763
      %v3765 = vrot.slane %v3763, 4
      %v3767 = vshrl.u32 %v3607, 16
      %v3769 = vrot.slane %v3767, 6
      %v3770 = vshll.u32 %v3607, 16
      %v3772 = vrot.slane %v3770, 7
      %v3773 = vor.u32 %v3769, %v3772
      %v3774 = vsel %vm3646, %v3765, %v3773
      %v3775 = vrot.slane %v3773, 4
      %v3777 = vshrl.u32 %v3608, 16
      %v3779 = vrot.slane %v3777, 6
      %v3780 = vshll.u32 %v3608, 16
      %v3782 = vrot.slane %v3780, 7
      %v3783 = vor.u32 %v3779, %v3782
      %v3784 = vsel %vm3646, %v3775, %v3783
      %v3785 = vrot.slane %v3783, 4
      %v3787 = vshrl.u32 %v3609, 16
      %v3789 = vrot.slane %v3787, 6
      %v3790 = vshll.u32 %v3609, 16
      %v3792 = vrot.slane %v3790, 7
      %v3793 = vor.u32 %v3789, %v3792
      %v3794 = vsel %vm3646, %v3785, %v3793
      %v3795 = vrot.slane %v3793, 4
      %v3797 = vshrl.u32 %v3610, 16
      %v3799 = vrot.slane %v3797, 6
      %v3800 = vshll.u32 %v3610, 16
      %v3802 = vrot.slane %v3800, 7
      %v3803 = vor.u32 %v3799, %v3802
      %v3804 = vsel %vm3646, %v3795, %v3803
      %v3805 = vrot.slane %v3803, 4
      %v3807 = vshrl.u32 %v3611, 16
      %v3809 = vrot.slane %v3807, 6
      %v3810 = vshll.u32 %v3611, 16
      %v3812 = vrot.slane %v3810, 7
      %v3813 = vor.u32 %v3809, %v3812
      %v3814 = vsel %vm3646, %v3805, %v3813
      %v3815 = vrot.slane %v3813, 4
      %v3817 = vshrl.u32 %v3612, 16
      %v3819 = vrot.slane %v3817, 6
      %v3820 = vshll.u32 %v3612, 16
      %v3822 = vrot.slane %v3820, 7
      %v3823 = vor.u32 %v3819, %v3822
      %v3824 = vsel %vm3646, %v3815, %v3823
      %v3825 = vrot.slane %v3823, 4
      %v3827 = vshrl.u32 %v3613, 16
      %v3829 = vrot.slane %v3827, 6
      %v3830 = vshll.u32 %v3613, 16
      %v3832 = vrot.slane %v3830, 7
      %v3833 = vor.u32 %v3829, %v3832
      %v3834 = vsel %vm3646, %v3825, %v3833
      %v3835 = vrot.slane %v3833, 4
      %v3837 = vshrl.u32 %v3614, 16
      %v3839 = vrot.slane %v3837, 6
      %v3840 = vshll.u32 %v3614, 16
      %v3842 = vrot.slane %v3840, 7
      %v3843 = vor.u32 %v3839, %v3842
      %v3844 = vsel %vm3646, %v3835, %v3843
      %v3845 = vrot.slane %v3843, 4
      %v3847 = vshrl.u32 %v3615, 16
      %v3849 = vrot.slane %v3847, 6
      %v3850 = vshll.u32 %v3615, 16
      %v3852 = vrot.slane %v3850, 7
      %v3853 = vor.u32 %v3849, %v3852
      %v3854 = vsel %vm3646, %v3845, %v3853
      %v3855 = vrot.slane %v3853, 4
      %v3857 = vshrl.u32 %v3616, 16
      %v3859 = vrot.slane %v3857, 6
      %v3860 = vshll.u32 %v3616, 16
      %v3862 = vrot.slane %v3860, 7
      %v3863 = vor.u32 %v3859, %v3862
      %v3864 = vsel %vm3646, %v3855, %v3863
      %v3865 = vrot.slane %v3863, 4
      %v3867 = vshrl.u32 %v3617, 16
      %v3869 = vrot.slane %v3867, 6
      %v3870 = vshll.u32 %v3617, 16
      %v3872 = vrot.slane %v3870, 7
      %v3873 = vor.u32 %v3869, %v3872
      %v3874 = vsel %vm3646, %v3865, %v3873
      %v3875 = vrot.slane %v3873, 4
      %v3877 = vshrl.u32 %v3618, 16
      %v3879 = vrot.slane %v3877, 6
      %v3880 = vshll.u32 %v3618, 16
      %v3882 = vrot.slane %v3880, 7
      %v3883 = vor.u32 %v3879, %v3882
      %v3884 = vsel %vm3646, %v3875, %v3883
      %v3885 = vrot.slane %v3883, 4
      %v3887 = vshrl.u32 %v3619, 16
      %v3889 = vrot.slane %v3887, 6
      %v3890 = vshll.u32 %v3619, 16
      %v3892 = vrot.slane %v3890, 7
      %v3893 = vor.u32 %v3889, %v3892
      %v3894 = vsel %vm3646, %v3885, %v3893
      %v3895 = vrot.slane %v3893, 4
      %v3897 = vshrl.u32 %v3620, 16
      %v3899 = vrot.slane %v3897, 6
      %v3900 = vshll.u32 %v3620, 16
      %v3902 = vrot.slane %v3900, 7
      %v3903 = vor.u32 %v3899, %v3902
      %v3904 = vsel %vm3646, %v3895, %v3903
      %v3905 = vrot.slane %v3903, 4
      %v3907 = vshrl.u32 %v3621, 16
      %v3909 = vrot.slane %v3907, 6
      %v3910 = vshll.u32 %v3621, 16
      %v3912 = vrot.slane %v3910, 7
      %v3913 = vor.u32 %v3909, %v3912
      %v3914 = vsel %vm3646, %v3905, %v3913
      %v3915 = vrot.slane %v3913, 4
      %v3917 = vshrl.u32 %v3622, 16
      %v3919 = vrot.slane %v3917, 6
      %v3920 = vshll.u32 %v3622, 16
      %v3922 = vrot.slane %v3920, 7
      %v3923 = vor.u32 %v3919, %v3922
      %v3924 = vsel %vm3646, %v3915, %v3923
      %v3925 = vrot.slane %v3923, 4
      %v3927 = vshrl.u32 %v3623, 16
      %v3929 = vrot.slane %v3927, 6
      %v3930 = vshll.u32 %v3623, 16
      %v3932 = vrot.slane %v3930, 7
      %v3933 = vor.u32 %v3929, %v3932
      %v3934 = vsel %vm3646, %v3925, %v3933
      %v3935 = vrot.slane %v3933, 4
      %v3937 = vshrl.u32 %v3624, 16
      %v3939 = vrot.slane %v3937, 6
      %v3940 = vshll.u32 %v3624, 16
      %v3942 = vrot.slane %v3940, 7
      %v3943 = vor.u32 %v3939, %v3942
      %v3944 = vsel %vm3646, %v3935, %v3943
      %v3945 = vrot.slane %v3943, 4
      %v3947 = vshrl.u32 %v3625, 16
      %v3949 = vrot.slane %v3947, 6
      %v3950 = vshll.u32 %v3625, 16
      %v3952 = vrot.slane %v3950, 7
      %v3953 = vor.u32 %v3949, %v3952
      %v3954 = vsel %vm3646, %v3945, %v3953
      %v3955 = vrot.slane %v3953, 4
      %v3957 = vshrl.u32 %v3626, 16
      %v3959 = vrot.slane %v3957, 6
      %v3960 = vshll.u32 %v3626, 16
      %v3962 = vrot.slane %v3960, 7
      %v3963 = vor.u32 %v3959, %v3962
      %v3964 = vsel %vm3646, %v3955, %v3963
      %v3965 = vrot.slane %v3963, 4
      %v3967 = vshrl.u32 %v3627, 16
      %v3969 = vrot.slane %v3967, 6
      %v3970 = vshll.u32 %v3627, 16
      %v3972 = vrot.slane %v3970, 7
      %v3973 = vor.u32 %v3969, %v3972
      %v3974 = vsel %vm3646, %v3965, %v3973
      %v3975 = vrot.slane %v3973, 4
      %v3977 = vshrl.u32 %v3628, 16
      %v3979 = vrot.slane %v3977, 6
      %v3980 = vshll.u32 %v3628, 16
      %v3982 = vrot.slane %v3980, 7
      %v3983 = vor.u32 %v3979, %v3982
      %v3984 = vsel %vm3646, %v3975, %v3983
      %v3985 = vrot.slane %v3983, 4
      %v3987 = vshrl.u32 %v3629, 16
      %v3989 = vrot.slane %v3987, 6
      %v3990 = vshll.u32 %v3629, 16
      %v3992 = vrot.slane %v3990, 7
      %v3993 = vor.u32 %v3989, %v3992
      %v3994 = vsel %vm3646, %v3985, %v3993
      %v3995 = vrot.slane %v3993, 4
      %v3997 = vshrl.u32 %v3630, 16
      %v3999 = vrot.slane %v3997, 6
      %v4000 = vshll.u32 %v3630, 16
      %v4002 = vrot.slane %v4000, 7
      %v4003 = vor.u32 %v3999, %v4002
      %v4004 = vsel %vm3646, %v3995, %v4003
      %v4005 = vrot.slane %v4003, 4
      %v4007 = vshrl.u32 %v3631, 16
      %v4009 = vrot.slane %v4007, 6
      %v4010 = vshll.u32 %v3631, 16
      %v4012 = vrot.slane %v4010, 7
      %v4013 = vor.u32 %v4009, %v4012
      %v4014 = vsel %vm3646, %v4005, %v4013
      %v4015 = vrot.slane %v4013, 4
      %v4017 = vshrl.u32 %v3632, 16
      %v4019 = vrot.slane %v4017, 6
      %v4020 = vshll.u32 %v3632, 16
      %v4022 = vrot.slane %v4020, 7
      %v4023 = vor.u32 %v4019, %v4022
      %v4024 = vsel %vm3646, %v4015, %v4023
      %v4025 = vrot.slane %v4023, 4
      %v4027 = vshrl.u32 %v3633, 16
      %v4029 = vrot.slane %v4027, 6
      %v4030 = vshll.u32 %v3633, 16
      %v4032 = vrot.slane %v4030, 7
      %v4033 = vor.u32 %v4029, %v4032
      %v4034 = vsel %vm3646, %v4025, %v4033
      %v4035 = vrot.slane %v4033, 4
      %v4037 = vshrl.u32 %v3634, 16
      %v4039 = vrot.slane %v4037, 6
      %v4040 = vshll.u32 %v3634, 16
      %v4042 = vrot.slane %v4040, 7
      %v4043 = vor.u32 %v4039, %v4042
      %v4044 = vsel %vm3646, %v4035, %v4043
      %v4045 = vrot.slane %v4043, 4
      %v4047 = vshrl.u32 %v3635, 16
      %v4049 = vrot.slane %v4047, 6
      %v4050 = vshll.u32 %v3635, 16
      %v4052 = vrot.slane %v4050, 7
      %v4053 = vor.u32 %v4049, %v4052
      %v4054 = vsel %vm3646, %v4045, %v4053
      %v4055 = vrot.slane %v4053, 4
      %v4057 = vshrl.u32 %v3636, 16
      %v4059 = vrot.slane %v4057, 6
      %v4060 = vshll.u32 %v3636, 16
      %v4062 = vrot.slane %v4060, 7
      %v4063 = vor.u32 %v4059, %v4062
      %v4064 = vsel %vm3646, %v4055, %v4063
      %v4065 = vrot.slane %v4063, 4
      %v4067 = vshrl.u32 %v3637, 16
      %v4069 = vrot.slane %v4067, 6
      %v4070 = vshll.u32 %v3637, 16
      %v4072 = vrot.slane %v4070, 7
      %v4073 = vor.u32 %v4069, %v4072
      %v4074 = vsel %vm3646, %v4065, %v4073
      %v4075 = vrot.slane %v4073, 4
      %v4077 = vshrl.u32 %v3638, 16
      %v4079 = vrot.slane %v4077, 6
      %v4080 = vshll.u32 %v3638, 16
      %v4082 = vrot.slane %v4080, 7
      %v4083 = vor.u32 %v4079, %v4082
      %v4084 = vsel %vm3646, %v4075, %v4083
      %v4085 = vrot.slane %v4083, 4
      %v4087 = vshrl.u32 %v3639, 16
      %v4089 = vrot.slane %v4087, 6
      %v4090 = vshll.u32 %v3639, 16
      %v4092 = vrot.slane %v4090, 7
      %v4093 = vor.u32 %v4089, %v4092
      %v4094 = vsel %vm3646, %v4085, %v4093
      %v4095 = vrot.slane %v4093, 4
      %v4097 = vshrl.u32 %v3640, 16
      %v4099 = vrot.slane %v4097, 6
      %v4100 = vshll.u32 %v3640, 16
      %v4102 = vrot.slane %v4100, 7
      %v4103 = vor.u32 %v4099, %v4102
      %v4104 = vsel %vm3646, %v4095, %v4103
      %v4105 = vrot.slane %v4103, 4
      %v4107 = vshrl.u32 %v3641, 16
      %v4109 = vrot.slane %v4107, 6
      %v4110 = vshll.u32 %v3641, 16
      %v4112 = vrot.slane %v4110, 7
      %v4113 = vor.u32 %v4109, %v4112
      %v4114 = vsel %vm3646, %v4105, %v4113
      %v4115 = vrot.slane %v4113, 4
      %v4117 = vshrl.u32 %v3642, 16
      %v4119 = vrot.slane %v4117, 6
      %v4120 = vshll.u32 %v3642, 16
      %v4122 = vrot.slane %v4120, 7
      %v4123 = vor.u32 %v4119, %v4122
      %v4124 = vsel %vm3646, %v4115, %v4123
      %v4125 = vrot.slane %v4123, 4
      %v4127 = vshrl.u32 %v3643, 16
      %v4129 = vrot.slane %v4127, 6
      %v4130 = vshll.u32 %v3643, 16
      %v4132 = vrot.slane %v4130, 7
      %v4133 = vor.u32 %v4129, %v4132
      %v4134 = vsel %vm3646, %v4125, %v4133
      %4135 = vrot.lane.b32.xlu0 %v3664, 56
      %v4136 = vpop.permute.xlu0 %4135
      %4137 = vrot.lane.b32.xlu0 %v3674, 56
      %v4138 = vpop.permute.xlu0 %4137
      %4139 = vrot.lane.b32.xlu0 %v3684, 56
      %v4140 = vpop.permute.xlu0 %4139
      %4141 = vrot.lane.b32.xlu0 %v3694, 56
      %v4142 = vpop.permute.xlu0 %4141
      %4143 = vrot.lane.b32.xlu0 %v3704, 56
      %v4144 = vpop.permute.xlu0 %4143
      %4145 = vrot.lane.b32.xlu0 %v3714, 56
      %v4146 = vpop.permute.xlu0 %4145
      %4147 = vrot.lane.b32.xlu0 %v3724, 56
      %v4148 = vpop.permute.xlu0 %4147
      %4149 = vrot.lane.b32.xlu0 %v3734, 56
      %v4150 = vpop.permute.xlu0 %4149
      %4151 = vrot.lane.b32.xlu0 %v3744, 56
      %v4152 = vpop.permute.xlu0 %4151
      %4153 = vrot.lane.b32.xlu0 %v3754, 56
      %v4154 = vpop.permute.xlu0 %4153
      %4155 = vrot.lane.b32.xlu0 %v3764, 56
      %v4156 = vpop.permute.xlu0 %4155
      %4157 = vrot.lane.b32.xlu0 %v3774, 56
      %v4158 = vpop.permute.xlu0 %4157
      %4159 = vrot.lane.b32.xlu0 %v3784, 56
      %v4160 = vpop.permute.xlu0 %4159
      %4161 = vrot.lane.b32.xlu0 %v3794, 56
      %v4162 = vpop.permute.xlu0 %4161
      %4163 = vrot.lane.b32.xlu0 %v3804, 56
      %v4164 = vpop.permute.xlu0 %4163
      %4165 = vrot.lane.b32.xlu0 %v3814, 56
      %v4166 = vpop.permute.xlu0 %4165
      %4167 = vrot.lane.b32.xlu0 %v3824, 56
      %v4168 = vpop.permute.xlu0 %4167
      %4169 = vrot.lane.b32.xlu0 %v3834, 56
      %v4170 = vpop.permute.xlu0 %4169
      %4171 = vrot.lane.b32.xlu0 %v3844, 56
      %v4172 = vpop.permute.xlu0 %4171
      %4173 = vrot.lane.b32.xlu0 %v3854, 56
      %v4174 = vpop.permute.xlu0 %4173
      %4175 = vrot.lane.b32.xlu0 %v3864, 56
      %v4176 = vpop.permute.xlu0 %4175
      %4177 = vrot.lane.b32.xlu0 %v3874, 56
      %v4178 = vpop.permute.xlu0 %4177
      %4179 = vrot.lane.b32.xlu0 %v3884, 56
      %v4180 = vpop.permute.xlu0 %4179
      %4181 = vrot.lane.b32.xlu0 %v3894, 56
      %v4182 = vpop.permute.xlu0 %4181
      %4183 = vrot.lane.b32.xlu0 %v3904, 56
      %v4184 = vpop.permute.xlu0 %4183
      %4185 = vrot.lane.b32.xlu0 %v3914, 56
      %v4186 = vpop.permute.xlu0 %4185
      %4187 = vrot.lane.b32.xlu0 %v3924, 56
      %v4188 = vpop.permute.xlu0 %4187
      %4189 = vrot.lane.b32.xlu0 %v3934, 56
      %v4190 = vpop.permute.xlu0 %4189
      %4191 = vrot.lane.b32.xlu0 %v3944, 56
      %v4192 = vpop.permute.xlu0 %4191
      %4193 = vrot.lane.b32.xlu0 %v3954, 56
      %v4194 = vpop.permute.xlu0 %4193
      %4195 = vrot.lane.b32.xlu0 %v3964, 56
      %v4196 = vpop.permute.xlu0 %4195
      %4197 = vrot.lane.b32.xlu0 %v3974, 56
      %v4198 = vpop.permute.xlu0 %4197
      %4199 = vrot.lane.b32.xlu0 %v3984, 56
      %v4200 = vpop.permute.xlu0 %4199
      %4201 = vrot.lane.b32.xlu0 %v3994, 56
      %v4202 = vpop.permute.xlu0 %4201
      %4203 = vrot.lane.b32.xlu0 %v4004, 56
      %v4204 = vpop.permute.xlu0 %4203
      %4205 = vrot.lane.b32.xlu0 %v4014, 56
      %v4206 = vpop.permute.xlu0 %4205
      %4207 = vrot.lane.b32.xlu0 %v4024, 56
      %v4208 = vpop.permute.xlu0 %4207
      %4209 = vrot.lane.b32.xlu0 %v4034, 56
      %v4210 = vpop.permute.xlu0 %4209
      %4211 = vrot.lane.b32.xlu0 %v4044, 56
      %v4212 = vpop.permute.xlu0 %4211
      %4213 = vrot.lane.b32.xlu0 %v4054, 56
      %v4214 = vpop.permute.xlu0 %4213
      %4215 = vrot.lane.b32.xlu0 %v4064, 56
      %v4216 = vpop.permute.xlu0 %4215
      %4217 = vrot.lane.b32.xlu0 %v4074, 56
      %v4218 = vpop.permute.xlu0 %4217
      %4219 = vrot.lane.b32.xlu0 %v4084, 56
      %v4220 = vpop.permute.xlu0 %4219
      %4221 = vrot.lane.b32.xlu0 %v4094, 56
      %v4222 = vpop.permute.xlu0 %4221
      %4223 = vrot.lane.b32.xlu0 %v4104, 56
      %v4224 = vpop.permute.xlu0 %4223
      %4225 = vrot.lane.b32.xlu0 %v4114, 56
      %v4226 = vpop.permute.xlu0 %4225
      %4227 = vrot.lane.b32.xlu0 %v4124, 56
      %v4228 = vpop.permute.xlu0 %4227
      %4229 = vrot.lane.b32.xlu0 %v4134, 56
      %v4230 = vpop.permute.xlu0 %4229
      %vm4279 = vcmask 519616
      %4280 = vst.msk [vmem:[#allocation2] sm:$0xf] %vm4279, %v4136
      %4281 = vst.msk [vmem:[#allocation2 + $0x4] sm:$0xf] %vm4279, %v4138
      %4282 = vst.msk [vmem:[#allocation2 + $0x8] sm:$0xf] %vm4279, %v4140
      %4283 = vst.msk [vmem:[#allocation2 + $0xc] sm:$0xf] %vm4279, %v4142
      %4284 = vst.msk [vmem:[#allocation2 + $0x10] sm:$0xf] %vm4279, %v4144
      %4285 = vst.msk [vmem:[#allocation2 + $0x14] sm:$0xf] %vm4279, %v4146
      %4286 = vst.msk [vmem:[#allocation2 + $0x18] sm:$0xf] %vm4279, %v4148
      %4287 = vst.msk [vmem:[#allocation2 + $0x1c] sm:$0xf] %vm4279, %v4150
      %4288 = vst.msk [vmem:[#allocation2 + $0x20] sm:$0xf] %vm4279, %v4152
      %4289 = vst.msk [vmem:[#allocation2 + $0x24] sm:$0xf] %vm4279, %v4154
      %4290 = vst.msk [vmem:[#allocation2 + $0x28] sm:$0xf] %vm4279, %v4156
      %4291 = vst.msk [vmem:[#allocation2 + $0x2c] sm:$0xf] %vm4279, %v4158
      %4292 = vst.msk [vmem:[#allocation2 + $0x30] sm:$0xf] %vm4279, %v4160
      %4293 = vst.msk [vmem:[#allocation2 + $0x34] sm:$0xf] %vm4279, %v4162
      %4294 = vst.msk [vmem:[#allocation2 + $0x38] sm:$0xf] %vm4279, %v4164
      %4295 = vst.msk [vmem:[#allocation2 + $0x3c] sm:$0xf] %vm4279, %v4166
      %4296 = vst.msk [vmem:[#allocation2 + $0x40] sm:$0xf] %vm4279, %v4168
      %4297 = vst.msk [vmem:[#allocation2 + $0x44] sm:$0xf] %vm4279, %v4170
      %4298 = vst.msk [vmem:[#allocation2 + $0x48] sm:$0xf] %vm4279, %v4172
      %4299 = vst.msk [vmem:[#allocation2 + $0x4c] sm:$0xf] %vm4279, %v4174
      %4300 = vst.msk [vmem:[#allocation2 + $0x50] sm:$0xf] %vm4279, %v4176
      %4301 = vst.msk [vmem:[#allocation2 + $0x54] sm:$0xf] %vm4279, %v4178
      %4302 = vst.msk [vmem:[#allocation2 + $0x58] sm:$0xf] %vm4279, %v4180
      %4303 = vst.msk [vmem:[#allocation2 + $0x5c] sm:$0xf] %vm4279, %v4182
      %4304 = vst.msk [vmem:[#allocation2 + $0x60] sm:$0xf] %vm4279, %v4184
      %4305 = vst.msk [vmem:[#allocation2 + $0x64] sm:$0xf] %vm4279, %v4186
      %4306 = vst.msk [vmem:[#allocation2 + $0x68] sm:$0xf] %vm4279, %v4188
      %4307 = vst.msk [vmem:[#allocation2 + $0x6c] sm:$0xf] %vm4279, %v4190
      %4308 = vst.msk [vmem:[#allocation2 + $0x70] sm:$0xf] %vm4279, %v4192
      %4309 = vst.msk [vmem:[#allocation2 + $0x74] sm:$0xf] %vm4279, %v4194
      %4310 = vst.msk [vmem:[#allocation2 + $0x78] sm:$0xf] %vm4279, %v4196
      %4311 = vst.msk [vmem:[#allocation2 + $0x7c] sm:$0xf] %vm4279, %v4198
      %4312 = vst.msk [vmem:[#allocation2 + $0x80] sm:$0xf] %vm4279, %v4200
      %4313 = vst.msk [vmem:[#allocation2 + $0x84] sm:$0xf] %vm4279, %v4202
      %4314 = vst.msk [vmem:[#allocation2 + $0x88] sm:$0xf] %vm4279, %v4204
      %4315 = vst.msk [vmem:[#allocation2 + $0x8c] sm:$0xf] %vm4279, %v4206
      %4316 = vst.msk [vmem:[#allocation2 + $0x90] sm:$0xf] %vm4279, %v4208
      %4317 = vst.msk [vmem:[#allocation2 + $0x94] sm:$0xf] %vm4279, %v4210
      %4318 = vst.msk [vmem:[#allocation2 + $0x98] sm:$0xf] %vm4279, %v4212
      %4319 = vst.msk [vmem:[#allocation2 + $0x9c] sm:$0xf] %vm4279, %v4214
      %4320 = vst.msk [vmem:[#allocation2 + $0xa0] sm:$0xf] %vm4279, %v4216
      %4321 = vst.msk [vmem:[#allocation2 + $0xa4] sm:$0xf] %vm4279, %v4218
      %4322 = vst.msk [vmem:[#allocation2 + $0xa8] sm:$0xf] %vm4279, %v4220
      %4323 = vst.msk [vmem:[#allocation2 + $0xac] sm:$0xf] %vm4279, %v4222
      %4324 = vst.msk [vmem:[#allocation2 + $0xb0] sm:$0xf] %vm4279, %v4224
      %4325 = vst.msk [vmem:[#allocation2 + $0xb4] sm:$0xf] %vm4279, %v4226
      %4326 = vst.msk [vmem:[#allocation2 + $0xb8] sm:$0xf] %vm4279, %v4228
      %4327 = vst.msk [vmem:[#allocation2 + $0xbc] sm:$0xf] %vm4279, %v4230
      %v4328 = vld [vmem:[%s273 + $0x10] sm:$0x8]
      %v4329 = vld [vmem:[%s273 + $0x14] sm:$0xf]
      %v4330 = vld [vmem:[%s273 + $0x18] sm:$0xf]
      %v4331 = vld [vmem:[%s273 + $0x1c] sm:$0xf]
      %v4332 = vld [vmem:[%s273 + $0x20] sm:$0xf]
      %v4333 = vld [vmem:[%s273 + $0x24] sm:$0xf]
      %v4334 = vld [vmem:[%s273 + $0x28] sm:$0xf]
      %v4335 = vld [vmem:[%s273 + $0x2c] sm:$0xf]
      %v4336 = vld [vmem:[%s273 + $0x30] sm:$0xf]
      %v4337 = vld [vmem:[%s273 + $0x34] sm:$0xf]
      %v4338 = vld [vmem:[%s273 + $0x38] sm:$0xf]
      %v4339 = vld [vmem:[%s273 + $0x3c] sm:$0xf]
      %v4340 = vld [vmem:[%s273 + $0x40] sm:$0xf]
      %v4341 = vld [vmem:[%s273 + $0x44] sm:$0xf]
      %v4342 = vld [vmem:[%s273 + $0x48] sm:$0xf]
      %v4343 = vld [vmem:[%s273 + $0x4c] sm:$0xf]
      %v4344 = vld [vmem:[%s273 + $0x50] sm:$0xf]
      %v4345 = vld [vmem:[%s273 + $0x54] sm:$0xf]
      %v4346 = vld [vmem:[%s273 + $0x58] sm:$0xf]
      %v4347 = vld [vmem:[%s273 + $0x5c] sm:$0xf]
      %v4348 = vld [vmem:[%s273 + $0x60] sm:$0xf]
      %v4349 = vld [vmem:[%s273 + $0x64] sm:$0xf]
      %v4350 = vld [vmem:[%s273 + $0x68] sm:$0xf]
      %v4351 = vld [vmem:[%s273 + $0x6c] sm:$0xf]
      %v4352 = vld [vmem:[%s273 + $0x70] sm:$0xf]
      %v4353 = vld [vmem:[%s273 + $0x74] sm:$0xf]
      %v4354 = vld [vmem:[%s273 + $0x78] sm:$0xf]
      %v4355 = vld [vmem:[%s273 + $0x7c] sm:$0xf]
      %v4356 = vld [vmem:[%s273 + $0x80] sm:$0xf]
      %v4357 = vld [vmem:[%s273 + $0x84] sm:$0xf]
      %v4358 = vld [vmem:[%s273 + $0x88] sm:$0xf]
      %v4359 = vld [vmem:[%s273 + $0x8c] sm:$0xf]
      %v4360 = vld [vmem:[%s273 + $0x90] sm:$0xf]
      %v4361 = vld [vmem:[%s273 + $0x94] sm:$0xf]
      %v4362 = vld [vmem:[%s273 + $0x98] sm:$0xf]
      %v4363 = vld [vmem:[%s273 + $0x9c] sm:$0xf]
      %v4364 = vld [vmem:[%s273 + $0xa0] sm:$0xf]
      %v4365 = vld [vmem:[%s273 + $0xa4] sm:$0xf]
      %v4366 = vld [vmem:[%s273 + $0xa8] sm:$0xf]
      %v4367 = vld [vmem:[%s273 + $0xac] sm:$0xf]
      %v4368 = vld [vmem:[%s273 + $0xb0] sm:$0xf]
      %v4369 = vld [vmem:[%s273 + $0xb4] sm:$0xf]
      %v4370 = vld [vmem:[%s273 + $0xb8] sm:$0xf]
      %v4371 = vld [vmem:[%s273 + $0xbc] sm:$0xf]
      %v4372 = vld [vmem:[%s273 + $0xc0] sm:$0xf]
      %v4373 = vld [vmem:[%s273 + $0xc4] sm:$0xf]
      %v4374 = vld [vmem:[%s273 + $0xc8] sm:$0xf]
      %v4375 = vld [vmem:[%s273 + $0xcc] sm:$0xf]
      %v4376 = vld [vmem:[%s273 + $0xd0] sm:$0x7]
      %vm4426 = vcmask 1040384
      %vm4427 = vcmask 1044484
      %vm4428 = vmor %vm4426, %vm4427
      %v4429 = vrot.slane %v4328, 7
      %v4430 = vrot.slane %v4429, 4
      %v4431 = vrot.slane %v4329, 7
      %v4432 = vsel %vm4428, %v4430, %v4431
      %v4433 = vrot.slane %v4431, 4
      %v4434 = vrot.slane %v4330, 7
      %v4435 = vsel %vm4428, %v4433, %v4434
      %v4436 = vrot.slane %v4434, 4
      %v4437 = vrot.slane %v4331, 7
      %v4438 = vsel %vm4428, %v4436, %v4437
      %v4439 = vrot.slane %v4437, 4
      %v4440 = vrot.slane %v4332, 7
      %v4441 = vsel %vm4428, %v4439, %v4440
      %v4442 = vrot.slane %v4440, 4
      %v4443 = vrot.slane %v4333, 7
      %v4444 = vsel %vm4428, %v4442, %v4443
      %v4445 = vrot.slane %v4443, 4
      %v4446 = vrot.slane %v4334, 7
      %v4447 = vsel %vm4428, %v4445, %v4446
      %v4448 = vrot.slane %v4446, 4
      %v4449 = vrot.slane %v4335, 7
      %v4450 = vsel %vm4428, %v4448, %v4449
      %v4451 = vrot.slane %v4449, 4
      %v4452 = vrot.slane %v4336, 7
      %v4453 = vsel %vm4428, %v4451, %v4452
      %v4454 = vrot.slane %v4452, 4
      %v4455 = vrot.slane %v4337, 7
      %v4456 = vsel %vm4428, %v4454, %v4455
      %v4457 = vrot.slane %v4455, 4
      %v4458 = vrot.slane %v4338, 7
      %v4459 = vsel %vm4428, %v4457, %v4458
      %v4460 = vrot.slane %v4458, 4
      %v4461 = vrot.slane %v4339, 7
      %v4462 = vsel %vm4428, %v4460, %v4461
      %v4463 = vrot.slane %v4461, 4
      %v4464 = vrot.slane %v4340, 7
      %v4465 = vsel %vm4428, %v4463, %v4464
      %v4466 = vrot.slane %v4464, 4
      %v4467 = vrot.slane %v4341, 7
      %v4468 = vsel %vm4428, %v4466, %v4467
      %v4469 = vrot.slane %v4467, 4
      %v4470 = vrot.slane %v4342, 7
      %v4471 = vsel %vm4428, %v4469, %v4470
      %v4472 = vrot.slane %v4470, 4
      %v4473 = vrot.slane %v4343, 7
      %v4474 = vsel %vm4428, %v4472, %v4473
      %v4475 = vrot.slane %v4473, 4
      %v4476 = vrot.slane %v4344, 7
      %v4477 = vsel %vm4428, %v4475, %v4476
      %v4478 = vrot.slane %v4476, 4
      %v4479 = vrot.slane %v4345, 7
      %v4480 = vsel %vm4428, %v4478, %v4479
      %v4481 = vrot.slane %v4479, 4
      %v4482 = vrot.slane %v4346, 7
      %v4483 = vsel %vm4428, %v4481, %v4482
      %v4484 = vrot.slane %v4482, 4
      %v4485 = vrot.slane %v4347, 7
      %v4486 = vsel %vm4428, %v4484, %v4485
      %v4487 = vrot.slane %v4485, 4
      %v4488 = vrot.slane %v4348, 7
      %v4489 = vsel %vm4428, %v4487, %v4488
      %v4490 = vrot.slane %v4488, 4
      %v4491 = vrot.slane %v4349, 7
      %v4492 = vsel %vm4428, %v4490, %v4491
      %v4493 = vrot.slane %v4491, 4
      %v4494 = vrot.slane %v4350, 7
      %v4495 = vsel %vm4428, %v4493, %v4494
      %v4496 = vrot.slane %v4494, 4
      %v4497 = vrot.slane %v4351, 7
      %v4498 = vsel %vm4428, %v4496, %v4497
      %v4499 = vrot.slane %v4497, 4
      %v4500 = vrot.slane %v4352, 7
      %v4501 = vsel %vm4428, %v4499, %v4500
      %v4502 = vrot.slane %v4500, 4
      %v4503 = vrot.slane %v4353, 7
      %v4504 = vsel %vm4428, %v4502, %v4503
      %v4505 = vrot.slane %v4503, 4
      %v4506 = vrot.slane %v4354, 7
      %v4507 = vsel %vm4428, %v4505, %v4506
      %v4508 = vrot.slane %v4506, 4
      %v4509 = vrot.slane %v4355, 7
      %v4510 = vsel %vm4428, %v4508, %v4509
      %v4511 = vrot.slane %v4509, 4
      %v4512 = vrot.slane %v4356, 7
      %v4513 = vsel %vm4428, %v4511, %v4512
      %v4514 = vrot.slane %v4512, 4
      %v4515 = vrot.slane %v4357, 7
      %v4516 = vsel %vm4428, %v4514, %v4515
      %v4517 = vrot.slane %v4515, 4
      %v4518 = vrot.slane %v4358, 7
      %v4519 = vsel %vm4428, %v4517, %v4518
      %v4520 = vrot.slane %v4518, 4
      %v4521 = vrot.slane %v4359, 7
      %v4522 = vsel %vm4428, %v4520, %v4521
      %v4523 = vrot.slane %v4521, 4
      %v4524 = vrot.slane %v4360, 7
      %v4525 = vsel %vm4428, %v4523, %v4524
      %v4526 = vrot.slane %v4524, 4
      %v4527 = vrot.slane %v4361, 7
      %v4528 = vsel %vm4428, %v4526, %v4527
      %v4529 = vrot.slane %v4527, 4
      %v4530 = vrot.slane %v4362, 7
      %v4531 = vsel %vm4428, %v4529, %v4530
      %v4532 = vrot.slane %v4530, 4
      %v4533 = vrot.slane %v4363, 7
      %v4534 = vsel %vm4428, %v4532, %v4533
      %v4535 = vrot.slane %v4533, 4
      %v4536 = vrot.slane %v4364, 7
      %v4537 = vsel %vm4428, %v4535, %v4536
      %v4538 = vrot.slane %v4536, 4
      %v4539 = vrot.slane %v4365, 7
      %v4540 = vsel %vm4428, %v4538, %v4539
      %v4541 = vrot.slane %v4539, 4
      %v4542 = vrot.slane %v4366, 7
      %v4543 = vsel %vm4428, %v4541, %v4542
      %v4544 = vrot.slane %v4542, 4
      %v4545 = vrot.slane %v4367, 7
      %v4546 = vsel %vm4428, %v4544, %v4545
      %v4547 = vrot.slane %v4545, 4
      %v4548 = vrot.slane %v4368, 7
      %v4549 = vsel %vm4428, %v4547, %v4548
      %v4550 = vrot.slane %v4548, 4
      %v4551 = vrot.slane %v4369, 7
      %v4552 = vsel %vm4428, %v4550, %v4551
      %v4553 = vrot.slane %v4551, 4
      %v4554 = vrot.slane %v4370, 7
      %v4555 = vsel %vm4428, %v4553, %v4554
      %v4556 = vrot.slane %v4554, 4
      %v4557 = vrot.slane %v4371, 7
      %v4558 = vsel %vm4428, %v4556, %v4557
      %v4559 = vrot.slane %v4557, 4
      %v4560 = vrot.slane %v4372, 7
      %v4561 = vsel %vm4428, %v4559, %v4560
      %v4562 = vrot.slane %v4560, 4
      %v4563 = vrot.slane %v4373, 7
      %v4564 = vsel %vm4428, %v4562, %v4563
      %v4565 = vrot.slane %v4563, 4
      %v4566 = vrot.slane %v4374, 7
      %v4567 = vsel %vm4428, %v4565, %v4566
      %v4568 = vrot.slane %v4566, 4
      %v4569 = vrot.slane %v4375, 7
      %v4570 = vsel %vm4428, %v4568, %v4569
      %v4571 = vrot.slane %v4569, 4
      %v4572 = vrot.slane %v4376, 7
      %v4573 = vsel %vm4428, %v4571, %v4572
      %4574 = vrot.lane.b32.xlu0 %v4432, 64
      %v4575 = vpop.permute.xlu0 %4574
      %4576 = vrot.lane.b32.xlu0 %v4435, 64
      %v4577 = vpop.permute.xlu0 %4576
      %4578 = vrot.lane.b32.xlu0 %v4438, 64
      %v4579 = vpop.permute.xlu0 %4578
      %4580 = vrot.lane.b32.xlu0 %v4441, 64
      %v4581 = vpop.permute.xlu0 %4580
      %4582 = vrot.lane.b32.xlu0 %v4444, 64
      %v4583 = vpop.permute.xlu0 %4582
      %4584 = vrot.lane.b32.xlu0 %v4447, 64
      %v4585 = vpop.permute.xlu0 %4584
      %4586 = vrot.lane.b32.xlu0 %v4450, 64
      %v4587 = vpop.permute.xlu0 %4586
      %4588 = vrot.lane.b32.xlu0 %v4453, 64
      %v4589 = vpop.permute.xlu0 %4588
      %4590 = vrot.lane.b32.xlu0 %v4456, 64
      %v4591 = vpop.permute.xlu0 %4590
      %4592 = vrot.lane.b32.xlu0 %v4459, 64
      %v4593 = vpop.permute.xlu0 %4592
      %4594 = vrot.lane.b32.xlu0 %v4462, 64
      %v4595 = vpop.permute.xlu0 %4594
      %4596 = vrot.lane.b32.xlu0 %v4465, 64
      %v4597 = vpop.permute.xlu0 %4596
      %4598 = vrot.lane.b32.xlu0 %v4468, 64
      %v4599 = vpop.permute.xlu0 %4598
      %4600 = vrot.lane.b32.xlu0 %v4471, 64
      %v4601 = vpop.permute.xlu0 %4600
      %4602 = vrot.lane.b32.xlu0 %v4474, 64
      %v4603 = vpop.permute.xlu0 %4602
      %4604 = vrot.lane.b32.xlu0 %v4477, 64
      %v4605 = vpop.permute.xlu0 %4604
      %4606 = vrot.lane.b32.xlu0 %v4480, 64
      %v4607 = vpop.permute.xlu0 %4606
      %4608 = vrot.lane.b32.xlu0 %v4483, 64
      %v4609 = vpop.permute.xlu0 %4608
      %4610 = vrot.lane.b32.xlu0 %v4486, 64
      %v4611 = vpop.permute.xlu0 %4610
      %4612 = vrot.lane.b32.xlu0 %v4489, 64
      %v4613 = vpop.permute.xlu0 %4612
      %4614 = vrot.lane.b32.xlu0 %v4492, 64
      %v4615 = vpop.permute.xlu0 %4614
      %4616 = vrot.lane.b32.xlu0 %v4495, 64
      %v4617 = vpop.permute.xlu0 %4616
      %4618 = vrot.lane.b32.xlu0 %v4498, 64
      %v4619 = vpop.permute.xlu0 %4618
      %4620 = vrot.lane.b32.xlu0 %v4501, 64
      %v4621 = vpop.permute.xlu0 %4620
      %4622 = vrot.lane.b32.xlu0 %v4504, 64
      %v4623 = vpop.permute.xlu0 %4622
      %4624 = vrot.lane.b32.xlu0 %v4507, 64
      %v4625 = vpop.permute.xlu0 %4624
      %4626 = vrot.lane.b32.xlu0 %v4510, 64
      %v4627 = vpop.permute.xlu0 %4626
      %4628 = vrot.lane.b32.xlu0 %v4513, 64
      %v4629 = vpop.permute.xlu0 %4628
      %4630 = vrot.lane.b32.xlu0 %v4516, 64
      %v4631 = vpop.permute.xlu0 %4630
      %4632 = vrot.lane.b32.xlu0 %v4519, 64
      %v4633 = vpop.permute.xlu0 %4632
      %4634 = vrot.lane.b32.xlu0 %v4522, 64
      %v4635 = vpop.permute.xlu0 %4634
      %4636 = vrot.lane.b32.xlu0 %v4525, 64
      %v4637 = vpop.permute.xlu0 %4636
      %4638 = vrot.lane.b32.xlu0 %v4528, 64
      %v4639 = vpop.permute.xlu0 %4638
      %4640 = vrot.lane.b32.xlu0 %v4531, 64
      %v4641 = vpop.permute.xlu0 %4640
      %4642 = vrot.lane.b32.xlu0 %v4534, 64
      %v4643 = vpop.permute.xlu0 %4642
      %4644 = vrot.lane.b32.xlu0 %v4537, 64
      %v4645 = vpop.permute.xlu0 %4644
      %4646 = vrot.lane.b32.xlu0 %v4540, 64
      %v4647 = vpop.permute.xlu0 %4646
      %4648 = vrot.lane.b32.xlu0 %v4543, 64
      %v4649 = vpop.permute.xlu0 %4648
      %4650 = vrot.lane.b32.xlu0 %v4546, 64
      %v4651 = vpop.permute.xlu0 %4650
      %4652 = vrot.lane.b32.xlu0 %v4549, 64
      %v4653 = vpop.permute.xlu0 %4652
      %4654 = vrot.lane.b32.xlu0 %v4552, 64
      %v4655 = vpop.permute.xlu0 %4654
      %4656 = vrot.lane.b32.xlu0 %v4555, 64
      %v4657 = vpop.permute.xlu0 %4656
      %4658 = vrot.lane.b32.xlu0 %v4558, 64
      %v4659 = vpop.permute.xlu0 %4658
      %4660 = vrot.lane.b32.xlu0 %v4561, 64
      %v4661 = vpop.permute.xlu0 %4660
      %4662 = vrot.lane.b32.xlu0 %v4564, 64
      %v4663 = vpop.permute.xlu0 %4662
      %4664 = vrot.lane.b32.xlu0 %v4567, 64
      %v4665 = vpop.permute.xlu0 %4664
      %4666 = vrot.lane.b32.xlu0 %v4570, 64
      %v4667 = vpop.permute.xlu0 %4666
      %4668 = vrot.lane.b32.xlu0 %v4573, 64
      %v4669 = vpop.permute.xlu0 %4668
      %vm4718 = vcmask 585216
      %4719 = vst.msk [vmem:[#allocation2] sm:$0xf] %vm4718, %v4575
      %4720 = vst.msk [vmem:[#allocation2 + $0x4] sm:$0xf] %vm4718, %v4577
      %4721 = vst.msk [vmem:[#allocation2 + $0x8] sm:$0xf] %vm4718, %v4579
      %4722 = vst.msk [vmem:[#allocation2 + $0xc] sm:$0xf] %vm4718, %v4581
      %4723 = vst.msk [vmem:[#allocation2 + $0x10] sm:$0xf] %vm4718, %v4583
      %4724 = vst.msk [vmem:[#allocation2 + $0x14] sm:$0xf] %vm4718, %v4585
      %4725 = vst.msk [vmem:[#allocation2 + $0x18] sm:$0xf] %vm4718, %v4587
      %4726 = vst.msk [vmem:[#allocation2 + $0x1c] sm:$0xf] %vm4718, %v4589
      %4727 = vst.msk [vmem:[#allocation2 + $0x20] sm:$0xf] %vm4718, %v4591
      %4728 = vst.msk [vmem:[#allocation2 + $0x24] sm:$0xf] %vm4718, %v4593
      %4729 = vst.msk [vmem:[#allocation2 + $0x28] sm:$0xf] %vm4718, %v4595
      %4730 = vst.msk [vmem:[#allocation2 + $0x2c] sm:$0xf] %vm4718, %v4597
      %4731 = vst.msk [vmem:[#allocation2 + $0x30] sm:$0xf] %vm4718, %v4599
      %4732 = vst.msk [vmem:[#allocation2 + $0x34] sm:$0xf] %vm4718, %v4601
      %4733 = vst.msk [vmem:[#allocation2 + $0x38] sm:$0xf] %vm4718, %v4603
      %4734 = vst.msk [vmem:[#allocation2 + $0x3c] sm:$0xf] %vm4718, %v4605
      %4735 = vst.msk [vmem:[#allocation2 + $0x40] sm:$0xf] %vm4718, %v4607
      %4736 = vst.msk [vmem:[#allocation2 + $0x44] sm:$0xf] %vm4718, %v4609
      %4737 = vst.msk [vmem:[#allocation2 + $0x48] sm:$0xf] %vm4718, %v4611
      %4738 = vst.msk [vmem:[#allocation2 + $0x4c] sm:$0xf] %vm4718, %v4613
      %4739 = vst.msk [vmem:[#allocation2 + $0x50] sm:$0xf] %vm4718, %v4615
      %4740 = vst.msk [vmem:[#allocation2 + $0x54] sm:$0xf] %vm4718, %v4617
      %4741 = vst.msk [vmem:[#allocation2 + $0x58] sm:$0xf] %vm4718, %v4619
      %4742 = vst.msk [vmem:[#allocation2 + $0x5c] sm:$0xf] %vm4718, %v4621
      %4743 = vst.msk [vmem:[#allocation2 + $0x60] sm:$0xf] %vm4718, %v4623
      %4744 = vst.msk [vmem:[#allocation2 + $0x64] sm:$0xf] %vm4718, %v4625
      %4745 = vst.msk [vmem:[#allocation2 + $0x68] sm:$0xf] %vm4718, %v4627
      %4746 = vst.msk [vmem:[#allocation2 + $0x6c] sm:$0xf] %vm4718, %v4629
      %4747 = vst.msk [vmem:[#allocation2 + $0x70] sm:$0xf] %vm4718, %v4631
      %4748 = vst.msk [vmem:[#allocation2 + $0x74] sm:$0xf] %vm4718, %v4633
      %4749 = vst.msk [vmem:[#allocation2 + $0x78] sm:$0xf] %vm4718, %v4635
      %4750 = vst.msk [vmem:[#allocation2 + $0x7c] sm:$0xf] %vm4718, %v4637
      %4751 = vst.msk [vmem:[#allocation2 + $0x80] sm:$0xf] %vm4718, %v4639
      %4752 = vst.msk [vmem:[#allocation2 + $0x84] sm:$0xf] %vm4718, %v4641
      %4753 = vst.msk [vmem:[#allocation2 + $0x88] sm:$0xf] %vm4718, %v4643
      %4754 = vst.msk [vmem:[#allocation2 + $0x8c] sm:$0xf] %vm4718, %v4645
      %4755 = vst.msk [vmem:[#allocation2 + $0x90] sm:$0xf] %vm4718, %v4647
      %4756 = vst.msk [vmem:[#allocation2 + $0x94] sm:$0xf] %vm4718, %v4649
      %4757 = vst.msk [vmem:[#allocation2 + $0x98] sm:$0xf] %vm4718, %v4651
      %4758 = vst.msk [vmem:[#allocation2 + $0x9c] sm:$0xf] %vm4718, %v4653
      %4759 = vst.msk [vmem:[#allocation2 + $0xa0] sm:$0xf] %vm4718, %v4655
      %4760 = vst.msk [vmem:[#allocation2 + $0xa4] sm:$0xf] %vm4718, %v4657
      %4761 = vst.msk [vmem:[#allocation2 + $0xa8] sm:$0xf] %vm4718, %v4659
      %4762 = vst.msk [vmem:[#allocation2 + $0xac] sm:$0xf] %vm4718, %v4661
      %4763 = vst.msk [vmem:[#allocation2 + $0xb0] sm:$0xf] %vm4718, %v4663
      %4764 = vst.msk [vmem:[#allocation2 + $0xb4] sm:$0xf] %vm4718, %v4665
      %4765 = vst.msk [vmem:[#allocation2 + $0xb8] sm:$0xf] %vm4718, %v4667
      %4766 = vst.msk [vmem:[#allocation2 + $0xbc] sm:$0xf] %vm4718, %v4669
      %v4767 = vld [vmem:[#allocation2] sm:$0xf]
      %v4768 = vld [vmem:[#allocation2 + $0x4] sm:$0xf]
      %v4769 = vld [vmem:[#allocation2 + $0x8] sm:$0xf]
      %v4770 = vld [vmem:[#allocation2 + $0xc] sm:$0xf]
      %v4771 = vld [vmem:[#allocation2 + $0x10] sm:$0xf]
      %v4772 = vld [vmem:[#allocation2 + $0x14] sm:$0xf]
      %v4773 = vld [vmem:[#allocation2 + $0x18] sm:$0xf]
      %v4774 = vld [vmem:[#allocation2 + $0x1c] sm:$0xf]
      %v4775 = vld [vmem:[#allocation2 + $0x20] sm:$0xf]
      %v4776 = vld [vmem:[#allocation2 + $0x24] sm:$0xf]
      %v4777 = vld [vmem:[#allocation2 + $0x28] sm:$0xf]
      %v4778 = vld [vmem:[#allocation2 + $0x2c] sm:$0xf]
      %v4779 = vld [vmem:[#allocation2 + $0x30] sm:$0xf]
      %v4780 = vld [vmem:[#allocation2 + $0x34] sm:$0xf]
      %v4781 = vld [vmem:[#allocation2 + $0x38] sm:$0xf]
      %v4782 = vld [vmem:[#allocation2 + $0x3c] sm:$0xf]
      %v4783 = vld [vmem:[#allocation2 + $0x40] sm:$0xf]
      %v4784 = vld [vmem:[#allocation2 + $0x44] sm:$0xf]
      %v4785 = vld [vmem:[#allocation2 + $0x48] sm:$0xf]
      %v4786 = vld [vmem:[#allocation2 + $0x4c] sm:$0xf]
      %v4787 = vld [vmem:[#allocation2 + $0x50] sm:$0xf]
      %v4788 = vld [vmem:[#allocation2 + $0x54] sm:$0xf]
      %v4789 = vld [vmem:[#allocation2 + $0x58] sm:$0xf]
      %v4790 = vld [vmem:[#allocation2 + $0x5c] sm:$0xf]
      %v4791 = vld [vmem:[#allocation2 + $0x60] sm:$0xf]
      %v4792 = vld [vmem:[#allocation2 + $0x64] sm:$0xf]
      %v4793 = vld [vmem:[#allocation2 + $0x68] sm:$0xf]
      %v4794 = vld [vmem:[#allocation2 + $0x6c] sm:$0xf]
      %v4795 = vld [vmem:[#allocation2 + $0x70] sm:$0xf]
      %v4796 = vld [vmem:[#allocation2 + $0x74] sm:$0xf]
      %v4797 = vld [vmem:[#allocation2 + $0x78] sm:$0xf]
      %v4798 = vld [vmem:[#allocation2 + $0x7c] sm:$0xf]
      %v4799 = vld [vmem:[#allocation2 + $0x80] sm:$0xf]
      %v4800 = vld [vmem:[#allocation2 + $0x84] sm:$0xf]
      %v4801 = vld [vmem:[#allocation2 + $0x88] sm:$0xf]
      %v4802 = vld [vmem:[#allocation2 + $0x8c] sm:$0xf]
      %v4803 = vld [vmem:[#allocation2 + $0x90] sm:$0xf]
      %v4804 = vld [vmem:[#allocation2 + $0x94] sm:$0xf]
      %v4805 = vld [vmem:[#allocation2 + $0x98] sm:$0xf]
      %v4806 = vld [vmem:[#allocation2 + $0x9c] sm:$0xf]
      %v4807 = vld [vmem:[#allocation2 + $0xa0] sm:$0xf]
      %v4808 = vld [vmem:[#allocation2 + $0xa4] sm:$0xf]
      %v4809 = vld [vmem:[#allocation2 + $0xa8] sm:$0xf]
      %v4810 = vld [vmem:[#allocation2 + $0xac] sm:$0xf]
      %v4811 = vld [vmem:[#allocation2 + $0xb0] sm:$0xf]
      %v4812 = vld [vmem:[#allocation2 + $0xb4] sm:$0xf]
      %v4813 = vld [vmem:[#allocation2 + $0xb8] sm:$0xf]
      %v4814 = vld [vmem:[#allocation2 + $0xbc] sm:$0xf]
      %v4815 = vld [vmem:[%s1] sm:$0xf]
      %v4816 = vld [vmem:[%s1 + $0x4] sm:$0xf]
      %v4817 = vld [vmem:[%s1 + $0x8] sm:$0xf]
      %v4818 = vld [vmem:[%s1 + $0xc] sm:$0xf]
      %v4819 = vld [vmem:[%s1 + $0x10] sm:$0xf]
      %v4820 = vld [vmem:[%s1 + $0x14] sm:$0xf]
      %v4821 = vld [vmem:[%s1 + $0x18] sm:$0xf]
      %v4822 = vld [vmem:[%s1 + $0x1c] sm:$0xf]
      %v4823 = vld [vmem:[%s1 + $0x20] sm:$0xf]
      %v4872 = vunpack.c.l.b16 %v4767
      %v4873 = vunpack.c.l.b16 %v4768
      %v4874 = vunpack.c.l.b16 %v4769
      %v4875 = vunpack.c.l.b16 %v4770
      %v4876 = vunpack.c.l.b16 %v4771
      %v4877 = vunpack.c.l.b16 %v4772
      %v4878 = vunpack.c.l.b16 %v4773
      %v4879 = vunpack.c.l.b16 %v4774
      %v4880 = vunpack.c.l.b16 %v4775
      %v4881 = vunpack.c.l.b16 %v4776
      %v4882 = vunpack.c.l.b16 %v4777
      %v4883 = vunpack.c.l.b16 %v4778
      %v4884 = vunpack.c.l.b16 %v4779
      %v4885 = vunpack.c.l.b16 %v4780
      %v4886 = vunpack.c.l.b16 %v4781
      %v4887 = vunpack.c.l.b16 %v4782
      %v4888 = vunpack.c.l.b16 %v4783
      %v4889 = vunpack.c.l.b16 %v4784
      %v4890 = vunpack.c.l.b16 %v4785
      %v4891 = vunpack.c.l.b16 %v4786
      %v4892 = vunpack.c.l.b16 %v4787
      %v4893 = vunpack.c.l.b16 %v4788
      %v4894 = vunpack.c.l.b16 %v4789
      %v4895 = vunpack.c.l.b16 %v4790
      %v4896 = vunpack.c.l.b16 %v4791
      %v4897 = vunpack.c.l.b16 %v4792
      %v4898 = vunpack.c.l.b16 %v4793
      %v4899 = vunpack.c.l.b16 %v4794
      %v4900 = vunpack.c.l.b16 %v4795
      %v4901 = vunpack.c.l.b16 %v4796
      %v4902 = vunpack.c.l.b16 %v4797
      %v4903 = vunpack.c.l.b16 %v4798
      %v4904 = vunpack.c.l.b16 %v4799
      %v4905 = vunpack.c.l.b16 %v4800
      %v4906 = vunpack.c.l.b16 %v4801
      %v4907 = vunpack.c.l.b16 %v4802
      %v4908 = vunpack.c.l.b16 %v4803
      %v4909 = vunpack.c.l.b16 %v4804
      %v4910 = vunpack.c.l.b16 %v4805
      %v4911 = vunpack.c.l.b16 %v4806
      %v4912 = vunpack.c.l.b16 %v4807
      %v4913 = vunpack.c.l.b16 %v4808
      %v4914 = vunpack.c.l.b16 %v4809
      %v4915 = vunpack.c.l.b16 %v4810
      %v4916 = vunpack.c.l.b16 %v4811
      %v4917 = vunpack.c.l.b16 %v4812
      %v4918 = vunpack.c.l.b16 %v4813
      %v4919 = vunpack.c.l.b16 %v4814
      %v4920 = vpack.c.b16 %v4873, %v4872
      %v4921 = vpack.c.b16 %v4875, %v4874
      %v4922 = vpack.c.b16 %v4877, %v4876
      %v4923 = vpack.c.b16 %v4879, %v4878
      %v4924 = vpack.c.b16 %v4881, %v4880
      %v4925 = vpack.c.b16 %v4883, %v4882
      %v4926 = vpack.c.b16 %v4885, %v4884
      %v4927 = vpack.c.b16 %v4887, %v4886
      %v4928 = vpack.c.b16 %v4889, %v4888
      %v4929 = vpack.c.b16 %v4891, %v4890
      %v4930 = vpack.c.b16 %v4893, %v4892
      %v4931 = vpack.c.b16 %v4895, %v4894
      %v4932 = vpack.c.b16 %v4897, %v4896
      %v4933 = vpack.c.b16 %v4899, %v4898
      %v4934 = vpack.c.b16 %v4901, %v4900
      %v4935 = vpack.c.b16 %v4903, %v4902
      %v4936 = vpack.c.b16 %v4905, %v4904
      %v4937 = vpack.c.b16 %v4907, %v4906
      %v4938 = vpack.c.b16 %v4909, %v4908
      %v4939 = vpack.c.b16 %v4911, %v4910
      %v4940 = vpack.c.b16 %v4913, %v4912
      %v4941 = vpack.c.b16 %v4915, %v4914
      %v4942 = vpack.c.b16 %v4917, %v4916
      %v4943 = vpack.c.b16 %v4919, %v4918
      %v4953 = vunpack.c.l.b16 %v4815
      %v4954 = vunpack.c.l.b16 %v4816
      %v4955 = vunpack.c.l.b16 %v4817
      %v4956 = vunpack.c.l.b16 %v4818
      %v4957 = vunpack.c.l.b16 %v4819
      %v4958 = vunpack.c.l.b16 %v4820
      %v4959 = vunpack.c.l.b16 %v4821
      %v4960 = vunpack.c.l.b16 %v4822
      %v4961 = vunpack.c.l.b16 %v4823
      %v4962 = vpack.c.b16 %v4954, %v4953
      %v4963 = vpack.c.b16 %v4956, %v4955
      %v4964 = vpack.c.b16 %v4958, %v4957
      %v4965 = vpack.c.b16 %v4960, %v4959
      %v4966 = vpack.c.b16 %v4961, %v4961
      %vm4971 = vcmask 588800
      %v4973 = vsel %vm4971, %v4920, 0
      %v4976 = vsel %vm4971, %v4921, 0
      %v4979 = vsel %vm4971, %v4922, 0
      %v4982 = vsel %vm4971, %v4923, 0
      %v4985 = vsel %vm4971, %v4924, 0
      %v4988 = vsel %vm4971, %v4925, 0
      %v4991 = vsel %vm4971, %v4926, 0
      %v4994 = vsel %vm4971, %v4927, 0
      %v4997 = vsel %vm4971, %v4928, 0
      %v5000 = vsel %vm4971, %v4929, 0
      %v5003 = vsel %vm4971, %v4930, 0
      %v5006 = vsel %vm4971, %v4931, 0
      %v5009 = vsel %vm4971, %v4932, 0
      %v5012 = vsel %vm4971, %v4933, 0
      %v5015 = vsel %vm4971, %v4934, 0
      %v5018 = vsel %vm4971, %v4935, 0
      %v5021 = vsel %vm4971, %v4936, 0
      %v5024 = vsel %vm4971, %v4937, 0
      %v5027 = vsel %vm4971, %v4938, 0
      %v5030 = vsel %vm4971, %v4939, 0
      %v5033 = vsel %vm4971, %v4940, 0
      %v5036 = vsel %vm4971, %v4941, 0
      %v5039 = vsel %vm4971, %v4942, 0
      %v5042 = vsel %vm4971, %v4943, 0
      %vm5044 = vcmask 1043456
      %v5046 = vsel %vm5044, %v4966, 0
      %5048 = vmatprep.subr.bf16.mxu0 0
      %5049 = vmatpush1.bf16.msra.mxu0 0
      %5050 = vmatprep.subr.bf16.mxu0 0
      %5051 = vmatpush1.bf16.msra.mxu0 0
      %5052 = vmatprep.subr.bf16.mxu0 0
      %5053 = vmatpush1.bf16.msra.mxu0 0
      %5054 = vmatprep.subr.bf16.mxu0 0
      %5055 = vmatpush1.bf16.msra.mxu0 %v5046
      %5056 = vmatprep.subr.bf16.mxu0 0
      %5057 = vmatpush1.bf16.msra.mxu0 %v4965
      %5058 = vmatprep.subr.bf16.mxu0 0
      %5059 = vmatpush1.bf16.msra.mxu0 %v4964
      %5060 = vmatprep.subr.bf16.mxu0 0
      %5061 = vmatpush1.bf16.msra.mxu0 %v4963
      %5062 = vmatprep.subr.bf16.mxu0 0
      %5063 = vmatpush1.bf16.msra.mxu0 %v4962
      %5064 = vmatprep.subr.bf16.mxu0 0
      %5065 = vmatpush2.bf16.msra.mxu0 0
      %5066 = vmatprep.subr.bf16.mxu0 0
      %5067 = vmatpush2.bf16.msra.mxu0 0
      %5068 = vmatprep.subr.bf16.mxu0 0
      %5069 = vmatpush2.bf16.msra.mxu0 0
      %5070 = vmatprep.subr.bf16.mxu0 0
      %5071 = vmatpush2.bf16.msra.mxu0 0
      %5072 = vmatprep.subr.bf16.mxu0 0
      %5073 = vmatpush2.bf16.msra.mxu0 0
      %5074 = vmatprep.subr.bf16.mxu0 0
      %5075 = vmatpush2.bf16.msra.mxu0 0
      %5076 = vmatprep.subr.bf16.mxu0 0
      %5077 = vmatpush2.bf16.msra.mxu0 0
      %5078 = vmatprep.subr.bf16.mxu0 0
      %5079 = vmatpush2.bf16.msra.mxu0 0
      %5080 = vmatprep.mubr.bf16.mxu0 0
      %5081 = vmatmul.mubr.bf16.gmra.mxu0 %v4973
      %v5082 = vpop.f32.mrf.mxu0
      %v5083 = vadd.f32 0.0, %v5082
      %v5084 = vpop.f32.mrf.mxu0
      %v5085 = vpop.f32.mrf.mxu0
      %v5086 = vadd.f32 0.0, %v5085
      %v5087 = vpop.f32.mrf.mxu0
      %5088 = vmatprep.mubr.bf16.mxu0 0
      %5089 = vmatmul.mubr.bf16.gmra.mxu0 %v4976
      %v5090 = vpop.f32.mrf.mxu0
      %v5091 = vadd.f32 0.0, %v5090
      %v5092 = vpop.f32.mrf.mxu0
      %v5093 = vpop.f32.mrf.mxu0
      %v5094 = vadd.f32 0.0, %v5093
      %v5095 = vpop.f32.mrf.mxu0
      %5096 = vmatprep.mubr.bf16.mxu0 0
      %5097 = vmatmul.mubr.bf16.gmra.mxu0 %v4979
      %v5098 = vpop.f32.mrf.mxu0
      %v5099 = vadd.f32 0.0, %v5098
      %v5100 = vpop.f32.mrf.mxu0
      %v5101 = vpop.f32.mrf.mxu0
      %v5102 = vadd.f32 0.0, %v5101
      %v5103 = vpop.f32.mrf.mxu0
      %5104 = vmatprep.mubr.bf16.mxu0 0
      %5105 = vmatmul.mubr.bf16.gmra.mxu0 %v4982
      %v5106 = vpop.f32.mrf.mxu0
      %v5107 = vadd.f32 0.0, %v5106
      %v5108 = vpop.f32.mrf.mxu0
      %v5109 = vpop.f32.mrf.mxu0
      %v5110 = vadd.f32 0.0, %v5109
      %v5111 = vpop.f32.mrf.mxu0
      %5112 = vmatprep.mubr.bf16.mxu0 0
      %5113 = vmatmul.mubr.bf16.gmra.mxu0 %v4985
      %v5114 = vpop.f32.mrf.mxu0
      %v5115 = vadd.f32 0.0, %v5114
      %v5116 = vpop.f32.mrf.mxu0
      %v5117 = vpop.f32.mrf.mxu0
      %v5118 = vadd.f32 0.0, %v5117
      %v5119 = vpop.f32.mrf.mxu0
      %5120 = vmatprep.mubr.bf16.mxu0 0
      %5121 = vmatmul.mubr.bf16.gmra.mxu0 %v4988
      %v5122 = vpop.f32.mrf.mxu0
      %v5123 = vadd.f32 0.0, %v5122
      %v5124 = vpop.f32.mrf.mxu0
      %v5125 = vpop.f32.mrf.mxu0
      %v5126 = vadd.f32 0.0, %v5125
      %v5127 = vpop.f32.mrf.mxu0
      %5128 = vmatprep.mubr.bf16.mxu0 0
      %5129 = vmatmul.mubr.bf16.gmra.mxu0 %v4991
      %v5130 = vpop.f32.mrf.mxu0
      %v5131 = vadd.f32 0.0, %v5130
      %v5132 = vpop.f32.mrf.mxu0
      %v5133 = vpop.f32.mrf.mxu0
      %v5134 = vadd.f32 0.0, %v5133
      %v5135 = vpop.f32.mrf.mxu0
      %5136 = vmatprep.mubr.bf16.mxu0 0
      %5137 = vmatmul.mubr.bf16.gmra.mxu0 %v4994
      %v5138 = vpop.f32.mrf.mxu0
      %v5139 = vadd.f32 0.0, %v5138
      %v5140 = vpop.f32.mrf.mxu0
      %v5141 = vpop.f32.mrf.mxu0
      %v5142 = vadd.f32 0.0, %v5141
      %v5143 = vpop.f32.mrf.mxu0
      %5144 = vmatprep.mubr.bf16.mxu0 0
      %5145 = vmatmul.mubr.bf16.gmra.mxu0 %v4997
      %v5146 = vpop.f32.mrf.mxu0
      %v5147 = vadd.f32 0.0, %v5146
      %v5148 = vpop.f32.mrf.mxu0
      %v5149 = vpop.f32.mrf.mxu0
      %v5150 = vadd.f32 0.0, %v5149
      %v5151 = vpop.f32.mrf.mxu0
      %5152 = vmatprep.mubr.bf16.mxu0 0
      %5153 = vmatmul.mubr.bf16.gmra.mxu0 %v5000
      %v5154 = vpop.f32.mrf.mxu0
      %v5155 = vadd.f32 0.0, %v5154
      %v5156 = vpop.f32.mrf.mxu0
      %v5157 = vpop.f32.mrf.mxu0
      %v5158 = vadd.f32 0.0, %v5157
      %v5159 = vpop.f32.mrf.mxu0
      %5160 = vmatprep.mubr.bf16.mxu0 0
      %5161 = vmatmul.mubr.bf16.gmra.mxu0 %v5003
      %v5162 = vpop.f32.mrf.mxu0
      %v5163 = vadd.f32 0.0, %v5162
      %v5164 = vpop.f32.mrf.mxu0
      %v5165 = vpop.f32.mrf.mxu0
      %v5166 = vadd.f32 0.0, %v5165
      %v5167 = vpop.f32.mrf.mxu0
      %5168 = vmatprep.mubr.bf16.mxu0 0
      %5169 = vmatmul.mubr.bf16.gmra.mxu0 %v5006
      %v5170 = vpop.f32.mrf.mxu0
      %v5171 = vadd.f32 0.0, %v5170
      %v5172 = vpop.f32.mrf.mxu0
      %v5173 = vpop.f32.mrf.mxu0
      %v5174 = vadd.f32 0.0, %v5173
      %v5175 = vpop.f32.mrf.mxu0
      %5176 = vmatprep.mubr.bf16.mxu0 0
      %5177 = vmatmul.mubr.bf16.gmra.mxu0 %v5009
      %v5178 = vpop.f32.mrf.mxu0
      %v5179 = vadd.f32 0.0, %v5178
      %v5180 = vpop.f32.mrf.mxu0
      %v5181 = vpop.f32.mrf.mxu0
      %v5182 = vadd.f32 0.0, %v5181
      %v5183 = vpop.f32.mrf.mxu0
      %5184 = vmatprep.mubr.bf16.mxu0 0
      %5185 = vmatmul.mubr.bf16.gmra.mxu0 %v5012
      %v5186 = vpop.f32.mrf.mxu0
      %v5187 = vadd.f32 0.0, %v5186
      %v5188 = vpop.f32.mrf.mxu0
      %v5189 = vpop.f32.mrf.mxu0
      %v5190 = vadd.f32 0.0, %v5189
      %v5191 = vpop.f32.mrf.mxu0
      %5192 = vmatprep.mubr.bf16.mxu0 0
      %5193 = vmatmul.mubr.bf16.gmra.mxu0 %v5015
      %v5194 = vpop.f32.mrf.mxu0
      %v5195 = vadd.f32 0.0, %v5194
      %v5196 = vpop.f32.mrf.mxu0
      %v5197 = vpop.f32.mrf.mxu0
      %v5198 = vadd.f32 0.0, %v5197
      %v5199 = vpop.f32.mrf.mxu0
      %5200 = vmatprep.mubr.bf16.mxu0 0
      %5201 = vmatmul.mubr.bf16.gmra.mxu0 %v5018
      %v5202 = vpop.f32.mrf.mxu0
      %v5203 = vadd.f32 0.0, %v5202
      %v5204 = vpop.f32.mrf.mxu0
      %v5205 = vpop.f32.mrf.mxu0
      %v5206 = vadd.f32 0.0, %v5205
      %v5207 = vpop.f32.mrf.mxu0
      %5208 = vmatprep.mubr.bf16.mxu0 0
      %5209 = vmatmul.mubr.bf16.gmra.mxu0 %v5021
      %v5210 = vpop.f32.mrf.mxu0
      %v5211 = vadd.f32 0.0, %v5210
      %v5212 = vpop.f32.mrf.mxu0
      %v5213 = vpop.f32.mrf.mxu0
      %v5214 = vadd.f32 0.0, %v5213
      %v5215 = vpop.f32.mrf.mxu0
      %5216 = vmatprep.mubr.bf16.mxu0 0
      %5217 = vmatmul.mubr.bf16.gmra.mxu0 %v5024
      %v5218 = vpop.f32.mrf.mxu0
      %v5219 = vadd.f32 0.0, %v5218
      %v5220 = vpop.f32.mrf.mxu0
      %v5221 = vpop.f32.mrf.mxu0
      %v5222 = vadd.f32 0.0, %v5221
      %v5223 = vpop.f32.mrf.mxu0
      %5224 = vmatprep.mubr.bf16.mxu0 0
      %5225 = vmatmul.mubr.bf16.gmra.mxu0 %v5027
      %v5226 = vpop.f32.mrf.mxu0
      %v5227 = vadd.f32 0.0, %v5226
      %v5228 = vpop.f32.mrf.mxu0
      %v5229 = vpop.f32.mrf.mxu0
      %v5230 = vadd.f32 0.0, %v5229
      %v5231 = vpop.f32.mrf.mxu0
      %5232 = vmatprep.mubr.bf16.mxu0 0
      %5233 = vmatmul.mubr.bf16.gmra.mxu0 %v5030
      %v5234 = vpop.f32.mrf.mxu0
      %v5235 = vadd.f32 0.0, %v5234
      %v5236 = vpop.f32.mrf.mxu0
      %v5237 = vpop.f32.mrf.mxu0
      %v5238 = vadd.f32 0.0, %v5237
      %v5239 = vpop.f32.mrf.mxu0
      %5240 = vmatprep.mubr.bf16.mxu0 0
      %5241 = vmatmul.mubr.bf16.gmra.mxu0 %v5033
      %v5242 = vpop.f32.mrf.mxu0
      %v5243 = vadd.f32 0.0, %v5242
      %v5244 = vpop.f32.mrf.mxu0
      %v5245 = vpop.f32.mrf.mxu0
      %v5246 = vadd.f32 0.0, %v5245
      %v5247 = vpop.f32.mrf.mxu0
      %5248 = vmatprep.mubr.bf16.mxu0 0
      %5249 = vmatmul.mubr.bf16.gmra.mxu0 %v5036
      %v5250 = vpop.f32.mrf.mxu0
      %v5251 = vadd.f32 0.0, %v5250
      %v5252 = vpop.f32.mrf.mxu0
      %v5253 = vpop.f32.mrf.mxu0
      %v5254 = vadd.f32 0.0, %v5253
      %v5255 = vpop.f32.mrf.mxu0
      %5256 = vmatprep.mubr.bf16.mxu0 0
      %5257 = vmatmul.mubr.bf16.gmra.mxu0 %v5039
      %v5258 = vpop.f32.mrf.mxu0
      %v5259 = vadd.f32 0.0, %v5258
      %v5260 = vpop.f32.mrf.mxu0
      %v5261 = vpop.f32.mrf.mxu0
      %v5262 = vadd.f32 0.0, %v5261
      %v5263 = vpop.f32.mrf.mxu0
      %5264 = vmatprep.mubr.bf16.mxu0 0
      %5265 = vmatmul.mubr.bf16.gmra.mxu0 %v5042
      %v5266 = vpop.f32.mrf.mxu0
      %v5267 = vadd.f32 0.0, %v5266
      %v5268 = vpop.f32.mrf.mxu0
      %v5269 = vpop.f32.mrf.mxu0
      %v5270 = vadd.f32 0.0, %v5269
      %v5271 = vpop.f32.mrf.mxu0
      %5272 = vdwg.mxu0
      %v5273 = vld [vmem:[%s2] sm:$0x1]
      %v5275 = vlaneseq
      %v5276 = vshrl.u32 %v5275, 7
      %v5277 = vsub.s32 0, %v5276
      %v5278 = vrot.slane %v5273, %v5277
      %v5280 = vmul.f32 %v5083, %v5278
      %v5281 = vmul.f32 %v5086, %v5278
      %v5282 = vmul.f32 %v5091, %v5278
      %v5283 = vmul.f32 %v5094, %v5278
      %v5284 = vmul.f32 %v5099, %v5278
      %v5285 = vmul.f32 %v5102, %v5278
      %v5286 = vmul.f32 %v5107, %v5278
      %v5287 = vmul.f32 %v5110, %v5278
      %v5288 = vmul.f32 %v5115, %v5278
      %v5289 = vmul.f32 %v5118, %v5278
      %v5290 = vmul.f32 %v5123, %v5278
      %v5291 = vmul.f32 %v5126, %v5278
      %v5292 = vmul.f32 %v5131, %v5278
      %v5293 = vmul.f32 %v5134, %v5278
      %v5294 = vmul.f32 %v5139, %v5278
      %v5295 = vmul.f32 %v5142, %v5278
      %v5296 = vmul.f32 %v5147, %v5278
      %v5297 = vmul.f32 %v5150, %v5278
      %v5298 = vmul.f32 %v5155, %v5278
      %v5299 = vmul.f32 %v5158, %v5278
      %v5300 = vmul.f32 %v5163, %v5278
      %v5301 = vmul.f32 %v5166, %v5278
      %v5302 = vmul.f32 %v5171, %v5278
      %v5303 = vmul.f32 %v5174, %v5278
      %v5304 = vmul.f32 %v5179, %v5278
      %v5305 = vmul.f32 %v5182, %v5278
      %v5306 = vmul.f32 %v5187, %v5278
      %v5307 = vmul.f32 %v5190, %v5278
      %v5308 = vmul.f32 %v5195, %v5278
      %v5309 = vmul.f32 %v5198, %v5278
      %v5310 = vmul.f32 %v5203, %v5278
      %v5311 = vmul.f32 %v5206, %v5278
      %v5312 = vmul.f32 %v5211, %v5278
      %v5313 = vmul.f32 %v5214, %v5278
      %v5314 = vmul.f32 %v5219, %v5278
      %v5315 = vmul.f32 %v5222, %v5278
      %v5316 = vmul.f32 %v5227, %v5278
      %v5317 = vmul.f32 %v5230, %v5278
      %v5318 = vmul.f32 %v5235, %v5278
      %v5319 = vmul.f32 %v5238, %v5278
      %v5320 = vmul.f32 %v5243, %v5278
      %v5321 = vmul.f32 %v5246, %v5278
      %v5322 = vmul.f32 %v5251, %v5278
      %v5323 = vmul.f32 %v5254, %v5278
      %v5324 = vmul.f32 %v5259, %v5278
      %v5325 = vmul.f32 %v5262, %v5278
      %v5326 = vmul.f32 %v5267, %v5278
      %v5327 = vmul.f32 %v5270, %v5278
      %v5328 = vld [vmem:[%s3] sm:$0x1]
      %v5330 = vlaneseq
      %v5331 = vshrl.u32 %v5330, 7
      %v5332 = vsub.s32 0, %v5331
      %v5333 = vrot.slane %v5328, %v5332
      %v5335 = vadd.f32 %v5280, %v5333
      %v5336 = vadd.f32 %v5281, %v5333
      %v5337 = vadd.f32 %v5282, %v5333
      %v5338 = vadd.f32 %v5283, %v5333
      %v5339 = vadd.f32 %v5284, %v5333
      %v5340 = vadd.f32 %v5285, %v5333
      %v5341 = vadd.f32 %v5286, %v5333
      %v5342 = vadd.f32 %v5287, %v5333
      %v5343 = vadd.f32 %v5288, %v5333
      %v5344 = vadd.f32 %v5289, %v5333
      %v5345 = vadd.f32 %v5290, %v5333
      %v5346 = vadd.f32 %v5291, %v5333
      %v5347 = vadd.f32 %v5292, %v5333
      %v5348 = vadd.f32 %v5293, %v5333
      %v5349 = vadd.f32 %v5294, %v5333
      %v5350 = vadd.f32 %v5295, %v5333
      %v5351 = vadd.f32 %v5296, %v5333
      %v5352 = vadd.f32 %v5297, %v5333
      %v5353 = vadd.f32 %v5298, %v5333
      %v5354 = vadd.f32 %v5299, %v5333
      %v5355 = vadd.f32 %v5300, %v5333
      %v5356 = vadd.f32 %v5301, %v5333
      %v5357 = vadd.f32 %v5302, %v5333
      %v5358 = vadd.f32 %v5303, %v5333
      %v5359 = vadd.f32 %v5304, %v5333
      %v5360 = vadd.f32 %v5305, %v5333
      %v5361 = vadd.f32 %v5306, %v5333
      %v5362 = vadd.f32 %v5307, %v5333
      %v5363 = vadd.f32 %v5308, %v5333
      %v5364 = vadd.f32 %v5309, %v5333
      %v5365 = vadd.f32 %v5310, %v5333
      %v5366 = vadd.f32 %v5311, %v5333
      %v5367 = vadd.f32 %v5312, %v5333
      %v5368 = vadd.f32 %v5313, %v5333
      %v5369 = vadd.f32 %v5314, %v5333
      %v5370 = vadd.f32 %v5315, %v5333
      %v5371 = vadd.f32 %v5316, %v5333
      %v5372 = vadd.f32 %v5317, %v5333
      %v5373 = vadd.f32 %v5318, %v5333
      %v5374 = vadd.f32 %v5319, %v5333
      %v5375 = vadd.f32 %v5320, %v5333
      %v5376 = vadd.f32 %v5321, %v5333
      %v5377 = vadd.f32 %v5322, %v5333
      %v5378 = vadd.f32 %v5323, %v5333
      %v5379 = vadd.f32 %v5324, %v5333
      %v5380 = vadd.f32 %v5325, %v5333
      %v5381 = vadd.f32 %v5326, %v5333
      %v5382 = vadd.f32 %v5327, %v5333
      %v5383 = vmax.f32 %v5335, 0.0
      %v5384 = vmax.f32 %v5336, 0.0
      %v5385 = vmax.f32 %v5337, 0.0
      %v5386 = vmax.f32 %v5338, 0.0
      %v5387 = vmax.f32 %v5339, 0.0
      %v5388 = vmax.f32 %v5340, 0.0
      %v5389 = vmax.f32 %v5341, 0.0
      %v5390 = vmax.f32 %v5342, 0.0
      %v5391 = vmax.f32 %v5343, 0.0
      %v5392 = vmax.f32 %v5344, 0.0
      %v5393 = vmax.f32 %v5345, 0.0
      %v5394 = vmax.f32 %v5346, 0.0
      %v5395 = vmax.f32 %v5347, 0.0
      %v5396 = vmax.f32 %v5348, 0.0
      %v5397 = vmax.f32 %v5349, 0.0
      %v5398 = vmax.f32 %v5350, 0.0
      %v5399 = vmax.f32 %v5351, 0.0
      %v5400 = vmax.f32 %v5352, 0.0
      %v5401 = vmax.f32 %v5353, 0.0
      %v5402 = vmax.f32 %v5354, 0.0
      %v5403 = vmax.f32 %v5355, 0.0
      %v5404 = vmax.f32 %v5356, 0.0
      %v5405 = vmax.f32 %v5357, 0.0
      %v5406 = vmax.f32 %v5358, 0.0
      %v5407 = vmax.f32 %v5359, 0.0
      %v5408 = vmax.f32 %v5360, 0.0
      %v5409 = vmax.f32 %v5361, 0.0
      %v5410 = vmax.f32 %v5362, 0.0
      %v5411 = vmax.f32 %v5363, 0.0
      %v5412 = vmax.f32 %v5364, 0.0
      %v5413 = vmax.f32 %v5365, 0.0
      %v5414 = vmax.f32 %v5366, 0.0
      %v5415 = vmax.f32 %v5367, 0.0
      %v5416 = vmax.f32 %v5368, 0.0
      %v5417 = vmax.f32 %v5369, 0.0
      %v5418 = vmax.f32 %v5370, 0.0
      %v5419 = vmax.f32 %v5371, 0.0
      %v5420 = vmax.f32 %v5372, 0.0
      %v5421 = vmax.f32 %v5373, 0.0
      %v5422 = vmax.f32 %v5374, 0.0
      %v5423 = vmax.f32 %v5375, 0.0
      %v5424 = vmax.f32 %v5376, 0.0
      %v5425 = vmax.f32 %v5377, 0.0
      %v5426 = vmax.f32 %v5378, 0.0
      %v5427 = vmax.f32 %v5379, 0.0
      %v5428 = vmax.f32 %v5380, 0.0
      %v5429 = vmax.f32 %v5381, 0.0
      %v5430 = vmax.f32 %v5382, 0.0
      %v5431 = vlaneseq
      %v5432 = vshrl.u32 %v5431, 7
      %v5433 = vadd.s32 %v5432, 8
      %v5434 = vadd.s32 %v5432, 16
      %v5435 = vadd.s32 %v5432, 24
      %v5436 = vadd.s32 %v5432, 32
      %v5437 = vadd.s32 %v5432, 40
      %v5438 = vadd.s32 %v5432, 48
      %v5439 = vadd.s32 %v5432, 56
      %v5440 = vadd.s32 %v5432, 64
      %v5441 = vadd.s32 %v5432, 72
      %v5442 = vadd.s32 %v5432, 80
      %v5443 = vadd.s32 %v5432, 88
      %v5444 = vadd.s32 %v5432, 96
      %v5445 = vadd.s32 %v5432, 104
      %v5446 = vadd.s32 %v5432, 112
      %v5447 = vadd.s32 %v5432, 120
      %v5448 = vadd.s32 %v5432, 128
      %v5449 = vadd.s32 %v5432, 136
      %v5450 = vadd.s32 %v5432, 144
      %v5451 = vadd.s32 %v5432, 152
      %v5452 = vadd.s32 %v5432, 160
      %v5453 = vadd.s32 %v5432, 168
      %v5454 = vadd.s32 %v5432, 176
      %v5455 = vadd.s32 %v5432, 184
      %v5456 = vadd.s32 %v5432, 192
      %v5457 = vadd.s32 %v5432, 200
      %v5458 = vadd.s32 %v5432, 208
      %v5459 = vadd.s32 %v5432, 216
      %v5460 = vadd.s32 %v5432, 224
      %v5461 = vadd.s32 %v5432, 232
      %v5462 = vadd.s32 %v5432, 240
      %v5463 = vadd.s32 %v5432, 248
      %v5464 = vadd.s32 %v5432, 256
      %v5465 = vadd.s32 %v5432, 264
      %v5466 = vadd.s32 %v5432, 272
      %v5467 = vadd.s32 %v5432, 280
      %v5468 = vadd.s32 %v5432, 288
      %v5469 = vadd.s32 %v5432, 296
      %v5470 = vadd.s32 %v5432, 304
      %v5471 = vadd.s32 %v5432, 312
      %v5472 = vadd.s32 %v5432, 320
      %v5473 = vadd.s32 %v5432, 328
      %v5474 = vadd.s32 %v5432, 336
      %v5475 = vadd.s32 %v5432, 344
      %v5476 = vadd.s32 %v5432, 352
      %v5477 = vadd.s32 %v5432, 360
      %v5478 = vadd.s32 %v5432, 368
      %v5479 = vadd.s32 %v5432, 376
      %v5480 = vcvt.s32.f32 %v5432
      %v5481 = vcvt.s32.f32 %v5433
      %v5482 = vcvt.s32.f32 %v5434
      %v5483 = vcvt.s32.f32 %v5435
      %v5484 = vcvt.s32.f32 %v5436
      %v5485 = vcvt.s32.f32 %v5437
      %v5486 = vcvt.s32.f32 %v5438
      %v5487 = vcvt.s32.f32 %v5439
      %v5488 = vcvt.s32.f32 %v5440
      %v5489 = vcvt.s32.f32 %v5441
      %v5490 = vcvt.s32.f32 %v5442
      %v5491 = vcvt.s32.f32 %v5443
      %v5492 = vcvt.s32.f32 %v5444
      %v5493 = vcvt.s32.f32 %v5445
      %v5494 = vcvt.s32.f32 %v5446
      %v5495 = vcvt.s32.f32 %v5447
      %v5496 = vcvt.s32.f32 %v5448
      %v5497 = vcvt.s32.f32 %v5449
      %v5498 = vcvt.s32.f32 %v5450
      %v5499 = vcvt.s32.f32 %v5451
      %v5500 = vcvt.s32.f32 %v5452
      %v5501 = vcvt.s32.f32 %v5453
      %v5502 = vcvt.s32.f32 %v5454
      %v5503 = vcvt.s32.f32 %v5455
      %v5504 = vcvt.s32.f32 %v5456
      %v5505 = vcvt.s32.f32 %v5457
      %v5506 = vcvt.s32.f32 %v5458
      %v5507 = vcvt.s32.f32 %v5459
      %v5508 = vcvt.s32.f32 %v5460
      %v5509 = vcvt.s32.f32 %v5461
      %v5510 = vcvt.s32.f32 %v5462
      %v5511 = vcvt.s32.f32 %v5463
      %v5512 = vcvt.s32.f32 %v5464
      %v5513 = vcvt.s32.f32 %v5465
      %v5514 = vcvt.s32.f32 %v5466
      %v5515 = vcvt.s32.f32 %v5467
      %v5516 = vcvt.s32.f32 %v5468
      %v5517 = vcvt.s32.f32 %v5469
      %v5518 = vcvt.s32.f32 %v5470
      %v5519 = vcvt.s32.f32 %v5471
      %v5520 = vcvt.s32.f32 %v5472
      %v5521 = vcvt.s32.f32 %v5473
      %v5522 = vcvt.s32.f32 %v5474
      %v5523 = vcvt.s32.f32 %v5475
      %v5524 = vcvt.s32.f32 %v5476
      %v5525 = vcvt.s32.f32 %v5477
      %v5526 = vcvt.s32.f32 %v5478
      %v5527 = vcvt.s32.f32 %v5479
      %v5528 = vmul.f32 %v5480, 0.055555556
      %v5529 = vmul.f32 %v5481, 0.055555556
      %v5530 = vmul.f32 %v5482, 0.055555556
      %v5531 = vmul.f32 %v5483, 0.055555556
      %v5532 = vmul.f32 %v5484, 0.055555556
      %v5533 = vmul.f32 %v5485, 0.055555556
      %v5534 = vmul.f32 %v5486, 0.055555556
      %v5535 = vmul.f32 %v5487, 0.055555556
      %v5536 = vmul.f32 %v5488, 0.055555556
      %v5537 = vmul.f32 %v5489, 0.055555556
      %v5538 = vmul.f32 %v5490, 0.055555556
      %v5539 = vmul.f32 %v5491, 0.055555556
      %v5540 = vmul.f32 %v5492, 0.055555556
      %v5541 = vmul.f32 %v5493, 0.055555556
      %v5542 = vmul.f32 %v5494, 0.055555556
      %v5543 = vmul.f32 %v5495, 0.055555556
      %v5544 = vmul.f32 %v5496, 0.055555556
      %v5545 = vmul.f32 %v5497, 0.055555556
      %v5546 = vmul.f32 %v5498, 0.055555556
      %v5547 = vmul.f32 %v5499, 0.055555556
      %v5548 = vmul.f32 %v5500, 0.055555556
      %v5549 = vmul.f32 %v5501, 0.055555556
      %v5550 = vmul.f32 %v5502, 0.055555556
      %v5551 = vmul.f32 %v5503, 0.055555556
      %v5552 = vmul.f32 %v5504, 0.055555556
      %v5553 = vmul.f32 %v5505, 0.055555556
      %v5554 = vmul.f32 %v5506, 0.055555556
      %v5555 = vmul.f32 %v5507, 0.055555556
      %v5556 = vmul.f32 %v5508, 0.055555556
      %v5557 = vmul.f32 %v5509, 0.055555556
      %v5558 = vmul.f32 %v5510, 0.055555556
      %v5559 = vmul.f32 %v5511, 0.055555556
      %v5560 = vmul.f32 %v5512, 0.055555556
      %v5561 = vmul.f32 %v5513, 0.055555556
      %v5562 = vmul.f32 %v5514, 0.055555556
      %v5563 = vmul.f32 %v5515, 0.055555556
      %v5564 = vmul.f32 %v5516, 0.055555556
      %v5565 = vmul.f32 %v5517, 0.055555556
      %v5566 = vmul.f32 %v5518, 0.055555556
      %v5567 = vmul.f32 %v5519, 0.055555556
      %v5568 = vmul.f32 %v5520, 0.055555556
      %v5569 = vmul.f32 %v5521, 0.055555556
      %v5570 = vmul.f32 %v5522, 0.055555556
      %v5571 = vmul.f32 %v5523, 0.055555556
      %v5572 = vmul.f32 %v5524, 0.055555556
      %v5573 = vmul.f32 %v5525, 0.055555556
      %v5574 = vmul.f32 %v5526, 0.055555556
      %v5575 = vmul.f32 %v5527, 0.055555556
      %v5576 = vfloor.f32 %v5528
      %v5577 = vfloor.f32 %v5529
      %v5578 = vfloor.f32 %v5530
      %v5579 = vfloor.f32 %v5531
      %v5580 = vfloor.f32 %v5532
      %v5581 = vfloor.f32 %v5533
      %v5582 = vfloor.f32 %v5534
      %v5583 = vfloor.f32 %v5535
      %v5584 = vfloor.f32 %v5536
      %v5585 = vfloor.f32 %v5537
      %v5586 = vfloor.f32 %v5538
      %v5587 = vfloor.f32 %v5539
      %v5588 = vfloor.f32 %v5540
      %v5589 = vfloor.f32 %v5541
      %v5590 = vfloor.f32 %v5542
      %v5591 = vfloor.f32 %v5543
      %v5592 = vfloor.f32 %v5544
      %v5593 = vfloor.f32 %v5545
      %v5594 = vfloor.f32 %v5546
      %v5595 = vfloor.f32 %v5547
      %v5596 = vfloor.f32 %v5548
      %v5597 = vfloor.f32 %v5549
      %v5598 = vfloor.f32 %v5550
      %v5599 = vfloor.f32 %v5551
      %v5600 = vfloor.f32 %v5552
      %v5601 = vfloor.f32 %v5553
      %v5602 = vfloor.f32 %v5554
      %v5603 = vfloor.f32 %v5555
      %v5604 = vfloor.f32 %v5556
      %v5605 = vfloor.f32 %v5557
      %v5606 = vfloor.f32 %v5558
      %v5607 = vfloor.f32 %v5559
      %v5608 = vfloor.f32 %v5560
      %v5609 = vfloor.f32 %v5561
      %v5610 = vfloor.f32 %v5562
      %v5611 = vfloor.f32 %v5563
      %v5612 = vfloor.f32 %v5564
      %v5613 = vfloor.f32 %v5565
      %v5614 = vfloor.f32 %v5566
      %v5615 = vfloor.f32 %v5567
      %v5616 = vfloor.f32 %v5568
      %v5617 = vfloor.f32 %v5569
      %v5618 = vfloor.f32 %v5570
      %v5619 = vfloor.f32 %v5571
      %v5620 = vfloor.f32 %v5572
      %v5621 = vfloor.f32 %v5573
      %v5622 = vfloor.f32 %v5574
      %v5623 = vfloor.f32 %v5575
      %v5624 = vcvt.f32.s32.to.zero.pseudo %v5576
      %v5625 = vcvt.f32.s32.to.zero.pseudo %v5577
      %v5626 = vcvt.f32.s32.to.zero.pseudo %v5578
      %v5627 = vcvt.f32.s32.to.zero.pseudo %v5579
      %v5628 = vcvt.f32.s32.to.zero.pseudo %v5580
      %v5629 = vcvt.f32.s32.to.zero.pseudo %v5581
      %v5630 = vcvt.f32.s32.to.zero.pseudo %v5582
      %v5631 = vcvt.f32.s32.to.zero.pseudo %v5583
      %v5632 = vcvt.f32.s32.to.zero.pseudo %v5584
      %v5633 = vcvt.f32.s32.to.zero.pseudo %v5585
      %v5634 = vcvt.f32.s32.to.zero.pseudo %v5586
      %v5635 = vcvt.f32.s32.to.zero.pseudo %v5587
      %v5636 = vcvt.f32.s32.to.zero.pseudo %v5588
      %v5637 = vcvt.f32.s32.to.zero.pseudo %v5589
      %v5638 = vcvt.f32.s32.to.zero.pseudo %v5590
      %v5639 = vcvt.f32.s32.to.zero.pseudo %v5591
      %v5640 = vcvt.f32.s32.to.zero.pseudo %v5592
      %v5641 = vcvt.f32.s32.to.zero.pseudo %v5593
      %v5642 = vcvt.f32.s32.to.zero.pseudo %v5594
      %v5643 = vcvt.f32.s32.to.zero.pseudo %v5595
      %v5644 = vcvt.f32.s32.to.zero.pseudo %v5596
      %v5645 = vcvt.f32.s32.to.zero.pseudo %v5597
      %v5646 = vcvt.f32.s32.to.zero.pseudo %v5598
      %v5647 = vcvt.f32.s32.to.zero.pseudo %v5599
      %v5648 = vcvt.f32.s32.to.zero.pseudo %v5600
      %v5649 = vcvt.f32.s32.to.zero.pseudo %v5601
      %v5650 = vcvt.f32.s32.to.zero.pseudo %v5602
      %v5651 = vcvt.f32.s32.to.zero.pseudo %v5603
      %v5652 = vcvt.f32.s32.to.zero.pseudo %v5604
      %v5653 = vcvt.f32.s32.to.zero.pseudo %v5605
      %v5654 = vcvt.f32.s32.to.zero.pseudo %v5606
      %v5655 = vcvt.f32.s32.to.zero.pseudo %v5607
      %v5656 = vcvt.f32.s32.to.zero.pseudo %v5608
      %v5657 = vcvt.f32.s32.to.zero.pseudo %v5609
      %v5658 = vcvt.f32.s32.to.zero.pseudo %v5610
      %v5659 = vcvt.f32.s32.to.zero.pseudo %v5611
      %v5660 = vcvt.f32.s32.to.zero.pseudo %v5612
      %v5661 = vcvt.f32.s32.to.zero.pseudo %v5613
      %v5662 = vcvt.f32.s32.to.zero.pseudo %v5614
      %v5663 = vcvt.f32.s32.to.zero.pseudo %v5615
      %v5664 = vcvt.f32.s32.to.zero.pseudo %v5616
      %v5665 = vcvt.f32.s32.to.zero.pseudo %v5617
      %v5666 = vcvt.f32.s32.to.zero.pseudo %v5618
      %v5667 = vcvt.f32.s32.to.zero.pseudo %v5619
      %v5668 = vcvt.f32.s32.to.zero.pseudo %v5620
      %v5669 = vcvt.f32.s32.to.zero.pseudo %v5621
      %v5670 = vcvt.f32.s32.to.zero.pseudo %v5622
      %v5671 = vcvt.f32.s32.to.zero.pseudo %v5623
      %v5672 = vmul.u32 %v5624, 18
      %v5673 = vmul.u32 %v5625, 18
      %v5674 = vmul.u32 %v5626, 18
      %v5675 = vmul.u32 %v5627, 18
      %v5676 = vmul.u32 %v5628, 18
      %v5677 = vmul.u32 %v5629, 18
      %v5678 = vmul.u32 %v5630, 18
      %v5679 = vmul.u32 %v5631, 18
      %v5680 = vmul.u32 %v5632, 18
      %v5681 = vmul.u32 %v5633, 18
      %v5682 = vmul.u32 %v5634, 18
      %v5683 = vmul.u32 %v5635, 18
      %v5684 = vmul.u32 %v5636, 18
      %v5685 = vmul.u32 %v5637, 18
      %v5686 = vmul.u32 %v5638, 18
      %v5687 = vmul.u32 %v5639, 18
      %v5688 = vmul.u32 %v5640, 18
      %v5689 = vmul.u32 %v5641, 18
      %v5690 = vmul.u32 %v5642, 18
      %v5691 = vmul.u32 %v5643, 18
      %v5692 = vmul.u32 %v5644, 18
      %v5693 = vmul.u32 %v5645, 18
      %v5694 = vmul.u32 %v5646, 18
      %v5695 = vmul.u32 %v5647, 18
      %v5696 = vmul.u32 %v5648, 18
      %v5697 = vmul.u32 %v5649, 18
      %v5698 = vmul.u32 %v5650, 18
      %v5699 = vmul.u32 %v5651, 18
      %v5700 = vmul.u32 %v5652, 18
      %v5701 = vmul.u32 %v5653, 18
      %v5702 = vmul.u32 %v5654, 18
      %v5703 = vmul.u32 %v5655, 18
      %v5704 = vmul.u32 %v5656, 18
      %v5705 = vmul.u32 %v5657, 18
      %v5706 = vmul.u32 %v5658, 18
      %v5707 = vmul.u32 %v5659, 18
      %v5708 = vmul.u32 %v5660, 18
      %v5709 = vmul.u32 %v5661, 18
      %v5710 = vmul.u32 %v5662, 18
      %v5711 = vmul.u32 %v5663, 18
      %v5712 = vmul.u32 %v5664, 18
      %v5713 = vmul.u32 %v5665, 18
      %v5714 = vmul.u32 %v5666, 18
      %v5715 = vmul.u32 %v5667, 18
      %v5716 = vmul.u32 %v5668, 18
      %v5717 = vmul.u32 %v5669, 18
      %v5718 = vmul.u32 %v5670, 18
      %v5719 = vmul.u32 %v5671, 18
      %v5720 = vsub.s32 %v5432, %v5672
      %v5721 = vsub.s32 %v5433, %v5673
      %v5722 = vsub.s32 %v5434, %v5674
      %v5723 = vsub.s32 %v5435, %v5675
      %v5724 = vsub.s32 %v5436, %v5676
      %v5725 = vsub.s32 %v5437, %v5677
      %v5726 = vsub.s32 %v5438, %v5678
      %v5727 = vsub.s32 %v5439, %v5679
      %v5728 = vsub.s32 %v5440, %v5680
      %v5729 = vsub.s32 %v5441, %v5681
      %v5730 = vsub.s32 %v5442, %v5682
      %v5731 = vsub.s32 %v5443, %v5683
      %v5732 = vsub.s32 %v5444, %v5684
      %v5733 = vsub.s32 %v5445, %v5685
      %v5734 = vsub.s32 %v5446, %v5686
      %v5735 = vsub.s32 %v5447, %v5687
      %v5736 = vsub.s32 %v5448, %v5688
      %v5737 = vsub.s32 %v5449, %v5689
      %v5738 = vsub.s32 %v5450, %v5690
      %v5739 = vsub.s32 %v5451, %v5691
      %v5740 = vsub.s32 %v5452, %v5692
      %v5741 = vsub.s32 %v5453, %v5693
      %v5742 = vsub.s32 %v5454, %v5694
      %v5743 = vsub.s32 %v5455, %v5695
      %v5744 = vsub.s32 %v5456, %v5696
      %v5745 = vsub.s32 %v5457, %v5697
      %v5746 = vsub.s32 %v5458, %v5698
      %v5747 = vsub.s32 %v5459, %v5699
      %v5748 = vsub.s32 %v5460, %v5700
      %v5749 = vsub.s32 %v5461, %v5701
      %v5750 = vsub.s32 %v5462, %v5702
      %v5751 = vsub.s32 %v5463, %v5703
      %v5752 = vsub.s32 %v5464, %v5704
      %v5753 = vsub.s32 %v5465, %v5705
      %v5754 = vsub.s32 %v5466, %v5706
      %v5755 = vsub.s32 %v5467, %v5707
      %v5756 = vsub.s32 %v5468, %v5708
      %v5757 = vsub.s32 %v5469, %v5709
      %v5758 = vsub.s32 %v5470, %v5710
      %v5759 = vsub.s32 %v5471, %v5711
      %v5760 = vsub.s32 %v5472, %v5712
      %v5761 = vsub.s32 %v5473, %v5713
      %v5762 = vsub.s32 %v5474, %v5714
      %v5763 = vsub.s32 %v5475, %v5715
      %v5764 = vsub.s32 %v5476, %v5716
      %v5765 = vsub.s32 %v5477, %v5717
      %v5766 = vsub.s32 %v5478, %v5718
      %v5767 = vsub.s32 %v5479, %v5719
      %vm5768 = vcmp.ge.s32.totalorder %v5720, 18
      %vm5769 = vcmp.ge.s32.totalorder %v5721, 18
      %vm5770 = vcmp.ge.s32.totalorder %v5722, 18
      %vm5771 = vcmp.ge.s32.totalorder %v5723, 18
      %vm5772 = vcmp.ge.s32.totalorder %v5724, 18
      %vm5773 = vcmp.ge.s32.totalorder %v5725, 18
      %vm5774 = vcmp.ge.s32.totalorder %v5726, 18
      %vm5775 = vcmp.ge.s32.totalorder %v5727, 18
      %vm5776 = vcmp.ge.s32.totalorder %v5728, 18
      %vm5777 = vcmp.ge.s32.totalorder %v5729, 18
      %vm5778 = vcmp.ge.s32.totalorder %v5730, 18
      %vm5779 = vcmp.ge.s32.totalorder %v5731, 18
      %vm5780 = vcmp.ge.s32.totalorder %v5732, 18
      %vm5781 = vcmp.ge.s32.totalorder %v5733, 18
      %vm5782 = vcmp.ge.s32.totalorder %v5734, 18
      %vm5783 = vcmp.ge.s32.totalorder %v5735, 18
      %vm5784 = vcmp.ge.s32.totalorder %v5736, 18
      %vm5785 = vcmp.ge.s32.totalorder %v5737, 18
      %vm5786 = vcmp.ge.s32.totalorder %v5738, 18
      %vm5787 = vcmp.ge.s32.totalorder %v5739, 18
      %vm5788 = vcmp.ge.s32.totalorder %v5740, 18
      %vm5789 = vcmp.ge.s32.totalorder %v5741, 18
      %vm5790 = vcmp.ge.s32.totalorder %v5742, 18
      %vm5791 = vcmp.ge.s32.totalorder %v5743, 18
      %vm5792 = vcmp.ge.s32.totalorder %v5744, 18
      %vm5793 = vcmp.ge.s32.totalorder %v5745, 18
      %vm5794 = vcmp.ge.s32.totalorder %v5746, 18
      %vm5795 = vcmp.ge.s32.totalorder %v5747, 18
      %vm5796 = vcmp.ge.s32.totalorder %v5748, 18
      %vm5797 = vcmp.ge.s32.totalorder %v5749, 18
      %vm5798 = vcmp.ge.s32.totalorder %v5750, 18
      %vm5799 = vcmp.ge.s32.totalorder %v5751, 18
      %vm5800 = vcmp.ge.s32.totalorder %v5752, 18
      %vm5801 = vcmp.ge.s32.totalorder %v5753, 18
      %vm5802 = vcmp.ge.s32.totalorder %v5754, 18
      %vm5803 = vcmp.ge.s32.totalorder %v5755, 18
      %vm5804 = vcmp.ge.s32.totalorder %v5756, 18
      %vm5805 = vcmp.ge.s32.totalorder %v5757, 18
      %vm5806 = vcmp.ge.s32.totalorder %v5758, 18
      %vm5807 = vcmp.ge.s32.totalorder %v5759, 18
      %vm5808 = vcmp.ge.s32.totalorder %v5760, 18
      %vm5809 = vcmp.ge.s32.totalorder %v5761, 18
      %vm5810 = vcmp.ge.s32.totalorder %v5762, 18
      %vm5811 = vcmp.ge.s32.totalorder %v5763, 18
      %vm5812 = vcmp.ge.s32.totalorder %v5764, 18
      %vm5813 = vcmp.ge.s32.totalorder %v5765, 18
      %vm5814 = vcmp.ge.s32.totalorder %v5766, 18
      %vm5815 = vcmp.ge.s32.totalorder %v5767, 18
      %v5816 = vsub.s32 %v5720, 18
      %v5817 = vsub.s32 %v5721, 18
      %v5818 = vsub.s32 %v5722, 18
      %v5819 = vsub.s32 %v5723, 18
      %v5820 = vsub.s32 %v5724, 18
      %v5821 = vsub.s32 %v5725, 18
      %v5822 = vsub.s32 %v5726, 18
      %v5823 = vsub.s32 %v5727, 18
      %v5824 = vsub.s32 %v5728, 18
      %v5825 = vsub.s32 %v5729, 18
      %v5826 = vsub.s32 %v5730, 18
      %v5827 = vsub.s32 %v5731, 18
      %v5828 = vsub.s32 %v5732, 18
      %v5829 = vsub.s32 %v5733, 18
      %v5830 = vsub.s32 %v5734, 18
      %v5831 = vsub.s32 %v5735, 18
      %v5832 = vsub.s32 %v5736, 18
      %v5833 = vsub.s32 %v5737, 18
      %v5834 = vsub.s32 %v5738, 18
      %v5835 = vsub.s32 %v5739, 18
      %v5836 = vsub.s32 %v5740, 18
      %v5837 = vsub.s32 %v5741, 18
      %v5838 = vsub.s32 %v5742, 18
      %v5839 = vsub.s32 %v5743, 18
      %v5840 = vsub.s32 %v5744, 18
      %v5841 = vsub.s32 %v5745, 18
      %v5842 = vsub.s32 %v5746, 18
      %v5843 = vsub.s32 %v5747, 18
      %v5844 = vsub.s32 %v5748, 18
      %v5845 = vsub.s32 %v5749, 18
      %v5846 = vsub.s32 %v5750, 18
      %v5847 = vsub.s32 %v5751, 18
      %v5848 = vsub.s32 %v5752, 18
      %v5849 = vsub.s32 %v5753, 18
      %v5850 = vsub.s32 %v5754, 18
      %v5851 = vsub.s32 %v5755, 18
      %v5852 = vsub.s32 %v5756, 18
      %v5853 = vsub.s32 %v5757, 18
      %v5854 = vsub.s32 %v5758, 18
      %v5855 = vsub.s32 %v5759, 18
      %v5856 = vsub.s32 %v5760, 18
      %v5857 = vsub.s32 %v5761, 18
      %v5858 = vsub.s32 %v5762, 18
      %v5859 = vsub.s32 %v5763, 18
      %v5860 = vsub.s32 %v5764, 18
      %v5861 = vsub.s32 %v5765, 18
      %v5862 = vsub.s32 %v5766, 18
      %v5863 = vsub.s32 %v5767, 18
      %v5864 = vsel %vm5768, %v5816, %v5720
      %v5865 = vsel %vm5769, %v5817, %v5721
      %v5866 = vsel %vm5770, %v5818, %v5722
      %v5867 = vsel %vm5771, %v5819, %v5723
      %v5868 = vsel %vm5772, %v5820, %v5724
      %v5869 = vsel %vm5773, %v5821, %v5725
      %v5870 = vsel %vm5774, %v5822, %v5726
      %v5871 = vsel %vm5775, %v5823, %v5727
      %v5872 = vsel %vm5776, %v5824, %v5728
      %v5873 = vsel %vm5777, %v5825, %v5729
      %v5874 = vsel %vm5778, %v5826, %v5730
      %v5875 = vsel %vm5779, %v5827, %v5731
      %v5876 = vsel %vm5780, %v5828, %v5732
      %v5877 = vsel %vm5781, %v5829, %v5733
      %v5878 = vsel %vm5782, %v5830, %v5734
      %v5879 = vsel %vm5783, %v5831, %v5735
      %v5880 = vsel %vm5784, %v5832, %v5736
      %v5881 = vsel %vm5785, %v5833, %v5737
      %v5882 = vsel %vm5786, %v5834, %v5738
      %v5883 = vsel %vm5787, %v5835, %v5739
      %v5884 = vsel %vm5788, %v5836, %v5740
      %v5885 = vsel %vm5789, %v5837, %v5741
      %v5886 = vsel %vm5790, %v5838, %v5742
      %v5887 = vsel %vm5791, %v5839, %v5743
      %v5888 = vsel %vm5792, %v5840, %v5744
      %v5889 = vsel %vm5793, %v5841, %v5745
      %v5890 = vsel %vm5794, %v5842, %v5746
      %v5891 = vsel %vm5795, %v5843, %v5747
      %v5892 = vsel %vm5796, %v5844, %v5748
      %v5893 = vsel %vm5797, %v5845, %v5749
      %v5894 = vsel %vm5798, %v5846, %v5750
      %v5895 = vsel %vm5799, %v5847, %v5751
      %v5896 = vsel %vm5800, %v5848, %v5752
      %v5897 = vsel %vm5801, %v5849, %v5753
      %v5898 = vsel %vm5802, %v5850, %v5754
      %v5899 = vsel %vm5803, %v5851, %v5755
      %v5900 = vsel %vm5804, %v5852, %v5756
      %v5901 = vsel %vm5805, %v5853, %v5757
      %v5902 = vsel %vm5806, %v5854, %v5758
      %v5903 = vsel %vm5807, %v5855, %v5759
      %v5904 = vsel %vm5808, %v5856, %v5760
      %v5905 = vsel %vm5809, %v5857, %v5761
      %v5906 = vsel %vm5810, %v5858, %v5762
      %v5907 = vsel %vm5811, %v5859, %v5763
      %v5908 = vsel %vm5812, %v5860, %v5764
      %v5909 = vsel %vm5813, %v5861, %v5765
      %v5910 = vsel %vm5814, %v5862, %v5766
      %v5911 = vsel %vm5815, %v5863, %v5767
      %vm5912 = vcmp.lt.s32.totalorder %v5864, 0
      %vm5913 = vcmp.lt.s32.totalorder %v5865, 0
      %vm5914 = vcmp.lt.s32.totalorder %v5866, 0
      %vm5915 = vcmp.lt.s32.totalorder %v5867, 0
      %vm5916 = vcmp.lt.s32.totalorder %v5868, 0
      %vm5917 = vcmp.lt.s32.totalorder %v5869, 0
      %vm5918 = vcmp.lt.s32.totalorder %v5870, 0
      %vm5919 = vcmp.lt.s32.totalorder %v5871, 0
      %vm5920 = vcmp.lt.s32.totalorder %v5872, 0
      %vm5921 = vcmp.lt.s32.totalorder %v5873, 0
      %vm5922 = vcmp.lt.s32.totalorder %v5874, 0
      %vm5923 = vcmp.lt.s32.totalorder %v5875, 0
      %vm5924 = vcmp.lt.s32.totalorder %v5876, 0
      %vm5925 = vcmp.lt.s32.totalorder %v5877, 0
      %vm5926 = vcmp.lt.s32.totalorder %v5878, 0
      %vm5927 = vcmp.lt.s32.totalorder %v5879, 0
      %vm5928 = vcmp.lt.s32.totalorder %v5880, 0
      %vm5929 = vcmp.lt.s32.totalorder %v5881, 0
      %vm5930 = vcmp.lt.s32.totalorder %v5882, 0
      %vm5931 = vcmp.lt.s32.totalorder %v5883, 0
      %vm5932 = vcmp.lt.s32.totalorder %v5884, 0
      %vm5933 = vcmp.lt.s32.totalorder %v5885, 0
      %vm5934 = vcmp.lt.s32.totalorder %v5886, 0
      %vm5935 = vcmp.lt.s32.totalorder %v5887, 0
      %vm5936 = vcmp.lt.s32.totalorder %v5888, 0
      %vm5937 = vcmp.lt.s32.totalorder %v5889, 0
      %vm5938 = vcmp.lt.s32.totalorder %v5890, 0
      %vm5939 = vcmp.lt.s32.totalorder %v5891, 0
      %vm5940 = vcmp.lt.s32.totalorder %v5892, 0
      %vm5941 = vcmp.lt.s32.totalorder %v5893, 0
      %vm5942 = vcmp.lt.s32.totalorder %v5894, 0
      %vm5943 = vcmp.lt.s32.totalorder %v5895, 0
      %vm5944 = vcmp.lt.s32.totalorder %v5896, 0
      %vm5945 = vcmp.lt.s32.totalorder %v5897, 0
      %vm5946 = vcmp.lt.s32.totalorder %v5898, 0
      %vm5947 = vcmp.lt.s32.totalorder %v5899, 0
      %vm5948 = vcmp.lt.s32.totalorder %v5900, 0
      %vm5949 = vcmp.lt.s32.totalorder %v5901, 0
      %vm5950 = vcmp.lt.s32.totalorder %v5902, 0
      %vm5951 = vcmp.lt.s32.totalorder %v5903, 0
      %vm5952 = vcmp.lt.s32.totalorder %v5904, 0
      %vm5953 = vcmp.lt.s32.totalorder %v5905, 0
      %vm5954 = vcmp.lt.s32.totalorder %v5906, 0
      %vm5955 = vcmp.lt.s32.totalorder %v5907, 0
      %vm5956 = vcmp.lt.s32.totalorder %v5908, 0
      %vm5957 = vcmp.lt.s32.totalorder %v5909, 0
      %vm5958 = vcmp.lt.s32.totalorder %v5910, 0
      %vm5959 = vcmp.lt.s32.totalorder %v5911, 0
      %v5960 = vadd.s32 %v5864, 18
      %v5961 = vadd.s32 %v5865, 18
      %v5962 = vadd.s32 %v5866, 18
      %v5963 = vadd.s32 %v5867, 18
      %v5964 = vadd.s32 %v5868, 18
      %v5965 = vadd.s32 %v5869, 18
      %v5966 = vadd.s32 %v5870, 18
      %v5967 = vadd.s32 %v5871, 18
      %v5968 = vadd.s32 %v5872, 18
      %v5969 = vadd.s32 %v5873, 18
      %v5970 = vadd.s32 %v5874, 18
      %v5971 = vadd.s32 %v5875, 18
      %v5972 = vadd.s32 %v5876, 18
      %v5973 = vadd.s32 %v5877, 18
      %v5974 = vadd.s32 %v5878, 18
      %v5975 = vadd.s32 %v5879, 18
      %v5976 = vadd.s32 %v5880, 18
      %v5977 = vadd.s32 %v5881, 18
      %v5978 = vadd.s32 %v5882, 18
      %v5979 = vadd.s32 %v5883, 18
      %v5980 = vadd.s32 %v5884, 18
      %v5981 = vadd.s32 %v5885, 18
      %v5982 = vadd.s32 %v5886, 18
      %v5983 = vadd.s32 %v5887, 18
      %v5984 = vadd.s32 %v5888, 18
      %v5985 = vadd.s32 %v5889, 18
      %v5986 = vadd.s32 %v5890, 18
      %v5987 = vadd.s32 %v5891, 18
      %v5988 = vadd.s32 %v5892, 18
      %v5989 = vadd.s32 %v5893, 18
      %v5990 = vadd.s32 %v5894, 18
      %v5991 = vadd.s32 %v5895, 18
      %v5992 = vadd.s32 %v5896, 18
      %v5993 = vadd.s32 %v5897, 18
      %v5994 = vadd.s32 %v5898, 18
      %v5995 = vadd.s32 %v5899, 18
      %v5996 = vadd.s32 %v5900, 18
      %v5997 = vadd.s32 %v5901, 18
      %v5998 = vadd.s32 %v5902, 18
      %v5999 = vadd.s32 %v5903, 18
      %v6000 = vadd.s32 %v5904, 18
      %v6001 = vadd.s32 %v5905, 18
      %v6002 = vadd.s32 %v5906, 18
      %v6003 = vadd.s32 %v5907, 18
      %v6004 = vadd.s32 %v5908, 18
      %v6005 = vadd.s32 %v5909, 18
      %v6006 = vadd.s32 %v5910, 18
      %v6007 = vadd.s32 %v5911, 18
      %v6008 = vsel %vm5912, %v5960, %v5864
      %v6009 = vsel %vm5913, %v5961, %v5865
      %v6010 = vsel %vm5914, %v5962, %v5866
      %v6011 = vsel %vm5915, %v5963, %v5867
      %v6012 = vsel %vm5916, %v5964, %v5868
      %v6013 = vsel %vm5917, %v5965, %v5869
      %v6014 = vsel %vm5918, %v5966, %v5870
      %v6015 = vsel %vm5919, %v5967, %v5871
      %v6016 = vsel %vm5920, %v5968, %v5872
      %v6017 = vsel %vm5921, %v5969, %v5873
      %v6018 = vsel %vm5922, %v5970, %v5874
      %v6019 = vsel %vm5923, %v5971, %v5875
      %v6020 = vsel %vm5924, %v5972, %v5876
      %v6021 = vsel %vm5925, %v5973, %v5877
      %v6022 = vsel %vm5926, %v5974, %v5878
      %v6023 = vsel %vm5927, %v5975, %v5879
      %v6024 = vsel %vm5928, %v5976, %v5880
      %v6025 = vsel %vm5929, %v5977, %v5881
      %v6026 = vsel %vm5930, %v5978, %v5882
      %v6027 = vsel %vm5931, %v5979, %v5883
      %v6028 = vsel %vm5932, %v5980, %v5884
      %v6029 = vsel %vm5933, %v5981, %v5885
      %v6030 = vsel %vm5934, %v5982, %v5886
      %v6031 = vsel %vm5935, %v5983, %v5887
      %v6032 = vsel %vm5936, %v5984, %v5888
      %v6033 = vsel %vm5937, %v5985, %v5889
      %v6034 = vsel %vm5938, %v5986, %v5890
      %v6035 = vsel %vm5939, %v5987, %v5891
      %v6036 = vsel %vm5940, %v5988, %v5892
      %v6037 = vsel %vm5941, %v5989, %v5893
      %v6038 = vsel %vm5942, %v5990, %v5894
      %v6039 = vsel %vm5943, %v5991, %v5895
      %v6040 = vsel %vm5944, %v5992, %v5896
      %v6041 = vsel %vm5945, %v5993, %v5897
      %v6042 = vsel %vm5946, %v5994, %v5898
      %v6043 = vsel %vm5947, %v5995, %v5899
      %v6044 = vsel %vm5948, %v5996, %v5900
      %v6045 = vsel %vm5949, %v5997, %v5901
      %v6046 = vsel %vm5950, %v5998, %v5902
      %v6047 = vsel %vm5951, %v5999, %v5903
      %v6048 = vsel %vm5952, %v6000, %v5904
      %v6049 = vsel %vm5953, %v6001, %v5905
      %v6050 = vsel %vm5954, %v6002, %v5906
      %v6051 = vsel %vm5955, %v6003, %v5907
      %v6052 = vsel %vm5956, %v6004, %v5908
      %v6053 = vsel %vm5957, %v6005, %v5909
      %v6054 = vsel %vm5958, %v6006, %v5910
      %v6055 = vsel %vm5959, %v6007, %v5911
      %vm6056 = vcmp.lt.s32.totalorder %v5432, 288
      %vm6057 = vcmp.lt.s32.totalorder %v5433, 288
      %vm6058 = vcmp.lt.s32.totalorder %v5434, 288
      %vm6059 = vcmp.lt.s32.totalorder %v5435, 288
      %vm6060 = vcmp.lt.s32.totalorder %v5436, 288
      %vm6061 = vcmp.lt.s32.totalorder %v5437, 288
      %vm6062 = vcmp.lt.s32.totalorder %v5438, 288
      %vm6063 = vcmp.lt.s32.totalorder %v5439, 288
      %vm6064 = vcmp.lt.s32.totalorder %v5440, 288
      %vm6065 = vcmp.lt.s32.totalorder %v5441, 288
      %vm6066 = vcmp.lt.s32.totalorder %v5442, 288
      %vm6067 = vcmp.lt.s32.totalorder %v5443, 288
      %vm6068 = vcmp.lt.s32.totalorder %v5444, 288
      %vm6069 = vcmp.lt.s32.totalorder %v5445, 288
      %vm6070 = vcmp.lt.s32.totalorder %v5446, 288
      %vm6071 = vcmp.lt.s32.totalorder %v5447, 288
      %vm6072 = vcmp.lt.s32.totalorder %v5448, 288
      %vm6073 = vcmp.lt.s32.totalorder %v5449, 288
      %vm6074 = vcmp.lt.s32.totalorder %v5450, 288
      %vm6075 = vcmp.lt.s32.totalorder %v5451, 288
      %vm6076 = vcmp.lt.s32.totalorder %v5452, 288
      %vm6077 = vcmp.lt.s32.totalorder %v5453, 288
      %vm6078 = vcmp.lt.s32.totalorder %v5454, 288
      %vm6079 = vcmp.lt.s32.totalorder %v5455, 288
      %vm6080 = vcmp.lt.s32.totalorder %v5456, 288
      %vm6081 = vcmp.lt.s32.totalorder %v5457, 288
      %vm6082 = vcmp.lt.s32.totalorder %v5458, 288
      %vm6083 = vcmp.lt.s32.totalorder %v5459, 288
      %vm6084 = vcmp.lt.s32.totalorder %v5460, 288
      %vm6085 = vcmp.lt.s32.totalorder %v5461, 288
      %vm6086 = vcmp.lt.s32.totalorder %v5462, 288
      %vm6087 = vcmp.lt.s32.totalorder %v5463, 288
      %vm6088 = vcmp.lt.s32.totalorder %v5464, 288
      %vm6089 = vcmp.lt.s32.totalorder %v5465, 288
      %vm6090 = vcmp.lt.s32.totalorder %v5466, 288
      %vm6091 = vcmp.lt.s32.totalorder %v5467, 288
      %vm6092 = vcmp.lt.s32.totalorder %v5468, 288
      %vm6093 = vcmp.lt.s32.totalorder %v5469, 288
      %vm6094 = vcmp.lt.s32.totalorder %v5470, 288
      %vm6095 = vcmp.lt.s32.totalorder %v5471, 288
      %vm6096 = vcmp.lt.s32.totalorder %v5472, 288
      %vm6097 = vcmp.lt.s32.totalorder %v5473, 288
      %vm6098 = vcmp.lt.s32.totalorder %v5474, 288
      %vm6099 = vcmp.lt.s32.totalorder %v5475, 288
      %vm6100 = vcmp.lt.s32.totalorder %v5476, 288
      %vm6101 = vcmp.lt.s32.totalorder %v5477, 288
      %vm6102 = vcmp.lt.s32.totalorder %v5478, 288
      %vm6103 = vcmp.lt.s32.totalorder %v5479, 288
      %vm6104 = vcmp.lt.s32.totalorder %v6008, 16
      %vm6105 = vcmp.lt.s32.totalorder %v6009, 16
      %vm6106 = vcmp.lt.s32.totalorder %v6010, 16
      %vm6107 = vcmp.lt.s32.totalorder %v6011, 16
      %vm6108 = vcmp.lt.s32.totalorder %v6012, 16
      %vm6109 = vcmp.lt.s32.totalorder %v6013, 16
      %vm6110 = vcmp.lt.s32.totalorder %v6014, 16
      %vm6111 = vcmp.lt.s32.totalorder %v6015, 16
      %vm6112 = vcmp.lt.s32.totalorder %v6016, 16
      %vm6113 = vcmp.lt.s32.totalorder %v6017, 16
      %vm6114 = vcmp.lt.s32.totalorder %v6018, 16
      %vm6115 = vcmp.lt.s32.totalorder %v6019, 16
      %vm6116 = vcmp.lt.s32.totalorder %v6020, 16
      %vm6117 = vcmp.lt.s32.totalorder %v6021, 16
      %vm6118 = vcmp.lt.s32.totalorder %v6022, 16
      %vm6119 = vcmp.lt.s32.totalorder %v6023, 16
      %vm6120 = vcmp.lt.s32.totalorder %v6024, 16
      %vm6121 = vcmp.lt.s32.totalorder %v6025, 16
      %vm6122 = vcmp.lt.s32.totalorder %v6026, 16
      %vm6123 = vcmp.lt.s32.totalorder %v6027, 16
      %vm6124 = vcmp.lt.s32.totalorder %v6028, 16
      %vm6125 = vcmp.lt.s32.totalorder %v6029, 16
      %vm6126 = vcmp.lt.s32.totalorder %v6030, 16
      %vm6127 = vcmp.lt.s32.totalorder %v6031, 16
      %vm6128 = vcmp.lt.s32.totalorder %v6032, 16
      %vm6129 = vcmp.lt.s32.totalorder %v6033, 16
      %vm6130 = vcmp.lt.s32.totalorder %v6034, 16
      %vm6131 = vcmp.lt.s32.totalorder %v6035, 16
      %vm6132 = vcmp.lt.s32.totalorder %v6036, 16
      %vm6133 = vcmp.lt.s32.totalorder %v6037, 16
      %vm6134 = vcmp.lt.s32.totalorder %v6038, 16
      %vm6135 = vcmp.lt.s32.totalorder %v6039, 16
      %vm6136 = vcmp.lt.s32.totalorder %v6040, 16
      %vm6137 = vcmp.lt.s32.totalorder %v6041, 16
      %vm6138 = vcmp.lt.s32.totalorder %v6042, 16
      %vm6139 = vcmp.lt.s32.totalorder %v6043, 16
      %vm6140 = vcmp.lt.s32.totalorder %v6044, 16
      %vm6141 = vcmp.lt.s32.totalorder %v6045, 16
      %vm6142 = vcmp.lt.s32.totalorder %v6046, 16
      %vm6143 = vcmp.lt.s32.totalorder %v6047, 16
      %vm6144 = vcmp.lt.s32.totalorder %v6048, 16
      %vm6145 = vcmp.lt.s32.totalorder %v6049, 16
      %vm6146 = vcmp.lt.s32.totalorder %v6050, 16
      %vm6147 = vcmp.lt.s32.totalorder %v6051, 16
      %vm6148 = vcmp.lt.s32.totalorder %v6052, 16
      %vm6149 = vcmp.lt.s32.totalorder %v6053, 16
      %vm6150 = vcmp.lt.s32.totalorder %v6054, 16
      %vm6151 = vcmp.lt.s32.totalorder %v6055, 16
      %vm6152 = vmand %vm6056, %vm6104
      %vm6153 = vmand %vm6057, %vm6105
      %vm6154 = vmand %vm6058, %vm6106
      %vm6155 = vmand %vm6059, %vm6107
      %vm6156 = vmand %vm6060, %vm6108
      %vm6157 = vmand %vm6061, %vm6109
      %vm6158 = vmand %vm6062, %vm6110
      %vm6159 = vmand %vm6063, %vm6111
      %vm6160 = vmand %vm6064, %vm6112
      %vm6161 = vmand %vm6065, %vm6113
      %vm6162 = vmand %vm6066, %vm6114
      %vm6163 = vmand %vm6067, %vm6115
      %vm6164 = vmand %vm6068, %vm6116
      %vm6165 = vmand %vm6069, %vm6117
      %vm6166 = vmand %vm6070, %vm6118
      %vm6167 = vmand %vm6071, %vm6119
      %vm6168 = vmand %vm6072, %vm6120
      %vm6169 = vmand %vm6073, %vm6121
      %vm6170 = vmand %vm6074, %vm6122
      %vm6171 = vmand %vm6075, %vm6123
      %vm6172 = vmand %vm6076, %vm6124
      %vm6173 = vmand %vm6077, %vm6125
      %vm6174 = vmand %vm6078, %vm6126
      %vm6175 = vmand %vm6079, %vm6127
      %vm6176 = vmand %vm6080, %vm6128
      %vm6177 = vmand %vm6081, %vm6129
      %vm6178 = vmand %vm6082, %vm6130
      %vm6179 = vmand %vm6083, %vm6131
      %vm6180 = vmand %vm6084, %vm6132
      %vm6181 = vmand %vm6085, %vm6133
      %vm6182 = vmand %vm6086, %vm6134
      %vm6183 = vmand %vm6087, %vm6135
      %vm6184 = vmand %vm6088, %vm6136
      %vm6185 = vmand %vm6089, %vm6137
      %vm6186 = vmand %vm6090, %vm6138
      %vm6187 = vmand %vm6091, %vm6139
      %vm6188 = vmand %vm6092, %vm6140
      %vm6189 = vmand %vm6093, %vm6141
      %vm6190 = vmand %vm6094, %vm6142
      %vm6191 = vmand %vm6095, %vm6143
      %vm6192 = vmand %vm6096, %vm6144
      %vm6193 = vmand %vm6097, %vm6145
      %vm6194 = vmand %vm6098, %vm6146
      %vm6195 = vmand %vm6099, %vm6147
      %vm6196 = vmand %vm6100, %vm6148
      %vm6197 = vmand %vm6101, %vm6149
      %vm6198 = vmand %vm6102, %vm6150
      %vm6199 = vmand %vm6103, %vm6151
      %v6200 = vsel %vm6152, 1, 0
      %v6201 = vsel %vm6153, 1, 0
      %v6202 = vsel %vm6154, 1, 0
      %v6203 = vsel %vm6155, 1, 0
      %v6204 = vsel %vm6156, 1, 0
      %v6205 = vsel %vm6157, 1, 0
      %v6206 = vsel %vm6158, 1, 0
      %v6207 = vsel %vm6159, 1, 0
      %v6208 = vsel %vm6160, 1, 0
      %v6209 = vsel %vm6161, 1, 0
      %v6210 = vsel %vm6162, 1, 0
      %v6211 = vsel %vm6163, 1, 0
      %v6212 = vsel %vm6164, 1, 0
      %v6213 = vsel %vm6165, 1, 0
      %v6214 = vsel %vm6166, 1, 0
      %v6215 = vsel %vm6167, 1, 0
      %v6216 = vsel %vm6168, 1, 0
      %v6217 = vsel %vm6169, 1, 0
      %v6218 = vsel %vm6170, 1, 0
      %v6219 = vsel %vm6171, 1, 0
      %v6220 = vsel %vm6172, 1, 0
      %v6221 = vsel %vm6173, 1, 0
      %v6222 = vsel %vm6174, 1, 0
      %v6223 = vsel %vm6175, 1, 0
      %v6224 = vsel %vm6176, 1, 0
      %v6225 = vsel %vm6177, 1, 0
      %v6226 = vsel %vm6178, 1, 0
      %v6227 = vsel %vm6179, 1, 0
      %v6228 = vsel %vm6180, 1, 0
      %v6229 = vsel %vm6181, 1, 0
      %v6230 = vsel %vm6182, 1, 0
      %v6231 = vsel %vm6183, 1, 0
      %v6232 = vsel %vm6184, 1, 0
      %v6233 = vsel %vm6185, 1, 0
      %v6234 = vsel %vm6186, 1, 0
      %v6235 = vsel %vm6187, 1, 0
      %v6236 = vsel %vm6188, 1, 0
      %v6237 = vsel %vm6189, 1, 0
      %v6238 = vsel %vm6190, 1, 0
      %v6239 = vsel %vm6191, 1, 0
      %v6240 = vsel %vm6192, 1, 0
      %v6241 = vsel %vm6193, 1, 0
      %v6242 = vsel %vm6194, 1, 0
      %v6243 = vsel %vm6195, 1, 0
      %v6244 = vsel %vm6196, 1, 0
      %v6245 = vsel %vm6197, 1, 0
      %v6246 = vsel %vm6198, 1, 0
      %v6247 = vsel %vm6199, 1, 0
      %vm6248 = vcmp.eq.s32.totalorder %v6200, 1
      %vm6249 = vcmp.eq.s32.totalorder %v6201, 1
      %vm6250 = vcmp.eq.s32.totalorder %v6202, 1
      %vm6251 = vcmp.eq.s32.totalorder %v6203, 1
      %vm6252 = vcmp.eq.s32.totalorder %v6204, 1
      %vm6253 = vcmp.eq.s32.totalorder %v6205, 1
      %vm6254 = vcmp.eq.s32.totalorder %v6206, 1
      %vm6255 = vcmp.eq.s32.totalorder %v6207, 1
      %vm6256 = vcmp.eq.s32.totalorder %v6208, 1
      %vm6257 = vcmp.eq.s32.totalorder %v6209, 1
      %vm6258 = vcmp.eq.s32.totalorder %v6210, 1
      %vm6259 = vcmp.eq.s32.totalorder %v6211, 1
      %vm6260 = vcmp.eq.s32.totalorder %v6212, 1
      %vm6261 = vcmp.eq.s32.totalorder %v6213, 1
      %vm6262 = vcmp.eq.s32.totalorder %v6214, 1
      %vm6263 = vcmp.eq.s32.totalorder %v6215, 1
      %vm6264 = vcmp.eq.s32.totalorder %v6216, 1
      %vm6265 = vcmp.eq.s32.totalorder %v6217, 1
      %vm6266 = vcmp.eq.s32.totalorder %v6218, 1
      %vm6267 = vcmp.eq.s32.totalorder %v6219, 1
      %vm6268 = vcmp.eq.s32.totalorder %v6220, 1
      %vm6269 = vcmp.eq.s32.totalorder %v6221, 1
      %vm6270 = vcmp.eq.s32.totalorder %v6222, 1
      %vm6271 = vcmp.eq.s32.totalorder %v6223, 1
      %vm6272 = vcmp.eq.s32.totalorder %v6224, 1
      %vm6273 = vcmp.eq.s32.totalorder %v6225, 1
      %vm6274 = vcmp.eq.s32.totalorder %v6226, 1
      %vm6275 = vcmp.eq.s32.totalorder %v6227, 1
      %vm6276 = vcmp.eq.s32.totalorder %v6228, 1
      %vm6277 = vcmp.eq.s32.totalorder %v6229, 1
      %vm6278 = vcmp.eq.s32.totalorder %v6230, 1
      %vm6279 = vcmp.eq.s32.totalorder %v6231, 1
      %vm6280 = vcmp.eq.s32.totalorder %v6232, 1
      %vm6281 = vcmp.eq.s32.totalorder %v6233, 1
      %vm6282 = vcmp.eq.s32.totalorder %v6234, 1
      %vm6283 = vcmp.eq.s32.totalorder %v6235, 1
      %vm6284 = vcmp.eq.s32.totalorder %v6236, 1
      %vm6285 = vcmp.eq.s32.totalorder %v6237, 1
      %vm6286 = vcmp.eq.s32.totalorder %v6238, 1
      %vm6287 = vcmp.eq.s32.totalorder %v6239, 1
      %vm6288 = vcmp.eq.s32.totalorder %v6240, 1
      %vm6289 = vcmp.eq.s32.totalorder %v6241, 1
      %vm6290 = vcmp.eq.s32.totalorder %v6242, 1
      %vm6291 = vcmp.eq.s32.totalorder %v6243, 1
      %vm6292 = vcmp.eq.s32.totalorder %v6244, 1
      %vm6293 = vcmp.eq.s32.totalorder %v6245, 1
      %vm6294 = vcmp.eq.s32.totalorder %v6246, 1
      %vm6295 = vcmp.eq.s32.totalorder %v6247, 1
      %v6296 = vsel %vm6248, %v5383, 0.0
      %v6297 = vsel %vm6249, %v5384, 0.0
      %v6298 = vsel %vm6250, %v5385, 0.0
      %v6299 = vsel %vm6251, %v5386, 0.0
      %v6300 = vsel %vm6252, %v5387, 0.0
      %v6301 = vsel %vm6253, %v5388, 0.0
      %v6302 = vsel %vm6254, %v5389, 0.0
      %v6303 = vsel %vm6255, %v5390, 0.0
      %v6304 = vsel %vm6256, %v5391, 0.0
      %v6305 = vsel %vm6257, %v5392, 0.0
      %v6306 = vsel %vm6258, %v5393, 0.0
      %v6307 = vsel %vm6259, %v5394, 0.0
      %v6308 = vsel %vm6260, %v5395, 0.0
      %v6309 = vsel %vm6261, %v5396, 0.0
      %v6310 = vsel %vm6262, %v5397, 0.0
      %v6311 = vsel %vm6263, %v5398, 0.0
      %v6312 = vsel %vm6264, %v5399, 0.0
      %v6313 = vsel %vm6265, %v5400, 0.0
      %v6314 = vsel %vm6266, %v5401, 0.0
      %v6315 = vsel %vm6267, %v5402, 0.0
      %v6316 = vsel %vm6268, %v5403, 0.0
      %v6317 = vsel %vm6269, %v5404, 0.0
      %v6318 = vsel %vm6270, %v5405, 0.0
      %v6319 = vsel %vm6271, %v5406, 0.0
      %v6320 = vsel %vm6272, %v5407, 0.0
      %v6321 = vsel %vm6273, %v5408, 0.0
      %v6322 = vsel %vm6274, %v5409, 0.0
      %v6323 = vsel %vm6275, %v5410, 0.0
      %v6324 = vsel %vm6276, %v5411, 0.0
      %v6325 = vsel %vm6277, %v5412, 0.0
      %v6326 = vsel %vm6278, %v5413, 0.0
      %v6327 = vsel %vm6279, %v5414, 0.0
      %v6328 = vsel %vm6280, %v5415, 0.0
      %v6329 = vsel %vm6281, %v5416, 0.0
      %v6330 = vsel %vm6282, %v5417, 0.0
      %v6331 = vsel %vm6283, %v5418, 0.0
      %v6332 = vsel %vm6284, %v5419, 0.0
      %v6333 = vsel %vm6285, %v5420, 0.0
      %v6334 = vsel %vm6286, %v5421, 0.0
      %v6335 = vsel %vm6287, %v5422, 0.0
      %v6336 = vsel %vm6288, %v5423, 0.0
      %v6337 = vsel %vm6289, %v5424, 0.0
      %v6338 = vsel %vm6290, %v5425, 0.0
      %v6339 = vsel %vm6291, %v5426, 0.0
      %v6340 = vsel %vm6292, %v5427, 0.0
      %v6341 = vsel %vm6293, %v5428, 0.0
      %v6342 = vsel %vm6294, %v5429, 0.0
      %v6343 = vsel %vm6295, %v5430, 0.0
      %v6344 = vpack.c.bf16 %v6297, %v6296
      %v6345 = vpack.c.bf16 %v6299, %v6298
      %v6346 = vpack.c.bf16 %v6301, %v6300
      %v6347 = vpack.c.bf16 %v6303, %v6302
      %v6348 = vpack.c.bf16 %v6305, %v6304
      %v6349 = vpack.c.bf16 %v6307, %v6306
      %v6350 = vpack.c.bf16 %v6309, %v6308
      %v6351 = vpack.c.bf16 %v6311, %v6310
      %v6352 = vpack.c.bf16 %v6313, %v6312
      %v6353 = vpack.c.bf16 %v6315, %v6314
      %v6354 = vpack.c.bf16 %v6317, %v6316
      %v6355 = vpack.c.bf16 %v6319, %v6318
      %v6356 = vpack.c.bf16 %v6321, %v6320
      %v6357 = vpack.c.bf16 %v6323, %v6322
      %v6358 = vpack.c.bf16 %v6325, %v6324
      %v6359 = vpack.c.bf16 %v6327, %v6326
      %v6360 = vpack.c.bf16 %v6329, %v6328
      %v6361 = vpack.c.bf16 %v6331, %v6330
      %v6362 = vpack.c.bf16 %v6333, %v6332
      %v6363 = vpack.c.bf16 %v6335, %v6334
      %v6364 = vpack.c.bf16 %v6337, %v6336
      %v6365 = vpack.c.bf16 %v6339, %v6338
      %v6366 = vpack.c.bf16 %v6341, %v6340
      %v6367 = vpack.c.bf16 %v6343, %v6342
      %v6392 = vunpack.c.l.b16 %v6344
      %v6393 = vunpack.c.h.b16 %v6344
      %v6394 = vunpack.c.l.b16 %v6345
      %v6395 = vunpack.c.h.b16 %v6345
      %v6396 = vunpack.c.l.b16 %v6346
      %v6397 = vunpack.c.h.b16 %v6346
      %v6398 = vunpack.c.l.b16 %v6347
      %v6399 = vunpack.c.h.b16 %v6347
      %v6400 = vunpack.c.l.b16 %v6348
      %v6401 = vunpack.c.h.b16 %v6348
      %v6402 = vunpack.c.l.b16 %v6349
      %v6403 = vunpack.c.h.b16 %v6349
      %v6404 = vunpack.c.l.b16 %v6350
      %v6405 = vunpack.c.h.b16 %v6350
      %v6406 = vunpack.c.l.b16 %v6351
      %v6407 = vunpack.c.h.b16 %v6351
      %v6408 = vunpack.c.l.b16 %v6352
      %v6409 = vunpack.c.h.b16 %v6352
      %v6410 = vunpack.c.l.b16 %v6353
      %v6411 = vunpack.c.h.b16 %v6353
      %v6412 = vunpack.c.l.b16 %v6354
      %v6413 = vunpack.c.h.b16 %v6354
      %v6414 = vunpack.c.l.b16 %v6355
      %v6415 = vunpack.c.h.b16 %v6355
      %v6416 = vunpack.c.l.b16 %v6356
      %v6417 = vunpack.c.h.b16 %v6356
      %v6418 = vunpack.c.l.b16 %v6357
      %v6419 = vunpack.c.h.b16 %v6357
      %v6420 = vunpack.c.l.b16 %v6358
      %v6421 = vunpack.c.h.b16 %v6358
      %v6422 = vunpack.c.l.b16 %v6359
      %v6423 = vunpack.c.h.b16 %v6359
      %v6424 = vunpack.c.l.b16 %v6360
      %v6425 = vunpack.c.h.b16 %v6360
      %v6426 = vunpack.c.l.b16 %v6361
      %v6427 = vunpack.c.h.b16 %v6361
      %v6428 = vunpack.c.l.b16 %v6362
      %v6429 = vunpack.c.h.b16 %v6362
      %v6430 = vunpack.c.l.b16 %v6363
      %v6431 = vunpack.c.h.b16 %v6363
      %v6432 = vunpack.c.l.b16 %v6364
      %v6433 = vunpack.c.h.b16 %v6364
      %v6434 = vunpack.c.l.b16 %v6365
      %v6435 = vunpack.c.h.b16 %v6365
      %v6436 = vunpack.c.l.b16 %v6366
      %v6437 = vunpack.c.h.b16 %v6366
      %v6438 = vunpack.c.l.b16 %v6367
      %v6439 = vunpack.c.h.b16 %v6367
      %v6440 = vpack.c.b16 %v6392, %v6392
      %v6441 = vpack.c.b16 %v6393, %v6393
      %v6442 = vpack.c.b16 %v6394, %v6394
      %v6443 = vpack.c.b16 %v6395, %v6395
      %v6444 = vpack.c.b16 %v6396, %v6396
      %v6445 = vpack.c.b16 %v6397, %v6397
      %v6446 = vpack.c.b16 %v6398, %v6398
      %v6447 = vpack.c.b16 %v6399, %v6399
      %v6448 = vpack.c.b16 %v6400, %v6400
      %v6449 = vpack.c.b16 %v6401, %v6401
      %v6450 = vpack.c.b16 %v6402, %v6402
      %v6451 = vpack.c.b16 %v6403, %v6403
      %v6452 = vpack.c.b16 %v6404, %v6404
      %v6453 = vpack.c.b16 %v6405, %v6405
      %v6454 = vpack.c.b16 %v6406, %v6406
      %v6455 = vpack.c.b16 %v6407, %v6407
      %v6456 = vpack.c.b16 %v6408, %v6408
      %v6457 = vpack.c.b16 %v6409, %v6409
      %v6458 = vpack.c.b16 %v6410, %v6410
      %v6459 = vpack.c.b16 %v6411, %v6411
      %v6460 = vpack.c.b16 %v6412, %v6412
      %v6461 = vpack.c.b16 %v6413, %v6413
      %v6462 = vpack.c.b16 %v6414, %v6414
      %v6463 = vpack.c.b16 %v6415, %v6415
      %v6464 = vpack.c.b16 %v6416, %v6416
      %v6465 = vpack.c.b16 %v6417, %v6417
      %v6466 = vpack.c.b16 %v6418, %v6418
      %v6467 = vpack.c.b16 %v6419, %v6419
      %v6468 = vpack.c.b16 %v6420, %v6420
      %v6469 = vpack.c.b16 %v6421, %v6421
      %v6470 = vpack.c.b16 %v6422, %v6422
      %v6471 = vpack.c.b16 %v6423, %v6423
      %v6472 = vpack.c.b16 %v6424, %v6424
      %v6473 = vpack.c.b16 %v6425, %v6425
      %v6474 = vpack.c.b16 %v6426, %v6426
      %v6475 = vpack.c.b16 %v6427, %v6427
      %v6476 = vpack.c.b16 %v6428, %v6428
      %v6477 = vpack.c.b16 %v6429, %v6429
      %v6478 = vpack.c.b16 %v6430, %v6430
      %v6479 = vpack.c.b16 %v6431, %v6431
      %v6480 = vpack.c.b16 %v6432, %v6432
      %v6481 = vpack.c.b16 %v6433, %v6433
      %v6482 = vpack.c.b16 %v6434, %v6434
      %v6483 = vpack.c.b16 %v6435, %v6435
      %v6484 = vpack.c.b16 %v6436, %v6436
      %v6485 = vpack.c.b16 %v6437, %v6437
      %v6486 = vpack.c.b16 %v6438, %v6438
      %v6487 = vpack.c.b16 %v6439, %v6439
      %6536 = vst [vmem:[#allocation3 + $0xc] sm:$0xf] %v6440
      %6537 = vst [vmem:[#allocation3 + $0x10] sm:$0xf] %v6441
      %6538 = vst [vmem:[#allocation3 + $0x14] sm:$0xf] %v6442
      %6539 = vst [vmem:[#allocation3 + $0x18] sm:$0xf] %v6443
      %6540 = vst [vmem:[#allocation3 + $0x1c] sm:$0xf] %v6444
      %6541 = vst [vmem:[#allocation3 + $0x20] sm:$0xf] %v6445
      %6542 = vst [vmem:[#allocation3 + $0x24] sm:$0xf] %v6446
      %6543 = vst [vmem:[#allocation3 + $0x28] sm:$0xf] %v6447
      %6544 = vst [vmem:[#allocation3 + $0x2c] sm:$0xf] %v6448
      %6545 = vst [vmem:[#allocation3 + $0x30] sm:$0xf] %v6449
      %6546 = vst [vmem:[#allocation3 + $0x34] sm:$0xf] %v6450
      %6547 = vst [vmem:[#allocation3 + $0x38] sm:$0xf] %v6451
      %6548 = vst [vmem:[#allocation3 + $0x3c] sm:$0xf] %v6452
      %6549 = vst [vmem:[#allocation3 + $0x40] sm:$0xf] %v6453
      %6550 = vst [vmem:[#allocation3 + $0x44] sm:$0xf] %v6454
      %6551 = vst [vmem:[#allocation3 + $0x48] sm:$0xf] %v6455
      %6552 = vst [vmem:[#allocation3 + $0x4c] sm:$0xf] %v6456
      %6553 = vst [vmem:[#allocation3 + $0x50] sm:$0xf] %v6457
      %6554 = vst [vmem:[#allocation3 + $0x54] sm:$0xf] %v6458
      %6555 = vst [vmem:[#allocation3 + $0x58] sm:$0xf] %v6459
      %6556 = vst [vmem:[#allocation3 + $0x5c] sm:$0xf] %v6460
      %6557 = vst [vmem:[#allocation3 + $0x60] sm:$0xf] %v6461
      %6558 = vst [vmem:[#allocation3 + $0x64] sm:$0xf] %v6462
      %6559 = vst [vmem:[#allocation3 + $0x68] sm:$0xf] %v6463
      %6560 = vst [vmem:[#allocation3 + $0x6c] sm:$0xf] %v6464
      %6561 = vst [vmem:[#allocation3 + $0x70] sm:$0xf] %v6465
      %6562 = vst [vmem:[#allocation3 + $0x74] sm:$0xf] %v6466
      %6563 = vst [vmem:[#allocation3 + $0x78] sm:$0xf] %v6467
      %6564 = vst [vmem:[#allocation3 + $0x7c] sm:$0xf] %v6468
      %6565 = vst [vmem:[#allocation3 + $0x80] sm:$0xf] %v6469
      %6566 = vst [vmem:[#allocation3 + $0x84] sm:$0xf] %v6470
      %6567 = vst [vmem:[#allocation3 + $0x88] sm:$0xf] %v6471
      %6568 = vst [vmem:[#allocation3 + $0x8c] sm:$0xf] %v6472
      %6569 = vst [vmem:[#allocation3 + $0x90] sm:$0xf] %v6473
      %6570 = vst [vmem:[#allocation3 + $0x94] sm:$0xf] %v6474
      %6571 = vst [vmem:[#allocation3 + $0x98] sm:$0xf] %v6475
      %6572 = vst [vmem:[#allocation3 + $0x9c] sm:$0xf] %v6476
      %6573 = vst [vmem:[#allocation3 + $0xa0] sm:$0xf] %v6477
      %6574 = vst [vmem:[#allocation3 + $0xa4] sm:$0xf] %v6478
      %6575 = vst [vmem:[#allocation3 + $0xa8] sm:$0xf] %v6479
      %6576 = vst [vmem:[#allocation3 + $0xac] sm:$0xf] %v6480
      %6577 = vst [vmem:[#allocation3 + $0xb0] sm:$0xf] %v6481
      %6578 = vst [vmem:[#allocation3 + $0xb4] sm:$0xf] %v6482
      %6579 = vst [vmem:[#allocation3 + $0xb8] sm:$0xf] %v6483
      %6580 = vst [vmem:[#allocation3 + $0xbc] sm:$0xf] %v6484
      %6581 = vst [vmem:[#allocation3 + $0xc0] sm:$0xf] %v6485
      %6582 = vst [vmem:[#allocation3 + $0xc4] sm:$0xf] %v6486
      %6583 = vst [vmem:[#allocation3 + $0xc8] sm:$0xf] %v6487
      %v6584 = vld [vmem:[#allocation3] sm:$0xc]
      %v6585 = vld [vmem:[#allocation3 + $0x4] sm:$0xf]
      %v6586 = vld [vmem:[#allocation3 + $0x8] sm:$0xf]
      %v6587 = vld [vmem:[#allocation3 + $0xc] sm:$0xf]
      %v6588 = vld [vmem:[#allocation3 + $0x10] sm:$0xf]
      %v6589 = vld [vmem:[#allocation3 + $0x14] sm:$0xf]
      %v6590 = vld [vmem:[#allocation3 + $0x18] sm:$0xf]
      %v6591 = vld [vmem:[#allocation3 + $0x1c] sm:$0xf]
      %v6592 = vld [vmem:[#allocation3 + $0x20] sm:$0xf]
      %v6593 = vld [vmem:[#allocation3 + $0x24] sm:$0xf]
      %v6594 = vld [vmem:[#allocation3 + $0x28] sm:$0xf]
      %v6595 = vld [vmem:[#allocation3 + $0x2c] sm:$0xf]
      %v6596 = vld [vmem:[#allocation3 + $0x30] sm:$0xf]
      %v6597 = vld [vmem:[#allocation3 + $0x34] sm:$0xf]
      %v6598 = vld [vmem:[#allocation3 + $0x38] sm:$0xf]
      %v6599 = vld [vmem:[#allocation3 + $0x3c] sm:$0xf]
      %v6600 = vld [vmem:[#allocation3 + $0x40] sm:$0xf]
      %v6601 = vld [vmem:[#allocation3 + $0x44] sm:$0xf]
      %v6602 = vld [vmem:[#allocation3 + $0x48] sm:$0xf]
      %v6603 = vld [vmem:[#allocation3 + $0x4c] sm:$0xf]
      %v6604 = vld [vmem:[#allocation3 + $0x50] sm:$0xf]
      %v6605 = vld [vmem:[#allocation3 + $0x54] sm:$0xf]
      %v6606 = vld [vmem:[#allocation3 + $0x58] sm:$0xf]
      %v6607 = vld [vmem:[#allocation3 + $0x5c] sm:$0xf]
      %v6608 = vld [vmem:[#allocation3 + $0x60] sm:$0xf]
      %v6609 = vld [vmem:[#allocation3 + $0x64] sm:$0xf]
      %v6610 = vld [vmem:[#allocation3 + $0x68] sm:$0xf]
      %v6611 = vld [vmem:[#allocation3 + $0x6c] sm:$0xf]
      %v6612 = vld [vmem:[#allocation3 + $0x70] sm:$0xf]
      %v6613 = vld [vmem:[#allocation3 + $0x74] sm:$0xf]
      %v6614 = vld [vmem:[#allocation3 + $0x78] sm:$0xf]
      %v6615 = vld [vmem:[#allocation3 + $0x7c] sm:$0xf]
      %v6616 = vld [vmem:[#allocation3 + $0x80] sm:$0xf]
      %v6617 = vld [vmem:[#allocation3 + $0x84] sm:$0xf]
      %v6618 = vld [vmem:[#allocation3 + $0x88] sm:$0xf]
      %v6619 = vld [vmem:[#allocation3 + $0x8c] sm:$0xf]
      %v6620 = vld [vmem:[#allocation3 + $0x90] sm:$0xf]
      %v6621 = vld [vmem:[#allocation3 + $0x94] sm:$0xf]
      %v6622 = vld [vmem:[#allocation3 + $0x98] sm:$0xf]
      %v6623 = vld [vmem:[#allocation3 + $0x9c] sm:$0xf]
      %v6624 = vld [vmem:[#allocation3 + $0xa0] sm:$0xf]
      %v6625 = vld [vmem:[#allocation3 + $0xa4] sm:$0xf]
      %v6626 = vld [vmem:[#allocation3 + $0xa8] sm:$0xf]
      %v6627 = vld [vmem:[#allocation3 + $0xac] sm:$0xf]
      %v6628 = vld [vmem:[#allocation3 + $0xb0] sm:$0xf]
      %v6629 = vld [vmem:[#allocation3 + $0xb4] sm:$0xf]
      %v6630 = vld [vmem:[#allocation3 + $0xb8] sm:$0xf]
      %v6631 = vld [vmem:[#allocation3 + $0xbc] sm:$0xf]
      %v6632 = vld [vmem:[#allocation3 + $0xc0] sm:$0x7]
      %v6633 = vld [vmem:[%s4] sm:$0xf]
      %v6634 = vld [vmem:[%s4 + $0x4] sm:$0xf]
      %v6635 = vld [vmem:[%s4 + $0x8] sm:$0xf]
      %v6636 = vld [vmem:[%s4 + $0xc] sm:$0xf]
      %v6637 = vld [vmem:[%s4 + $0x10] sm:$0xf]
      %v6638 = vld [vmem:[%s4 + $0x14] sm:$0xf]
      %v6639 = vld [vmem:[%s4 + $0x18] sm:$0xf]
      %v6640 = vld [vmem:[%s4 + $0x1c] sm:$0xf]
      %v6641 = vld [vmem:[%s4 + $0x20] sm:$0xf]
      %v6642 = vld [vmem:[%s4 + $0x24] sm:$0xf]
      %v6643 = vld [vmem:[%s4 + $0x28] sm:$0xf]
      %v6644 = vld [vmem:[%s4 + $0x2c] sm:$0xf]
      %v6645 = vld [vmem:[%s4 + $0x30] sm:$0xf]
      %v6646 = vld [vmem:[%s4 + $0x34] sm:$0xf]
      %v6647 = vld [vmem:[%s4 + $0x38] sm:$0xf]
      %v6648 = vld [vmem:[%s4 + $0x3c] sm:$0xf]
      %v6649 = vld [vmem:[#allocation3] sm:$0x8]
      %s6650 = scalar_lea.vmem %s4, 64
      %v6651 = vld [vmem:[%s6650] sm:$0xf]
      %v6652 = vld [vmem:[%s6650 + $0x4] sm:$0xf]
      %v6653 = vld [vmem:[%s6650 + $0x8] sm:$0xf]
      %v6654 = vld [vmem:[%s6650 + $0xc] sm:$0xf]
      %v6655 = vld [vmem:[%s6650 + $0x10] sm:$0xf]
      %v6656 = vld [vmem:[%s6650 + $0x14] sm:$0xf]
      %v6657 = vld [vmem:[%s6650 + $0x18] sm:$0xf]
      %v6658 = vld [vmem:[%s6650 + $0x1c] sm:$0xf]
      %v6659 = vld [vmem:[%s6650 + $0x20] sm:$0xf]
      %v6660 = vld [vmem:[%s6650 + $0x24] sm:$0xf]
      %v6661 = vld [vmem:[%s6650 + $0x28] sm:$0xf]
      %v6662 = vld [vmem:[%s6650 + $0x2c] sm:$0xf]
      %v6663 = vld [vmem:[%s6650 + $0x30] sm:$0xf]
      %v6664 = vld [vmem:[%s6650 + $0x34] sm:$0xf]
      %v6665 = vld [vmem:[%s6650 + $0x38] sm:$0xf]
      %v6666 = vld [vmem:[%s6650 + $0x3c] sm:$0xf]
      %v6716 = vunpack.c.l.b16 %v6649
      %v6717 = vunpack.c.l.b16 %v6585
      %v6718 = vunpack.c.l.b16 %v6586
      %v6719 = vunpack.c.l.b16 %v6587
      %v6720 = vunpack.c.l.b16 %v6588
      %v6721 = vunpack.c.l.b16 %v6589
      %v6722 = vunpack.c.l.b16 %v6590
      %v6723 = vunpack.c.l.b16 %v6591
      %v6724 = vunpack.c.l.b16 %v6592
      %v6725 = vunpack.c.l.b16 %v6593
      %v6726 = vunpack.c.l.b16 %v6594
      %v6727 = vunpack.c.l.b16 %v6595
      %v6728 = vunpack.c.l.b16 %v6596
      %v6729 = vunpack.c.l.b16 %v6597
      %v6730 = vunpack.c.l.b16 %v6598
      %v6731 = vunpack.c.l.b16 %v6599
      %v6732 = vunpack.c.l.b16 %v6600
      %v6733 = vunpack.c.l.b16 %v6601
      %v6734 = vunpack.c.l.b16 %v6602
      %v6735 = vunpack.c.l.b16 %v6603
      %v6736 = vunpack.c.l.b16 %v6604
      %v6737 = vunpack.c.l.b16 %v6605
      %v6738 = vunpack.c.l.b16 %v6606
      %v6739 = vunpack.c.l.b16 %v6607
      %v6740 = vunpack.c.l.b16 %v6608
      %v6741 = vunpack.c.l.b16 %v6609
      %v6742 = vunpack.c.l.b16 %v6610
      %v6743 = vunpack.c.l.b16 %v6611
      %v6744 = vunpack.c.l.b16 %v6612
      %v6745 = vunpack.c.l.b16 %v6613
      %v6746 = vunpack.c.l.b16 %v6614
      %v6747 = vunpack.c.l.b16 %v6615
      %v6748 = vunpack.c.l.b16 %v6616
      %v6749 = vunpack.c.l.b16 %v6617
      %v6750 = vunpack.c.l.b16 %v6618
      %v6751 = vunpack.c.l.b16 %v6619
      %v6752 = vunpack.c.l.b16 %v6620
      %v6753 = vunpack.c.l.b16 %v6621
      %v6754 = vunpack.c.l.b16 %v6622
      %v6755 = vunpack.c.l.b16 %v6623
      %v6756 = vunpack.c.l.b16 %v6624
      %v6757 = vunpack.c.l.b16 %v6625
      %v6758 = vunpack.c.l.b16 %v6626
      %v6759 = vunpack.c.l.b16 %v6627
      %v6760 = vunpack.c.l.b16 %v6628
      %v6761 = vunpack.c.l.b16 %v6629
      %v6762 = vunpack.c.l.b16 %v6630
      %v6763 = vunpack.c.l.b16 %v6631
      %v6764 = vunpack.c.l.b16 %v6632
      %v6765 = vpack.c.b16 %v6717, %v6716
      %v6766 = vpack.c.b16 %v6719, %v6718
      %v6767 = vpack.c.b16 %v6721, %v6720
      %v6768 = vpack.c.b16 %v6723, %v6722
      %v6769 = vpack.c.b16 %v6725, %v6724
      %v6770 = vpack.c.b16 %v6727, %v6726
      %v6771 = vpack.c.b16 %v6729, %v6728
      %v6772 = vpack.c.b16 %v6731, %v6730
      %v6773 = vpack.c.b16 %v6733, %v6732
      %v6774 = vpack.c.b16 %v6735, %v6734
      %v6775 = vpack.c.b16 %v6737, %v6736
      %v6776 = vpack.c.b16 %v6739, %v6738
      %v6777 = vpack.c.b16 %v6741, %v6740
      %v6778 = vpack.c.b16 %v6743, %v6742
      %v6779 = vpack.c.b16 %v6745, %v6744
      %v6780 = vpack.c.b16 %v6747, %v6746
      %v6781 = vpack.c.b16 %v6749, %v6748
      %v6782 = vpack.c.b16 %v6751, %v6750
      %v6783 = vpack.c.b16 %v6753, %v6752
      %v6784 = vpack.c.b16 %v6755, %v6754
      %v6785 = vpack.c.b16 %v6757, %v6756
      %v6786 = vpack.c.b16 %v6759, %v6758
      %v6787 = vpack.c.b16 %v6761, %v6760
      %v6788 = vpack.c.b16 %v6763, %v6762
      %v6789 = vpack.c.b16 %v6764, %v6764
      %vm6790 = vcmask 1044480
      %v6791 = vrot.slane %v6765, 3
      %v6792 = vrot.slane %v6766, 3
      %v6793 = vsel %vm6790, %v6791, %v6792
      %v6794 = vrot.slane %v6767, 3
      %v6795 = vsel %vm6790, %v6792, %v6794
      %v6796 = vrot.slane %v6768, 3
      %v6797 = vsel %vm6790, %v6794, %v6796
      %v6798 = vrot.slane %v6769, 3
      %v6799 = vsel %vm6790, %v6796, %v6798
      %v6800 = vrot.slane %v6770, 3
      %v6801 = vsel %vm6790, %v6798, %v6800
      %v6802 = vrot.slane %v6771, 3
      %v6803 = vsel %vm6790, %v6800, %v6802
      %v6804 = vrot.slane %v6772, 3
      %v6805 = vsel %vm6790, %v6802, %v6804
      %v6806 = vrot.slane %v6773, 3
      %v6807 = vsel %vm6790, %v6804, %v6806
      %v6808 = vrot.slane %v6774, 3
      %v6809 = vsel %vm6790, %v6806, %v6808
      %v6810 = vrot.slane %v6775, 3
      %v6811 = vsel %vm6790, %v6808, %v6810
      %v6812 = vrot.slane %v6776, 3
      %v6813 = vsel %vm6790, %v6810, %v6812
      %v6814 = vrot.slane %v6777, 3
      %v6815 = vsel %vm6790, %v6812, %v6814
      %v6816 = vrot.slane %v6778, 3
      %v6817 = vsel %vm6790, %v6814, %v6816
      %v6818 = vrot.slane %v6779, 3
      %v6819 = vsel %vm6790, %v6816, %v6818
      %v6820 = vrot.slane %v6780, 3
      %v6821 = vsel %vm6790, %v6818, %v6820
      %v6822 = vrot.slane %v6781, 3
      %v6823 = vsel %vm6790, %v6820, %v6822
      %v6824 = vrot.slane %v6782, 3
      %v6825 = vsel %vm6790, %v6822, %v6824
      %v6826 = vrot.slane %v6783, 3
      %v6827 = vsel %vm6790, %v6824, %v6826
      %v6828 = vrot.slane %v6784, 3
      %v6829 = vsel %vm6790, %v6826, %v6828
      %v6830 = vrot.slane %v6785, 3
      %v6831 = vsel %vm6790, %v6828, %v6830
      %v6832 = vrot.slane %v6786, 3
      %v6833 = vsel %vm6790, %v6830, %v6832
      %v6834 = vrot.slane %v6787, 3
      %v6835 = vsel %vm6790, %v6832, %v6834
      %v6836 = vrot.slane %v6788, 3
      %v6837 = vsel %vm6790, %v6834, %v6836
      %v6838 = vrot.slane %v6789, 3
      %v6839 = vsel %vm6790, %v6836, %v6838
      %v6880 = vunpack.c.l.b16 %v6651
      %v6881 = vunpack.c.l.b16 %v6652
      %v6882 = vunpack.c.l.b16 %v6653
      %v6883 = vunpack.c.l.b16 %v6654
      %v6884 = vunpack.c.l.b16 %v6655
      %v6885 = vunpack.c.l.b16 %v6656
      %v6886 = vunpack.c.l.b16 %v6657
      %v6887 = vunpack.c.l.b16 %v6658
      %v6888 = vunpack.c.l.b16 %v6659
      %v6889 = vunpack.c.l.b16 %v6660
      %v6890 = vunpack.c.l.b16 %v6661
      %v6891 = vunpack.c.l.b16 %v6662
      %v6892 = vunpack.c.l.b16 %v6663
      %v6893 = vunpack.c.l.b16 %v6664
      %v6894 = vunpack.c.l.b16 %v6665
      %v6895 = vunpack.c.l.b16 %v6666
      %v6896 = vpack.c.b16 %v6881, %v6880
      %v6897 = vpack.c.b16 %v6883, %v6882
      %v6898 = vpack.c.b16 %v6885, %v6884
      %v6899 = vpack.c.b16 %v6887, %v6886
      %v6900 = vpack.c.b16 %v6889, %v6888
      %v6901 = vpack.c.b16 %v6891, %v6890
      %v6902 = vpack.c.b16 %v6893, %v6892
      %v6903 = vpack.c.b16 %v6895, %v6894
      %6912 = vmatprep.subr.bf16.mxu0 0
      %6913 = vmatpush1.bf16.msra.mxu0 %v6903
      %6914 = vmatprep.subr.bf16.mxu0 0
      %6915 = vmatpush1.bf16.msra.mxu0 %v6902
      %6916 = vmatprep.subr.bf16.mxu0 0
      %6917 = vmatpush1.bf16.msra.mxu0 %v6901
      %6918 = vmatprep.subr.bf16.mxu0 0
      %6919 = vmatpush1.bf16.msra.mxu0 %v6900
      %6920 = vmatprep.subr.bf16.mxu0 0
      %6921 = vmatpush1.bf16.msra.mxu0 %v6899
      %6922 = vmatprep.subr.bf16.mxu0 0
      %6923 = vmatpush1.bf16.msra.mxu0 %v6898
      %6924 = vmatprep.subr.bf16.mxu0 0
      %6925 = vmatpush1.bf16.msra.mxu0 %v6897
      %6926 = vmatprep.subr.bf16.mxu0 0
      %6927 = vmatpush1.bf16.msra.mxu0 %v6896
      %6928 = vmatprep.subr.bf16.mxu0 0
      %6929 = vmatpush2.bf16.msra.mxu0 0
      %6930 = vmatprep.subr.bf16.mxu0 0
      %6931 = vmatpush2.bf16.msra.mxu0 0
      %6932 = vmatprep.subr.bf16.mxu0 0
      %6933 = vmatpush2.bf16.msra.mxu0 0
      %6934 = vmatprep.subr.bf16.mxu0 0
      %6935 = vmatpush2.bf16.msra.mxu0 0
      %6936 = vmatprep.subr.bf16.mxu0 0
      %6937 = vmatpush2.bf16.msra.mxu0 0
      %6938 = vmatprep.subr.bf16.mxu0 0
      %6939 = vmatpush2.bf16.msra.mxu0 0
      %6940 = vmatprep.subr.bf16.mxu0 0
      %6941 = vmatpush2.bf16.msra.mxu0 0
      %6942 = vmatprep.subr.bf16.mxu0 0
      %6943 = vmatpush2.bf16.msra.mxu0 0
      %6944 = vmatprep.mubr.bf16.mxu0 0
      %6945 = vmatmul.mubr.bf16.gmra.mxu0 %v6793
      %v6946 = vpop.f32.mrf.mxu0
      %v6947 = vadd.f32 0.0, %v6946
      %v6948 = vpop.f32.mrf.mxu0
      %v6949 = vpop.f32.mrf.mxu0
      %v6950 = vadd.f32 0.0, %v6949
      %v6951 = vpop.f32.mrf.mxu0
      %6952 = vmatprep.mubr.bf16.mxu0 0
      %6953 = vmatmul.mubr.bf16.gmra.mxu0 %v6795
      %v6954 = vpop.f32.mrf.mxu0
      %v6955 = vadd.f32 0.0, %v6954
      %v6956 = vpop.f32.mrf.mxu0
      %v6957 = vpop.f32.mrf.mxu0
      %v6958 = vadd.f32 0.0, %v6957
      %v6959 = vpop.f32.mrf.mxu0
      %6960 = vmatprep.mubr.bf16.mxu0 0
      %6961 = vmatmul.mubr.bf16.gmra.mxu0 %v6797
      %v6962 = vpop.f32.mrf.mxu0
      %v6963 = vadd.f32 0.0, %v6962
      %v6964 = vpop.f32.mrf.mxu0
      %v6965 = vpop.f32.mrf.mxu0
      %v6966 = vadd.f32 0.0, %v6965
      %v6967 = vpop.f32.mrf.mxu0
      %6968 = vmatprep.mubr.bf16.mxu0 0
      %6969 = vmatmul.mubr.bf16.gmra.mxu0 %v6799
      %v6970 = vpop.f32.mrf.mxu0
      %v6971 = vadd.f32 0.0, %v6970
      %v6972 = vpop.f32.mrf.mxu0
      %v6973 = vpop.f32.mrf.mxu0
      %v6974 = vadd.f32 0.0, %v6973
      %v6975 = vpop.f32.mrf.mxu0
      %6976 = vmatprep.mubr.bf16.mxu0 0
      %6977 = vmatmul.mubr.bf16.gmra.mxu0 %v6801
      %v6978 = vpop.f32.mrf.mxu0
      %v6979 = vadd.f32 0.0, %v6978
      %v6980 = vpop.f32.mrf.mxu0
      %v6981 = vpop.f32.mrf.mxu0
      %v6982 = vadd.f32 0.0, %v6981
      %v6983 = vpop.f32.mrf.mxu0
      %6984 = vmatprep.mubr.bf16.mxu0 0
      %6985 = vmatmul.mubr.bf16.gmra.mxu0 %v6803
      %v6986 = vpop.f32.mrf.mxu0
      %v6987 = vadd.f32 0.0, %v6986
      %v6988 = vpop.f32.mrf.mxu0
      %v6989 = vpop.f32.mrf.mxu0
      %v6990 = vadd.f32 0.0, %v6989
      %v6991 = vpop.f32.mrf.mxu0
      %6992 = vmatprep.mubr.bf16.mxu0 0
      %6993 = vmatmul.mubr.bf16.gmra.mxu0 %v6805
      %v6994 = vpop.f32.mrf.mxu0
      %v6995 = vadd.f32 0.0, %v6994
      %v6996 = vpop.f32.mrf.mxu0
      %v6997 = vpop.f32.mrf.mxu0
      %v6998 = vadd.f32 0.0, %v6997
      %v6999 = vpop.f32.mrf.mxu0
      %7000 = vmatprep.mubr.bf16.mxu0 0
      %7001 = vmatmul.mubr.bf16.gmra.mxu0 %v6807
      %v7002 = vpop.f32.mrf.mxu0
      %v7003 = vadd.f32 0.0, %v7002
      %v7004 = vpop.f32.mrf.mxu0
      %v7005 = vpop.f32.mrf.mxu0
      %v7006 = vadd.f32 0.0, %v7005
      %v7007 = vpop.f32.mrf.mxu0
      %7008 = vmatprep.mubr.bf16.mxu0 0
      %7009 = vmatmul.mubr.bf16.gmra.mxu0 %v6809
      %v7010 = vpop.f32.mrf.mxu0
      %v7011 = vadd.f32 0.0, %v7010
      %v7012 = vpop.f32.mrf.mxu0
      %v7013 = vpop.f32.mrf.mxu0
      %v7014 = vadd.f32 0.0, %v7013
      %v7015 = vpop.f32.mrf.mxu0
      %7016 = vmatprep.mubr.bf16.mxu0 0
      %7017 = vmatmul.mubr.bf16.gmra.mxu0 %v6811
      %v7018 = vpop.f32.mrf.mxu0
      %v7019 = vadd.f32 0.0, %v7018
      %v7020 = vpop.f32.mrf.mxu0
      %v7021 = vpop.f32.mrf.mxu0
      %v7022 = vadd.f32 0.0, %v7021
      %v7023 = vpop.f32.mrf.mxu0
      %7024 = vmatprep.mubr.bf16.mxu0 0
      %7025 = vmatmul.mubr.bf16.gmra.mxu0 %v6813
      %v7026 = vpop.f32.mrf.mxu0
      %v7027 = vadd.f32 0.0, %v7026
      %v7028 = vpop.f32.mrf.mxu0
      %v7029 = vpop.f32.mrf.mxu0
      %v7030 = vadd.f32 0.0, %v7029
      %v7031 = vpop.f32.mrf.mxu0
      %7032 = vmatprep.mubr.bf16.mxu0 0
      %7033 = vmatmul.mubr.bf16.gmra.mxu0 %v6815
      %v7034 = vpop.f32.mrf.mxu0
      %v7035 = vadd.f32 0.0, %v7034
      %v7036 = vpop.f32.mrf.mxu0
      %v7037 = vpop.f32.mrf.mxu0
      %v7038 = vadd.f32 0.0, %v7037
      %v7039 = vpop.f32.mrf.mxu0
      %7040 = vmatprep.mubr.bf16.mxu0 0
      %7041 = vmatmul.mubr.bf16.gmra.mxu0 %v6817
      %v7042 = vpop.f32.mrf.mxu0
      %v7043 = vadd.f32 0.0, %v7042
      %v7044 = vpop.f32.mrf.mxu0
      %v7045 = vpop.f32.mrf.mxu0
      %v7046 = vadd.f32 0.0, %v7045
      %v7047 = vpop.f32.mrf.mxu0
      %7048 = vmatprep.mubr.bf16.mxu0 0
      %7049 = vmatmul.mubr.bf16.gmra.mxu0 %v6819
      %v7050 = vpop.f32.mrf.mxu0
      %v7051 = vadd.f32 0.0, %v7050
      %v7052 = vpop.f32.mrf.mxu0
      %v7053 = vpop.f32.mrf.mxu0
      %v7054 = vadd.f32 0.0, %v7053
      %v7055 = vpop.f32.mrf.mxu0
      %7056 = vmatprep.mubr.bf16.mxu0 0
      %7057 = vmatmul.mubr.bf16.gmra.mxu0 %v6821
      %v7058 = vpop.f32.mrf.mxu0
      %v7059 = vadd.f32 0.0, %v7058
      %v7060 = vpop.f32.mrf.mxu0
      %v7061 = vpop.f32.mrf.mxu0
      %v7062 = vadd.f32 0.0, %v7061
      %v7063 = vpop.f32.mrf.mxu0
      %7064 = vmatprep.mubr.bf16.mxu0 0
      %7065 = vmatmul.mubr.bf16.gmra.mxu0 %v6823
      %v7066 = vpop.f32.mrf.mxu0
      %v7067 = vadd.f32 0.0, %v7066
      %v7068 = vpop.f32.mrf.mxu0
      %v7069 = vpop.f32.mrf.mxu0
      %v7070 = vadd.f32 0.0, %v7069
      %v7071 = vpop.f32.mrf.mxu0
      %7072 = vmatprep.mubr.bf16.mxu0 0
      %7073 = vmatmul.mubr.bf16.gmra.mxu0 %v6825
      %v7074 = vpop.f32.mrf.mxu0
      %v7075 = vadd.f32 0.0, %v7074
      %v7076 = vpop.f32.mrf.mxu0
      %v7077 = vpop.f32.mrf.mxu0
      %v7078 = vadd.f32 0.0, %v7077
      %v7079 = vpop.f32.mrf.mxu0
      %7080 = vmatprep.mubr.bf16.mxu0 0
      %7081 = vmatmul.mubr.bf16.gmra.mxu0 %v6827
      %v7082 = vpop.f32.mrf.mxu0
      %v7083 = vadd.f32 0.0, %v7082
      %v7084 = vpop.f32.mrf.mxu0
      %v7085 = vpop.f32.mrf.mxu0
      %v7086 = vadd.f32 0.0, %v7085
      %v7087 = vpop.f32.mrf.mxu0
      %7088 = vmatprep.mubr.bf16.mxu0 0
      %7089 = vmatmul.mubr.bf16.gmra.mxu0 %v6829
      %v7090 = vpop.f32.mrf.mxu0
      %v7091 = vadd.f32 0.0, %v7090
      %v7092 = vpop.f32.mrf.mxu0
      %v7093 = vpop.f32.mrf.mxu0
      %v7094 = vadd.f32 0.0, %v7093
      %v7095 = vpop.f32.mrf.mxu0
      %7096 = vmatprep.mubr.bf16.mxu0 0
      %7097 = vmatmul.mubr.bf16.gmra.mxu0 %v6831
      %v7098 = vpop.f32.mrf.mxu0
      %v7099 = vadd.f32 0.0, %v7098
      %v7100 = vpop.f32.mrf.mxu0
      %v7101 = vpop.f32.mrf.mxu0
      %v7102 = vadd.f32 0.0, %v7101
      %v7103 = vpop.f32.mrf.mxu0
      %7104 = vmatprep.mubr.bf16.mxu0 0
      %7105 = vmatmul.mubr.bf16.gmra.mxu0 %v6833
      %v7106 = vpop.f32.mrf.mxu0
      %v7107 = vadd.f32 0.0, %v7106
      %v7108 = vpop.f32.mrf.mxu0
      %v7109 = vpop.f32.mrf.mxu0
      %v7110 = vadd.f32 0.0, %v7109
      %v7111 = vpop.f32.mrf.mxu0
      %7112 = vmatprep.mubr.bf16.mxu0 0
      %7113 = vmatmul.mubr.bf16.gmra.mxu0 %v6835
      %v7114 = vpop.f32.mrf.mxu0
      %v7115 = vadd.f32 0.0, %v7114
      %v7116 = vpop.f32.mrf.mxu0
      %v7117 = vpop.f32.mrf.mxu0
      %v7118 = vadd.f32 0.0, %v7117
      %v7119 = vpop.f32.mrf.mxu0
      %7120 = vmatprep.mubr.bf16.mxu0 0
      %7121 = vmatmul.mubr.bf16.gmra.mxu0 %v6837
      %v7122 = vpop.f32.mrf.mxu0
      %v7123 = vadd.f32 0.0, %v7122
      %v7124 = vpop.f32.mrf.mxu0
      %v7125 = vpop.f32.mrf.mxu0
      %v7126 = vadd.f32 0.0, %v7125
      %v7127 = vpop.f32.mrf.mxu0
      %7128 = vmatprep.mubr.bf16.mxu0 0
      %7129 = vmatmul.mubr.bf16.gmra.mxu0 %v6839
      %v7130 = vpop.f32.mrf.mxu0
      %v7131 = vadd.f32 0.0, %v7130
      %v7132 = vpop.f32.mrf.mxu0
      %v7133 = vpop.f32.mrf.mxu0
      %v7134 = vadd.f32 0.0, %v7133
      %v7135 = vpop.f32.mrf.mxu0
      %7136 = vdwg.mxu0
      %v7138 = vunpack.c.l.b16 %v6584
      %v7139 = vpack.c.b16 %v6717, %v7138
      %vm7140 = vsmask.f32 5376
      %v7142 = vshrl.u32 %v7139, 16
      %v7144 = vrot.slane %v7142, 2
      %v7145 = vshll.u32 %v7139, 16
      %v7147 = vrot.slane %v7145, 3
      %v7148 = vor.u32 %v7144, %v7147
      %v7150 = vshrl.u32 %v6766, 16
      %v7152 = vrot.slane %v7150, 2
      %v7153 = vshll.u32 %v6766, 16
      %v7155 = vrot.slane %v7153, 3
      %v7156 = vor.u32 %v7152, %v7155
      %v7157 = vsel %vm7140, %v7148, %v7156
      %v7159 = vshrl.u32 %v6767, 16
      %v7161 = vrot.slane %v7159, 2
      %v7162 = vshll.u32 %v6767, 16
      %v7164 = vrot.slane %v7162, 3
      %v7165 = vor.u32 %v7161, %v7164
      %v7166 = vsel %vm7140, %v7156, %v7165
      %v7168 = vshrl.u32 %v6768, 16
      %v7170 = vrot.slane %v7168, 2
      %v7171 = vshll.u32 %v6768, 16
      %v7173 = vrot.slane %v7171, 3
      %v7174 = vor.u32 %v7170, %v7173
      %v7175 = vsel %vm7140, %v7165, %v7174
      %v7177 = vshrl.u32 %v6769, 16
      %v7179 = vrot.slane %v7177, 2
      %v7180 = vshll.u32 %v6769, 16
      %v7182 = vrot.slane %v7180, 3
      %v7183 = vor.u32 %v7179, %v7182
      %v7184 = vsel %vm7140, %v7174, %v7183
      %v7186 = vshrl.u32 %v6770, 16
      %v7188 = vrot.slane %v7186, 2
      %v7189 = vshll.u32 %v6770, 16
      %v7191 = vrot.slane %v7189, 3
      %v7192 = vor.u32 %v7188, %v7191
      %v7193 = vsel %vm7140, %v7183, %v7192
      %v7195 = vshrl.u32 %v6771, 16
      %v7197 = vrot.slane %v7195, 2
      %v7198 = vshll.u32 %v6771, 16
      %v7200 = vrot.slane %v7198, 3
      %v7201 = vor.u32 %v7197, %v7200
      %v7202 = vsel %vm7140, %v7192, %v7201
      %v7204 = vshrl.u32 %v6772, 16
      %v7206 = vrot.slane %v7204, 2
      %v7207 = vshll.u32 %v6772, 16
      %v7209 = vrot.slane %v7207, 3
      %v7210 = vor.u32 %v7206, %v7209
      %v7211 = vsel %vm7140, %v7201, %v7210
      %v7213 = vshrl.u32 %v6773, 16
      %v7215 = vrot.slane %v7213, 2
      %v7216 = vshll.u32 %v6773, 16
      %v7218 = vrot.slane %v7216, 3
      %v7219 = vor.u32 %v7215, %v7218
      %v7220 = vsel %vm7140, %v7210, %v7219
      %v7222 = vshrl.u32 %v6774, 16
      %v7224 = vrot.slane %v7222, 2
      %v7225 = vshll.u32 %v6774, 16
      %v7227 = vrot.slane %v7225, 3
      %v7228 = vor.u32 %v7224, %v7227
      %v7229 = vsel %vm7140, %v7219, %v7228
      %v7231 = vshrl.u32 %v6775, 16
      %v7233 = vrot.slane %v7231, 2
      %v7234 = vshll.u32 %v6775, 16
      %v7236 = vrot.slane %v7234, 3
      %v7237 = vor.u32 %v7233, %v7236
      %v7238 = vsel %vm7140, %v7228, %v7237
      %v7240 = vshrl.u32 %v6776, 16
      %v7242 = vrot.slane %v7240, 2
      %v7243 = vshll.u32 %v6776, 16
      %v7245 = vrot.slane %v7243, 3
      %v7246 = vor.u32 %v7242, %v7245
      %v7247 = vsel %vm7140, %v7237, %v7246
      %v7249 = vshrl.u32 %v6777, 16
      %v7251 = vrot.slane %v7249, 2
      %v7252 = vshll.u32 %v6777, 16
      %v7254 = vrot.slane %v7252, 3
      %v7255 = vor.u32 %v7251, %v7254
      %v7256 = vsel %vm7140, %v7246, %v7255
      %v7258 = vshrl.u32 %v6778, 16
      %v7260 = vrot.slane %v7258, 2
      %v7261 = vshll.u32 %v6778, 16
      %v7263 = vrot.slane %v7261, 3
      %v7264 = vor.u32 %v7260, %v7263
      %v7265 = vsel %vm7140, %v7255, %v7264
      %v7267 = vshrl.u32 %v6779, 16
      %v7269 = vrot.slane %v7267, 2
      %v7270 = vshll.u32 %v6779, 16
      %v7272 = vrot.slane %v7270, 3
      %v7273 = vor.u32 %v7269, %v7272
      %v7274 = vsel %vm7140, %v7264, %v7273
      %v7276 = vshrl.u32 %v6780, 16
      %v7278 = vrot.slane %v7276, 2
      %v7279 = vshll.u32 %v6780, 16
      %v7281 = vrot.slane %v7279, 3
      %v7282 = vor.u32 %v7278, %v7281
      %v7283 = vsel %vm7140, %v7273, %v7282
      %v7285 = vshrl.u32 %v6781, 16
      %v7287 = vrot.slane %v7285, 2
      %v7288 = vshll.u32 %v6781, 16
      %v7290 = vrot.slane %v7288, 3
      %v7291 = vor.u32 %v7287, %v7290
      %v7292 = vsel %vm7140, %v7282, %v7291
      %v7294 = vshrl.u32 %v6782, 16
      %v7296 = vrot.slane %v7294, 2
      %v7297 = vshll.u32 %v6782, 16
      %v7299 = vrot.slane %v7297, 3
      %v7300 = vor.u32 %v7296, %v7299
      %v7301 = vsel %vm7140, %v7291, %v7300
      %v7303 = vshrl.u32 %v6783, 16
      %v7305 = vrot.slane %v7303, 2
      %v7306 = vshll.u32 %v6783, 16
      %v7308 = vrot.slane %v7306, 3
      %v7309 = vor.u32 %v7305, %v7308
      %v7310 = vsel %vm7140, %v7300, %v7309
      %v7312 = vshrl.u32 %v6784, 16
      %v7314 = vrot.slane %v7312, 2
      %v7315 = vshll.u32 %v6784, 16
      %v7317 = vrot.slane %v7315, 3
      %v7318 = vor.u32 %v7314, %v7317
      %v7319 = vsel %vm7140, %v7309, %v7318
      %v7321 = vshrl.u32 %v6785, 16
      %v7323 = vrot.slane %v7321, 2
      %v7324 = vshll.u32 %v6785, 16
      %v7326 = vrot.slane %v7324, 3
      %v7327 = vor.u32 %v7323, %v7326
      %v7328 = vsel %vm7140, %v7318, %v7327
      %v7330 = vshrl.u32 %v6786, 16
      %v7332 = vrot.slane %v7330, 2
      %v7333 = vshll.u32 %v6786, 16
      %v7335 = vrot.slane %v7333, 3
      %v7336 = vor.u32 %v7332, %v7335
      %v7337 = vsel %vm7140, %v7327, %v7336
      %v7339 = vshrl.u32 %v6787, 16
      %v7341 = vrot.slane %v7339, 2
      %v7342 = vshll.u32 %v6787, 16
      %v7344 = vrot.slane %v7342, 3
      %v7345 = vor.u32 %v7341, %v7344
      %v7346 = vsel %vm7140, %v7336, %v7345
      %v7348 = vshrl.u32 %v6788, 16
      %v7350 = vrot.slane %v7348, 2
      %v7351 = vshll.u32 %v6788, 16
      %v7353 = vrot.slane %v7351, 3
      %v7354 = vor.u32 %v7350, %v7353
      %v7355 = vsel %vm7140, %v7345, %v7354
      %v7357 = vshrl.u32 %v6789, 16
      %v7359 = vrot.slane %v7357, 2
      %v7360 = vshll.u32 %v6789, 16
      %v7362 = vrot.slane %v7360, 3
      %v7363 = vor.u32 %v7359, %v7362
      %v7364 = vsel %vm7140, %v7354, %v7363
      %v7405 = vunpack.c.l.b16 %v6633
      %v7406 = vunpack.c.l.b16 %v6634
      %v7407 = vunpack.c.l.b16 %v6635
      %v7408 = vunpack.c.l.b16 %v6636
      %v7409 = vunpack.c.l.b16 %v6637
      %v7410 = vunpack.c.l.b16 %v6638
      %v7411 = vunpack.c.l.b16 %v6639
      %v7412 = vunpack.c.l.b16 %v6640
      %v7413 = vunpack.c.l.b16 %v6641
      %v7414 = vunpack.c.l.b16 %v6642
      %v7415 = vunpack.c.l.b16 %v6643
      %v7416 = vunpack.c.l.b16 %v6644
      %v7417 = vunpack.c.l.b16 %v6645
      %v7418 = vunpack.c.l.b16 %v6646
      %v7419 = vunpack.c.l.b16 %v6647
      %v7420 = vunpack.c.l.b16 %v6648
      %v7421 = vpack.c.b16 %v7406, %v7405
      %v7422 = vpack.c.b16 %v7408, %v7407
      %v7423 = vpack.c.b16 %v7410, %v7409
      %v7424 = vpack.c.b16 %v7412, %v7411
      %v7425 = vpack.c.b16 %v7414, %v7413
      %v7426 = vpack.c.b16 %v7416, %v7415
      %v7427 = vpack.c.b16 %v7418, %v7417
      %v7428 = vpack.c.b16 %v7420, %v7419
      %7437 = vmatprep.subr.bf16.mxu0 0
      %7438 = vmatpush1.bf16.msra.mxu0 %v7428
      %7439 = vmatprep.subr.bf16.mxu0 0
      %7440 = vmatpush1.bf16.msra.mxu0 %v7427
      %7441 = vmatprep.subr.bf16.mxu0 0
      %7442 = vmatpush1.bf16.msra.mxu0 %v7426
      %7443 = vmatprep.subr.bf16.mxu0 0
      %7444 = vmatpush1.bf16.msra.mxu0 %v7425
      %7445 = vmatprep.subr.bf16.mxu0 0
      %7446 = vmatpush1.bf16.msra.mxu0 %v7424
      %7447 = vmatprep.subr.bf16.mxu0 0
      %7448 = vmatpush1.bf16.msra.mxu0 %v7423
      %7449 = vmatprep.subr.bf16.mxu0 0
      %7450 = vmatpush1.bf16.msra.mxu0 %v7422
      %7451 = vmatprep.subr.bf16.mxu0 0
      %7452 = vmatpush1.bf16.msra.mxu0 %v7421
      %7453 = vmatprep.subr.bf16.mxu0 0
      %7454 = vmatpush2.bf16.msra.mxu0 0
      %7455 = vmatprep.subr.bf16.mxu0 0
      %7456 = vmatpush2.bf16.msra.mxu0 0
      %7457 = vmatprep.subr.bf16.mxu0 0
      %7458 = vmatpush2.bf16.msra.mxu0 0
      %7459 = vmatprep.subr.bf16.mxu0 0
      %7460 = vmatpush2.bf16.msra.mxu0 0
      %7461 = vmatprep.subr.bf16.mxu0 0
      %7462 = vmatpush2.bf16.msra.mxu0 0
      %7463 = vmatprep.subr.bf16.mxu0 0
      %7464 = vmatpush2.bf16.msra.mxu0 0
      %7465 = vmatprep.subr.bf16.mxu0 0
      %7466 = vmatpush2.bf16.msra.mxu0 0
      %7467 = vmatprep.subr.bf16.mxu0 0
      %7468 = vmatpush2.bf16.msra.mxu0 0
      %7469 = vmatprep.mubr.bf16.mxu0 0
      %7470 = vmatmul.mubr.bf16.gmra.mxu0 %v7157
      %v7471 = vpop.f32.mrf.mxu0
      %v7472 = vadd.f32 %v6947, %v7471
      %v7473 = vpop.f32.mrf.mxu0
      %v7474 = vpop.f32.mrf.mxu0
      %v7475 = vadd.f32 %v6950, %v7474
      %v7476 = vpop.f32.mrf.mxu0
      %7477 = vmatprep.mubr.bf16.mxu0 0
      %7478 = vmatmul.mubr.bf16.gmra.mxu0 %v7166
      %v7479 = vpop.f32.mrf.mxu0
      %v7480 = vadd.f32 %v6955, %v7479
      %v7481 = vpop.f32.mrf.mxu0
      %v7482 = vpop.f32.mrf.mxu0
      %v7483 = vadd.f32 %v6958, %v7482
      %v7484 = vpop.f32.mrf.mxu0
      %7485 = vmatprep.mubr.bf16.mxu0 0
      %7486 = vmatmul.mubr.bf16.gmra.mxu0 %v7175
      %v7487 = vpop.f32.mrf.mxu0
      %v7488 = vadd.f32 %v6963, %v7487
      %v7489 = vpop.f32.mrf.mxu0
      %v7490 = vpop.f32.mrf.mxu0
      %v7491 = vadd.f32 %v6966, %v7490
      %v7492 = vpop.f32.mrf.mxu0
      %7493 = vmatprep.mubr.bf16.mxu0 0
      %7494 = vmatmul.mubr.bf16.gmra.mxu0 %v7184
      %v7495 = vpop.f32.mrf.mxu0
      %v7496 = vadd.f32 %v6971, %v7495
      %v7497 = vpop.f32.mrf.mxu0
      %v7498 = vpop.f32.mrf.mxu0
      %v7499 = vadd.f32 %v6974, %v7498
      %v7500 = vpop.f32.mrf.mxu0
      %7501 = vmatprep.mubr.bf16.mxu0 0
      %7502 = vmatmul.mubr.bf16.gmra.mxu0 %v7193
      %v7503 = vpop.f32.mrf.mxu0
      %v7504 = vadd.f32 %v6979, %v7503
      %v7505 = vpop.f32.mrf.mxu0
      %v7506 = vpop.f32.mrf.mxu0
      %v7507 = vadd.f32 %v6982, %v7506
      %v7508 = vpop.f32.mrf.mxu0
      %7509 = vmatprep.mubr.bf16.mxu0 0
      %7510 = vmatmul.mubr.bf16.gmra.mxu0 %v7202
      %v7511 = vpop.f32.mrf.mxu0
      %v7512 = vadd.f32 %v6987, %v7511
      %v7513 = vpop.f32.mrf.mxu0
      %v7514 = vpop.f32.mrf.mxu0
      %v7515 = vadd.f32 %v6990, %v7514
      %v7516 = vpop.f32.mrf.mxu0
      %7517 = vmatprep.mubr.bf16.mxu0 0
      %7518 = vmatmul.mubr.bf16.gmra.mxu0 %v7211
      %v7519 = vpop.f32.mrf.mxu0
      %v7520 = vadd.f32 %v6995, %v7519
      %v7521 = vpop.f32.mrf.mxu0
      %v7522 = vpop.f32.mrf.mxu0
      %v7523 = vadd.f32 %v6998, %v7522
      %v7524 = vpop.f32.mrf.mxu0
      %7525 = vmatprep.mubr.bf16.mxu0 0
      %7526 = vmatmul.mubr.bf16.gmra.mxu0 %v7220
      %v7527 = vpop.f32.mrf.mxu0
      %v7528 = vadd.f32 %v7003, %v7527
      %v7529 = vpop.f32.mrf.mxu0
      %v7530 = vpop.f32.mrf.mxu0
      %v7531 = vadd.f32 %v7006, %v7530
      %v7532 = vpop.f32.mrf.mxu0
      %7533 = vmatprep.mubr.bf16.mxu0 0
      %7534 = vmatmul.mubr.bf16.gmra.mxu0 %v7229
      %v7535 = vpop.f32.mrf.mxu0
      %v7536 = vadd.f32 %v7011, %v7535
      %v7537 = vpop.f32.mrf.mxu0
      %v7538 = vpop.f32.mrf.mxu0
      %v7539 = vadd.f32 %v7014, %v7538
      %v7540 = vpop.f32.mrf.mxu0
      %7541 = vmatprep.mubr.bf16.mxu0 0
      %7542 = vmatmul.mubr.bf16.gmra.mxu0 %v7238
      %v7543 = vpop.f32.mrf.mxu0
      %v7544 = vadd.f32 %v7019, %v7543
      %v7545 = vpop.f32.mrf.mxu0
      %v7546 = vpop.f32.mrf.mxu0
      %v7547 = vadd.f32 %v7022, %v7546
      %v7548 = vpop.f32.mrf.mxu0
      %7549 = vmatprep.mubr.bf16.mxu0 0
      %7550 = vmatmul.mubr.bf16.gmra.mxu0 %v7247
      %v7551 = vpop.f32.mrf.mxu0
      %v7552 = vadd.f32 %v7027, %v7551
      %v7553 = vpop.f32.mrf.mxu0
      %v7554 = vpop.f32.mrf.mxu0
      %v7555 = vadd.f32 %v7030, %v7554
      %v7556 = vpop.f32.mrf.mxu0
      %7557 = vmatprep.mubr.bf16.mxu0 0
      %7558 = vmatmul.mubr.bf16.gmra.mxu0 %v7256
      %v7559 = vpop.f32.mrf.mxu0
      %v7560 = vadd.f32 %v7035, %v7559
      %v7561 = vpop.f32.mrf.mxu0
      %v7562 = vpop.f32.mrf.mxu0
      %v7563 = vadd.f32 %v7038, %v7562
      %v7564 = vpop.f32.mrf.mxu0
      %7565 = vmatprep.mubr.bf16.mxu0 0
      %7566 = vmatmul.mubr.bf16.gmra.mxu0 %v7265
      %v7567 = vpop.f32.mrf.mxu0
      %v7568 = vadd.f32 %v7043, %v7567
      %v7569 = vpop.f32.mrf.mxu0
      %v7570 = vpop.f32.mrf.mxu0
      %v7571 = vadd.f32 %v7046, %v7570
      %v7572 = vpop.f32.mrf.mxu0
      %7573 = vmatprep.mubr.bf16.mxu0 0
      %7574 = vmatmul.mubr.bf16.gmra.mxu0 %v7274
      %v7575 = vpop.f32.mrf.mxu0
      %v7576 = vadd.f32 %v7051, %v7575
      %v7577 = vpop.f32.mrf.mxu0
      %v7578 = vpop.f32.mrf.mxu0
      %v7579 = vadd.f32 %v7054, %v7578
      %v7580 = vpop.f32.mrf.mxu0
      %7581 = vmatprep.mubr.bf16.mxu0 0
      %7582 = vmatmul.mubr.bf16.gmra.mxu0 %v7283
      %v7583 = vpop.f32.mrf.mxu0
      %v7584 = vadd.f32 %v7059, %v7583
      %v7585 = vpop.f32.mrf.mxu0
      %v7586 = vpop.f32.mrf.mxu0
      %v7587 = vadd.f32 %v7062, %v7586
      %v7588 = vpop.f32.mrf.mxu0
      %7589 = vmatprep.mubr.bf16.mxu0 0
      %7590 = vmatmul.mubr.bf16.gmra.mxu0 %v7292
      %v7591 = vpop.f32.mrf.mxu0
      %v7592 = vadd.f32 %v7067, %v7591
      %v7593 = vpop.f32.mrf.mxu0
      %v7594 = vpop.f32.mrf.mxu0
      %v7595 = vadd.f32 %v7070, %v7594
      %v7596 = vpop.f32.mrf.mxu0
      %7597 = vmatprep.mubr.bf16.mxu0 0
      %7598 = vmatmul.mubr.bf16.gmra.mxu0 %v7301
      %v7599 = vpop.f32.mrf.mxu0
      %v7600 = vadd.f32 %v7075, %v7599
      %v7601 = vpop.f32.mrf.mxu0
      %v7602 = vpop.f32.mrf.mxu0
      %v7603 = vadd.f32 %v7078, %v7602
      %v7604 = vpop.f32.mrf.mxu0
      %7605 = vmatprep.mubr.bf16.mxu0 0
      %7606 = vmatmul.mubr.bf16.gmra.mxu0 %v7310
      %v7607 = vpop.f32.mrf.mxu0
      %v7608 = vadd.f32 %v7083, %v7607
      %v7609 = vpop.f32.mrf.mxu0
      %v7610 = vpop.f32.mrf.mxu0
      %v7611 = vadd.f32 %v7086, %v7610
      %v7612 = vpop.f32.mrf.mxu0
      %7613 = vmatprep.mubr.bf16.mxu0 0
      %7614 = vmatmul.mubr.bf16.gmra.mxu0 %v7319
      %v7615 = vpop.f32.mrf.mxu0
      %v7616 = vadd.f32 %v7091, %v7615
      %v7617 = vpop.f32.mrf.mxu0
      %v7618 = vpop.f32.mrf.mxu0
      %v7619 = vadd.f32 %v7094, %v7618
      %v7620 = vpop.f32.mrf.mxu0
      %7621 = vmatprep.mubr.bf16.mxu0 0
      %7622 = vmatmul.mubr.bf16.gmra.mxu0 %v7328
      %v7623 = vpop.f32.mrf.mxu0
      %v7624 = vadd.f32 %v7099, %v7623
      %v7625 = vpop.f32.mrf.mxu0
      %v7626 = vpop.f32.mrf.mxu0
      %v7627 = vadd.f32 %v7102, %v7626
      %v7628 = vpop.f32.mrf.mxu0
      %7629 = vmatprep.mubr.bf16.mxu0 0
      %7630 = vmatmul.mubr.bf16.gmra.mxu0 %v7337
      %v7631 = vpop.f32.mrf.mxu0
      %v7632 = vadd.f32 %v7107, %v7631
      %v7633 = vpop.f32.mrf.mxu0
      %v7634 = vpop.f32.mrf.mxu0
      %v7635 = vadd.f32 %v7110, %v7634
      %v7636 = vpop.f32.mrf.mxu0
      %7637 = vmatprep.mubr.bf16.mxu0 0
      %7638 = vmatmul.mubr.bf16.gmra.mxu0 %v7346
      %v7639 = vpop.f32.mrf.mxu0
      %v7640 = vadd.f32 %v7115, %v7639
      %v7641 = vpop.f32.mrf.mxu0
      %v7642 = vpop.f32.mrf.mxu0
      %v7643 = vadd.f32 %v7118, %v7642
      %v7644 = vpop.f32.mrf.mxu0
      %7645 = vmatprep.mubr.bf16.mxu0 0
      %7646 = vmatmul.mubr.bf16.gmra.mxu0 %v7355
      %v7647 = vpop.f32.mrf.mxu0
      %v7648 = vadd.f32 %v7123, %v7647
      %v7649 = vpop.f32.mrf.mxu0
      %v7650 = vpop.f32.mrf.mxu0
      %v7651 = vadd.f32 %v7126, %v7650
      %v7652 = vpop.f32.mrf.mxu0
      %7653 = vmatprep.mubr.bf16.mxu0 0
      %7654 = vmatmul.mubr.bf16.gmra.mxu0 %v7364
      %v7655 = vpop.f32.mrf.mxu0
      %v7656 = vadd.f32 %v7131, %v7655
      %v7657 = vpop.f32.mrf.mxu0
      %v7658 = vpop.f32.mrf.mxu0
      %v7659 = vadd.f32 %v7134, %v7658
      %v7660 = vpop.f32.mrf.mxu0
      %7661 = vdwg.mxu0
      %v7662 = vld [vmem:[#allocation3 + $0xc0] sm:$0xf]
      %s7663 = scalar_lea.vmem %s4, 128
      %v7664 = vld [vmem:[%s7663] sm:$0xf]
      %v7665 = vld [vmem:[%s7663 + $0x4] sm:$0xf]
      %v7666 = vld [vmem:[%s7663 + $0x8] sm:$0xf]
      %v7667 = vld [vmem:[%s7663 + $0xc] sm:$0xf]
      %v7668 = vld [vmem:[%s7663 + $0x10] sm:$0xf]
      %v7669 = vld [vmem:[%s7663 + $0x14] sm:$0xf]
      %v7670 = vld [vmem:[%s7663 + $0x18] sm:$0xf]
      %v7671 = vld [vmem:[%s7663 + $0x1c] sm:$0xf]
      %v7672 = vld [vmem:[%s7663 + $0x20] sm:$0xf]
      %v7673 = vld [vmem:[%s7663 + $0x24] sm:$0xf]
      %v7674 = vld [vmem:[%s7663 + $0x28] sm:$0xf]
      %v7675 = vld [vmem:[%s7663 + $0x2c] sm:$0xf]
      %v7676 = vld [vmem:[%s7663 + $0x30] sm:$0xf]
      %v7677 = vld [vmem:[%s7663 + $0x34] sm:$0xf]
      %v7678 = vld [vmem:[%s7663 + $0x38] sm:$0xf]
      %v7679 = vld [vmem:[%s7663 + $0x3c] sm:$0xf]
      %v7681 = vunpack.c.l.b16 %v7662
      %v7682 = vpack.c.b16 %v7681, %v7681
      %vm7683 = vsmask.f32 4352
      %v7685 = vshrl.u32 %v6765, 16
      %v7687 = vrot.slane %v7685, 3
      %v7688 = vshll.u32 %v6765, 16
      %v7690 = vrot.slane %v7688, 4
      %v7691 = vor.u32 %v7687, %v7690
      %v7692 = vrot.slane %v7150, 3
      %v7693 = vrot.slane %v7153, 4
      %v7694 = vor.u32 %v7692, %v7693
      %v7695 = vsel %vm7683, %v7691, %v7694
      %v7696 = vrot.slane %v7159, 3
      %v7697 = vrot.slane %v7162, 4
      %v7698 = vor.u32 %v7696, %v7697
      %v7699 = vsel %vm7683, %v7694, %v7698
      %v7700 = vrot.slane %v7168, 3
      %v7701 = vrot.slane %v7171, 4
      %v7702 = vor.u32 %v7700, %v7701
      %v7703 = vsel %vm7683, %v7698, %v7702
      %v7704 = vrot.slane %v7177, 3
      %v7705 = vrot.slane %v7180, 4
      %v7706 = vor.u32 %v7704, %v7705
      %v7707 = vsel %vm7683, %v7702, %v7706
      %v7708 = vrot.slane %v7186, 3
      %v7709 = vrot.slane %v7189, 4
      %v7710 = vor.u32 %v7708, %v7709
      %v7711 = vsel %vm7683, %v7706, %v7710
      %v7712 = vrot.slane %v7195, 3
      %v7713 = vrot.slane %v7198, 4
      %v7714 = vor.u32 %v7712, %v7713
      %v7715 = vsel %vm7683, %v7710, %v7714
      %v7716 = vrot.slane %v7204, 3
      %v7717 = vrot.slane %v7207, 4
      %v7718 = vor.u32 %v7716, %v7717
      %v7719 = vsel %vm7683, %v7714, %v7718
      %v7720 = vrot.slane %v7213, 3
      %v7721 = vrot.slane %v7216, 4
      %v7722 = vor.u32 %v7720, %v7721
      %v7723 = vsel %vm7683, %v7718, %v7722
      %v7724 = vrot.slane %v7222, 3
      %v7725 = vrot.slane %v7225, 4
      %v7726 = vor.u32 %v7724, %v7725
      %v7727 = vsel %vm7683, %v7722, %v7726
      %v7728 = vrot.slane %v7231, 3
      %v7729 = vrot.slane %v7234, 4
      %v7730 = vor.u32 %v7728, %v7729
      %v7731 = vsel %vm7683, %v7726, %v7730
      %v7732 = vrot.slane %v7240, 3
      %v7733 = vrot.slane %v7243, 4
      %v7734 = vor.u32 %v7732, %v7733
      %v7735 = vsel %vm7683, %v7730, %v7734
      %v7736 = vrot.slane %v7249, 3
      %v7737 = vrot.slane %v7252, 4
      %v7738 = vor.u32 %v7736, %v7737
      %v7739 = vsel %vm7683, %v7734, %v7738
      %v7740 = vrot.slane %v7258, 3
      %v7741 = vrot.slane %v7261, 4
      %v7742 = vor.u32 %v7740, %v7741
      %v7743 = vsel %vm7683, %v7738, %v7742
      %v7744 = vrot.slane %v7267, 3
      %v7745 = vrot.slane %v7270, 4
      %v7746 = vor.u32 %v7744, %v7745
      %v7747 = vsel %vm7683, %v7742, %v7746
      %v7748 = vrot.slane %v7276, 3
      %v7749 = vrot.slane %v7279, 4
      %v7750 = vor.u32 %v7748, %v7749
      %v7751 = vsel %vm7683, %v7746, %v7750
      %v7752 = vrot.slane %v7285, 3
      %v7753 = vrot.slane %v7288, 4
      %v7754 = vor.u32 %v7752, %v7753
      %v7755 = vsel %vm7683, %v7750, %v7754
      %v7756 = vrot.slane %v7294, 3
      %v7757 = vrot.slane %v7297, 4
      %v7758 = vor.u32 %v7756, %v7757
      %v7759 = vsel %vm7683, %v7754, %v7758
      %v7760 = vrot.slane %v7303, 3
      %v7761 = vrot.slane %v7306, 4
      %v7762 = vor.u32 %v7760, %v7761
      %v7763 = vsel %vm7683, %v7758, %v7762
      %v7764 = vrot.slane %v7312, 3
      %v7765 = vrot.slane %v7315, 4
      %v7766 = vor.u32 %v7764, %v7765
      %v7767 = vsel %vm7683, %v7762, %v7766
      %v7768 = vrot.slane %v7321, 3
      %v7769 = vrot.slane %v7324, 4
      %v7770 = vor.u32 %v7768, %v7769
      %v7771 = vsel %vm7683, %v7766, %v7770
      %v7772 = vrot.slane %v7330, 3
      %v7773 = vrot.slane %v7333, 4
      %v7774 = vor.u32 %v7772, %v7773
      %v7775 = vsel %vm7683, %v7770, %v7774
      %v7776 = vrot.slane %v7339, 3
      %v7777 = vrot.slane %v7342, 4
      %v7778 = vor.u32 %v7776, %v7777
      %v7779 = vsel %vm7683, %v7774, %v7778
      %v7780 = vrot.slane %v7348, 3
      %v7781 = vrot.slane %v7351, 4
      %v7782 = vor.u32 %v7780, %v7781
      %v7783 = vsel %vm7683, %v7778, %v7782
      %v7785 = vshrl.u32 %v7682, 16
      %v7787 = vrot.slane %v7785, 3
      %v7788 = vshll.u32 %v7682, 16
      %v7790 = vrot.slane %v7788, 4
      %v7791 = vor.u32 %v7787, %v7790
      %v7792 = vsel %vm7683, %v7782, %v7791
      %v7833 = vunpack.c.l.b16 %v7664
      %v7834 = vunpack.c.l.b16 %v7665
      %v7835 = vunpack.c.l.b16 %v7666
      %v7836 = vunpack.c.l.b16 %v7667
      %v7837 = vunpack.c.l.b16 %v7668
      %v7838 = vunpack.c.l.b16 %v7669
      %v7839 = vunpack.c.l.b16 %v7670
      %v7840 = vunpack.c.l.b16 %v7671
      %v7841 = vunpack.c.l.b16 %v7672
      %v7842 = vunpack.c.l.b16 %v7673
      %v7843 = vunpack.c.l.b16 %v7674
      %v7844 = vunpack.c.l.b16 %v7675
      %v7845 = vunpack.c.l.b16 %v7676
      %v7846 = vunpack.c.l.b16 %v7677
      %v7847 = vunpack.c.l.b16 %v7678
      %v7848 = vunpack.c.l.b16 %v7679
      %v7849 = vpack.c.b16 %v7834, %v7833
      %v7850 = vpack.c.b16 %v7836, %v7835
      %v7851 = vpack.c.b16 %v7838, %v7837
      %v7852 = vpack.c.b16 %v7840, %v7839
      %v7853 = vpack.c.b16 %v7842, %v7841
      %v7854 = vpack.c.b16 %v7844, %v7843
      %v7855 = vpack.c.b16 %v7846, %v7845
      %v7856 = vpack.c.b16 %v7848, %v7847
      %7865 = vmatprep.subr.bf16.mxu0 0
      %7866 = vmatpush1.bf16.msra.mxu0 %v7856
      %7867 = vmatprep.subr.bf16.mxu0 0
      %7868 = vmatpush1.bf16.msra.mxu0 %v7855
      %7869 = vmatprep.subr.bf16.mxu0 0
      %7870 = vmatpush1.bf16.msra.mxu0 %v7854
      %7871 = vmatprep.subr.bf16.mxu0 0
      %7872 = vmatpush1.bf16.msra.mxu0 %v7853
      %7873 = vmatprep.subr.bf16.mxu0 0
      %7874 = vmatpush1.bf16.msra.mxu0 %v7852
      %7875 = vmatprep.subr.bf16.mxu0 0
      %7876 = vmatpush1.bf16.msra.mxu0 %v7851
      %7877 = vmatprep.subr.bf16.mxu0 0
      %7878 = vmatpush1.bf16.msra.mxu0 %v7850
      %7879 = vmatprep.subr.bf16.mxu0 0
      %7880 = vmatpush1.bf16.msra.mxu0 %v7849
      %7881 = vmatprep.subr.bf16.mxu0 0
      %7882 = vmatpush2.bf16.msra.mxu0 0
      %7883 = vmatprep.subr.bf16.mxu0 0
      %7884 = vmatpush2.bf16.msra.mxu0 0
      %7885 = vmatprep.subr.bf16.mxu0 0
      %7886 = vmatpush2.bf16.msra.mxu0 0
      %7887 = vmatprep.subr.bf16.mxu0 0
      %7888 = vmatpush2.bf16.msra.mxu0 0
      %7889 = vmatprep.subr.bf16.mxu0 0
      %7890 = vmatpush2.bf16.msra.mxu0 0
      %7891 = vmatprep.subr.bf16.mxu0 0
      %7892 = vmatpush2.bf16.msra.mxu0 0
      %7893 = vmatprep.subr.bf16.mxu0 0
      %7894 = vmatpush2.bf16.msra.mxu0 0
      %7895 = vmatprep.subr.bf16.mxu0 0
      %7896 = vmatpush2.bf16.msra.mxu0 0
      %7897 = vmatprep.mubr.bf16.mxu0 0
      %7898 = vmatmul.mubr.bf16.gmra.mxu0 %v7695
      %v7899 = vpop.f32.mrf.mxu0
      %v7900 = vadd.f32 0.0, %v7899
      %v7901 = vpop.f32.mrf.mxu0
      %v7902 = vpop.f32.mrf.mxu0
      %v7903 = vadd.f32 0.0, %v7902
      %v7904 = vpop.f32.mrf.mxu0
      %7905 = vmatprep.mubr.bf16.mxu0 0
      %7906 = vmatmul.mubr.bf16.gmra.mxu0 %v7699
      %v7907 = vpop.f32.mrf.mxu0
      %v7908 = vadd.f32 0.0, %v7907
      %v7909 = vpop.f32.mrf.mxu0
      %v7910 = vpop.f32.mrf.mxu0
      %v7911 = vadd.f32 0.0, %v7910
      %v7912 = vpop.f32.mrf.mxu0
      %7913 = vmatprep.mubr.bf16.mxu0 0
      %7914 = vmatmul.mubr.bf16.gmra.mxu0 %v7703
      %v7915 = vpop.f32.mrf.mxu0
      %v7916 = vadd.f32 0.0, %v7915
      %v7917 = vpop.f32.mrf.mxu0
      %v7918 = vpop.f32.mrf.mxu0
      %v7919 = vadd.f32 0.0, %v7918
      %v7920 = vpop.f32.mrf.mxu0
      %7921 = vmatprep.mubr.bf16.mxu0 0
      %7922 = vmatmul.mubr.bf16.gmra.mxu0 %v7707
      %v7923 = vpop.f32.mrf.mxu0
      %v7924 = vadd.f32 0.0, %v7923
      %v7925 = vpop.f32.mrf.mxu0
      %v7926 = vpop.f32.mrf.mxu0
      %v7927 = vadd.f32 0.0, %v7926
      %v7928 = vpop.f32.mrf.mxu0
      %7929 = vmatprep.mubr.bf16.mxu0 0
      %7930 = vmatmul.mubr.bf16.gmra.mxu0 %v7711
      %v7931 = vpop.f32.mrf.mxu0
      %v7932 = vadd.f32 0.0, %v7931
      %v7933 = vpop.f32.mrf.mxu0
      %v7934 = vpop.f32.mrf.mxu0
      %v7935 = vadd.f32 0.0, %v7934
      %v7936 = vpop.f32.mrf.mxu0
      %7937 = vmatprep.mubr.bf16.mxu0 0
      %7938 = vmatmul.mubr.bf16.gmra.mxu0 %v7715
      %v7939 = vpop.f32.mrf.mxu0
      %v7940 = vadd.f32 0.0, %v7939
      %v7941 = vpop.f32.mrf.mxu0
      %v7942 = vpop.f32.mrf.mxu0
      %v7943 = vadd.f32 0.0, %v7942
      %v7944 = vpop.f32.mrf.mxu0
      %7945 = vmatprep.mubr.bf16.mxu0 0
      %7946 = vmatmul.mubr.bf16.gmra.mxu0 %v7719
      %v7947 = vpop.f32.mrf.mxu0
      %v7948 = vadd.f32 0.0, %v7947
      %v7949 = vpop.f32.mrf.mxu0
      %v7950 = vpop.f32.mrf.mxu0
      %v7951 = vadd.f32 0.0, %v7950
      %v7952 = vpop.f32.mrf.mxu0
      %7953 = vmatprep.mubr.bf16.mxu0 0
      %7954 = vmatmul.mubr.bf16.gmra.mxu0 %v7723
      %v7955 = vpop.f32.mrf.mxu0
      %v7956 = vadd.f32 0.0, %v7955
      %v7957 = vpop.f32.mrf.mxu0
      %v7958 = vpop.f32.mrf.mxu0
      %v7959 = vadd.f32 0.0, %v7958
      %v7960 = vpop.f32.mrf.mxu0
      %7961 = vmatprep.mubr.bf16.mxu0 0
      %7962 = vmatmul.mubr.bf16.gmra.mxu0 %v7727
      %v7963 = vpop.f32.mrf.mxu0
      %v7964 = vadd.f32 0.0, %v7963
      %v7965 = vpop.f32.mrf.mxu0
      %v7966 = vpop.f32.mrf.mxu0
      %v7967 = vadd.f32 0.0, %v7966
      %v7968 = vpop.f32.mrf.mxu0
      %7969 = vmatprep.mubr.bf16.mxu0 0
      %7970 = vmatmul.mubr.bf16.gmra.mxu0 %v7731
      %v7971 = vpop.f32.mrf.mxu0
      %v7972 = vadd.f32 0.0, %v7971
      %v7973 = vpop.f32.mrf.mxu0
      %v7974 = vpop.f32.mrf.mxu0
      %v7975 = vadd.f32 0.0, %v7974
      %v7976 = vpop.f32.mrf.mxu0
      %7977 = vmatprep.mubr.bf16.mxu0 0
      %7978 = vmatmul.mubr.bf16.gmra.mxu0 %v7735
      %v7979 = vpop.f32.mrf.mxu0
      %v7980 = vadd.f32 0.0, %v7979
      %v7981 = vpop.f32.mrf.mxu0
      %v7982 = vpop.f32.mrf.mxu0
      %v7983 = vadd.f32 0.0, %v7982
      %v7984 = vpop.f32.mrf.mxu0
      %7985 = vmatprep.mubr.bf16.mxu0 0
      %7986 = vmatmul.mubr.bf16.gmra.mxu0 %v7739
      %v7987 = vpop.f32.mrf.mxu0
      %v7988 = vadd.f32 0.0, %v7987
      %v7989 = vpop.f32.mrf.mxu0
      %v7990 = vpop.f32.mrf.mxu0
      %v7991 = vadd.f32 0.0, %v7990
      %v7992 = vpop.f32.mrf.mxu0
      %7993 = vmatprep.mubr.bf16.mxu0 0
      %7994 = vmatmul.mubr.bf16.gmra.mxu0 %v7743
      %v7995 = vpop.f32.mrf.mxu0
      %v7996 = vadd.f32 0.0, %v7995
      %v7997 = vpop.f32.mrf.mxu0
      %v7998 = vpop.f32.mrf.mxu0
      %v7999 = vadd.f32 0.0, %v7998
      %v8000 = vpop.f32.mrf.mxu0
      %8001 = vmatprep.mubr.bf16.mxu0 0
      %8002 = vmatmul.mubr.bf16.gmra.mxu0 %v7747
      %v8003 = vpop.f32.mrf.mxu0
      %v8004 = vadd.f32 0.0, %v8003
      %v8005 = vpop.f32.mrf.mxu0
      %v8006 = vpop.f32.mrf.mxu0
      %v8007 = vadd.f32 0.0, %v8006
      %v8008 = vpop.f32.mrf.mxu0
      %8009 = vmatprep.mubr.bf16.mxu0 0
      %8010 = vmatmul.mubr.bf16.gmra.mxu0 %v7751
      %v8011 = vpop.f32.mrf.mxu0
      %v8012 = vadd.f32 0.0, %v8011
      %v8013 = vpop.f32.mrf.mxu0
      %v8014 = vpop.f32.mrf.mxu0
      %v8015 = vadd.f32 0.0, %v8014
      %v8016 = vpop.f32.mrf.mxu0
      %8017 = vmatprep.mubr.bf16.mxu0 0
      %8018 = vmatmul.mubr.bf16.gmra.mxu0 %v7755
      %v8019 = vpop.f32.mrf.mxu0
      %v8020 = vadd.f32 0.0, %v8019
      %v8021 = vpop.f32.mrf.mxu0
      %v8022 = vpop.f32.mrf.mxu0
      %v8023 = vadd.f32 0.0, %v8022
      %v8024 = vpop.f32.mrf.mxu0
      %8025 = vmatprep.mubr.bf16.mxu0 0
      %8026 = vmatmul.mubr.bf16.gmra.mxu0 %v7759
      %v8027 = vpop.f32.mrf.mxu0
      %v8028 = vadd.f32 0.0, %v8027
      %v8029 = vpop.f32.mrf.mxu0
      %v8030 = vpop.f32.mrf.mxu0
      %v8031 = vadd.f32 0.0, %v8030
      %v8032 = vpop.f32.mrf.mxu0
      %8033 = vmatprep.mubr.bf16.mxu0 0
      %8034 = vmatmul.mubr.bf16.gmra.mxu0 %v7763
      %v8035 = vpop.f32.mrf.mxu0
      %v8036 = vadd.f32 0.0, %v8035
      %v8037 = vpop.f32.mrf.mxu0
      %v8038 = vpop.f32.mrf.mxu0
      %v8039 = vadd.f32 0.0, %v8038
      %v8040 = vpop.f32.mrf.mxu0
      %8041 = vmatprep.mubr.bf16.mxu0 0
      %8042 = vmatmul.mubr.bf16.gmra.mxu0 %v7767
      %v8043 = vpop.f32.mrf.mxu0
      %v8044 = vadd.f32 0.0, %v8043
      %v8045 = vpop.f32.mrf.mxu0
      %v8046 = vpop.f32.mrf.mxu0
      %v8047 = vadd.f32 0.0, %v8046
      %v8048 = vpop.f32.mrf.mxu0
      %8049 = vmatprep.mubr.bf16.mxu0 0
      %8050 = vmatmul.mubr.bf16.gmra.mxu0 %v7771
      %v8051 = vpop.f32.mrf.mxu0
      %v8052 = vadd.f32 0.0, %v8051
      %v8053 = vpop.f32.mrf.mxu0
      %v8054 = vpop.f32.mrf.mxu0
      %v8055 = vadd.f32 0.0, %v8054
      %v8056 = vpop.f32.mrf.mxu0
      %8057 = vmatprep.mubr.bf16.mxu0 0
      %8058 = vmatmul.mubr.bf16.gmra.mxu0 %v7775
      %v8059 = vpop.f32.mrf.mxu0
      %v8060 = vadd.f32 0.0, %v8059
      %v8061 = vpop.f32.mrf.mxu0
      %v8062 = vpop.f32.mrf.mxu0
      %v8063 = vadd.f32 0.0, %v8062
      %v8064 = vpop.f32.mrf.mxu0
      %8065 = vmatprep.mubr.bf16.mxu0 0
      %8066 = vmatmul.mubr.bf16.gmra.mxu0 %v7779
      %v8067 = vpop.f32.mrf.mxu0
      %v8068 = vadd.f32 0.0, %v8067
      %v8069 = vpop.f32.mrf.mxu0
      %v8070 = vpop.f32.mrf.mxu0
      %v8071 = vadd.f32 0.0, %v8070
      %v8072 = vpop.f32.mrf.mxu0
      %8073 = vmatprep.mubr.bf16.mxu0 0
      %8074 = vmatmul.mubr.bf16.gmra.mxu0 %v7783
      %v8075 = vpop.f32.mrf.mxu0
      %v8076 = vadd.f32 0.0, %v8075
      %v8077 = vpop.f32.mrf.mxu0
      %v8078 = vpop.f32.mrf.mxu0
      %v8079 = vadd.f32 0.0, %v8078
      %v8080 = vpop.f32.mrf.mxu0
      %8081 = vmatprep.mubr.bf16.mxu0 0
      %8082 = vmatmul.mubr.bf16.gmra.mxu0 %v7792
      %v8083 = vpop.f32.mrf.mxu0
      %v8084 = vadd.f32 0.0, %v8083
      %v8085 = vpop.f32.mrf.mxu0
      %v8086 = vpop.f32.mrf.mxu0
      %v8087 = vadd.f32 0.0, %v8086
      %v8088 = vpop.f32.mrf.mxu0
      %8089 = vdwg.mxu0
      %v8090 = vadd.f32 %v7472, %v7900
      %v8091 = vadd.f32 %v7475, %v7903
      %v8092 = vadd.f32 %v7480, %v7908
      %v8093 = vadd.f32 %v7483, %v7911
      %v8094 = vadd.f32 %v7488, %v7916
      %v8095 = vadd.f32 %v7491, %v7919
      %v8096 = vadd.f32 %v7496, %v7924
      %v8097 = vadd.f32 %v7499, %v7927
      %v8098 = vadd.f32 %v7504, %v7932
      %v8099 = vadd.f32 %v7507, %v7935
      %v8100 = vadd.f32 %v7512, %v7940
      %v8101 = vadd.f32 %v7515, %v7943
      %v8102 = vadd.f32 %v7520, %v7948
      %v8103 = vadd.f32 %v7523, %v7951
      %v8104 = vadd.f32 %v7528, %v7956
      %v8105 = vadd.f32 %v7531, %v7959
      %v8106 = vadd.f32 %v7536, %v7964
      %v8107 = vadd.f32 %v7539, %v7967
      %v8108 = vadd.f32 %v7544, %v7972
      %v8109 = vadd.f32 %v7547, %v7975
      %v8110 = vadd.f32 %v7552, %v7980
      %v8111 = vadd.f32 %v7555, %v7983
      %v8112 = vadd.f32 %v7560, %v7988
      %v8113 = vadd.f32 %v7563, %v7991
      %v8114 = vadd.f32 %v7568, %v7996
      %v8115 = vadd.f32 %v7571, %v7999
      %v8116 = vadd.f32 %v7576, %v8004
      %v8117 = vadd.f32 %v7579, %v8007
      %v8118 = vadd.f32 %v7584, %v8012
      %v8119 = vadd.f32 %v7587, %v8015
      %v8120 = vadd.f32 %v7592, %v8020
      %v8121 = vadd.f32 %v7595, %v8023
      %v8122 = vadd.f32 %v7600, %v8028
      %v8123 = vadd.f32 %v7603, %v8031
      %v8124 = vadd.f32 %v7608, %v8036
      %v8125 = vadd.f32 %v7611, %v8039
      %v8126 = vadd.f32 %v7616, %v8044
      %v8127 = vadd.f32 %v7619, %v8047
      %v8128 = vadd.f32 %v7624, %v8052
      %v8129 = vadd.f32 %v7627, %v8055
      %v8130 = vadd.f32 %v7632, %v8060
      %v8131 = vadd.f32 %v7635, %v8063
      %v8132 = vadd.f32 %v7640, %v8068
      %v8133 = vadd.f32 %v7643, %v8071
      %v8134 = vadd.f32 %v7648, %v8076
      %v8135 = vadd.f32 %v7651, %v8079
      %v8136 = vadd.f32 %v7656, %v8084
      %v8137 = vadd.f32 %v7659, %v8087
      %v8138 = vld [vmem:[#allocation3 + $0x8] sm:$0x8]
      %v8139 = vld [vmem:[#allocation3 + $0xc] sm:$0xf]
      %v8140 = vld [vmem:[#allocation3 + $0x10] sm:$0xf]
      %v8141 = vld [vmem:[#allocation3 + $0x14] sm:$0xf]
      %v8142 = vld [vmem:[#allocation3 + $0x18] sm:$0xf]
      %v8143 = vld [vmem:[#allocation3 + $0x1c] sm:$0xf]
      %v8144 = vld [vmem:[#allocation3 + $0x20] sm:$0xf]
      %v8145 = vld [vmem:[#allocation3 + $0x24] sm:$0xf]
      %v8146 = vld [vmem:[#allocation3 + $0x28] sm:$0xf]
      %v8147 = vld [vmem:[#allocation3 + $0x2c] sm:$0xf]
      %v8148 = vld [vmem:[#allocation3 + $0x30] sm:$0xf]
      %v8149 = vld [vmem:[#allocation3 + $0x34] sm:$0xf]
      %v8150 = vld [vmem:[#allocation3 + $0x38] sm:$0xf]
      %v8151 = vld [vmem:[#allocation3 + $0x3c] sm:$0xf]
      %v8152 = vld [vmem:[#allocation3 + $0x40] sm:$0xf]
      %v8153 = vld [vmem:[#allocation3 + $0x44] sm:$0xf]
      %v8154 = vld [vmem:[#allocation3 + $0x48] sm:$0xf]
      %v8155 = vld [vmem:[#allocation3 + $0x4c] sm:$0xf]
      %v8156 = vld [vmem:[#allocation3 + $0x50] sm:$0xf]
      %v8157 = vld [vmem:[#allocation3 + $0x54] sm:$0xf]
      %v8158 = vld [vmem:[#allocation3 + $0x58] sm:$0xf]
      %v8159 = vld [vmem:[#allocation3 + $0x5c] sm:$0xf]
      %v8160 = vld [vmem:[#allocation3 + $0x60] sm:$0xf]
      %v8161 = vld [vmem:[#allocation3 + $0x64] sm:$0xf]
      %v8162 = vld [vmem:[#allocation3 + $0x68] sm:$0xf]
      %v8163 = vld [vmem:[#allocation3 + $0x6c] sm:$0xf]
      %v8164 = vld [vmem:[#allocation3 + $0x70] sm:$0xf]
      %v8165 = vld [vmem:[#allocation3 + $0x74] sm:$0xf]
      %v8166 = vld [vmem:[#allocation3 + $0x78] sm:$0xf]
      %v8167 = vld [vmem:[#allocation3 + $0x7c] sm:$0xf]
      %v8168 = vld [vmem:[#allocation3 + $0x80] sm:$0xf]
      %v8169 = vld [vmem:[#allocation3 + $0x84] sm:$0xf]
      %v8170 = vld [vmem:[#allocation3 + $0x88] sm:$0xf]
      %v8171 = vld [vmem:[#allocation3 + $0x8c] sm:$0xf]
      %v8172 = vld [vmem:[#allocation3 + $0x90] sm:$0xf]
      %v8173 = vld [vmem:[#allocation3 + $0x94] sm:$0xf]
      %v8174 = vld [vmem:[#allocation3 + $0x98] sm:$0xf]
      %v8175 = vld [vmem:[#allocation3 + $0x9c] sm:$0xf]
      %v8176 = vld [vmem:[#allocation3 + $0xa0] sm:$0xf]
      %v8177 = vld [vmem:[#allocation3 + $0xa4] sm:$0xf]
      %v8178 = vld [vmem:[#allocation3 + $0xa8] sm:$0xf]
      %v8179 = vld [vmem:[#allocation3 + $0xac] sm:$0xf]
      %v8180 = vld [vmem:[#allocation3 + $0xb0] sm:$0xf]
      %v8181 = vld [vmem:[#allocation3 + $0xb4] sm:$0xf]
      %v8182 = vld [vmem:[#allocation3 + $0xb8] sm:$0xf]
      %v8183 = vld [vmem:[#allocation3 + $0xbc] sm:$0xf]
      %v8184 = vld [vmem:[#allocation3 + $0xc0] sm:$0xf]
      %v8185 = vld [vmem:[#allocation3 + $0xc4] sm:$0xf]
      %v8186 = vld [vmem:[#allocation3 + $0xc8] sm:$0xf]
      %s8187 = scalar_lea.vmem %s4, 192
      %v8188 = vld [vmem:[%s8187] sm:$0xf]
      %v8189 = vld [vmem:[%s8187 + $0x4] sm:$0xf]
      %v8190 = vld [vmem:[%s8187 + $0x8] sm:$0xf]
      %v8191 = vld [vmem:[%s8187 + $0xc] sm:$0xf]
      %v8192 = vld [vmem:[%s8187 + $0x10] sm:$0xf]
      %v8193 = vld [vmem:[%s8187 + $0x14] sm:$0xf]
      %v8194 = vld [vmem:[%s8187 + $0x18] sm:$0xf]
      %v8195 = vld [vmem:[%s8187 + $0x1c] sm:$0xf]
      %v8196 = vld [vmem:[%s8187 + $0x20] sm:$0xf]
      %v8197 = vld [vmem:[%s8187 + $0x24] sm:$0xf]
      %v8198 = vld [vmem:[%s8187 + $0x28] sm:$0xf]
      %v8199 = vld [vmem:[%s8187 + $0x2c] sm:$0xf]
      %v8200 = vld [vmem:[%s8187 + $0x30] sm:$0xf]
      %v8201 = vld [vmem:[%s8187 + $0x34] sm:$0xf]
      %v8202 = vld [vmem:[%s8187 + $0x38] sm:$0xf]
      %v8203 = vld [vmem:[%s8187 + $0x3c] sm:$0xf]
      %v8253 = vunpack.c.l.b16 %v8138
      %v8254 = vunpack.c.l.b16 %v8139
      %v8255 = vunpack.c.l.b16 %v8140
      %v8256 = vunpack.c.l.b16 %v8141
      %v8257 = vunpack.c.l.b16 %v8142
      %v8258 = vunpack.c.l.b16 %v8143
      %v8259 = vunpack.c.l.b16 %v8144
      %v8260 = vunpack.c.l.b16 %v8145
      %v8261 = vunpack.c.l.b16 %v8146
      %v8262 = vunpack.c.l.b16 %v8147
      %v8263 = vunpack.c.l.b16 %v8148
      %v8264 = vunpack.c.l.b16 %v8149
      %v8265 = vunpack.c.l.b16 %v8150
      %v8266 = vunpack.c.l.b16 %v8151
      %v8267 = vunpack.c.l.b16 %v8152
      %v8268 = vunpack.c.l.b16 %v8153
      %v8269 = vunpack.c.l.b16 %v8154
      %v8270 = vunpack.c.l.b16 %v8155
      %v8271 = vunpack.c.l.b16 %v8156
      %v8272 = vunpack.c.l.b16 %v8157
      %v8273 = vunpack.c.l.b16 %v8158
      %v8274 = vunpack.c.l.b16 %v8159
      %v8275 = vunpack.c.l.b16 %v8160
      %v8276 = vunpack.c.l.b16 %v8161
      %v8277 = vunpack.c.l.b16 %v8162
      %v8278 = vunpack.c.l.b16 %v8163
      %v8279 = vunpack.c.l.b16 %v8164
      %v8280 = vunpack.c.l.b16 %v8165
      %v8281 = vunpack.c.l.b16 %v8166
      %v8282 = vunpack.c.l.b16 %v8167
      %v8283 = vunpack.c.l.b16 %v8168
      %v8284 = vunpack.c.l.b16 %v8169
      %v8285 = vunpack.c.l.b16 %v8170
      %v8286 = vunpack.c.l.b16 %v8171
      %v8287 = vunpack.c.l.b16 %v8172
      %v8288 = vunpack.c.l.b16 %v8173
      %v8289 = vunpack.c.l.b16 %v8174
      %v8290 = vunpack.c.l.b16 %v8175
      %v8291 = vunpack.c.l.b16 %v8176
      %v8292 = vunpack.c.l.b16 %v8177
      %v8293 = vunpack.c.l.b16 %v8178
      %v8294 = vunpack.c.l.b16 %v8179
      %v8295 = vunpack.c.l.b16 %v8180
      %v8296 = vunpack.c.l.b16 %v8181
      %v8297 = vunpack.c.l.b16 %v8182
      %v8298 = vunpack.c.l.b16 %v8183
      %v8299 = vunpack.c.l.b16 %v8184
      %v8300 = vunpack.c.l.b16 %v8185
      %v8301 = vunpack.c.l.b16 %v8186
      %v8302 = vpack.c.b16 %v8254, %v8253
      %v8303 = vpack.c.b16 %v8256, %v8255
      %v8304 = vpack.c.b16 %v8258, %v8257
      %v8305 = vpack.c.b16 %v8260, %v8259
      %v8306 = vpack.c.b16 %v8262, %v8261
      %v8307 = vpack.c.b16 %v8264, %v8263
      %v8308 = vpack.c.b16 %v8266, %v8265
      %v8309 = vpack.c.b16 %v8268, %v8267
      %v8310 = vpack.c.b16 %v8270, %v8269
      %v8311 = vpack.c.b16 %v8272, %v8271
      %v8312 = vpack.c.b16 %v8274, %v8273
      %v8313 = vpack.c.b16 %v8276, %v8275
      %v8314 = vpack.c.b16 %v8278, %v8277
      %v8315 = vpack.c.b16 %v8280, %v8279
      %v8316 = vpack.c.b16 %v8282, %v8281
      %v8317 = vpack.c.b16 %v8284, %v8283
      %v8318 = vpack.c.b16 %v8286, %v8285
      %v8319 = vpack.c.b16 %v8288, %v8287
      %v8320 = vpack.c.b16 %v8290, %v8289
      %v8321 = vpack.c.b16 %v8292, %v8291
      %v8322 = vpack.c.b16 %v8294, %v8293
      %v8323 = vpack.c.b16 %v8296, %v8295
      %v8324 = vpack.c.b16 %v8298, %v8297
      %v8325 = vpack.c.b16 %v8300, %v8299
      %v8326 = vpack.c.b16 %v8301, %v8301
      %v8328 = vshrl.u32 %v8302, 16
      %v8330 = vrot.slane %v8328, 3
      %v8331 = vshll.u32 %v8302, 16
      %v8333 = vrot.slane %v8331, 4
      %v8334 = vor.u32 %v8330, %v8333
      %v8336 = vshrl.u32 %v8303, 16
      %v8338 = vrot.slane %v8336, 3
      %v8339 = vshll.u32 %v8303, 16
      %v8341 = vrot.slane %v8339, 4
      %v8342 = vor.u32 %v8338, %v8341
      %v8343 = vsel %vm7683, %v8334, %v8342
      %v8345 = vshrl.u32 %v8304, 16
      %v8347 = vrot.slane %v8345, 3
      %v8348 = vshll.u32 %v8304, 16
      %v8350 = vrot.slane %v8348, 4
      %v8351 = vor.u32 %v8347, %v8350
      %v8352 = vsel %vm7683, %v8342, %v8351
      %v8354 = vshrl.u32 %v8305, 16
      %v8356 = vrot.slane %v8354, 3
      %v8357 = vshll.u32 %v8305, 16
      %v8359 = vrot.slane %v8357, 4
      %v8360 = vor.u32 %v8356, %v8359
      %v8361 = vsel %vm7683, %v8351, %v8360
      %v8363 = vshrl.u32 %v8306, 16
      %v8365 = vrot.slane %v8363, 3
      %v8366 = vshll.u32 %v8306, 16
      %v8368 = vrot.slane %v8366, 4
      %v8369 = vor.u32 %v8365, %v8368
      %v8370 = vsel %vm7683, %v8360, %v8369
      %v8372 = vshrl.u32 %v8307, 16
      %v8374 = vrot.slane %v8372, 3
      %v8375 = vshll.u32 %v8307, 16
      %v8377 = vrot.slane %v8375, 4
      %v8378 = vor.u32 %v8374, %v8377
      %v8379 = vsel %vm7683, %v8369, %v8378
      %v8381 = vshrl.u32 %v8308, 16
      %v8383 = vrot.slane %v8381, 3
      %v8384 = vshll.u32 %v8308, 16
      %v8386 = vrot.slane %v8384, 4
      %v8387 = vor.u32 %v8383, %v8386
      %v8388 = vsel %vm7683, %v8378, %v8387
      %v8390 = vshrl.u32 %v8309, 16
      %v8392 = vrot.slane %v8390, 3
      %v8393 = vshll.u32 %v8309, 16
      %v8395 = vrot.slane %v8393, 4
      %v8396 = vor.u32 %v8392, %v8395
      %v8397 = vsel %vm7683, %v8387, %v8396
      %v8399 = vshrl.u32 %v8310, 16
      %v8401 = vrot.slane %v8399, 3
      %v8402 = vshll.u32 %v8310, 16
      %v8404 = vrot.slane %v8402, 4
      %v8405 = vor.u32 %v8401, %v8404
      %v8406 = vsel %vm7683, %v8396, %v8405
      %v8408 = vshrl.u32 %v8311, 16
      %v8410 = vrot.slane %v8408, 3
      %v8411 = vshll.u32 %v8311, 16
      %v8413 = vrot.slane %v8411, 4
      %v8414 = vor.u32 %v8410, %v8413
      %v8415 = vsel %vm7683, %v8405, %v8414
      %v8417 = vshrl.u32 %v8312, 16
      %v8419 = vrot.slane %v8417, 3
      %v8420 = vshll.u32 %v8312, 16
      %v8422 = vrot.slane %v8420, 4
      %v8423 = vor.u32 %v8419, %v8422
      %v8424 = vsel %vm7683, %v8414, %v8423
      %v8426 = vshrl.u32 %v8313, 16
      %v8428 = vrot.slane %v8426, 3
      %v8429 = vshll.u32 %v8313, 16
      %v8431 = vrot.slane %v8429, 4
      %v8432 = vor.u32 %v8428, %v8431
      %v8433 = vsel %vm7683, %v8423, %v8432
      %v8435 = vshrl.u32 %v8314, 16
      %v8437 = vrot.slane %v8435, 3
      %v8438 = vshll.u32 %v8314, 16
      %v8440 = vrot.slane %v8438, 4
      %v8441 = vor.u32 %v8437, %v8440
      %v8442 = vsel %vm7683, %v8432, %v8441
      %v8444 = vshrl.u32 %v8315, 16
      %v8446 = vrot.slane %v8444, 3
      %v8447 = vshll.u32 %v8315, 16
      %v8449 = vrot.slane %v8447, 4
      %v8450 = vor.u32 %v8446, %v8449
      %v8451 = vsel %vm7683, %v8441, %v8450
      %v8453 = vshrl.u32 %v8316, 16
      %v8455 = vrot.slane %v8453, 3
      %v8456 = vshll.u32 %v8316, 16
      %v8458 = vrot.slane %v8456, 4
      %v8459 = vor.u32 %v8455, %v8458
      %v8460 = vsel %vm7683, %v8450, %v8459
      %v8462 = vshrl.u32 %v8317, 16
      %v8464 = vrot.slane %v8462, 3
      %v8465 = vshll.u32 %v8317, 16
      %v8467 = vrot.slane %v8465, 4
      %v8468 = vor.u32 %v8464, %v8467
      %v8469 = vsel %vm7683, %v8459, %v8468
      %v8471 = vshrl.u32 %v8318, 16
      %v8473 = vrot.slane %v8471, 3
      %v8474 = vshll.u32 %v8318, 16
      %v8476 = vrot.slane %v8474, 4
      %v8477 = vor.u32 %v8473, %v8476
      %v8478 = vsel %vm7683, %v8468, %v8477
      %v8480 = vshrl.u32 %v8319, 16
      %v8482 = vrot.slane %v8480, 3
      %v8483 = vshll.u32 %v8319, 16
      %v8485 = vrot.slane %v8483, 4
      %v8486 = vor.u32 %v8482, %v8485
      %v8487 = vsel %vm7683, %v8477, %v8486
      %v8489 = vshrl.u32 %v8320, 16
      %v8491 = vrot.slane %v8489, 3
      %v8492 = vshll.u32 %v8320, 16
      %v8494 = vrot.slane %v8492, 4
      %v8495 = vor.u32 %v8491, %v8494
      %v8496 = vsel %vm7683, %v8486, %v8495
      %v8498 = vshrl.u32 %v8321, 16
      %v8500 = vrot.slane %v8498, 3
      %v8501 = vshll.u32 %v8321, 16
      %v8503 = vrot.slane %v8501, 4
      %v8504 = vor.u32 %v8500, %v8503
      %v8505 = vsel %vm7683, %v8495, %v8504
      %v8507 = vshrl.u32 %v8322, 16
      %v8509 = vrot.slane %v8507, 3
      %v8510 = vshll.u32 %v8322, 16
      %v8512 = vrot.slane %v8510, 4
      %v8513 = vor.u32 %v8509, %v8512
      %v8514 = vsel %vm7683, %v8504, %v8513
      %v8516 = vshrl.u32 %v8323, 16
      %v8518 = vrot.slane %v8516, 3
      %v8519 = vshll.u32 %v8323, 16
      %v8521 = vrot.slane %v8519, 4
      %v8522 = vor.u32 %v8518, %v8521
      %v8523 = vsel %vm7683, %v8513, %v8522
      %v8525 = vshrl.u32 %v8324, 16
      %v8527 = vrot.slane %v8525, 3
      %v8528 = vshll.u32 %v8324, 16
      %v8530 = vrot.slane %v8528, 4
      %v8531 = vor.u32 %v8527, %v8530
      %v8532 = vsel %vm7683, %v8522, %v8531
      %v8534 = vshrl.u32 %v8325, 16
      %v8536 = vrot.slane %v8534, 3
      %v8537 = vshll.u32 %v8325, 16
      %v8539 = vrot.slane %v8537, 4
      %v8540 = vor.u32 %v8536, %v8539
      %v8541 = vsel %vm7683, %v8531, %v8540
      %v8543 = vshrl.u32 %v8326, 16
      %v8545 = vrot.slane %v8543, 3
      %v8546 = vshll.u32 %v8326, 16
      %v8548 = vrot.slane %v8546, 4
      %v8549 = vor.u32 %v8545, %v8548
      %v8550 = vsel %vm7683, %v8540, %v8549
      %v8591 = vunpack.c.l.b16 %v8188
      %v8592 = vunpack.c.l.b16 %v8189
      %v8593 = vunpack.c.l.b16 %v8190
      %v8594 = vunpack.c.l.b16 %v8191
      %v8595 = vunpack.c.l.b16 %v8192
      %v8596 = vunpack.c.l.b16 %v8193
      %v8597 = vunpack.c.l.b16 %v8194
      %v8598 = vunpack.c.l.b16 %v8195
      %v8599 = vunpack.c.l.b16 %v8196
      %v8600 = vunpack.c.l.b16 %v8197
      %v8601 = vunpack.c.l.b16 %v8198
      %v8602 = vunpack.c.l.b16 %v8199
      %v8603 = vunpack.c.l.b16 %v8200
      %v8604 = vunpack.c.l.b16 %v8201
      %v8605 = vunpack.c.l.b16 %v8202
      %v8606 = vunpack.c.l.b16 %v8203
      %v8607 = vpack.c.b16 %v8592, %v8591
      %v8608 = vpack.c.b16 %v8594, %v8593
      %v8609 = vpack.c.b16 %v8596, %v8595
      %v8610 = vpack.c.b16 %v8598, %v8597
      %v8611 = vpack.c.b16 %v8600, %v8599
      %v8612 = vpack.c.b16 %v8602, %v8601
      %v8613 = vpack.c.b16 %v8604, %v8603
      %v8614 = vpack.c.b16 %v8606, %v8605
      %8623 = vmatprep.subr.bf16.mxu0 0
      %8624 = vmatpush1.bf16.msra.mxu0 %v8614
      %8625 = vmatprep.subr.bf16.mxu0 0
      %8626 = vmatpush1.bf16.msra.mxu0 %v8613
      %8627 = vmatprep.subr.bf16.mxu0 0
      %8628 = vmatpush1.bf16.msra.mxu0 %v8612
      %8629 = vmatprep.subr.bf16.mxu0 0
      %8630 = vmatpush1.bf16.msra.mxu0 %v8611
      %8631 = vmatprep.subr.bf16.mxu0 0
      %8632 = vmatpush1.bf16.msra.mxu0 %v8610
      %8633 = vmatprep.subr.bf16.mxu0 0
      %8634 = vmatpush1.bf16.msra.mxu0 %v8609
      %8635 = vmatprep.subr.bf16.mxu0 0
      %8636 = vmatpush1.bf16.msra.mxu0 %v8608
      %8637 = vmatprep.subr.bf16.mxu0 0
      %8638 = vmatpush1.bf16.msra.mxu0 %v8607
      %8639 = vmatprep.subr.bf16.mxu0 0
      %8640 = vmatpush2.bf16.msra.mxu0 0
      %8641 = vmatprep.subr.bf16.mxu0 0
      %8642 = vmatpush2.bf16.msra.mxu0 0
      %8643 = vmatprep.subr.bf16.mxu0 0
      %8644 = vmatpush2.bf16.msra.mxu0 0
      %8645 = vmatprep.subr.bf16.mxu0 0
      %8646 = vmatpush2.bf16.msra.mxu0 0
      %8647 = vmatprep.subr.bf16.mxu0 0
      %8648 = vmatpush2.bf16.msra.mxu0 0
      %8649 = vmatprep.subr.bf16.mxu0 0
      %8650 = vmatpush2.bf16.msra.mxu0 0
      %8651 = vmatprep.subr.bf16.mxu0 0
      %8652 = vmatpush2.bf16.msra.mxu0 0
      %8653 = vmatprep.subr.bf16.mxu0 0
      %8654 = vmatpush2.bf16.msra.mxu0 0
      %8655 = vmatprep.mubr.bf16.mxu0 0
      %8656 = vmatmul.mubr.bf16.gmra.mxu0 %v8343
      %v8657 = vpop.f32.mrf.mxu0
      %v8658 = vadd.f32 0.0, %v8657
      %v8659 = vpop.f32.mrf.mxu0
      %v8660 = vpop.f32.mrf.mxu0
      %v8661 = vadd.f32 0.0, %v8660
      %v8662 = vpop.f32.mrf.mxu0
      %8663 = vmatprep.mubr.bf16.mxu0 0
      %8664 = vmatmul.mubr.bf16.gmra.mxu0 %v8352
      %v8665 = vpop.f32.mrf.mxu0
      %v8666 = vadd.f32 0.0, %v8665
      %v8667 = vpop.f32.mrf.mxu0
      %v8668 = vpop.f32.mrf.mxu0
      %v8669 = vadd.f32 0.0, %v8668
      %v8670 = vpop.f32.mrf.mxu0
      %8671 = vmatprep.mubr.bf16.mxu0 0
      %8672 = vmatmul.mubr.bf16.gmra.mxu0 %v8361
      %v8673 = vpop.f32.mrf.mxu0
      %v8674 = vadd.f32 0.0, %v8673
      %v8675 = vpop.f32.mrf.mxu0
      %v8676 = vpop.f32.mrf.mxu0
      %v8677 = vadd.f32 0.0, %v8676
      %v8678 = vpop.f32.mrf.mxu0
      %8679 = vmatprep.mubr.bf16.mxu0 0
      %8680 = vmatmul.mubr.bf16.gmra.mxu0 %v8370
      %v8681 = vpop.f32.mrf.mxu0
      %v8682 = vadd.f32 0.0, %v8681
      %v8683 = vpop.f32.mrf.mxu0
      %v8684 = vpop.f32.mrf.mxu0
      %v8685 = vadd.f32 0.0, %v8684
      %v8686 = vpop.f32.mrf.mxu0
      %8687 = vmatprep.mubr.bf16.mxu0 0
      %8688 = vmatmul.mubr.bf16.gmra.mxu0 %v8379
      %v8689 = vpop.f32.mrf.mxu0
      %v8690 = vadd.f32 0.0, %v8689
      %v8691 = vpop.f32.mrf.mxu0
      %v8692 = vpop.f32.mrf.mxu0
      %v8693 = vadd.f32 0.0, %v8692
      %v8694 = vpop.f32.mrf.mxu0
      %8695 = vmatprep.mubr.bf16.mxu0 0
      %8696 = vmatmul.mubr.bf16.gmra.mxu0 %v8388
      %v8697 = vpop.f32.mrf.mxu0
      %v8698 = vadd.f32 0.0, %v8697
      %v8699 = vpop.f32.mrf.mxu0
      %v8700 = vpop.f32.mrf.mxu0
      %v8701 = vadd.f32 0.0, %v8700
      %v8702 = vpop.f32.mrf.mxu0
      %8703 = vmatprep.mubr.bf16.mxu0 0
      %8704 = vmatmul.mubr.bf16.gmra.mxu0 %v8397
      %v8705 = vpop.f32.mrf.mxu0
      %v8706 = vadd.f32 0.0, %v8705
      %v8707 = vpop.f32.mrf.mxu0
      %v8708 = vpop.f32.mrf.mxu0
      %v8709 = vadd.f32 0.0, %v8708
      %v8710 = vpop.f32.mrf.mxu0
      %8711 = vmatprep.mubr.bf16.mxu0 0
      %8712 = vmatmul.mubr.bf16.gmra.mxu0 %v8406
      %v8713 = vpop.f32.mrf.mxu0
      %v8714 = vadd.f32 0.0, %v8713
      %v8715 = vpop.f32.mrf.mxu0
      %v8716 = vpop.f32.mrf.mxu0
      %v8717 = vadd.f32 0.0, %v8716
      %v8718 = vpop.f32.mrf.mxu0
      %8719 = vmatprep.mubr.bf16.mxu0 0
      %8720 = vmatmul.mubr.bf16.gmra.mxu0 %v8415
      %v8721 = vpop.f32.mrf.mxu0
      %v8722 = vadd.f32 0.0, %v8721
      %v8723 = vpop.f32.mrf.mxu0
      %v8724 = vpop.f32.mrf.mxu0
      %v8725 = vadd.f32 0.0, %v8724
      %v8726 = vpop.f32.mrf.mxu0
      %8727 = vmatprep.mubr.bf16.mxu0 0
      %8728 = vmatmul.mubr.bf16.gmra.mxu0 %v8424
      %v8729 = vpop.f32.mrf.mxu0
      %v8730 = vadd.f32 0.0, %v8729
      %v8731 = vpop.f32.mrf.mxu0
      %v8732 = vpop.f32.mrf.mxu0
      %v8733 = vadd.f32 0.0, %v8732
      %v8734 = vpop.f32.mrf.mxu0
      %8735 = vmatprep.mubr.bf16.mxu0 0
      %8736 = vmatmul.mubr.bf16.gmra.mxu0 %v8433
      %v8737 = vpop.f32.mrf.mxu0
      %v8738 = vadd.f32 0.0, %v8737
      %v8739 = vpop.f32.mrf.mxu0
      %v8740 = vpop.f32.mrf.mxu0
      %v8741 = vadd.f32 0.0, %v8740
      %v8742 = vpop.f32.mrf.mxu0
      %8743 = vmatprep.mubr.bf16.mxu0 0
      %8744 = vmatmul.mubr.bf16.gmra.mxu0 %v8442
      %v8745 = vpop.f32.mrf.mxu0
      %v8746 = vadd.f32 0.0, %v8745
      %v8747 = vpop.f32.mrf.mxu0
      %v8748 = vpop.f32.mrf.mxu0
      %v8749 = vadd.f32 0.0, %v8748
      %v8750 = vpop.f32.mrf.mxu0
      %8751 = vmatprep.mubr.bf16.mxu0 0
      %8752 = vmatmul.mubr.bf16.gmra.mxu0 %v8451
      %v8753 = vpop.f32.mrf.mxu0
      %v8754 = vadd.f32 0.0, %v8753
      %v8755 = vpop.f32.mrf.mxu0
      %v8756 = vpop.f32.mrf.mxu0
      %v8757 = vadd.f32 0.0, %v8756
      %v8758 = vpop.f32.mrf.mxu0
      %8759 = vmatprep.mubr.bf16.mxu0 0
      %8760 = vmatmul.mubr.bf16.gmra.mxu0 %v8460
      %v8761 = vpop.f32.mrf.mxu0
      %v8762 = vadd.f32 0.0, %v8761
      %v8763 = vpop.f32.mrf.mxu0
      %v8764 = vpop.f32.mrf.mxu0
      %v8765 = vadd.f32 0.0, %v8764
      %v8766 = vpop.f32.mrf.mxu0
      %8767 = vmatprep.mubr.bf16.mxu0 0
      %8768 = vmatmul.mubr.bf16.gmra.mxu0 %v8469
      %v8769 = vpop.f32.mrf.mxu0
      %v8770 = vadd.f32 0.0, %v8769
      %v8771 = vpop.f32.mrf.mxu0
      %v8772 = vpop.f32.mrf.mxu0
      %v8773 = vadd.f32 0.0, %v8772
      %v8774 = vpop.f32.mrf.mxu0
      %8775 = vmatprep.mubr.bf16.mxu0 0
      %8776 = vmatmul.mubr.bf16.gmra.mxu0 %v8478
      %v8777 = vpop.f32.mrf.mxu0
      %v8778 = vadd.f32 0.0, %v8777
      %v8779 = vpop.f32.mrf.mxu0
      %v8780 = vpop.f32.mrf.mxu0
      %v8781 = vadd.f32 0.0, %v8780
      %v8782 = vpop.f32.mrf.mxu0
      %8783 = vmatprep.mubr.bf16.mxu0 0
      %8784 = vmatmul.mubr.bf16.gmra.mxu0 %v8487
      %v8785 = vpop.f32.mrf.mxu0
      %v8786 = vadd.f32 0.0, %v8785
      %v8787 = vpop.f32.mrf.mxu0
      %v8788 = vpop.f32.mrf.mxu0
      %v8789 = vadd.f32 0.0, %v8788
      %v8790 = vpop.f32.mrf.mxu0
      %8791 = vmatprep.mubr.bf16.mxu0 0
      %8792 = vmatmul.mubr.bf16.gmra.mxu0 %v8496
      %v8793 = vpop.f32.mrf.mxu0
      %v8794 = vadd.f32 0.0, %v8793
      %v8795 = vpop.f32.mrf.mxu0
      %v8796 = vpop.f32.mrf.mxu0
      %v8797 = vadd.f32 0.0, %v8796
      %v8798 = vpop.f32.mrf.mxu0
      %8799 = vmatprep.mubr.bf16.mxu0 0
      %8800 = vmatmul.mubr.bf16.gmra.mxu0 %v8505
      %v8801 = vpop.f32.mrf.mxu0
      %v8802 = vadd.f32 0.0, %v8801
      %v8803 = vpop.f32.mrf.mxu0
      %v8804 = vpop.f32.mrf.mxu0
      %v8805 = vadd.f32 0.0, %v8804
      %v8806 = vpop.f32.mrf.mxu0
      %8807 = vmatprep.mubr.bf16.mxu0 0
      %8808 = vmatmul.mubr.bf16.gmra.mxu0 %v8514
      %v8809 = vpop.f32.mrf.mxu0
      %v8810 = vadd.f32 0.0, %v8809
      %v8811 = vpop.f32.mrf.mxu0
      %v8812 = vpop.f32.mrf.mxu0
      %v8813 = vadd.f32 0.0, %v8812
      %v8814 = vpop.f32.mrf.mxu0
      %8815 = vmatprep.mubr.bf16.mxu0 0
      %8816 = vmatmul.mubr.bf16.gmra.mxu0 %v8523
      %v8817 = vpop.f32.mrf.mxu0
      %v8818 = vadd.f32 0.0, %v8817
      %v8819 = vpop.f32.mrf.mxu0
      %v8820 = vpop.f32.mrf.mxu0
      %v8821 = vadd.f32 0.0, %v8820
      %v8822 = vpop.f32.mrf.mxu0
      %8823 = vmatprep.mubr.bf16.mxu0 0
      %8824 = vmatmul.mubr.bf16.gmra.mxu0 %v8532
      %v8825 = vpop.f32.mrf.mxu0
      %v8826 = vadd.f32 0.0, %v8825
      %v8827 = vpop.f32.mrf.mxu0
      %v8828 = vpop.f32.mrf.mxu0
      %v8829 = vadd.f32 0.0, %v8828
      %v8830 = vpop.f32.mrf.mxu0
      %8831 = vmatprep.mubr.bf16.mxu0 0
      %8832 = vmatmul.mubr.bf16.gmra.mxu0 %v8541
      %v8833 = vpop.f32.mrf.mxu0
      %v8834 = vadd.f32 0.0, %v8833
      %v8835 = vpop.f32.mrf.mxu0
      %v8836 = vpop.f32.mrf.mxu0
      %v8837 = vadd.f32 0.0, %v8836
      %v8838 = vpop.f32.mrf.mxu0
      %8839 = vmatprep.mubr.bf16.mxu0 0
      %8840 = vmatmul.mubr.bf16.gmra.mxu0 %v8550
      %v8841 = vpop.f32.mrf.mxu0
      %v8842 = vadd.f32 0.0, %v8841
      %v8843 = vpop.f32.mrf.mxu0
      %v8844 = vpop.f32.mrf.mxu0
      %v8845 = vadd.f32 0.0, %v8844
      %v8846 = vpop.f32.mrf.mxu0
      %8847 = vdwg.mxu0
      %v8848 = vadd.f32 %v8090, %v8658
      %v8849 = vadd.f32 %v8091, %v8661
      %v8850 = vadd.f32 %v8092, %v8666
      %v8851 = vadd.f32 %v8093, %v8669
      %v8852 = vadd.f32 %v8094, %v8674
      %v8853 = vadd.f32 %v8095, %v8677
      %v8854 = vadd.f32 %v8096, %v8682
      %v8855 = vadd.f32 %v8097, %v8685
      %v8856 = vadd.f32 %v8098, %v8690
      %v8857 = vadd.f32 %v8099, %v8693
      %v8858 = vadd.f32 %v8100, %v8698
      %v8859 = vadd.f32 %v8101, %v8701
      %v8860 = vadd.f32 %v8102, %v8706
      %v8861 = vadd.f32 %v8103, %v8709
      %v8862 = vadd.f32 %v8104, %v8714
      %v8863 = vadd.f32 %v8105, %v8717
      %v8864 = vadd.f32 %v8106, %v8722
      %v8865 = vadd.f32 %v8107, %v8725
      %v8866 = vadd.f32 %v8108, %v8730
      %v8867 = vadd.f32 %v8109, %v8733
      %v8868 = vadd.f32 %v8110, %v8738
      %v8869 = vadd.f32 %v8111, %v8741
      %v8870 = vadd.f32 %v8112, %v8746
      %v8871 = vadd.f32 %v8113, %v8749
      %v8872 = vadd.f32 %v8114, %v8754
      %v8873 = vadd.f32 %v8115, %v8757
      %v8874 = vadd.f32 %v8116, %v8762
      %v8875 = vadd.f32 %v8117, %v8765
      %v8876 = vadd.f32 %v8118, %v8770
      %v8877 = vadd.f32 %v8119, %v8773
      %v8878 = vadd.f32 %v8120, %v8778
      %v8879 = vadd.f32 %v8121, %v8781
      %v8880 = vadd.f32 %v8122, %v8786
      %v8881 = vadd.f32 %v8123, %v8789
      %v8882 = vadd.f32 %v8124, %v8794
      %v8883 = vadd.f32 %v8125, %v8797
      %v8884 = vadd.f32 %v8126, %v8802
      %v8885 = vadd.f32 %v8127, %v8805
      %v8886 = vadd.f32 %v8128, %v8810
      %v8887 = vadd.f32 %v8129, %v8813
      %v8888 = vadd.f32 %v8130, %v8818
      %v8889 = vadd.f32 %v8131, %v8821
      %v8890 = vadd.f32 %v8132, %v8826
      %v8891 = vadd.f32 %v8133, %v8829
      %v8892 = vadd.f32 %v8134, %v8834
      %v8893 = vadd.f32 %v8135, %v8837
      %v8894 = vadd.f32 %v8136, %v8842
      %v8895 = vadd.f32 %v8137, %v8845
      %s8896 = scalar_lea.vmem %s4, 256
      %v8897 = vld [vmem:[%s8896] sm:$0xf]
      %v8898 = vld [vmem:[%s8896 + $0x4] sm:$0xf]
      %v8899 = vld [vmem:[%s8896 + $0x8] sm:$0xf]
      %v8900 = vld [vmem:[%s8896 + $0xc] sm:$0xf]
      %v8901 = vld [vmem:[%s8896 + $0x10] sm:$0xf]
      %v8902 = vld [vmem:[%s8896 + $0x14] sm:$0xf]
      %v8903 = vld [vmem:[%s8896 + $0x18] sm:$0xf]
      %v8904 = vld [vmem:[%s8896 + $0x1c] sm:$0xf]
      %v8905 = vld [vmem:[%s8896 + $0x20] sm:$0xf]
      %v8906 = vld [vmem:[%s8896 + $0x24] sm:$0xf]
      %v8907 = vld [vmem:[%s8896 + $0x28] sm:$0xf]
      %v8908 = vld [vmem:[%s8896 + $0x2c] sm:$0xf]
      %v8909 = vld [vmem:[%s8896 + $0x30] sm:$0xf]
      %v8910 = vld [vmem:[%s8896 + $0x34] sm:$0xf]
      %v8911 = vld [vmem:[%s8896 + $0x38] sm:$0xf]
      %v8912 = vld [vmem:[%s8896 + $0x3c] sm:$0xf]
      %v8913 = vpack.c.b16 %v8255, %v8254
      %v8914 = vpack.c.b16 %v8257, %v8256
      %v8915 = vpack.c.b16 %v8259, %v8258
      %v8916 = vpack.c.b16 %v8261, %v8260
      %v8917 = vpack.c.b16 %v8263, %v8262
      %v8918 = vpack.c.b16 %v8265, %v8264
      %v8919 = vpack.c.b16 %v8267, %v8266
      %v8920 = vpack.c.b16 %v8269, %v8268
      %v8921 = vpack.c.b16 %v8271, %v8270
      %v8922 = vpack.c.b16 %v8273, %v8272
      %v8923 = vpack.c.b16 %v8275, %v8274
      %v8924 = vpack.c.b16 %v8277, %v8276
      %v8925 = vpack.c.b16 %v8279, %v8278
      %v8926 = vpack.c.b16 %v8281, %v8280
      %v8927 = vpack.c.b16 %v8283, %v8282
      %v8928 = vpack.c.b16 %v8285, %v8284
      %v8929 = vpack.c.b16 %v8287, %v8286
      %v8930 = vpack.c.b16 %v8289, %v8288
      %v8931 = vpack.c.b16 %v8291, %v8290
      %v8932 = vpack.c.b16 %v8293, %v8292
      %v8933 = vpack.c.b16 %v8295, %v8294
      %v8934 = vpack.c.b16 %v8297, %v8296
      %v8935 = vpack.c.b16 %v8299, %v8298
      %v8936 = vpack.c.b16 %v8301, %v8300
      %v8977 = vunpack.c.l.b16 %v8897
      %v8978 = vunpack.c.l.b16 %v8898
      %v8979 = vunpack.c.l.b16 %v8899
      %v8980 = vunpack.c.l.b16 %v8900
      %v8981 = vunpack.c.l.b16 %v8901
      %v8982 = vunpack.c.l.b16 %v8902
      %v8983 = vunpack.c.l.b16 %v8903
      %v8984 = vunpack.c.l.b16 %v8904
      %v8985 = vunpack.c.l.b16 %v8905
      %v8986 = vunpack.c.l.b16 %v8906
      %v8987 = vunpack.c.l.b16 %v8907
      %v8988 = vunpack.c.l.b16 %v8908
      %v8989 = vunpack.c.l.b16 %v8909
      %v8990 = vunpack.c.l.b16 %v8910
      %v8991 = vunpack.c.l.b16 %v8911
      %v8992 = vunpack.c.l.b16 %v8912
      %v8993 = vpack.c.b16 %v8978, %v8977
      %v8994 = vpack.c.b16 %v8980, %v8979
      %v8995 = vpack.c.b16 %v8982, %v8981
      %v8996 = vpack.c.b16 %v8984, %v8983
      %v8997 = vpack.c.b16 %v8986, %v8985
      %v8998 = vpack.c.b16 %v8988, %v8987
      %v8999 = vpack.c.b16 %v8990, %v8989
      %v9000 = vpack.c.b16 %v8992, %v8991
      %9009 = vmatprep.subr.bf16.mxu0 0
      %9010 = vmatpush1.bf16.msra.mxu0 %v9000
      %9011 = vmatprep.subr.bf16.mxu0 0
      %9012 = vmatpush1.bf16.msra.mxu0 %v8999
      %9013 = vmatprep.subr.bf16.mxu0 0
      %9014 = vmatpush1.bf16.msra.mxu0 %v8998
      %9015 = vmatprep.subr.bf16.mxu0 0
      %9016 = vmatpush1.bf16.msra.mxu0 %v8997
      %9017 = vmatprep.subr.bf16.mxu0 0
      %9018 = vmatpush1.bf16.msra.mxu0 %v8996
      %9019 = vmatprep.subr.bf16.mxu0 0
      %9020 = vmatpush1.bf16.msra.mxu0 %v8995
      %9021 = vmatprep.subr.bf16.mxu0 0
      %9022 = vmatpush1.bf16.msra.mxu0 %v8994
      %9023 = vmatprep.subr.bf16.mxu0 0
      %9024 = vmatpush1.bf16.msra.mxu0 %v8993
      %9025 = vmatprep.subr.bf16.mxu0 0
      %9026 = vmatpush2.bf16.msra.mxu0 0
      %9027 = vmatprep.subr.bf16.mxu0 0
      %9028 = vmatpush2.bf16.msra.mxu0 0
      %9029 = vmatprep.subr.bf16.mxu0 0
      %9030 = vmatpush2.bf16.msra.mxu0 0
      %9031 = vmatprep.subr.bf16.mxu0 0
      %9032 = vmatpush2.bf16.msra.mxu0 0
      %9033 = vmatprep.subr.bf16.mxu0 0
      %9034 = vmatpush2.bf16.msra.mxu0 0
      %9035 = vmatprep.subr.bf16.mxu0 0
      %9036 = vmatpush2.bf16.msra.mxu0 0
      %9037 = vmatprep.subr.bf16.mxu0 0
      %9038 = vmatpush2.bf16.msra.mxu0 0
      %9039 = vmatprep.subr.bf16.mxu0 0
      %9040 = vmatpush2.bf16.msra.mxu0 0
      %9041 = vmatprep.mubr.bf16.mxu0 0
      %9042 = vmatmul.mubr.bf16.gmra.mxu0 %v8913
      %v9043 = vpop.f32.mrf.mxu0
      %v9044 = vadd.f32 0.0, %v9043
      %v9045 = vpop.f32.mrf.mxu0
      %v9046 = vpop.f32.mrf.mxu0
      %v9047 = vadd.f32 0.0, %v9046
      %v9048 = vpop.f32.mrf.mxu0
      %9049 = vmatprep.mubr.bf16.mxu0 0
      %9050 = vmatmul.mubr.bf16.gmra.mxu0 %v8914
      %v9051 = vpop.f32.mrf.mxu0
      %v9052 = vadd.f32 0.0, %v9051
      %v9053 = vpop.f32.mrf.mxu0
      %v9054 = vpop.f32.mrf.mxu0
      %v9055 = vadd.f32 0.0, %v9054
      %v9056 = vpop.f32.mrf.mxu0
      %9057 = vmatprep.mubr.bf16.mxu0 0
      %9058 = vmatmul.mubr.bf16.gmra.mxu0 %v8915
      %v9059 = vpop.f32.mrf.mxu0
      %v9060 = vadd.f32 0.0, %v9059
      %v9061 = vpop.f32.mrf.mxu0
      %v9062 = vpop.f32.mrf.mxu0
      %v9063 = vadd.f32 0.0, %v9062
      %v9064 = vpop.f32.mrf.mxu0
      %9065 = vmatprep.mubr.bf16.mxu0 0
      %9066 = vmatmul.mubr.bf16.gmra.mxu0 %v8916
      %v9067 = vpop.f32.mrf.mxu0
      %v9068 = vadd.f32 0.0, %v9067
      %v9069 = vpop.f32.mrf.mxu0
      %v9070 = vpop.f32.mrf.mxu0
      %v9071 = vadd.f32 0.0, %v9070
      %v9072 = vpop.f32.mrf.mxu0
      %9073 = vmatprep.mubr.bf16.mxu0 0
      %9074 = vmatmul.mubr.bf16.gmra.mxu0 %v8917
      %v9075 = vpop.f32.mrf.mxu0
      %v9076 = vadd.f32 0.0, %v9075
      %v9077 = vpop.f32.mrf.mxu0
      %v9078 = vpop.f32.mrf.mxu0
      %v9079 = vadd.f32 0.0, %v9078
      %v9080 = vpop.f32.mrf.mxu0
      %9081 = vmatprep.mubr.bf16.mxu0 0
      %9082 = vmatmul.mubr.bf16.gmra.mxu0 %v8918
      %v9083 = vpop.f32.mrf.mxu0
      %v9084 = vadd.f32 0.0, %v9083
      %v9085 = vpop.f32.mrf.mxu0
      %v9086 = vpop.f32.mrf.mxu0
      %v9087 = vadd.f32 0.0, %v9086
      %v9088 = vpop.f32.mrf.mxu0
      %9089 = vmatprep.mubr.bf16.mxu0 0
      %9090 = vmatmul.mubr.bf16.gmra.mxu0 %v8919
      %v9091 = vpop.f32.mrf.mxu0
      %v9092 = vadd.f32 0.0, %v9091
      %v9093 = vpop.f32.mrf.mxu0
      %v9094 = vpop.f32.mrf.mxu0
      %v9095 = vadd.f32 0.0, %v9094
      %v9096 = vpop.f32.mrf.mxu0
      %9097 = vmatprep.mubr.bf16.mxu0 0
      %9098 = vmatmul.mubr.bf16.gmra.mxu0 %v8920
      %v9099 = vpop.f32.mrf.mxu0
      %v9100 = vadd.f32 0.0, %v9099
      %v9101 = vpop.f32.mrf.mxu0
      %v9102 = vpop.f32.mrf.mxu0
      %v9103 = vadd.f32 0.0, %v9102
      %v9104 = vpop.f32.mrf.mxu0
      %9105 = vmatprep.mubr.bf16.mxu0 0
      %9106 = vmatmul.mubr.bf16.gmra.mxu0 %v8921
      %v9107 = vpop.f32.mrf.mxu0
      %v9108 = vadd.f32 0.0, %v9107
      %v9109 = vpop.f32.mrf.mxu0
      %v9110 = vpop.f32.mrf.mxu0
      %v9111 = vadd.f32 0.0, %v9110
      %v9112 = vpop.f32.mrf.mxu0
      %9113 = vmatprep.mubr.bf16.mxu0 0
      %9114 = vmatmul.mubr.bf16.gmra.mxu0 %v8922
      %v9115 = vpop.f32.mrf.mxu0
      %v9116 = vadd.f32 0.0, %v9115
      %v9117 = vpop.f32.mrf.mxu0
      %v9118 = vpop.f32.mrf.mxu0
      %v9119 = vadd.f32 0.0, %v9118
      %v9120 = vpop.f32.mrf.mxu0
      %9121 = vmatprep.mubr.bf16.mxu0 0
      %9122 = vmatmul.mubr.bf16.gmra.mxu0 %v8923
      %v9123 = vpop.f32.mrf.mxu0
      %v9124 = vadd.f32 0.0, %v9123
      %v9125 = vpop.f32.mrf.mxu0
      %v9126 = vpop.f32.mrf.mxu0
      %v9127 = vadd.f32 0.0, %v9126
      %v9128 = vpop.f32.mrf.mxu0
      %9129 = vmatprep.mubr.bf16.mxu0 0
      %9130 = vmatmul.mubr.bf16.gmra.mxu0 %v8924
      %v9131 = vpop.f32.mrf.mxu0
      %v9132 = vadd.f32 0.0, %v9131
      %v9133 = vpop.f32.mrf.mxu0
      %v9134 = vpop.f32.mrf.mxu0
      %v9135 = vadd.f32 0.0, %v9134
      %v9136 = vpop.f32.mrf.mxu0
      %9137 = vmatprep.mubr.bf16.mxu0 0
      %9138 = vmatmul.mubr.bf16.gmra.mxu0 %v8925
      %v9139 = vpop.f32.mrf.mxu0
      %v9140 = vadd.f32 0.0, %v9139
      %v9141 = vpop.f32.mrf.mxu0
      %v9142 = vpop.f32.mrf.mxu0
      %v9143 = vadd.f32 0.0, %v9142
      %v9144 = vpop.f32.mrf.mxu0
      %9145 = vmatprep.mubr.bf16.mxu0 0
      %9146 = vmatmul.mubr.bf16.gmra.mxu0 %v8926
      %v9147 = vpop.f32.mrf.mxu0
      %v9148 = vadd.f32 0.0, %v9147
      %v9149 = vpop.f32.mrf.mxu0
      %v9150 = vpop.f32.mrf.mxu0
      %v9151 = vadd.f32 0.0, %v9150
      %v9152 = vpop.f32.mrf.mxu0
      %9153 = vmatprep.mubr.bf16.mxu0 0
      %9154 = vmatmul.mubr.bf16.gmra.mxu0 %v8927
      %v9155 = vpop.f32.mrf.mxu0
      %v9156 = vadd.f32 0.0, %v9155
      %v9157 = vpop.f32.mrf.mxu0
      %v9158 = vpop.f32.mrf.mxu0
      %v9159 = vadd.f32 0.0, %v9158
      %v9160 = vpop.f32.mrf.mxu0
      %9161 = vmatprep.mubr.bf16.mxu0 0
      %9162 = vmatmul.mubr.bf16.gmra.mxu0 %v8928
      %v9163 = vpop.f32.mrf.mxu0
      %v9164 = vadd.f32 0.0, %v9163
      %v9165 = vpop.f32.mrf.mxu0
      %v9166 = vpop.f32.mrf.mxu0
      %v9167 = vadd.f32 0.0, %v9166
      %v9168 = vpop.f32.mrf.mxu0
      %9169 = vmatprep.mubr.bf16.mxu0 0
      %9170 = vmatmul.mubr.bf16.gmra.mxu0 %v8929
      %v9171 = vpop.f32.mrf.mxu0
      %v9172 = vadd.f32 0.0, %v9171
      %v9173 = vpop.f32.mrf.mxu0
      %v9174 = vpop.f32.mrf.mxu0
      %v9175 = vadd.f32 0.0, %v9174
      %v9176 = vpop.f32.mrf.mxu0
      %9177 = vmatprep.mubr.bf16.mxu0 0
      %9178 = vmatmul.mubr.bf16.gmra.mxu0 %v8930
      %v9179 = vpop.f32.mrf.mxu0
      %v9180 = vadd.f32 0.0, %v9179
      %v9181 = vpop.f32.mrf.mxu0
      %v9182 = vpop.f32.mrf.mxu0
      %v9183 = vadd.f32 0.0, %v9182
      %v9184 = vpop.f32.mrf.mxu0
      %9185 = vmatprep.mubr.bf16.mxu0 0
      %9186 = vmatmul.mubr.bf16.gmra.mxu0 %v8931
      %v9187 = vpop.f32.mrf.mxu0
      %v9188 = vadd.f32 0.0, %v9187
      %v9189 = vpop.f32.mrf.mxu0
      %v9190 = vpop.f32.mrf.mxu0
      %v9191 = vadd.f32 0.0, %v9190
      %v9192 = vpop.f32.mrf.mxu0
      %9193 = vmatprep.mubr.bf16.mxu0 0
      %9194 = vmatmul.mubr.bf16.gmra.mxu0 %v8932
      %v9195 = vpop.f32.mrf.mxu0
      %v9196 = vadd.f32 0.0, %v9195
      %v9197 = vpop.f32.mrf.mxu0
      %v9198 = vpop.f32.mrf.mxu0
      %v9199 = vadd.f32 0.0, %v9198
      %v9200 = vpop.f32.mrf.mxu0
      %9201 = vmatprep.mubr.bf16.mxu0 0
      %9202 = vmatmul.mubr.bf16.gmra.mxu0 %v8933
      %v9203 = vpop.f32.mrf.mxu0
      %v9204 = vadd.f32 0.0, %v9203
      %v9205 = vpop.f32.mrf.mxu0
      %v9206 = vpop.f32.mrf.mxu0
      %v9207 = vadd.f32 0.0, %v9206
      %v9208 = vpop.f32.mrf.mxu0
      %9209 = vmatprep.mubr.bf16.mxu0 0
      %9210 = vmatmul.mubr.bf16.gmra.mxu0 %v8934
      %v9211 = vpop.f32.mrf.mxu0
      %v9212 = vadd.f32 0.0, %v9211
      %v9213 = vpop.f32.mrf.mxu0
      %v9214 = vpop.f32.mrf.mxu0
      %v9215 = vadd.f32 0.0, %v9214
      %v9216 = vpop.f32.mrf.mxu0
      %9217 = vmatprep.mubr.bf16.mxu0 0
      %9218 = vmatmul.mubr.bf16.gmra.mxu0 %v8935
      %v9219 = vpop.f32.mrf.mxu0
      %v9220 = vadd.f32 0.0, %v9219
      %v9221 = vpop.f32.mrf.mxu0
      %v9222 = vpop.f32.mrf.mxu0
      %v9223 = vadd.f32 0.0, %v9222
      %v9224 = vpop.f32.mrf.mxu0
      %9225 = vmatprep.mubr.bf16.mxu0 0
      %9226 = vmatmul.mubr.bf16.gmra.mxu0 %v8936
      %v9227 = vpop.f32.mrf.mxu0
      %v9228 = vadd.f32 0.0, %v9227
      %v9229 = vpop.f32.mrf.mxu0
      %v9230 = vpop.f32.mrf.mxu0
      %v9231 = vadd.f32 0.0, %v9230
      %v9232 = vpop.f32.mrf.mxu0
      %9233 = vdwg.mxu0
      %v9234 = vadd.f32 %v8848, %v9044
      %v9235 = vadd.f32 %v8849, %v9047
      %v9236 = vadd.f32 %v8850, %v9052
      %v9237 = vadd.f32 %v8851, %v9055
      %v9238 = vadd.f32 %v8852, %v9060
      %v9239 = vadd.f32 %v8853, %v9063
      %v9240 = vadd.f32 %v8854, %v9068
      %v9241 = vadd.f32 %v8855, %v9071
      %v9242 = vadd.f32 %v8856, %v9076
      %v9243 = vadd.f32 %v8857, %v9079
      %v9244 = vadd.f32 %v8858, %v9084
      %v9245 = vadd.f32 %v8859, %v9087
      %v9246 = vadd.f32 %v8860, %v9092
      %v9247 = vadd.f32 %v8861, %v9095
      %v9248 = vadd.f32 %v8862, %v9100
      %v9249 = vadd.f32 %v8863, %v9103
      %v9250 = vadd.f32 %v8864, %v9108
      %v9251 = vadd.f32 %v8865, %v9111
      %v9252 = vadd.f32 %v8866, %v9116
      %v9253 = vadd.f32 %v8867, %v9119
      %v9254 = vadd.f32 %v8868, %v9124
      %v9255 = vadd.f32 %v8869, %v9127
      %v9256 = vadd.f32 %v8870, %v9132
      %v9257 = vadd.f32 %v8871, %v9135
      %v9258 = vadd.f32 %v8872, %v9140
      %v9259 = vadd.f32 %v8873, %v9143
      %v9260 = vadd.f32 %v8874, %v9148
      %v9261 = vadd.f32 %v8875, %v9151
      %v9262 = vadd.f32 %v8876, %v9156
      %v9263 = vadd.f32 %v8877, %v9159
      %v9264 = vadd.f32 %v8878, %v9164
      %v9265 = vadd.f32 %v8879, %v9167
      %v9266 = vadd.f32 %v8880, %v9172
      %v9267 = vadd.f32 %v8881, %v9175
      %v9268 = vadd.f32 %v8882, %v9180
      %v9269 = vadd.f32 %v8883, %v9183
      %v9270 = vadd.f32 %v8884, %v9188
      %v9271 = vadd.f32 %v8885, %v9191
      %v9272 = vadd.f32 %v8886, %v9196
      %v9273 = vadd.f32 %v8887, %v9199
      %v9274 = vadd.f32 %v8888, %v9204
      %v9275 = vadd.f32 %v8889, %v9207
      %v9276 = vadd.f32 %v8890, %v9212
      %v9277 = vadd.f32 %v8891, %v9215
      %v9278 = vadd.f32 %v8892, %v9220
      %v9279 = vadd.f32 %v8893, %v9223
      %v9280 = vadd.f32 %v8894, %v9228
      %v9281 = vadd.f32 %v8895, %v9231
      %v9282 = vld [vmem:[#allocation3 + $0xc] sm:$0xf]
      %v9283 = vld [vmem:[#allocation3 + $0x10] sm:$0xf]
      %v9284 = vld [vmem:[#allocation3 + $0x14] sm:$0xf]
      %v9285 = vld [vmem:[#allocation3 + $0x18] sm:$0xf]
      %v9286 = vld [vmem:[#allocation3 + $0x1c] sm:$0xf]
      %v9287 = vld [vmem:[#allocation3 + $0x20] sm:$0xf]
      %v9288 = vld [vmem:[#allocation3 + $0x24] sm:$0xf]
      %v9289 = vld [vmem:[#allocation3 + $0x28] sm:$0xf]
      %v9290 = vld [vmem:[#allocation3 + $0x2c] sm:$0xf]
      %v9291 = vld [vmem:[#allocation3 + $0x30] sm:$0xf]
      %v9292 = vld [vmem:[#allocation3 + $0x34] sm:$0xf]
      %v9293 = vld [vmem:[#allocation3 + $0x38] sm:$0xf]
      %v9294 = vld [vmem:[#allocation3 + $0x3c] sm:$0xf]
      %v9295 = vld [vmem:[#allocation3 + $0x40] sm:$0xf]
      %v9296 = vld [vmem:[#allocation3 + $0x44] sm:$0xf]
      %v9297 = vld [vmem:[#allocation3 + $0x48] sm:$0xf]
      %v9298 = vld [vmem:[#allocation3 + $0x4c] sm:$0xf]
      %v9299 = vld [vmem:[#allocation3 + $0x50] sm:$0xf]
      %v9300 = vld [vmem:[#allocation3 + $0x54] sm:$0xf]
      %v9301 = vld [vmem:[#allocation3 + $0x58] sm:$0xf]
      %v9302 = vld [vmem:[#allocation3 + $0x5c] sm:$0xf]
      %v9303 = vld [vmem:[#allocation3 + $0x60] sm:$0xf]
      %v9304 = vld [vmem:[#allocation3 + $0x64] sm:$0xf]
      %v9305 = vld [vmem:[#allocation3 + $0x68] sm:$0xf]
      %v9306 = vld [vmem:[#allocation3 + $0x6c] sm:$0xf]
      %v9307 = vld [vmem:[#allocation3 + $0x70] sm:$0xf]
      %v9308 = vld [vmem:[#allocation3 + $0x74] sm:$0xf]
      %v9309 = vld [vmem:[#allocation3 + $0x78] sm:$0xf]
      %v9310 = vld [vmem:[#allocation3 + $0x7c] sm:$0xf]
      %v9311 = vld [vmem:[#allocation3 + $0x80] sm:$0xf]
      %v9312 = vld [vmem:[#allocation3 + $0x84] sm:$0xf]
      %v9313 = vld [vmem:[#allocation3 + $0x88] sm:$0xf]
      %v9314 = vld [vmem:[#allocation3 + $0x8c] sm:$0xf]
      %v9315 = vld [vmem:[#allocation3 + $0x90] sm:$0xf]
      %v9316 = vld [vmem:[#allocation3 + $0x94] sm:$0xf]
      %v9317 = vld [vmem:[#allocation3 + $0x98] sm:$0xf]
      %v9318 = vld [vmem:[#allocation3 + $0x9c] sm:$0xf]
      %v9319 = vld [vmem:[#allocation3 + $0xa0] sm:$0xf]
      %v9320 = vld [vmem:[#allocation3 + $0xa4] sm:$0xf]
      %v9321 = vld [vmem:[#allocation3 + $0xa8] sm:$0xf]
      %v9322 = vld [vmem:[#allocation3 + $0xac] sm:$0xf]
      %v9323 = vld [vmem:[#allocation3 + $0xb0] sm:$0xf]
      %v9324 = vld [vmem:[#allocation3 + $0xb4] sm:$0xf]
      %v9325 = vld [vmem:[#allocation3 + $0xb8] sm:$0xf]
      %v9326 = vld [vmem:[#allocation3 + $0xbc] sm:$0xf]
      %v9327 = vld [vmem:[#allocation3 + $0xc0] sm:$0xf]
      %v9328 = vld [vmem:[#allocation3 + $0xc4] sm:$0xf]
      %v9329 = vld [vmem:[#allocation3 + $0xc8] sm:$0xf]
      %v9330 = vld [vmem:[#allocation3 + $0xcc] sm:$0x1]
      %s9331 = scalar_lea.vmem %s4, 320
      %v9332 = vld [vmem:[%s9331] sm:$0xf]
      %v9333 = vld [vmem:[%s9331 + $0x4] sm:$0xf]
      %v9334 = vld [vmem:[%s9331 + $0x8] sm:$0xf]
      %v9335 = vld [vmem:[%s9331 + $0xc] sm:$0xf]
      %v9336 = vld [vmem:[%s9331 + $0x10] sm:$0xf]
      %v9337 = vld [vmem:[%s9331 + $0x14] sm:$0xf]
      %v9338 = vld [vmem:[%s9331 + $0x18] sm:$0xf]
      %v9339 = vld [vmem:[%s9331 + $0x1c] sm:$0xf]
      %v9340 = vld [vmem:[%s9331 + $0x20] sm:$0xf]
      %v9341 = vld [vmem:[%s9331 + $0x24] sm:$0xf]
      %v9342 = vld [vmem:[%s9331 + $0x28] sm:$0xf]
      %v9343 = vld [vmem:[%s9331 + $0x2c] sm:$0xf]
      %v9344 = vld [vmem:[%s9331 + $0x30] sm:$0xf]
      %v9345 = vld [vmem:[%s9331 + $0x34] sm:$0xf]
      %v9346 = vld [vmem:[%s9331 + $0x38] sm:$0xf]
      %v9347 = vld [vmem:[%s9331 + $0x3c] sm:$0xf]
      %v9397 = vunpack.c.l.b16 %v9282
      %v9398 = vunpack.c.l.b16 %v9283
      %v9399 = vunpack.c.l.b16 %v9284
      %v9400 = vunpack.c.l.b16 %v9285
      %v9401 = vunpack.c.l.b16 %v9286
      %v9402 = vunpack.c.l.b16 %v9287
      %v9403 = vunpack.c.l.b16 %v9288
      %v9404 = vunpack.c.l.b16 %v9289
      %v9405 = vunpack.c.l.b16 %v9290
      %v9406 = vunpack.c.l.b16 %v9291
      %v9407 = vunpack.c.l.b16 %v9292
      %v9408 = vunpack.c.l.b16 %v9293
      %v9409 = vunpack.c.l.b16 %v9294
      %v9410 = vunpack.c.l.b16 %v9295
      %v9411 = vunpack.c.l.b16 %v9296
      %v9412 = vunpack.c.l.b16 %v9297
      %v9413 = vunpack.c.l.b16 %v9298
      %v9414 = vunpack.c.l.b16 %v9299
      %v9415 = vunpack.c.l.b16 %v9300
      %v9416 = vunpack.c.l.b16 %v9301
      %v9417 = vunpack.c.l.b16 %v9302
      %v9418 = vunpack.c.l.b16 %v9303
      %v9419 = vunpack.c.l.b16 %v9304
      %v9420 = vunpack.c.l.b16 %v9305
      %v9421 = vunpack.c.l.b16 %v9306
      %v9422 = vunpack.c.l.b16 %v9307
      %v9423 = vunpack.c.l.b16 %v9308
      %v9424 = vunpack.c.l.b16 %v9309
      %v9425 = vunpack.c.l.b16 %v9310
      %v9426 = vunpack.c.l.b16 %v9311
      %v9427 = vunpack.c.l.b16 %v9312
      %v9428 = vunpack.c.l.b16 %v9313
      %v9429 = vunpack.c.l.b16 %v9314
      %v9430 = vunpack.c.l.b16 %v9315
      %v9431 = vunpack.c.l.b16 %v9316
      %v9432 = vunpack.c.l.b16 %v9317
      %v9433 = vunpack.c.l.b16 %v9318
      %v9434 = vunpack.c.l.b16 %v9319
      %v9435 = vunpack.c.l.b16 %v9320
      %v9436 = vunpack.c.l.b16 %v9321
      %v9437 = vunpack.c.l.b16 %v9322
      %v9438 = vunpack.c.l.b16 %v9323
      %v9439 = vunpack.c.l.b16 %v9324
      %v9440 = vunpack.c.l.b16 %v9325
      %v9441 = vunpack.c.l.b16 %v9326
      %v9442 = vunpack.c.l.b16 %v9327
      %v9443 = vunpack.c.l.b16 %v9328
      %v9444 = vunpack.c.l.b16 %v9329
      %v9445 = vunpack.c.l.b16 %v9330
      %v9446 = vpack.c.b16 %v9398, %v9397
      %v9447 = vpack.c.b16 %v9400, %v9399
      %v9448 = vpack.c.b16 %v9402, %v9401
      %v9449 = vpack.c.b16 %v9404, %v9403
      %v9450 = vpack.c.b16 %v9406, %v9405
      %v9451 = vpack.c.b16 %v9408, %v9407
      %v9452 = vpack.c.b16 %v9410, %v9409
      %v9453 = vpack.c.b16 %v9412, %v9411
      %v9454 = vpack.c.b16 %v9414, %v9413
      %v9455 = vpack.c.b16 %v9416, %v9415
      %v9456 = vpack.c.b16 %v9418, %v9417
      %v9457 = vpack.c.b16 %v9420, %v9419
      %v9458 = vpack.c.b16 %v9422, %v9421
      %v9459 = vpack.c.b16 %v9424, %v9423
      %v9460 = vpack.c.b16 %v9426, %v9425
      %v9461 = vpack.c.b16 %v9428, %v9427
      %v9462 = vpack.c.b16 %v9430, %v9429
      %v9463 = vpack.c.b16 %v9432, %v9431
      %v9464 = vpack.c.b16 %v9434, %v9433
      %v9465 = vpack.c.b16 %v9436, %v9435
      %v9466 = vpack.c.b16 %v9438, %v9437
      %v9467 = vpack.c.b16 %v9440, %v9439
      %v9468 = vpack.c.b16 %v9442, %v9441
      %v9469 = vpack.c.b16 %v9444, %v9443
      %v9470 = vpack.c.b16 %v9445, %v9445
      %vm9471 = vsmask.f32 7424
      %v9473 = vshrl.u32 %v9446, 16
      %v9475 = vshll.u32 %v9446, 16
      %v9477 = vrot.slane %v9475, 1
      %v9478 = vor.u32 %v9473, %v9477
      %v9480 = vshll.u32 %v9447, 16
      %v9482 = vrot.slane %v9480, 1
      %v9483 = vsel %vm9471, %v9478, %v9482
      %v9484 = vshrl.u32 %v9447, 16
      %v9486 = vor.u32 %v9484, %v9482
      %v9488 = vshll.u32 %v9448, 16
      %v9490 = vrot.slane %v9488, 1
      %v9491 = vsel %vm9471, %v9486, %v9490
      %v9492 = vshrl.u32 %v9448, 16
      %v9494 = vor.u32 %v9492, %v9490
      %v9496 = vshll.u32 %v9449, 16
      %v9498 = vrot.slane %v9496, 1
      %v9499 = vsel %vm9471, %v9494, %v9498
      %v9500 = vshrl.u32 %v9449, 16
      %v9502 = vor.u32 %v9500, %v9498
      %v9504 = vshll.u32 %v9450, 16
      %v9506 = vrot.slane %v9504, 1
      %v9507 = vsel %vm9471, %v9502, %v9506
      %v9508 = vshrl.u32 %v9450, 16
      %v9510 = vor.u32 %v9508, %v9506
      %v9512 = vshll.u32 %v9451, 16
      %v9514 = vrot.slane %v9512, 1
      %v9515 = vsel %vm9471, %v9510, %v9514
      %v9516 = vshrl.u32 %v9451, 16
      %v9518 = vor.u32 %v9516, %v9514
      %v9520 = vshll.u32 %v9452, 16
      %v9522 = vrot.slane %v9520, 1
      %v9523 = vsel %vm9471, %v9518, %v9522
      %v9524 = vshrl.u32 %v9452, 16
      %v9526 = vor.u32 %v9524, %v9522
      %v9528 = vshll.u32 %v9453, 16
      %v9530 = vrot.slane %v9528, 1
      %v9531 = vsel %vm9471, %v9526, %v9530
      %v9532 = vshrl.u32 %v9453, 16
      %v9534 = vor.u32 %v9532, %v9530
      %v9536 = vshll.u32 %v9454, 16
      %v9538 = vrot.slane %v9536, 1
      %v9539 = vsel %vm9471, %v9534, %v9538
      %v9540 = vshrl.u32 %v9454, 16
      %v9542 = vor.u32 %v9540, %v9538
      %v9544 = vshll.u32 %v9455, 16
      %v9546 = vrot.slane %v9544, 1
      %v9547 = vsel %vm9471, %v9542, %v9546
      %v9548 = vshrl.u32 %v9455, 16
      %v9550 = vor.u32 %v9548, %v9546
      %v9552 = vshll.u32 %v9456, 16
      %v9554 = vrot.slane %v9552, 1
      %v9555 = vsel %vm9471, %v9550, %v9554
      %v9556 = vshrl.u32 %v9456, 16
      %v9558 = vor.u32 %v9556, %v9554
      %v9560 = vshll.u32 %v9457, 16
      %v9562 = vrot.slane %v9560, 1
      %v9563 = vsel %vm9471, %v9558, %v9562
      %v9564 = vshrl.u32 %v9457, 16
      %v9566 = vor.u32 %v9564, %v9562
      %v9568 = vshll.u32 %v9458, 16
      %v9570 = vrot.slane %v9568, 1
      %v9571 = vsel %vm9471, %v9566, %v9570
      %v9572 = vshrl.u32 %v9458, 16
      %v9574 = vor.u32 %v9572, %v9570
      %v9576 = vshll.u32 %v9459, 16
      %v9578 = vrot.slane %v9576, 1
      %v9579 = vsel %vm9471, %v9574, %v9578
      %v9580 = vshrl.u32 %v9459, 16
      %v9582 = vor.u32 %v9580, %v9578
      %v9584 = vshll.u32 %v9460, 16
      %v9586 = vrot.slane %v9584, 1
      %v9587 = vsel %vm9471, %v9582, %v9586
      %v9588 = vshrl.u32 %v9460, 16
      %v9590 = vor.u32 %v9588, %v9586
      %v9592 = vshll.u32 %v9461, 16
      %v9594 = vrot.slane %v9592, 1
      %v9595 = vsel %vm9471, %v9590, %v9594
      %v9596 = vshrl.u32 %v9461, 16
      %v9598 = vor.u32 %v9596, %v9594
      %v9600 = vshll.u32 %v9462, 16
      %v9602 = vrot.slane %v9600, 1
      %v9603 = vsel %vm9471, %v9598, %v9602
      %v9604 = vshrl.u32 %v9462, 16
      %v9606 = vor.u32 %v9604, %v9602
      %v9608 = vshll.u32 %v9463, 16
      %v9610 = vrot.slane %v9608, 1
      %v9611 = vsel %vm9471, %v9606, %v9610
      %v9612 = vshrl.u32 %v9463, 16
      %v9614 = vor.u32 %v9612, %v9610
      %v9616 = vshll.u32 %v9464, 16
      %v9618 = vrot.slane %v9616, 1
      %v9619 = vsel %vm9471, %v9614, %v9618
      %v9620 = vshrl.u32 %v9464, 16
      %v9622 = vor.u32 %v9620, %v9618
      %v9624 = vshll.u32 %v9465, 16
      %v9626 = vrot.slane %v9624, 1
      %v9627 = vsel %vm9471, %v9622, %v9626
      %v9628 = vshrl.u32 %v9465, 16
      %v9630 = vor.u32 %v9628, %v9626
      %v9632 = vshll.u32 %v9466, 16
      %v9634 = vrot.slane %v9632, 1
      %v9635 = vsel %vm9471, %v9630, %v9634
      %v9636 = vshrl.u32 %v9466, 16
      %v9638 = vor.u32 %v9636, %v9634
      %v9640 = vshll.u32 %v9467, 16
      %v9642 = vrot.slane %v9640, 1
      %v9643 = vsel %vm9471, %v9638, %v9642
      %v9644 = vshrl.u32 %v9467, 16
      %v9646 = vor.u32 %v9644, %v9642
      %v9648 = vshll.u32 %v9468, 16
      %v9650 = vrot.slane %v9648, 1
      %v9651 = vsel %vm9471, %v9646, %v9650
      %v9652 = vshrl.u32 %v9468, 16
      %v9654 = vor.u32 %v9652, %v9650
      %v9656 = vshll.u32 %v9469, 16
      %v9658 = vrot.slane %v9656, 1
      %v9659 = vsel %vm9471, %v9654, %v9658
      %v9660 = vshrl.u32 %v9469, 16
      %v9662 = vor.u32 %v9660, %v9658
      %v9664 = vshll.u32 %v9470, 16
      %v9666 = vrot.slane %v9664, 1
      %v9667 = vsel %vm9471, %v9662, %v9666
      %v9708 = vunpack.c.l.b16 %v9332
      %v9709 = vunpack.c.l.b16 %v9333
      %v9710 = vunpack.c.l.b16 %v9334
      %v9711 = vunpack.c.l.b16 %v9335
      %v9712 = vunpack.c.l.b16 %v9336
      %v9713 = vunpack.c.l.b16 %v9337
      %v9714 = vunpack.c.l.b16 %v9338
      %v9715 = vunpack.c.l.b16 %v9339
      %v9716 = vunpack.c.l.b16 %v9340
      %v9717 = vunpack.c.l.b16 %v9341
      %v9718 = vunpack.c.l.b16 %v9342
      %v9719 = vunpack.c.l.b16 %v9343
      %v9720 = vunpack.c.l.b16 %v9344
      %v9721 = vunpack.c.l.b16 %v9345
      %v9722 = vunpack.c.l.b16 %v9346
      %v9723 = vunpack.c.l.b16 %v9347
      %v9724 = vpack.c.b16 %v9709, %v9708
      %v9725 = vpack.c.b16 %v9711, %v9710
      %v9726 = vpack.c.b16 %v9713, %v9712
      %v9727 = vpack.c.b16 %v9715, %v9714
      %v9728 = vpack.c.b16 %v9717, %v9716
      %v9729 = vpack.c.b16 %v9719, %v9718
      %v9730 = vpack.c.b16 %v9721, %v9720
      %v9731 = vpack.c.b16 %v9723, %v9722
      %9740 = vmatprep.subr.bf16.mxu0 0
      %9741 = vmatpush1.bf16.msra.mxu0 %v9731
      %9742 = vmatprep.subr.bf16.mxu0 0
      %9743 = vmatpush1.bf16.msra.mxu0 %v9730
      %9744 = vmatprep.subr.bf16.mxu0 0
      %9745 = vmatpush1.bf16.msra.mxu0 %v9729
      %9746 = vmatprep.subr.bf16.mxu0 0
      %9747 = vmatpush1.bf16.msra.mxu0 %v9728
      %9748 = vmatprep.subr.bf16.mxu0 0
      %9749 = vmatpush1.bf16.msra.mxu0 %v9727
      %9750 = vmatprep.subr.bf16.mxu0 0
      %9751 = vmatpush1.bf16.msra.mxu0 %v9726
      %9752 = vmatprep.subr.bf16.mxu0 0
      %9753 = vmatpush1.bf16.msra.mxu0 %v9725
      %9754 = vmatprep.subr.bf16.mxu0 0
      %9755 = vmatpush1.bf16.msra.mxu0 %v9724
      %9756 = vmatprep.subr.bf16.mxu0 0
      %9757 = vmatpush2.bf16.msra.mxu0 0
      %9758 = vmatprep.subr.bf16.mxu0 0
      %9759 = vmatpush2.bf16.msra.mxu0 0
      %9760 = vmatprep.subr.bf16.mxu0 0
      %9761 = vmatpush2.bf16.msra.mxu0 0
      %9762 = vmatprep.subr.bf16.mxu0 0
      %9763 = vmatpush2.bf16.msra.mxu0 0
      %9764 = vmatprep.subr.bf16.mxu0 0
      %9765 = vmatpush2.bf16.msra.mxu0 0
      %9766 = vmatprep.subr.bf16.mxu0 0
      %9767 = vmatpush2.bf16.msra.mxu0 0
      %9768 = vmatprep.subr.bf16.mxu0 0
      %9769 = vmatpush2.bf16.msra.mxu0 0
      %9770 = vmatprep.subr.bf16.mxu0 0
      %9771 = vmatpush2.bf16.msra.mxu0 0
      %9772 = vmatprep.mubr.bf16.mxu0 0
      %9773 = vmatmul.mubr.bf16.gmra.mxu0 %v9483
      %v9774 = vpop.f32.mrf.mxu0
      %v9775 = vadd.f32 0.0, %v9774
      %v9776 = vpop.f32.mrf.mxu0
      %v9777 = vpop.f32.mrf.mxu0
      %v9778 = vadd.f32 0.0, %v9777
      %v9779 = vpop.f32.mrf.mxu0
      %9780 = vmatprep.mubr.bf16.mxu0 0
      %9781 = vmatmul.mubr.bf16.gmra.mxu0 %v9491
      %v9782 = vpop.f32.mrf.mxu0
      %v9783 = vadd.f32 0.0, %v9782
      %v9784 = vpop.f32.mrf.mxu0
      %v9785 = vpop.f32.mrf.mxu0
      %v9786 = vadd.f32 0.0, %v9785
      %v9787 = vpop.f32.mrf.mxu0
      %9788 = vmatprep.mubr.bf16.mxu0 0
      %9789 = vmatmul.mubr.bf16.gmra.mxu0 %v9499
      %v9790 = vpop.f32.mrf.mxu0
      %v9791 = vadd.f32 0.0, %v9790
      %v9792 = vpop.f32.mrf.mxu0
      %v9793 = vpop.f32.mrf.mxu0
      %v9794 = vadd.f32 0.0, %v9793
      %v9795 = vpop.f32.mrf.mxu0
      %9796 = vmatprep.mubr.bf16.mxu0 0
      %9797 = vmatmul.mubr.bf16.gmra.mxu0 %v9507
      %v9798 = vpop.f32.mrf.mxu0
      %v9799 = vadd.f32 0.0, %v9798
      %v9800 = vpop.f32.mrf.mxu0
      %v9801 = vpop.f32.mrf.mxu0
      %v9802 = vadd.f32 0.0, %v9801
      %v9803 = vpop.f32.mrf.mxu0
      %9804 = vmatprep.mubr.bf16.mxu0 0
      %9805 = vmatmul.mubr.bf16.gmra.mxu0 %v9515
      %v9806 = vpop.f32.mrf.mxu0
      %v9807 = vadd.f32 0.0, %v9806
      %v9808 = vpop.f32.mrf.mxu0
      %v9809 = vpop.f32.mrf.mxu0
      %v9810 = vadd.f32 0.0, %v9809
      %v9811 = vpop.f32.mrf.mxu0
      %9812 = vmatprep.mubr.bf16.mxu0 0
      %9813 = vmatmul.mubr.bf16.gmra.mxu0 %v9523
      %v9814 = vpop.f32.mrf.mxu0
      %v9815 = vadd.f32 0.0, %v9814
      %v9816 = vpop.f32.mrf.mxu0
      %v9817 = vpop.f32.mrf.mxu0
      %v9818 = vadd.f32 0.0, %v9817
      %v9819 = vpop.f32.mrf.mxu0
      %9820 = vmatprep.mubr.bf16.mxu0 0
      %9821 = vmatmul.mubr.bf16.gmra.mxu0 %v9531
      %v9822 = vpop.f32.mrf.mxu0
      %v9823 = vadd.f32 0.0, %v9822
      %v9824 = vpop.f32.mrf.mxu0
      %v9825 = vpop.f32.mrf.mxu0
      %v9826 = vadd.f32 0.0, %v9825
      %v9827 = vpop.f32.mrf.mxu0
      %9828 = vmatprep.mubr.bf16.mxu0 0
      %9829 = vmatmul.mubr.bf16.gmra.mxu0 %v9539
      %v9830 = vpop.f32.mrf.mxu0
      %v9831 = vadd.f32 0.0, %v9830
      %v9832 = vpop.f32.mrf.mxu0
      %v9833 = vpop.f32.mrf.mxu0
      %v9834 = vadd.f32 0.0, %v9833
      %v9835 = vpop.f32.mrf.mxu0
      %9836 = vmatprep.mubr.bf16.mxu0 0
      %9837 = vmatmul.mubr.bf16.gmra.mxu0 %v9547
      %v9838 = vpop.f32.mrf.mxu0
      %v9839 = vadd.f32 0.0, %v9838
      %v9840 = vpop.f32.mrf.mxu0
      %v9841 = vpop.f32.mrf.mxu0
      %v9842 = vadd.f32 0.0, %v9841
      %v9843 = vpop.f32.mrf.mxu0
      %9844 = vmatprep.mubr.bf16.mxu0 0
      %9845 = vmatmul.mubr.bf16.gmra.mxu0 %v9555
      %v9846 = vpop.f32.mrf.mxu0
      %v9847 = vadd.f32 0.0, %v9846
      %v9848 = vpop.f32.mrf.mxu0
      %v9849 = vpop.f32.mrf.mxu0
      %v9850 = vadd.f32 0.0, %v9849
      %v9851 = vpop.f32.mrf.mxu0
      %9852 = vmatprep.mubr.bf16.mxu0 0
      %9853 = vmatmul.mubr.bf16.gmra.mxu0 %v9563
      %v9854 = vpop.f32.mrf.mxu0
      %v9855 = vadd.f32 0.0, %v9854
      %v9856 = vpop.f32.mrf.mxu0
      %v9857 = vpop.f32.mrf.mxu0
      %v9858 = vadd.f32 0.0, %v9857
      %v9859 = vpop.f32.mrf.mxu0
      %9860 = vmatprep.mubr.bf16.mxu0 0
      %9861 = vmatmul.mubr.bf16.gmra.mxu0 %v9571
      %v9862 = vpop.f32.mrf.mxu0
      %v9863 = vadd.f32 0.0, %v9862
      %v9864 = vpop.f32.mrf.mxu0
      %v9865 = vpop.f32.mrf.mxu0
      %v9866 = vadd.f32 0.0, %v9865
      %v9867 = vpop.f32.mrf.mxu0
      %9868 = vmatprep.mubr.bf16.mxu0 0
      %9869 = vmatmul.mubr.bf16.gmra.mxu0 %v9579
      %v9870 = vpop.f32.mrf.mxu0
      %v9871 = vadd.f32 0.0, %v9870
      %v9872 = vpop.f32.mrf.mxu0
      %v9873 = vpop.f32.mrf.mxu0
      %v9874 = vadd.f32 0.0, %v9873
      %v9875 = vpop.f32.mrf.mxu0
      %9876 = vmatprep.mubr.bf16.mxu0 0
      %9877 = vmatmul.mubr.bf16.gmra.mxu0 %v9587
      %v9878 = vpop.f32.mrf.mxu0
      %v9879 = vadd.f32 0.0, %v9878
      %v9880 = vpop.f32.mrf.mxu0
      %v9881 = vpop.f32.mrf.mxu0
      %v9882 = vadd.f32 0.0, %v9881
      %v9883 = vpop.f32.mrf.mxu0
      %9884 = vmatprep.mubr.bf16.mxu0 0
      %9885 = vmatmul.mubr.bf16.gmra.mxu0 %v9595
      %v9886 = vpop.f32.mrf.mxu0
      %v9887 = vadd.f32 0.0, %v9886
      %v9888 = vpop.f32.mrf.mxu0
      %v9889 = vpop.f32.mrf.mxu0
      %v9890 = vadd.f32 0.0, %v9889
      %v9891 = vpop.f32.mrf.mxu0
      %9892 = vmatprep.mubr.bf16.mxu0 0
      %9893 = vmatmul.mubr.bf16.gmra.mxu0 %v9603
      %v9894 = vpop.f32.mrf.mxu0
      %v9895 = vadd.f32 0.0, %v9894
      %v9896 = vpop.f32.mrf.mxu0
      %v9897 = vpop.f32.mrf.mxu0
      %v9898 = vadd.f32 0.0, %v9897
      %v9899 = vpop.f32.mrf.mxu0
      %9900 = vmatprep.mubr.bf16.mxu0 0
      %9901 = vmatmul.mubr.bf16.gmra.mxu0 %v9611
      %v9902 = vpop.f32.mrf.mxu0
      %v9903 = vadd.f32 0.0, %v9902
      %v9904 = vpop.f32.mrf.mxu0
      %v9905 = vpop.f32.mrf.mxu0
      %v9906 = vadd.f32 0.0, %v9905
      %v9907 = vpop.f32.mrf.mxu0
      %9908 = vmatprep.mubr.bf16.mxu0 0
      %9909 = vmatmul.mubr.bf16.gmra.mxu0 %v9619
      %v9910 = vpop.f32.mrf.mxu0
      %v9911 = vadd.f32 0.0, %v9910
      %v9912 = vpop.f32.mrf.mxu0
      %v9913 = vpop.f32.mrf.mxu0
      %v9914 = vadd.f32 0.0, %v9913
      %v9915 = vpop.f32.mrf.mxu0
      %9916 = vmatprep.mubr.bf16.mxu0 0
      %9917 = vmatmul.mubr.bf16.gmra.mxu0 %v9627
      %v9918 = vpop.f32.mrf.mxu0
      %v9919 = vadd.f32 0.0, %v9918
      %v9920 = vpop.f32.mrf.mxu0
      %v9921 = vpop.f32.mrf.mxu0
      %v9922 = vadd.f32 0.0, %v9921
      %v9923 = vpop.f32.mrf.mxu0
      %9924 = vmatprep.mubr.bf16.mxu0 0
      %9925 = vmatmul.mubr.bf16.gmra.mxu0 %v9635
      %v9926 = vpop.f32.mrf.mxu0
      %v9927 = vadd.f32 0.0, %v9926
      %v9928 = vpop.f32.mrf.mxu0
      %v9929 = vpop.f32.mrf.mxu0
      %v9930 = vadd.f32 0.0, %v9929
      %v9931 = vpop.f32.mrf.mxu0
      %9932 = vmatprep.mubr.bf16.mxu0 0
      %9933 = vmatmul.mubr.bf16.gmra.mxu0 %v9643
      %v9934 = vpop.f32.mrf.mxu0
      %v9935 = vadd.f32 0.0, %v9934
      %v9936 = vpop.f32.mrf.mxu0
      %v9937 = vpop.f32.mrf.mxu0
      %v9938 = vadd.f32 0.0, %v9937
      %v9939 = vpop.f32.mrf.mxu0
      %9940 = vmatprep.mubr.bf16.mxu0 0
      %9941 = vmatmul.mubr.bf16.gmra.mxu0 %v9651
      %v9942 = vpop.f32.mrf.mxu0
      %v9943 = vadd.f32 0.0, %v9942
      %v9944 = vpop.f32.mrf.mxu0
      %v9945 = vpop.f32.mrf.mxu0
      %v9946 = vadd.f32 0.0, %v9945
      %v9947 = vpop.f32.mrf.mxu0
      %9948 = vmatprep.mubr.bf16.mxu0 0
      %9949 = vmatmul.mubr.bf16.gmra.mxu0 %v9659
      %v9950 = vpop.f32.mrf.mxu0
      %v9951 = vadd.f32 0.0, %v9950
      %v9952 = vpop.f32.mrf.mxu0
      %v9953 = vpop.f32.mrf.mxu0
      %v9954 = vadd.f32 0.0, %v9953
      %v9955 = vpop.f32.mrf.mxu0
      %9956 = vmatprep.mubr.bf16.mxu0 0
      %9957 = vmatmul.mubr.bf16.gmra.mxu0 %v9667
      %v9958 = vpop.f32.mrf.mxu0
      %v9959 = vadd.f32 0.0, %v9958
      %v9960 = vpop.f32.mrf.mxu0
      %v9961 = vpop.f32.mrf.mxu0
      %v9962 = vadd.f32 0.0, %v9961
      %v9963 = vpop.f32.mrf.mxu0
      %9964 = vdwg.mxu0
      %v9965 = vadd.f32 %v9234, %v9775
      %v9966 = vadd.f32 %v9235, %v9778
      %v9967 = vadd.f32 %v9236, %v9783
      %v9968 = vadd.f32 %v9237, %v9786
      %v9969 = vadd.f32 %v9238, %v9791
      %v9970 = vadd.f32 %v9239, %v9794
      %v9971 = vadd.f32 %v9240, %v9799
      %v9972 = vadd.f32 %v9241, %v9802
      %v9973 = vadd.f32 %v9242, %v9807
      %v9974 = vadd.f32 %v9243, %v9810
      %v9975 = vadd.f32 %v9244, %v9815
      %v9976 = vadd.f32 %v9245, %v9818
      %v9977 = vadd.f32 %v9246, %v9823
      %v9978 = vadd.f32 %v9247, %v9826
      %v9979 = vadd.f32 %v9248, %v9831
      %v9980 = vadd.f32 %v9249, %v9834
      %v9981 = vadd.f32 %v9250, %v9839
      %v9982 = vadd.f32 %v9251, %v9842
      %v9983 = vadd.f32 %v9252, %v9847
      %v9984 = vadd.f32 %v9253, %v9850
      %v9985 = vadd.f32 %v9254, %v9855
      %v9986 = vadd.f32 %v9255, %v9858
      %v9987 = vadd.f32 %v9256, %v9863
      %v9988 = vadd.f32 %v9257, %v9866
      %v9989 = vadd.f32 %v9258, %v9871
      %v9990 = vadd.f32 %v9259, %v9874
      %v9991 = vadd.f32 %v9260, %v9879
      %v9992 = vadd.f32 %v9261, %v9882
      %v9993 = vadd.f32 %v9262, %v9887
      %v9994 = vadd.f32 %v9263, %v9890
      %v9995 = vadd.f32 %v9264, %v9895
      %v9996 = vadd.f32 %v9265, %v9898
      %v9997 = vadd.f32 %v9266, %v9903
      %v9998 = vadd.f32 %v9267, %v9906
      %v9999 = vadd.f32 %v9268, %v9911
      %v10000 = vadd.f32 %v9269, %v9914
      %v10001 = vadd.f32 %v9270, %v9919
      %v10002 = vadd.f32 %v9271, %v9922
      %v10003 = vadd.f32 %v9272, %v9927
      %v10004 = vadd.f32 %v9273, %v9930
      %v10005 = vadd.f32 %v9274, %v9935
      %v10006 = vadd.f32 %v9275, %v9938
      %v10007 = vadd.f32 %v9276, %v9943
      %v10008 = vadd.f32 %v9277, %v9946
      %v10009 = vadd.f32 %v9278, %v9951
      %v10010 = vadd.f32 %v9279, %v9954
      %v10011 = vadd.f32 %v9280, %v9959
      %v10012 = vadd.f32 %v9281, %v9962
      %v10013 = vld [vmem:[#allocation3 + $0x14] sm:$0xf]
      %v10014 = vld [vmem:[#allocation3 + $0x18] sm:$0xf]
      %v10015 = vld [vmem:[#allocation3 + $0x1c] sm:$0xf]
      %v10016 = vld [vmem:[#allocation3 + $0x20] sm:$0xf]
      %v10017 = vld [vmem:[#allocation3 + $0x24] sm:$0xf]
      %v10018 = vld [vmem:[#allocation3 + $0x28] sm:$0xf]
      %v10019 = vld [vmem:[#allocation3 + $0x2c] sm:$0xf]
      %v10020 = vld [vmem:[#allocation3 + $0x30] sm:$0xf]
      %v10021 = vld [vmem:[#allocation3 + $0x34] sm:$0xf]
      %v10022 = vld [vmem:[#allocation3 + $0x38] sm:$0xf]
      %v10023 = vld [vmem:[#allocation3 + $0x3c] sm:$0xf]
      %v10024 = vld [vmem:[#allocation3 + $0x40] sm:$0xf]
      %v10025 = vld [vmem:[#allocation3 + $0x44] sm:$0xf]
      %v10026 = vld [vmem:[#allocation3 + $0x48] sm:$0xf]
      %v10027 = vld [vmem:[#allocation3 + $0x4c] sm:$0xf]
      %v10028 = vld [vmem:[#allocation3 + $0x50] sm:$0xf]
      %v10029 = vld [vmem:[#allocation3 + $0x54] sm:$0xf]
      %v10030 = vld [vmem:[#allocation3 + $0x58] sm:$0xf]
      %v10031 = vld [vmem:[#allocation3 + $0x5c] sm:$0xf]
      %v10032 = vld [vmem:[#allocation3 + $0x60] sm:$0xf]
      %v10033 = vld [vmem:[#allocation3 + $0x64] sm:$0xf]
      %v10034 = vld [vmem:[#allocation3 + $0x68] sm:$0xf]
      %v10035 = vld [vmem:[#allocation3 + $0x6c] sm:$0xf]
      %v10036 = vld [vmem:[#allocation3 + $0x70] sm:$0xf]
      %v10037 = vld [vmem:[#allocation3 + $0x74] sm:$0xf]
      %v10038 = vld [vmem:[#allocation3 + $0x78] sm:$0xf]
      %v10039 = vld [vmem:[#allocation3 + $0x7c] sm:$0xf]
      %v10040 = vld [vmem:[#allocation3 + $0x80] sm:$0xf]
      %v10041 = vld [vmem:[#allocation3 + $0x84] sm:$0xf]
      %v10042 = vld [vmem:[#allocation3 + $0x88] sm:$0xf]
      %v10043 = vld [vmem:[#allocation3 + $0x8c] sm:$0xf]
      %v10044 = vld [vmem:[#allocation3 + $0x90] sm:$0xf]
      %v10045 = vld [vmem:[#allocation3 + $0x94] sm:$0xf]
      %v10046 = vld [vmem:[#allocation3 + $0x98] sm:$0xf]
      %v10047 = vld [vmem:[#allocation3 + $0x9c] sm:$0xf]
      %v10048 = vld [vmem:[#allocation3 + $0xa0] sm:$0xf]
      %v10049 = vld [vmem:[#allocation3 + $0xa4] sm:$0xf]
      %v10050 = vld [vmem:[#allocation3 + $0xa8] sm:$0xf]
      %v10051 = vld [vmem:[#allocation3 + $0xac] sm:$0xf]
      %v10052 = vld [vmem:[#allocation3 + $0xb0] sm:$0xf]
      %v10053 = vld [vmem:[#allocation3 + $0xb4] sm:$0xf]
      %v10054 = vld [vmem:[#allocation3 + $0xb8] sm:$0xf]
      %v10055 = vld [vmem:[#allocation3 + $0xbc] sm:$0xf]
      %v10056 = vld [vmem:[#allocation3 + $0xc0] sm:$0xf]
      %v10057 = vld [vmem:[#allocation3 + $0xc4] sm:$0xf]
      %v10058 = vld [vmem:[#allocation3 + $0xc8] sm:$0xf]
      %v10059 = vld [vmem:[#allocation3 + $0xcc] sm:$0xf]
      %v10060 = vld [vmem:[#allocation3 + $0xd0] sm:$0xf]
      %v10061 = vld [vmem:[#allocation3 + $0xd4] sm:$0x1]
      %s10062 = scalar_lea.vmem %s4, 384
      %v10063 = vld [vmem:[%s10062] sm:$0xf]
      %v10064 = vld [vmem:[%s10062 + $0x4] sm:$0xf]
      %v10065 = vld [vmem:[%s10062 + $0x8] sm:$0xf]
      %v10066 = vld [vmem:[%s10062 + $0xc] sm:$0xf]
      %v10067 = vld [vmem:[%s10062 + $0x10] sm:$0xf]
      %v10068 = vld [vmem:[%s10062 + $0x14] sm:$0xf]
      %v10069 = vld [vmem:[%s10062 + $0x18] sm:$0xf]
      %v10070 = vld [vmem:[%s10062 + $0x1c] sm:$0xf]
      %v10071 = vld [vmem:[%s10062 + $0x20] sm:$0xf]
      %v10072 = vld [vmem:[%s10062 + $0x24] sm:$0xf]
      %v10073 = vld [vmem:[%s10062 + $0x28] sm:$0xf]
      %v10074 = vld [vmem:[%s10062 + $0x2c] sm:$0xf]
      %v10075 = vld [vmem:[%s10062 + $0x30] sm:$0xf]
      %v10076 = vld [vmem:[%s10062 + $0x34] sm:$0xf]
      %v10077 = vld [vmem:[%s10062 + $0x38] sm:$0xf]
      %v10078 = vld [vmem:[%s10062 + $0x3c] sm:$0xf]
      %v10128 = vunpack.c.l.b16 %v10013
      %v10129 = vunpack.c.l.b16 %v10014
      %v10130 = vunpack.c.l.b16 %v10015
      %v10131 = vunpack.c.l.b16 %v10016
      %v10132 = vunpack.c.l.b16 %v10017
      %v10133 = vunpack.c.l.b16 %v10018
      %v10134 = vunpack.c.l.b16 %v10019
      %v10135 = vunpack.c.l.b16 %v10020
      %v10136 = vunpack.c.l.b16 %v10021
      %v10137 = vunpack.c.l.b16 %v10022
      %v10138 = vunpack.c.l.b16 %v10023
      %v10139 = vunpack.c.l.b16 %v10024
      %v10140 = vunpack.c.l.b16 %v10025
      %v10141 = vunpack.c.l.b16 %v10026
      %v10142 = vunpack.c.l.b16 %v10027
      %v10143 = vunpack.c.l.b16 %v10028
      %v10144 = vunpack.c.l.b16 %v10029
      %v10145 = vunpack.c.l.b16 %v10030
      %v10146 = vunpack.c.l.b16 %v10031
      %v10147 = vunpack.c.l.b16 %v10032
      %v10148 = vunpack.c.l.b16 %v10033
      %v10149 = vunpack.c.l.b16 %v10034
      %v10150 = vunpack.c.l.b16 %v10035
      %v10151 = vunpack.c.l.b16 %v10036
      %v10152 = vunpack.c.l.b16 %v10037
      %v10153 = vunpack.c.l.b16 %v10038
      %v10154 = vunpack.c.l.b16 %v10039
      %v10155 = vunpack.c.l.b16 %v10040
      %v10156 = vunpack.c.l.b16 %v10041
      %v10157 = vunpack.c.l.b16 %v10042
      %v10158 = vunpack.c.l.b16 %v10043
      %v10159 = vunpack.c.l.b16 %v10044
      %v10160 = vunpack.c.l.b16 %v10045
      %v10161 = vunpack.c.l.b16 %v10046
      %v10162 = vunpack.c.l.b16 %v10047
      %v10163 = vunpack.c.l.b16 %v10048
      %v10164 = vunpack.c.l.b16 %v10049
      %v10165 = vunpack.c.l.b16 %v10050
      %v10166 = vunpack.c.l.b16 %v10051
      %v10167 = vunpack.c.l.b16 %v10052
      %v10168 = vunpack.c.l.b16 %v10053
      %v10169 = vunpack.c.l.b16 %v10054
      %v10170 = vunpack.c.l.b16 %v10055
      %v10171 = vunpack.c.l.b16 %v10056
      %v10172 = vunpack.c.l.b16 %v10057
      %v10173 = vunpack.c.l.b16 %v10058
      %v10174 = vunpack.c.l.b16 %v10059
      %v10175 = vunpack.c.l.b16 %v10060
      %v10176 = vunpack.c.l.b16 %v10061
      %v10177 = vpack.c.b16 %v10129, %v10128
      %v10178 = vpack.c.b16 %v10131, %v10130
      %v10179 = vpack.c.b16 %v10133, %v10132
      %v10180 = vpack.c.b16 %v10135, %v10134
      %v10181 = vpack.c.b16 %v10137, %v10136
      %v10182 = vpack.c.b16 %v10139, %v10138
      %v10183 = vpack.c.b16 %v10141, %v10140
      %v10184 = vpack.c.b16 %v10143, %v10142
      %v10185 = vpack.c.b16 %v10145, %v10144
      %v10186 = vpack.c.b16 %v10147, %v10146
      %v10187 = vpack.c.b16 %v10149, %v10148
      %v10188 = vpack.c.b16 %v10151, %v10150
      %v10189 = vpack.c.b16 %v10153, %v10152
      %v10190 = vpack.c.b16 %v10155, %v10154
      %v10191 = vpack.c.b16 %v10157, %v10156
      %v10192 = vpack.c.b16 %v10159, %v10158
      %v10193 = vpack.c.b16 %v10161, %v10160
      %v10194 = vpack.c.b16 %v10163, %v10162
      %v10195 = vpack.c.b16 %v10165, %v10164
      %v10196 = vpack.c.b16 %v10167, %v10166
      %v10197 = vpack.c.b16 %v10169, %v10168
      %v10198 = vpack.c.b16 %v10171, %v10170
      %v10199 = vpack.c.b16 %v10173, %v10172
      %v10200 = vpack.c.b16 %v10175, %v10174
      %v10201 = vpack.c.b16 %v10176, %v10176
      %v10203 = vshrl.u32 %v10177, 16
      %v10205 = vshll.u32 %v10177, 16
      %v10207 = vrot.slane %v10205, 1
      %v10208 = vor.u32 %v10203, %v10207
      %v10210 = vshll.u32 %v10178, 16
      %v10212 = vrot.slane %v10210, 1
      %v10213 = vsel %vm9471, %v10208, %v10212
      %v10214 = vshrl.u32 %v10178, 16
      %v10216 = vor.u32 %v10214, %v10212
      %v10218 = vshll.u32 %v10179, 16
      %v10220 = vrot.slane %v10218, 1
      %v10221 = vsel %vm9471, %v10216, %v10220
      %v10222 = vshrl.u32 %v10179, 16
      %v10224 = vor.u32 %v10222, %v10220
      %v10226 = vshll.u32 %v10180, 16
      %v10228 = vrot.slane %v10226, 1
      %v10229 = vsel %vm9471, %v10224, %v10228
      %v10230 = vshrl.u32 %v10180, 16
      %v10232 = vor.u32 %v10230, %v10228
      %v10234 = vshll.u32 %v10181, 16
      %v10236 = vrot.slane %v10234, 1
      %v10237 = vsel %vm9471, %v10232, %v10236
      %v10238 = vshrl.u32 %v10181, 16
      %v10240 = vor.u32 %v10238, %v10236
      %v10242 = vshll.u32 %v10182, 16
      %v10244 = vrot.slane %v10242, 1
      %v10245 = vsel %vm9471, %v10240, %v10244
      %v10246 = vshrl.u32 %v10182, 16
      %v10248 = vor.u32 %v10246, %v10244
      %v10250 = vshll.u32 %v10183, 16
      %v10252 = vrot.slane %v10250, 1
      %v10253 = vsel %vm9471, %v10248, %v10252
      %v10254 = vshrl.u32 %v10183, 16
      %v10256 = vor.u32 %v10254, %v10252
      %v10258 = vshll.u32 %v10184, 16
      %v10260 = vrot.slane %v10258, 1
      %v10261 = vsel %vm9471, %v10256, %v10260
      %v10262 = vshrl.u32 %v10184, 16
      %v10264 = vor.u32 %v10262, %v10260
      %v10266 = vshll.u32 %v10185, 16
      %v10268 = vrot.slane %v10266, 1
      %v10269 = vsel %vm9471, %v10264, %v10268
      %v10270 = vshrl.u32 %v10185, 16
      %v10272 = vor.u32 %v10270, %v10268
      %v10274 = vshll.u32 %v10186, 16
      %v10276 = vrot.slane %v10274, 1
      %v10277 = vsel %vm9471, %v10272, %v10276
      %v10278 = vshrl.u32 %v10186, 16
      %v10280 = vor.u32 %v10278, %v10276
      %v10282 = vshll.u32 %v10187, 16
      %v10284 = vrot.slane %v10282, 1
      %v10285 = vsel %vm9471, %v10280, %v10284
      %v10286 = vshrl.u32 %v10187, 16
      %v10288 = vor.u32 %v10286, %v10284
      %v10290 = vshll.u32 %v10188, 16
      %v10292 = vrot.slane %v10290, 1
      %v10293 = vsel %vm9471, %v10288, %v10292
      %v10294 = vshrl.u32 %v10188, 16
      %v10296 = vor.u32 %v10294, %v10292
      %v10298 = vshll.u32 %v10189, 16
      %v10300 = vrot.slane %v10298, 1
      %v10301 = vsel %vm9471, %v10296, %v10300
      %v10302 = vshrl.u32 %v10189, 16
      %v10304 = vor.u32 %v10302, %v10300
      %v10306 = vshll.u32 %v10190, 16
      %v10308 = vrot.slane %v10306, 1
      %v10309 = vsel %vm9471, %v10304, %v10308
      %v10310 = vshrl.u32 %v10190, 16
      %v10312 = vor.u32 %v10310, %v10308
      %v10314 = vshll.u32 %v10191, 16
      %v10316 = vrot.slane %v10314, 1
      %v10317 = vsel %vm9471, %v10312, %v10316
      %v10318 = vshrl.u32 %v10191, 16
      %v10320 = vor.u32 %v10318, %v10316
      %v10322 = vshll.u32 %v10192, 16
      %v10324 = vrot.slane %v10322, 1
      %v10325 = vsel %vm9471, %v10320, %v10324
      %v10326 = vshrl.u32 %v10192, 16
      %v10328 = vor.u32 %v10326, %v10324
      %v10330 = vshll.u32 %v10193, 16
      %v10332 = vrot.slane %v10330, 1
      %v10333 = vsel %vm9471, %v10328, %v10332
      %v10334 = vshrl.u32 %v10193, 16
      %v10336 = vor.u32 %v10334, %v10332
      %v10338 = vshll.u32 %v10194, 16
      %v10340 = vrot.slane %v10338, 1
      %v10341 = vsel %vm9471, %v10336, %v10340
      %v10342 = vshrl.u32 %v10194, 16
      %v10344 = vor.u32 %v10342, %v10340
      %v10346 = vshll.u32 %v10195, 16
      %v10348 = vrot.slane %v10346, 1
      %v10349 = vsel %vm9471, %v10344, %v10348
      %v10350 = vshrl.u32 %v10195, 16
      %v10352 = vor.u32 %v10350, %v10348
      %v10354 = vshll.u32 %v10196, 16
      %v10356 = vrot.slane %v10354, 1
      %v10357 = vsel %vm9471, %v10352, %v10356
      %v10358 = vshrl.u32 %v10196, 16
      %v10360 = vor.u32 %v10358, %v10356
      %v10362 = vshll.u32 %v10197, 16
      %v10364 = vrot.slane %v10362, 1
      %v10365 = vsel %vm9471, %v10360, %v10364
      %v10366 = vshrl.u32 %v10197, 16
      %v10368 = vor.u32 %v10366, %v10364
      %v10370 = vshll.u32 %v10198, 16
      %v10372 = vrot.slane %v10370, 1
      %v10373 = vsel %vm9471, %v10368, %v10372
      %v10374 = vshrl.u32 %v10198, 16
      %v10376 = vor.u32 %v10374, %v10372
      %v10378 = vshll.u32 %v10199, 16
      %v10380 = vrot.slane %v10378, 1
      %v10381 = vsel %vm9471, %v10376, %v10380
      %v10382 = vshrl.u32 %v10199, 16
      %v10384 = vor.u32 %v10382, %v10380
      %v10386 = vshll.u32 %v10200, 16
      %v10388 = vrot.slane %v10386, 1
      %v10389 = vsel %vm9471, %v10384, %v10388
      %v10390 = vshrl.u32 %v10200, 16
      %v10392 = vor.u32 %v10390, %v10388
      %v10394 = vshll.u32 %v10201, 16
      %v10396 = vrot.slane %v10394, 1
      %v10397 = vsel %vm9471, %v10392, %v10396
      %v10438 = vunpack.c.l.b16 %v10063
      %v10439 = vunpack.c.l.b16 %v10064
      %v10440 = vunpack.c.l.b16 %v10065
      %v10441 = vunpack.c.l.b16 %v10066
      %v10442 = vunpack.c.l.b16 %v10067
      %v10443 = vunpack.c.l.b16 %v10068
      %v10444 = vunpack.c.l.b16 %v10069
      %v10445 = vunpack.c.l.b16 %v10070
      %v10446 = vunpack.c.l.b16 %v10071
      %v10447 = vunpack.c.l.b16 %v10072
      %v10448 = vunpack.c.l.b16 %v10073
      %v10449 = vunpack.c.l.b16 %v10074
      %v10450 = vunpack.c.l.b16 %v10075
      %v10451 = vunpack.c.l.b16 %v10076
      %v10452 = vunpack.c.l.b16 %v10077
      %v10453 = vunpack.c.l.b16 %v10078
      %v10454 = vpack.c.b16 %v10439, %v10438
      %v10455 = vpack.c.b16 %v10441, %v10440
      %v10456 = vpack.c.b16 %v10443, %v10442
      %v10457 = vpack.c.b16 %v10445, %v10444
      %v10458 = vpack.c.b16 %v10447, %v10446
      %v10459 = vpack.c.b16 %v10449, %v10448
      %v10460 = vpack.c.b16 %v10451, %v10450
      %v10461 = vpack.c.b16 %v10453, %v10452
      %10470 = vmatprep.subr.bf16.mxu0 0
      %10471 = vmatpush1.bf16.msra.mxu0 %v10461
      %10472 = vmatprep.subr.bf16.mxu0 0
      %10473 = vmatpush1.bf16.msra.mxu0 %v10460
      %10474 = vmatprep.subr.bf16.mxu0 0
      %10475 = vmatpush1.bf16.msra.mxu0 %v10459
      %10476 = vmatprep.subr.bf16.mxu0 0
      %10477 = vmatpush1.bf16.msra.mxu0 %v10458
      %10478 = vmatprep.subr.bf16.mxu0 0
      %10479 = vmatpush1.bf16.msra.mxu0 %v10457
      %10480 = vmatprep.subr.bf16.mxu0 0
      %10481 = vmatpush1.bf16.msra.mxu0 %v10456
      %10482 = vmatprep.subr.bf16.mxu0 0
      %10483 = vmatpush1.bf16.msra.mxu0 %v10455
      %10484 = vmatprep.subr.bf16.mxu0 0
      %10485 = vmatpush1.bf16.msra.mxu0 %v10454
      %10486 = vmatprep.subr.bf16.mxu0 0
      %10487 = vmatpush2.bf16.msra.mxu0 0
      %10488 = vmatprep.subr.bf16.mxu0 0
      %10489 = vmatpush2.bf16.msra.mxu0 0
      %10490 = vmatprep.subr.bf16.mxu0 0
      %10491 = vmatpush2.bf16.msra.mxu0 0
      %10492 = vmatprep.subr.bf16.mxu0 0
      %10493 = vmatpush2.bf16.msra.mxu0 0
      %10494 = vmatprep.subr.bf16.mxu0 0
      %10495 = vmatpush2.bf16.msra.mxu0 0
      %10496 = vmatprep.subr.bf16.mxu0 0
      %10497 = vmatpush2.bf16.msra.mxu0 0
      %10498 = vmatprep.subr.bf16.mxu0 0
      %10499 = vmatpush2.bf16.msra.mxu0 0
      %10500 = vmatprep.subr.bf16.mxu0 0
      %10501 = vmatpush2.bf16.msra.mxu0 0
      %10502 = vmatprep.mubr.bf16.mxu0 0
      %10503 = vmatmul.mubr.bf16.gmra.mxu0 %v10213
      %v10504 = vpop.f32.mrf.mxu0
      %v10505 = vadd.f32 0.0, %v10504
      %v10506 = vpop.f32.mrf.mxu0
      %v10507 = vpop.f32.mrf.mxu0
      %v10508 = vadd.f32 0.0, %v10507
      %v10509 = vpop.f32.mrf.mxu0
      %10510 = vmatprep.mubr.bf16.mxu0 0
      %10511 = vmatmul.mubr.bf16.gmra.mxu0 %v10221
      %v10512 = vpop.f32.mrf.mxu0
      %v10513 = vadd.f32 0.0, %v10512
      %v10514 = vpop.f32.mrf.mxu0
      %v10515 = vpop.f32.mrf.mxu0
      %v10516 = vadd.f32 0.0, %v10515
      %v10517 = vpop.f32.mrf.mxu0
      %10518 = vmatprep.mubr.bf16.mxu0 0
      %10519 = vmatmul.mubr.bf16.gmra.mxu0 %v10229
      %v10520 = vpop.f32.mrf.mxu0
      %v10521 = vadd.f32 0.0, %v10520
      %v10522 = vpop.f32.mrf.mxu0
      %v10523 = vpop.f32.mrf.mxu0
      %v10524 = vadd.f32 0.0, %v10523
      %v10525 = vpop.f32.mrf.mxu0
      %10526 = vmatprep.mubr.bf16.mxu0 0
      %10527 = vmatmul.mubr.bf16.gmra.mxu0 %v10237
      %v10528 = vpop.f32.mrf.mxu0
      %v10529 = vadd.f32 0.0, %v10528
      %v10530 = vpop.f32.mrf.mxu0
      %v10531 = vpop.f32.mrf.mxu0
      %v10532 = vadd.f32 0.0, %v10531
      %v10533 = vpop.f32.mrf.mxu0
      %10534 = vmatprep.mubr.bf16.mxu0 0
      %10535 = vmatmul.mubr.bf16.gmra.mxu0 %v10245
      %v10536 = vpop.f32.mrf.mxu0
      %v10537 = vadd.f32 0.0, %v10536
      %v10538 = vpop.f32.mrf.mxu0
      %v10539 = vpop.f32.mrf.mxu0
      %v10540 = vadd.f32 0.0, %v10539
      %v10541 = vpop.f32.mrf.mxu0
      %10542 = vmatprep.mubr.bf16.mxu0 0
      %10543 = vmatmul.mubr.bf16.gmra.mxu0 %v10253
      %v10544 = vpop.f32.mrf.mxu0
      %v10545 = vadd.f32 0.0, %v10544
      %v10546 = vpop.f32.mrf.mxu0
      %v10547 = vpop.f32.mrf.mxu0
      %v10548 = vadd.f32 0.0, %v10547
      %v10549 = vpop.f32.mrf.mxu0
      %10550 = vmatprep.mubr.bf16.mxu0 0
      %10551 = vmatmul.mubr.bf16.gmra.mxu0 %v10261
      %v10552 = vpop.f32.mrf.mxu0
      %v10553 = vadd.f32 0.0, %v10552
      %v10554 = vpop.f32.mrf.mxu0
      %v10555 = vpop.f32.mrf.mxu0
      %v10556 = vadd.f32 0.0, %v10555
      %v10557 = vpop.f32.mrf.mxu0
      %10558 = vmatprep.mubr.bf16.mxu0 0
      %10559 = vmatmul.mubr.bf16.gmra.mxu0 %v10269
      %v10560 = vpop.f32.mrf.mxu0
      %v10561 = vadd.f32 0.0, %v10560
      %v10562 = vpop.f32.mrf.mxu0
      %v10563 = vpop.f32.mrf.mxu0
      %v10564 = vadd.f32 0.0, %v10563
      %v10565 = vpop.f32.mrf.mxu0
      %10566 = vmatprep.mubr.bf16.mxu0 0
      %10567 = vmatmul.mubr.bf16.gmra.mxu0 %v10277
      %v10568 = vpop.f32.mrf.mxu0
      %v10569 = vadd.f32 0.0, %v10568
      %v10570 = vpop.f32.mrf.mxu0
      %v10571 = vpop.f32.mrf.mxu0
      %v10572 = vadd.f32 0.0, %v10571
      %v10573 = vpop.f32.mrf.mxu0
      %10574 = vmatprep.mubr.bf16.mxu0 0
      %10575 = vmatmul.mubr.bf16.gmra.mxu0 %v10285
      %v10576 = vpop.f32.mrf.mxu0
      %v10577 = vadd.f32 0.0, %v10576
      %v10578 = vpop.f32.mrf.mxu0
      %v10579 = vpop.f32.mrf.mxu0
      %v10580 = vadd.f32 0.0, %v10579
      %v10581 = vpop.f32.mrf.mxu0
      %10582 = vmatprep.mubr.bf16.mxu0 0
      %10583 = vmatmul.mubr.bf16.gmra.mxu0 %v10293
      %v10584 = vpop.f32.mrf.mxu0
      %v10585 = vadd.f32 0.0, %v10584
      %v10586 = vpop.f32.mrf.mxu0
      %v10587 = vpop.f32.mrf.mxu0
      %v10588 = vadd.f32 0.0, %v10587
      %v10589 = vpop.f32.mrf.mxu0
      %10590 = vmatprep.mubr.bf16.mxu0 0
      %10591 = vmatmul.mubr.bf16.gmra.mxu0 %v10301
      %v10592 = vpop.f32.mrf.mxu0
      %v10593 = vadd.f32 0.0, %v10592
      %v10594 = vpop.f32.mrf.mxu0
      %v10595 = vpop.f32.mrf.mxu0
      %v10596 = vadd.f32 0.0, %v10595
      %v10597 = vpop.f32.mrf.mxu0
      %10598 = vmatprep.mubr.bf16.mxu0 0
      %10599 = vmatmul.mubr.bf16.gmra.mxu0 %v10309
      %v10600 = vpop.f32.mrf.mxu0
      %v10601 = vadd.f32 0.0, %v10600
      %v10602 = vpop.f32.mrf.mxu0
      %v10603 = vpop.f32.mrf.mxu0
      %v10604 = vadd.f32 0.0, %v10603
      %v10605 = vpop.f32.mrf.mxu0
      %10606 = vmatprep.mubr.bf16.mxu0 0
      %10607 = vmatmul.mubr.bf16.gmra.mxu0 %v10317
      %v10608 = vpop.f32.mrf.mxu0
      %v10609 = vadd.f32 0.0, %v10608
      %v10610 = vpop.f32.mrf.mxu0
      %v10611 = vpop.f32.mrf.mxu0
      %v10612 = vadd.f32 0.0, %v10611
      %v10613 = vpop.f32.mrf.mxu0
      %10614 = vmatprep.mubr.bf16.mxu0 0
      %10615 = vmatmul.mubr.bf16.gmra.mxu0 %v10325
      %v10616 = vpop.f32.mrf.mxu0
      %v10617 = vadd.f32 0.0, %v10616
      %v10618 = vpop.f32.mrf.mxu0
      %v10619 = vpop.f32.mrf.mxu0
      %v10620 = vadd.f32 0.0, %v10619
      %v10621 = vpop.f32.mrf.mxu0
      %10622 = vmatprep.mubr.bf16.mxu0 0
      %10623 = vmatmul.mubr.bf16.gmra.mxu0 %v10333
      %v10624 = vpop.f32.mrf.mxu0
      %v10625 = vadd.f32 0.0, %v10624
      %v10626 = vpop.f32.mrf.mxu0
      %v10627 = vpop.f32.mrf.mxu0
      %v10628 = vadd.f32 0.0, %v10627
      %v10629 = vpop.f32.mrf.mxu0
      %10630 = vmatprep.mubr.bf16.mxu0 0
      %10631 = vmatmul.mubr.bf16.gmra.mxu0 %v10341
      %v10632 = vpop.f32.mrf.mxu0
      %v10633 = vadd.f32 0.0, %v10632
      %v10634 = vpop.f32.mrf.mxu0
      %v10635 = vpop.f32.mrf.mxu0
      %v10636 = vadd.f32 0.0, %v10635
      %v10637 = vpop.f32.mrf.mxu0
      %10638 = vmatprep.mubr.bf16.mxu0 0
      %10639 = vmatmul.mubr.bf16.gmra.mxu0 %v10349
      %v10640 = vpop.f32.mrf.mxu0
      %v10641 = vadd.f32 0.0, %v10640
      %v10642 = vpop.f32.mrf.mxu0
      %v10643 = vpop.f32.mrf.mxu0
      %v10644 = vadd.f32 0.0, %v10643
      %v10645 = vpop.f32.mrf.mxu0
      %10646 = vmatprep.mubr.bf16.mxu0 0
      %10647 = vmatmul.mubr.bf16.gmra.mxu0 %v10357
      %v10648 = vpop.f32.mrf.mxu0
      %v10649 = vadd.f32 0.0, %v10648
      %v10650 = vpop.f32.mrf.mxu0
      %v10651 = vpop.f32.mrf.mxu0
      %v10652 = vadd.f32 0.0, %v10651
      %v10653 = vpop.f32.mrf.mxu0
      %10654 = vmatprep.mubr.bf16.mxu0 0
      %10655 = vmatmul.mubr.bf16.gmra.mxu0 %v10365
      %v10656 = vpop.f32.mrf.mxu0
      %v10657 = vadd.f32 0.0, %v10656
      %v10658 = vpop.f32.mrf.mxu0
      %v10659 = vpop.f32.mrf.mxu0
      %v10660 = vadd.f32 0.0, %v10659
      %v10661 = vpop.f32.mrf.mxu0
      %10662 = vmatprep.mubr.bf16.mxu0 0
      %10663 = vmatmul.mubr.bf16.gmra.mxu0 %v10373
      %v10664 = vpop.f32.mrf.mxu0
      %v10665 = vadd.f32 0.0, %v10664
      %v10666 = vpop.f32.mrf.mxu0
      %v10667 = vpop.f32.mrf.mxu0
      %v10668 = vadd.f32 0.0, %v10667
      %v10669 = vpop.f32.mrf.mxu0
      %10670 = vmatprep.mubr.bf16.mxu0 0
      %10671 = vmatmul.mubr.bf16.gmra.mxu0 %v10381
      %v10672 = vpop.f32.mrf.mxu0
      %v10673 = vadd.f32 0.0, %v10672
      %v10674 = vpop.f32.mrf.mxu0
      %v10675 = vpop.f32.mrf.mxu0
      %v10676 = vadd.f32 0.0, %v10675
      %v10677 = vpop.f32.mrf.mxu0
      %10678 = vmatprep.mubr.bf16.mxu0 0
      %10679 = vmatmul.mubr.bf16.gmra.mxu0 %v10389
      %v10680 = vpop.f32.mrf.mxu0
      %v10681 = vadd.f32 0.0, %v10680
      %v10682 = vpop.f32.mrf.mxu0
      %v10683 = vpop.f32.mrf.mxu0
      %v10684 = vadd.f32 0.0, %v10683
      %v10685 = vpop.f32.mrf.mxu0
      %10686 = vmatprep.mubr.bf16.mxu0 0
      %10687 = vmatmul.mubr.bf16.gmra.mxu0 %v10397
      %v10688 = vpop.f32.mrf.mxu0
      %v10689 = vadd.f32 0.0, %v10688
      %v10690 = vpop.f32.mrf.mxu0
      %v10691 = vpop.f32.mrf.mxu0
      %v10692 = vadd.f32 0.0, %v10691
      %v10693 = vpop.f32.mrf.mxu0
      %10694 = vdwg.mxu0
      %v10695 = vadd.f32 %v9965, %v10505
      %v10696 = vadd.f32 %v9966, %v10508
      %v10697 = vadd.f32 %v9967, %v10513
      %v10698 = vadd.f32 %v9968, %v10516
      %v10699 = vadd.f32 %v9969, %v10521
      %v10700 = vadd.f32 %v9970, %v10524
      %v10701 = vadd.f32 %v9971, %v10529
      %v10702 = vadd.f32 %v9972, %v10532
      %v10703 = vadd.f32 %v9973, %v10537
      %v10704 = vadd.f32 %v9974, %v10540
      %v10705 = vadd.f32 %v9975, %v10545
      %v10706 = vadd.f32 %v9976, %v10548
      %v10707 = vadd.f32 %v9977, %v10553
      %v10708 = vadd.f32 %v9978, %v10556
      %v10709 = vadd.f32 %v9979, %v10561
      %v10710 = vadd.f32 %v9980, %v10564
      %v10711 = vadd.f32 %v9981, %v10569
      %v10712 = vadd.f32 %v9982, %v10572
      %v10713 = vadd.f32 %v9983, %v10577
      %v10714 = vadd.f32 %v9984, %v10580
      %v10715 = vadd.f32 %v9985, %v10585
      %v10716 = vadd.f32 %v9986, %v10588
      %v10717 = vadd.f32 %v9987, %v10593
      %v10718 = vadd.f32 %v9988, %v10596
      %v10719 = vadd.f32 %v9989, %v10601
      %v10720 = vadd.f32 %v9990, %v10604
      %v10721 = vadd.f32 %v9991, %v10609
      %v10722 = vadd.f32 %v9992, %v10612
      %v10723 = vadd.f32 %v9993, %v10617
      %v10724 = vadd.f32 %v9994, %v10620
      %v10725 = vadd.f32 %v9995, %v10625
      %v10726 = vadd.f32 %v9996, %v10628
      %v10727 = vadd.f32 %v9997, %v10633
      %v10728 = vadd.f32 %v9998, %v10636
      %v10729 = vadd.f32 %v9999, %v10641
      %v10730 = vadd.f32 %v10000, %v10644
      %v10731 = vadd.f32 %v10001, %v10649
      %v10732 = vadd.f32 %v10002, %v10652
      %v10733 = vadd.f32 %v10003, %v10657
      %v10734 = vadd.f32 %v10004, %v10660
      %v10735 = vadd.f32 %v10005, %v10665
      %v10736 = vadd.f32 %v10006, %v10668
      %v10737 = vadd.f32 %v10007, %v10673
      %v10738 = vadd.f32 %v10008, %v10676
      %v10739 = vadd.f32 %v10009, %v10681
      %v10740 = vadd.f32 %v10010, %v10684
      %v10741 = vadd.f32 %v10011, %v10689
      %v10742 = vadd.f32 %v10012, %v10692
      %v10743 = vld [vmem:[#allocation3 + $0x14] sm:$0xe]
      %s10744 = scalar_lea.vmem %s4, 448
      %v10745 = vld [vmem:[%s10744] sm:$0xf]
      %v10746 = vld [vmem:[%s10744 + $0x4] sm:$0xf]
      %v10747 = vld [vmem:[%s10744 + $0x8] sm:$0xf]
      %v10748 = vld [vmem:[%s10744 + $0xc] sm:$0xf]
      %v10749 = vld [vmem:[%s10744 + $0x10] sm:$0xf]
      %v10750 = vld [vmem:[%s10744 + $0x14] sm:$0xf]
      %v10751 = vld [vmem:[%s10744 + $0x18] sm:$0xf]
      %v10752 = vld [vmem:[%s10744 + $0x1c] sm:$0xf]
      %v10753 = vld [vmem:[%s10744 + $0x20] sm:$0xf]
      %v10754 = vld [vmem:[%s10744 + $0x24] sm:$0xf]
      %v10755 = vld [vmem:[%s10744 + $0x28] sm:$0xf]
      %v10756 = vld [vmem:[%s10744 + $0x2c] sm:$0xf]
      %v10757 = vld [vmem:[%s10744 + $0x30] sm:$0xf]
      %v10758 = vld [vmem:[%s10744 + $0x34] sm:$0xf]
      %v10759 = vld [vmem:[%s10744 + $0x38] sm:$0xf]
      %v10760 = vld [vmem:[%s10744 + $0x3c] sm:$0xf]
      %v10762 = vunpack.c.l.b16 %v10743
      %v10763 = vpack.c.b16 %v10129, %v10762
      %vm10764 = vcmask 1046528
      %v10765 = vrot.slane %v10763, 1
      %v10766 = vrot.slane %v10178, 1
      %v10767 = vsel %vm10764, %v10765, %v10766
      %v10768 = vrot.slane %v10179, 1
      %v10769 = vsel %vm10764, %v10766, %v10768
      %v10770 = vrot.slane %v10180, 1
      %v10771 = vsel %vm10764, %v10768, %v10770
      %v10772 = vrot.slane %v10181, 1
      %v10773 = vsel %vm10764, %v10770, %v10772
      %v10774 = vrot.slane %v10182, 1
      %v10775 = vsel %vm10764, %v10772, %v10774
      %v10776 = vrot.slane %v10183, 1
      %v10777 = vsel %vm10764, %v10774, %v10776
      %v10778 = vrot.slane %v10184, 1
      %v10779 = vsel %vm10764, %v10776, %v10778
      %v10780 = vrot.slane %v10185, 1
      %v10781 = vsel %vm10764, %v10778, %v10780
      %v10782 = vrot.slane %v10186, 1
      %v10783 = vsel %vm10764, %v10780, %v10782
      %v10784 = vrot.slane %v10187, 1
      %v10785 = vsel %vm10764, %v10782, %v10784
      %v10786 = vrot.slane %v10188, 1
      %v10787 = vsel %vm10764, %v10784, %v10786
      %v10788 = vrot.slane %v10189, 1
      %v10789 = vsel %vm10764, %v10786, %v10788
      %v10790 = vrot.slane %v10190, 1
      %v10791 = vsel %vm10764, %v10788, %v10790
      %v10792 = vrot.slane %v10191, 1
      %v10793 = vsel %vm10764, %v10790, %v10792
      %v10794 = vrot.slane %v10192, 1
      %v10795 = vsel %vm10764, %v10792, %v10794
      %v10796 = vrot.slane %v10193, 1
      %v10797 = vsel %vm10764, %v10794, %v10796
      %v10798 = vrot.slane %v10194, 1
      %v10799 = vsel %vm10764, %v10796, %v10798
      %v10800 = vrot.slane %v10195, 1
      %v10801 = vsel %vm10764, %v10798, %v10800
      %v10802 = vrot.slane %v10196, 1
      %v10803 = vsel %vm10764, %v10800, %v10802
      %v10804 = vrot.slane %v10197, 1
      %v10805 = vsel %vm10764, %v10802, %v10804
      %v10806 = vrot.slane %v10198, 1
      %v10807 = vsel %vm10764, %v10804, %v10806
      %v10808 = vrot.slane %v10199, 1
      %v10809 = vsel %vm10764, %v10806, %v10808
      %v10810 = vrot.slane %v10200, 1
      %v10811 = vsel %vm10764, %v10808, %v10810
      %v10812 = vrot.slane %v10201, 1
      %v10813 = vsel %vm10764, %v10810, %v10812
      %v10854 = vunpack.c.l.b16 %v10745
      %v10855 = vunpack.c.l.b16 %v10746
      %v10856 = vunpack.c.l.b16 %v10747
      %v10857 = vunpack.c.l.b16 %v10748
      %v10858 = vunpack.c.l.b16 %v10749
      %v10859 = vunpack.c.l.b16 %v10750
      %v10860 = vunpack.c.l.b16 %v10751
      %v10861 = vunpack.c.l.b16 %v10752
      %v10862 = vunpack.c.l.b16 %v10753
      %v10863 = vunpack.c.l.b16 %v10754
      %v10864 = vunpack.c.l.b16 %v10755
      %v10865 = vunpack.c.l.b16 %v10756
      %v10866 = vunpack.c.l.b16 %v10757
      %v10867 = vunpack.c.l.b16 %v10758
      %v10868 = vunpack.c.l.b16 %v10759
      %v10869 = vunpack.c.l.b16 %v10760
      %v10870 = vpack.c.b16 %v10855, %v10854
      %v10871 = vpack.c.b16 %v10857, %v10856
      %v10872 = vpack.c.b16 %v10859, %v10858
      %v10873 = vpack.c.b16 %v10861, %v10860
      %v10874 = vpack.c.b16 %v10863, %v10862
      %v10875 = vpack.c.b16 %v10865, %v10864
      %v10876 = vpack.c.b16 %v10867, %v10866
      %v10877 = vpack.c.b16 %v10869, %v10868
      %10886 = vmatprep.subr.bf16.mxu0 0
      %10887 = vmatpush1.bf16.msra.mxu0 %v10877
      %10888 = vmatprep.subr.bf16.mxu0 0
      %10889 = vmatpush1.bf16.msra.mxu0 %v10876
      %10890 = vmatprep.subr.bf16.mxu0 0
      %10891 = vmatpush1.bf16.msra.mxu0 %v10875
      %10892 = vmatprep.subr.bf16.mxu0 0
      %10893 = vmatpush1.bf16.msra.mxu0 %v10874
      %10894 = vmatprep.subr.bf16.mxu0 0
      %10895 = vmatpush1.bf16.msra.mxu0 %v10873
      %10896 = vmatprep.subr.bf16.mxu0 0
      %10897 = vmatpush1.bf16.msra.mxu0 %v10872
      %10898 = vmatprep.subr.bf16.mxu0 0
      %10899 = vmatpush1.bf16.msra.mxu0 %v10871
      %10900 = vmatprep.subr.bf16.mxu0 0
      %10901 = vmatpush1.bf16.msra.mxu0 %v10870
      %10902 = vmatprep.subr.bf16.mxu0 0
      %10903 = vmatpush2.bf16.msra.mxu0 0
      %10904 = vmatprep.subr.bf16.mxu0 0
      %10905 = vmatpush2.bf16.msra.mxu0 0
      %10906 = vmatprep.subr.bf16.mxu0 0
      %10907 = vmatpush2.bf16.msra.mxu0 0
      %10908 = vmatprep.subr.bf16.mxu0 0
      %10909 = vmatpush2.bf16.msra.mxu0 0
      %10910 = vmatprep.subr.bf16.mxu0 0
      %10911 = vmatpush2.bf16.msra.mxu0 0
      %10912 = vmatprep.subr.bf16.mxu0 0
      %10913 = vmatpush2.bf16.msra.mxu0 0
      %10914 = vmatprep.subr.bf16.mxu0 0
      %10915 = vmatpush2.bf16.msra.mxu0 0
      %10916 = vmatprep.subr.bf16.mxu0 0
      %10917 = vmatpush2.bf16.msra.mxu0 0
      %10918 = vmatprep.mubr.bf16.mxu0 0
      %10919 = vmatmul.mubr.bf16.gmra.mxu0 %v10767
      %v10920 = vpop.f32.mrf.mxu0
      %v10921 = vadd.f32 0.0, %v10920
      %v10922 = vpop.f32.mrf.mxu0
      %v10923 = vpop.f32.mrf.mxu0
      %v10924 = vadd.f32 0.0, %v10923
      %v10925 = vpop.f32.mrf.mxu0
      %10926 = vmatprep.mubr.bf16.mxu0 0
      %10927 = vmatmul.mubr.bf16.gmra.mxu0 %v10769
      %v10928 = vpop.f32.mrf.mxu0
      %v10929 = vadd.f32 0.0, %v10928
      %v10930 = vpop.f32.mrf.mxu0
      %v10931 = vpop.f32.mrf.mxu0
      %v10932 = vadd.f32 0.0, %v10931
      %v10933 = vpop.f32.mrf.mxu0
      %10934 = vmatprep.mubr.bf16.mxu0 0
      %10935 = vmatmul.mubr.bf16.gmra.mxu0 %v10771
      %v10936 = vpop.f32.mrf.mxu0
      %v10937 = vadd.f32 0.0, %v10936
      %v10938 = vpop.f32.mrf.mxu0
      %v10939 = vpop.f32.mrf.mxu0
      %v10940 = vadd.f32 0.0, %v10939
      %v10941 = vpop.f32.mrf.mxu0
      %10942 = vmatprep.mubr.bf16.mxu0 0
      %10943 = vmatmul.mubr.bf16.gmra.mxu0 %v10773
      %v10944 = vpop.f32.mrf.mxu0
      %v10945 = vadd.f32 0.0, %v10944
      %v10946 = vpop.f32.mrf.mxu0
      %v10947 = vpop.f32.mrf.mxu0
      %v10948 = vadd.f32 0.0, %v10947
      %v10949 = vpop.f32.mrf.mxu0
      %10950 = vmatprep.mubr.bf16.mxu0 0
      %10951 = vmatmul.mubr.bf16.gmra.mxu0 %v10775
      %v10952 = vpop.f32.mrf.mxu0
      %v10953 = vadd.f32 0.0, %v10952
      %v10954 = vpop.f32.mrf.mxu0
      %v10955 = vpop.f32.mrf.mxu0
      %v10956 = vadd.f32 0.0, %v10955
      %v10957 = vpop.f32.mrf.mxu0
      %10958 = vmatprep.mubr.bf16.mxu0 0
      %10959 = vmatmul.mubr.bf16.gmra.mxu0 %v10777
      %v10960 = vpop.f32.mrf.mxu0
      %v10961 = vadd.f32 0.0, %v10960
      %v10962 = vpop.f32.mrf.mxu0
      %v10963 = vpop.f32.mrf.mxu0
      %v10964 = vadd.f32 0.0, %v10963
      %v10965 = vpop.f32.mrf.mxu0
      %10966 = vmatprep.mubr.bf16.mxu0 0
      %10967 = vmatmul.mubr.bf16.gmra.mxu0 %v10779
      %v10968 = vpop.f32.mrf.mxu0
      %v10969 = vadd.f32 0.0, %v10968
      %v10970 = vpop.f32.mrf.mxu0
      %v10971 = vpop.f32.mrf.mxu0
      %v10972 = vadd.f32 0.0, %v10971
      %v10973 = vpop.f32.mrf.mxu0
      %10974 = vmatprep.mubr.bf16.mxu0 0
      %10975 = vmatmul.mubr.bf16.gmra.mxu0 %v10781
      %v10976 = vpop.f32.mrf.mxu0
      %v10977 = vadd.f32 0.0, %v10976
      %v10978 = vpop.f32.mrf.mxu0
      %v10979 = vpop.f32.mrf.mxu0
      %v10980 = vadd.f32 0.0, %v10979
      %v10981 = vpop.f32.mrf.mxu0
      %10982 = vmatprep.mubr.bf16.mxu0 0
      %10983 = vmatmul.mubr.bf16.gmra.mxu0 %v10783
      %v10984 = vpop.f32.mrf.mxu0
      %v10985 = vadd.f32 0.0, %v10984
      %v10986 = vpop.f32.mrf.mxu0
      %v10987 = vpop.f32.mrf.mxu0
      %v10988 = vadd.f32 0.0, %v10987
      %v10989 = vpop.f32.mrf.mxu0
      %10990 = vmatprep.mubr.bf16.mxu0 0
      %10991 = vmatmul.mubr.bf16.gmra.mxu0 %v10785
      %v10992 = vpop.f32.mrf.mxu0
      %v10993 = vadd.f32 0.0, %v10992
      %v10994 = vpop.f32.mrf.mxu0
      %v10995 = vpop.f32.mrf.mxu0
      %v10996 = vadd.f32 0.0, %v10995
      %v10997 = vpop.f32.mrf.mxu0
      %10998 = vmatprep.mubr.bf16.mxu0 0
      %10999 = vmatmul.mubr.bf16.gmra.mxu0 %v10787
      %v11000 = vpop.f32.mrf.mxu0
      %v11001 = vadd.f32 0.0, %v11000
      %v11002 = vpop.f32.mrf.mxu0
      %v11003 = vpop.f32.mrf.mxu0
      %v11004 = vadd.f32 0.0, %v11003
      %v11005 = vpop.f32.mrf.mxu0
      %11006 = vmatprep.mubr.bf16.mxu0 0
      %11007 = vmatmul.mubr.bf16.gmra.mxu0 %v10789
      %v11008 = vpop.f32.mrf.mxu0
      %v11009 = vadd.f32 0.0, %v11008
      %v11010 = vpop.f32.mrf.mxu0
      %v11011 = vpop.f32.mrf.mxu0
      %v11012 = vadd.f32 0.0, %v11011
      %v11013 = vpop.f32.mrf.mxu0
      %11014 = vmatprep.mubr.bf16.mxu0 0
      %11015 = vmatmul.mubr.bf16.gmra.mxu0 %v10791
      %v11016 = vpop.f32.mrf.mxu0
      %v11017 = vadd.f32 0.0, %v11016
      %v11018 = vpop.f32.mrf.mxu0
      %v11019 = vpop.f32.mrf.mxu0
      %v11020 = vadd.f32 0.0, %v11019
      %v11021 = vpop.f32.mrf.mxu0
      %11022 = vmatprep.mubr.bf16.mxu0 0
      %11023 = vmatmul.mubr.bf16.gmra.mxu0 %v10793
      %v11024 = vpop.f32.mrf.mxu0
      %v11025 = vadd.f32 0.0, %v11024
      %v11026 = vpop.f32.mrf.mxu0
      %v11027 = vpop.f32.mrf.mxu0
      %v11028 = vadd.f32 0.0, %v11027
      %v11029 = vpop.f32.mrf.mxu0
      %11030 = vmatprep.mubr.bf16.mxu0 0
      %11031 = vmatmul.mubr.bf16.gmra.mxu0 %v10795
      %v11032 = vpop.f32.mrf.mxu0
      %v11033 = vadd.f32 0.0, %v11032
      %v11034 = vpop.f32.mrf.mxu0
      %v11035 = vpop.f32.mrf.mxu0
      %v11036 = vadd.f32 0.0, %v11035
      %v11037 = vpop.f32.mrf.mxu0
      %11038 = vmatprep.mubr.bf16.mxu0 0
      %11039 = vmatmul.mubr.bf16.gmra.mxu0 %v10797
      %v11040 = vpop.f32.mrf.mxu0
      %v11041 = vadd.f32 0.0, %v11040
      %v11042 = vpop.f32.mrf.mxu0
      %v11043 = vpop.f32.mrf.mxu0
      %v11044 = vadd.f32 0.0, %v11043
      %v11045 = vpop.f32.mrf.mxu0
      %11046 = vmatprep.mubr.bf16.mxu0 0
      %11047 = vmatmul.mubr.bf16.gmra.mxu0 %v10799
      %v11048 = vpop.f32.mrf.mxu0
      %v11049 = vadd.f32 0.0, %v11048
      %v11050 = vpop.f32.mrf.mxu0
      %v11051 = vpop.f32.mrf.mxu0
      %v11052 = vadd.f32 0.0, %v11051
      %v11053 = vpop.f32.mrf.mxu0
      %11054 = vmatprep.mubr.bf16.mxu0 0
      %11055 = vmatmul.mubr.bf16.gmra.mxu0 %v10801
      %v11056 = vpop.f32.mrf.mxu0
      %v11057 = vadd.f32 0.0, %v11056
      %v11058 = vpop.f32.mrf.mxu0
      %v11059 = vpop.f32.mrf.mxu0
      %v11060 = vadd.f32 0.0, %v11059
      %v11061 = vpop.f32.mrf.mxu0
      %11062 = vmatprep.mubr.bf16.mxu0 0
      %11063 = vmatmul.mubr.bf16.gmra.mxu0 %v10803
      %v11064 = vpop.f32.mrf.mxu0
      %v11065 = vadd.f32 0.0, %v11064
      %v11066 = vpop.f32.mrf.mxu0
      %v11067 = vpop.f32.mrf.mxu0
      %v11068 = vadd.f32 0.0, %v11067
      %v11069 = vpop.f32.mrf.mxu0
      %11070 = vmatprep.mubr.bf16.mxu0 0
      %11071 = vmatmul.mubr.bf16.gmra.mxu0 %v10805
      %v11072 = vpop.f32.mrf.mxu0
      %v11073 = vadd.f32 0.0, %v11072
      %v11074 = vpop.f32.mrf.mxu0
      %v11075 = vpop.f32.mrf.mxu0
      %v11076 = vadd.f32 0.0, %v11075
      %v11077 = vpop.f32.mrf.mxu0
      %11078 = vmatprep.mubr.bf16.mxu0 0
      %11079 = vmatmul.mubr.bf16.gmra.mxu0 %v10807
      %v11080 = vpop.f32.mrf.mxu0
      %v11081 = vadd.f32 0.0, %v11080
      %v11082 = vpop.f32.mrf.mxu0
      %v11083 = vpop.f32.mrf.mxu0
      %v11084 = vadd.f32 0.0, %v11083
      %v11085 = vpop.f32.mrf.mxu0
      %11086 = vmatprep.mubr.bf16.mxu0 0
      %11087 = vmatmul.mubr.bf16.gmra.mxu0 %v10809
      %v11088 = vpop.f32.mrf.mxu0
      %v11089 = vadd.f32 0.0, %v11088
      %v11090 = vpop.f32.mrf.mxu0
      %v11091 = vpop.f32.mrf.mxu0
      %v11092 = vadd.f32 0.0, %v11091
      %v11093 = vpop.f32.mrf.mxu0
      %11094 = vmatprep.mubr.bf16.mxu0 0
      %11095 = vmatmul.mubr.bf16.gmra.mxu0 %v10811
      %v11096 = vpop.f32.mrf.mxu0
      %v11097 = vadd.f32 0.0, %v11096
      %v11098 = vpop.f32.mrf.mxu0
      %v11099 = vpop.f32.mrf.mxu0
      %v11100 = vadd.f32 0.0, %v11099
      %v11101 = vpop.f32.mrf.mxu0
      %11102 = vmatprep.mubr.bf16.mxu0 0
      %11103 = vmatmul.mubr.bf16.gmra.mxu0 %v10813
      %v11104 = vpop.f32.mrf.mxu0
      %v11105 = vadd.f32 0.0, %v11104
      %v11106 = vpop.f32.mrf.mxu0
      %v11107 = vpop.f32.mrf.mxu0
      %v11108 = vadd.f32 0.0, %v11107
      %v11109 = vpop.f32.mrf.mxu0
      %11110 = vdwg.mxu0
      %v11111 = vadd.f32 %v10695, %v10921
      %v11112 = vadd.f32 %v10696, %v10924
      %v11113 = vadd.f32 %v10697, %v10929
      %v11114 = vadd.f32 %v10698, %v10932
      %v11115 = vadd.f32 %v10699, %v10937
      %v11116 = vadd.f32 %v10700, %v10940
      %v11117 = vadd.f32 %v10701, %v10945
      %v11118 = vadd.f32 %v10702, %v10948
      %v11119 = vadd.f32 %v10703, %v10953
      %v11120 = vadd.f32 %v10704, %v10956
      %v11121 = vadd.f32 %v10705, %v10961
      %v11122 = vadd.f32 %v10706, %v10964
      %v11123 = vadd.f32 %v10707, %v10969
      %v11124 = vadd.f32 %v10708, %v10972
      %v11125 = vadd.f32 %v10709, %v10977
      %v11126 = vadd.f32 %v10710, %v10980
      %v11127 = vadd.f32 %v10711, %v10985
      %v11128 = vadd.f32 %v10712, %v10988
      %v11129 = vadd.f32 %v10713, %v10993
      %v11130 = vadd.f32 %v10714, %v10996
      %v11131 = vadd.f32 %v10715, %v11001
      %v11132 = vadd.f32 %v10716, %v11004
      %v11133 = vadd.f32 %v10717, %v11009
      %v11134 = vadd.f32 %v10718, %v11012
      %v11135 = vadd.f32 %v10719, %v11017
      %v11136 = vadd.f32 %v10720, %v11020
      %v11137 = vadd.f32 %v10721, %v11025
      %v11138 = vadd.f32 %v10722, %v11028
      %v11139 = vadd.f32 %v10723, %v11033
      %v11140 = vadd.f32 %v10724, %v11036
      %v11141 = vadd.f32 %v10725, %v11041
      %v11142 = vadd.f32 %v10726, %v11044
      %v11143 = vadd.f32 %v10727, %v11049
      %v11144 = vadd.f32 %v10728, %v11052
      %v11145 = vadd.f32 %v10729, %v11057
      %v11146 = vadd.f32 %v10730, %v11060
      %v11147 = vadd.f32 %v10731, %v11065
      %v11148 = vadd.f32 %v10732, %v11068
      %v11149 = vadd.f32 %v10733, %v11073
      %v11150 = vadd.f32 %v10734, %v11076
      %v11151 = vadd.f32 %v10735, %v11081
      %v11152 = vadd.f32 %v10736, %v11084
      %v11153 = vadd.f32 %v10737, %v11089
      %v11154 = vadd.f32 %v10738, %v11092
      %v11155 = vadd.f32 %v10739, %v11097
      %v11156 = vadd.f32 %v10740, %v11100
      %v11157 = vadd.f32 %v10741, %v11105
      %v11158 = vadd.f32 %v10742, %v11108
      %v11159 = vld [vmem:[#allocation3 + $0xd4] sm:$0x3]
      %s11160 = scalar_lea.vmem %s4, 512
      %v11161 = vld [vmem:[%s11160] sm:$0xf]
      %v11162 = vld [vmem:[%s11160 + $0x4] sm:$0xf]
      %v11163 = vld [vmem:[%s11160 + $0x8] sm:$0xf]
      %v11164 = vld [vmem:[%s11160 + $0xc] sm:$0xf]
      %v11165 = vld [vmem:[%s11160 + $0x10] sm:$0xf]
      %v11166 = vld [vmem:[%s11160 + $0x14] sm:$0xf]
      %v11167 = vld [vmem:[%s11160 + $0x18] sm:$0xf]
      %v11168 = vld [vmem:[%s11160 + $0x1c] sm:$0xf]
      %v11169 = vld [vmem:[%s11160 + $0x20] sm:$0xf]
      %v11170 = vld [vmem:[%s11160 + $0x24] sm:$0xf]
      %v11171 = vld [vmem:[%s11160 + $0x28] sm:$0xf]
      %v11172 = vld [vmem:[%s11160 + $0x2c] sm:$0xf]
      %v11173 = vld [vmem:[%s11160 + $0x30] sm:$0xf]
      %v11174 = vld [vmem:[%s11160 + $0x34] sm:$0xf]
      %v11175 = vld [vmem:[%s11160 + $0x38] sm:$0xf]
      %v11176 = vld [vmem:[%s11160 + $0x3c] sm:$0xf]
      %v11178 = vunpack.c.l.b16 %v11159
      %v11179 = vpack.c.b16 %v11178, %v11178
      %vm11180 = vsmask.f32 6400
      %v11182 = vshrl.u32 %v10763, 16
      %v11184 = vrot.slane %v11182, 1
      %v11185 = vshll.u32 %v10763, 16
      %v11187 = vrot.slane %v11185, 2
      %v11188 = vor.u32 %v11184, %v11187
      %v11189 = vrot.slane %v10214, 1
      %v11190 = vrot.slane %v10210, 2
      %v11191 = vor.u32 %v11189, %v11190
      %v11192 = vsel %vm11180, %v11188, %v11191
      %v11193 = vrot.slane %v10222, 1
      %v11194 = vrot.slane %v10218, 2
      %v11195 = vor.u32 %v11193, %v11194
      %v11196 = vsel %vm11180, %v11191, %v11195
      %v11197 = vrot.slane %v10230, 1
      %v11198 = vrot.slane %v10226, 2
      %v11199 = vor.u32 %v11197, %v11198
      %v11200 = vsel %vm11180, %v11195, %v11199
      %v11201 = vrot.slane %v10238, 1
      %v11202 = vrot.slane %v10234, 2
      %v11203 = vor.u32 %v11201, %v11202
      %v11204 = vsel %vm11180, %v11199, %v11203
      %v11205 = vrot.slane %v10246, 1
      %v11206 = vrot.slane %v10242, 2
      %v11207 = vor.u32 %v11205, %v11206
      %v11208 = vsel %vm11180, %v11203, %v11207
      %v11209 = vrot.slane %v10254, 1
      %v11210 = vrot.slane %v10250, 2
      %v11211 = vor.u32 %v11209, %v11210
      %v11212 = vsel %vm11180, %v11207, %v11211
      %v11213 = vrot.slane %v10262, 1
      %v11214 = vrot.slane %v10258, 2
      %v11215 = vor.u32 %v11213, %v11214
      %v11216 = vsel %vm11180, %v11211, %v11215
      %v11217 = vrot.slane %v10270, 1
      %v11218 = vrot.slane %v10266, 2
      %v11219 = vor.u32 %v11217, %v11218
      %v11220 = vsel %vm11180, %v11215, %v11219
      %v11221 = vrot.slane %v10278, 1
      %v11222 = vrot.slane %v10274, 2
      %v11223 = vor.u32 %v11221, %v11222
      %v11224 = vsel %vm11180, %v11219, %v11223
      %v11225 = vrot.slane %v10286, 1
      %v11226 = vrot.slane %v10282, 2
      %v11227 = vor.u32 %v11225, %v11226
      %v11228 = vsel %vm11180, %v11223, %v11227
      %v11229 = vrot.slane %v10294, 1
      %v11230 = vrot.slane %v10290, 2
      %v11231 = vor.u32 %v11229, %v11230
      %v11232 = vsel %vm11180, %v11227, %v11231
      %v11233 = vrot.slane %v10302, 1
      %v11234 = vrot.slane %v10298, 2
      %v11235 = vor.u32 %v11233, %v11234
      %v11236 = vsel %vm11180, %v11231, %v11235
      %v11237 = vrot.slane %v10310, 1
      %v11238 = vrot.slane %v10306, 2
      %v11239 = vor.u32 %v11237, %v11238
      %v11240 = vsel %vm11180, %v11235, %v11239
      %v11241 = vrot.slane %v10318, 1
      %v11242 = vrot.slane %v10314, 2
      %v11243 = vor.u32 %v11241, %v11242
      %v11244 = vsel %vm11180, %v11239, %v11243
      %v11245 = vrot.slane %v10326, 1
      %v11246 = vrot.slane %v10322, 2
      %v11247 = vor.u32 %v11245, %v11246
      %v11248 = vsel %vm11180, %v11243, %v11247
      %v11249 = vrot.slane %v10334, 1
      %v11250 = vrot.slane %v10330, 2
      %v11251 = vor.u32 %v11249, %v11250
      %v11252 = vsel %vm11180, %v11247, %v11251
      %v11253 = vrot.slane %v10342, 1
      %v11254 = vrot.slane %v10338, 2
      %v11255 = vor.u32 %v11253, %v11254
      %v11256 = vsel %vm11180, %v11251, %v11255
      %v11257 = vrot.slane %v10350, 1
      %v11258 = vrot.slane %v10346, 2
      %v11259 = vor.u32 %v11257, %v11258
      %v11260 = vsel %vm11180, %v11255, %v11259
      %v11261 = vrot.slane %v10358, 1
      %v11262 = vrot.slane %v10354, 2
      %v11263 = vor.u32 %v11261, %v11262
      %v11264 = vsel %vm11180, %v11259, %v11263
      %v11265 = vrot.slane %v10366, 1
      %v11266 = vrot.slane %v10362, 2
      %v11267 = vor.u32 %v11265, %v11266
      %v11268 = vsel %vm11180, %v11263, %v11267
      %v11269 = vrot.slane %v10374, 1
      %v11270 = vrot.slane %v10370, 2
      %v11271 = vor.u32 %v11269, %v11270
      %v11272 = vsel %vm11180, %v11267, %v11271
      %v11273 = vrot.slane %v10382, 1
      %v11274 = vrot.slane %v10378, 2
      %v11275 = vor.u32 %v11273, %v11274
      %v11276 = vsel %vm11180, %v11271, %v11275
      %v11277 = vrot.slane %v10390, 1
      %v11278 = vrot.slane %v10386, 2
      %v11279 = vor.u32 %v11277, %v11278
      %v11280 = vsel %vm11180, %v11275, %v11279
      %v11282 = vshrl.u32 %v11179, 16
      %v11284 = vrot.slane %v11282, 1
      %v11285 = vshll.u32 %v11179, 16
      %v11287 = vrot.slane %v11285, 2
      %v11288 = vor.u32 %v11284, %v11287
      %v11289 = vsel %vm11180, %v11279, %v11288
      %v11330 = vunpack.c.l.b16 %v11161
      %v11331 = vunpack.c.l.b16 %v11162
      %v11332 = vunpack.c.l.b16 %v11163
      %v11333 = vunpack.c.l.b16 %v11164
      %v11334 = vunpack.c.l.b16 %v11165
      %v11335 = vunpack.c.l.b16 %v11166
      %v11336 = vunpack.c.l.b16 %v11167
      %v11337 = vunpack.c.l.b16 %v11168
      %v11338 = vunpack.c.l.b16 %v11169
      %v11339 = vunpack.c.l.b16 %v11170
      %v11340 = vunpack.c.l.b16 %v11171
      %v11341 = vunpack.c.l.b16 %v11172
      %v11342 = vunpack.c.l.b16 %v11173
      %v11343 = vunpack.c.l.b16 %v11174
      %v11344 = vunpack.c.l.b16 %v11175
      %v11345 = vunpack.c.l.b16 %v11176
      %v11346 = vpack.c.b16 %v11331, %v11330
      %v11347 = vpack.c.b16 %v11333, %v11332
      %v11348 = vpack.c.b16 %v11335, %v11334
      %v11349 = vpack.c.b16 %v11337, %v11336
      %v11350 = vpack.c.b16 %v11339, %v11338
      %v11351 = vpack.c.b16 %v11341, %v11340
      %v11352 = vpack.c.b16 %v11343, %v11342
      %v11353 = vpack.c.b16 %v11345, %v11344
      %11362 = vmatprep.subr.bf16.mxu0 0
      %11363 = vmatpush1.bf16.msra.mxu0 %v11353
      %11364 = vmatprep.subr.bf16.mxu0 0
      %11365 = vmatpush1.bf16.msra.mxu0 %v11352
      %11366 = vmatprep.subr.bf16.mxu0 0
      %11367 = vmatpush1.bf16.msra.mxu0 %v11351
      %11368 = vmatprep.subr.bf16.mxu0 0
      %11369 = vmatpush1.bf16.msra.mxu0 %v11350
      %11370 = vmatprep.subr.bf16.mxu0 0
      %11371 = vmatpush1.bf16.msra.mxu0 %v11349
      %11372 = vmatprep.subr.bf16.mxu0 0
      %11373 = vmatpush1.bf16.msra.mxu0 %v11348
      %11374 = vmatprep.subr.bf16.mxu0 0
      %11375 = vmatpush1.bf16.msra.mxu0 %v11347
      %11376 = vmatprep.subr.bf16.mxu0 0
      %11377 = vmatpush1.bf16.msra.mxu0 %v11346
      %11378 = vmatprep.subr.bf16.mxu0 0
      %11379 = vmatpush2.bf16.msra.mxu0 0
      %11380 = vmatprep.subr.bf16.mxu0 0
      %11381 = vmatpush2.bf16.msra.mxu0 0
      %11382 = vmatprep.subr.bf16.mxu0 0
      %11383 = vmatpush2.bf16.msra.mxu0 0
      %11384 = vmatprep.subr.bf16.mxu0 0
      %11385 = vmatpush2.bf16.msra.mxu0 0
      %11386 = vmatprep.subr.bf16.mxu0 0
      %11387 = vmatpush2.bf16.msra.mxu0 0
      %11388 = vmatprep.subr.bf16.mxu0 0
      %11389 = vmatpush2.bf16.msra.mxu0 0
      %11390 = vmatprep.subr.bf16.mxu0 0
      %11391 = vmatpush2.bf16.msra.mxu0 0
      %11392 = vmatprep.subr.bf16.mxu0 0
      %11393 = vmatpush2.bf16.msra.mxu0 0
      %11394 = vmatprep.mubr.bf16.mxu0 0
      %11395 = vmatmul.mubr.bf16.gmra.mxu0 %v11192
      %v11396 = vpop.f32.mrf.mxu0
      %v11397 = vadd.f32 0.0, %v11396
      %v11398 = vpop.f32.mrf.mxu0
      %v11399 = vpop.f32.mrf.mxu0
      %v11400 = vadd.f32 0.0, %v11399
      %v11401 = vpop.f32.mrf.mxu0
      %11402 = vmatprep.mubr.bf16.mxu0 0
      %11403 = vmatmul.mubr.bf16.gmra.mxu0 %v11196
      %v11404 = vpop.f32.mrf.mxu0
      %v11405 = vadd.f32 0.0, %v11404
      %v11406 = vpop.f32.mrf.mxu0
      %v11407 = vpop.f32.mrf.mxu0
      %v11408 = vadd.f32 0.0, %v11407
      %v11409 = vpop.f32.mrf.mxu0
      %11410 = vmatprep.mubr.bf16.mxu0 0
      %11411 = vmatmul.mubr.bf16.gmra.mxu0 %v11200
      %v11412 = vpop.f32.mrf.mxu0
      %v11413 = vadd.f32 0.0, %v11412
      %v11414 = vpop.f32.mrf.mxu0
      %v11415 = vpop.f32.mrf.mxu0
      %v11416 = vadd.f32 0.0, %v11415
      %v11417 = vpop.f32.mrf.mxu0
      %11418 = vmatprep.mubr.bf16.mxu0 0
      %11419 = vmatmul.mubr.bf16.gmra.mxu0 %v11204
      %v11420 = vpop.f32.mrf.mxu0
      %v11421 = vadd.f32 0.0, %v11420
      %v11422 = vpop.f32.mrf.mxu0
      %v11423 = vpop.f32.mrf.mxu0
      %v11424 = vadd.f32 0.0, %v11423
      %v11425 = vpop.f32.mrf.mxu0
      %11426 = vmatprep.mubr.bf16.mxu0 0
      %11427 = vmatmul.mubr.bf16.gmra.mxu0 %v11208
      %v11428 = vpop.f32.mrf.mxu0
      %v11429 = vadd.f32 0.0, %v11428
      %v11430 = vpop.f32.mrf.mxu0
      %v11431 = vpop.f32.mrf.mxu0
      %v11432 = vadd.f32 0.0, %v11431
      %v11433 = vpop.f32.mrf.mxu0
      %11434 = vmatprep.mubr.bf16.mxu0 0
      %11435 = vmatmul.mubr.bf16.gmra.mxu0 %v11212
      %v11436 = vpop.f32.mrf.mxu0
      %v11437 = vadd.f32 0.0, %v11436
      %v11438 = vpop.f32.mrf.mxu0
      %v11439 = vpop.f32.mrf.mxu0
      %v11440 = vadd.f32 0.0, %v11439
      %v11441 = vpop.f32.mrf.mxu0
      %11442 = vmatprep.mubr.bf16.mxu0 0
      %11443 = vmatmul.mubr.bf16.gmra.mxu0 %v11216
      %v11444 = vpop.f32.mrf.mxu0
      %v11445 = vadd.f32 0.0, %v11444
      %v11446 = vpop.f32.mrf.mxu0
      %v11447 = vpop.f32.mrf.mxu0
      %v11448 = vadd.f32 0.0, %v11447
      %v11449 = vpop.f32.mrf.mxu0
      %11450 = vmatprep.mubr.bf16.mxu0 0
      %11451 = vmatmul.mubr.bf16.gmra.mxu0 %v11220
      %v11452 = vpop.f32.mrf.mxu0
      %v11453 = vadd.f32 0.0, %v11452
      %v11454 = vpop.f32.mrf.mxu0
      %v11455 = vpop.f32.mrf.mxu0
      %v11456 = vadd.f32 0.0, %v11455
      %v11457 = vpop.f32.mrf.mxu0
      %11458 = vmatprep.mubr.bf16.mxu0 0
      %11459 = vmatmul.mubr.bf16.gmra.mxu0 %v11224
      %v11460 = vpop.f32.mrf.mxu0
      %v11461 = vadd.f32 0.0, %v11460
      %v11462 = vpop.f32.mrf.mxu0
      %v11463 = vpop.f32.mrf.mxu0
      %v11464 = vadd.f32 0.0, %v11463
      %v11465 = vpop.f32.mrf.mxu0
      %11466 = vmatprep.mubr.bf16.mxu0 0
      %11467 = vmatmul.mubr.bf16.gmra.mxu0 %v11228
      %v11468 = vpop.f32.mrf.mxu0
      %v11469 = vadd.f32 0.0, %v11468
      %v11470 = vpop.f32.mrf.mxu0
      %v11471 = vpop.f32.mrf.mxu0
      %v11472 = vadd.f32 0.0, %v11471
      %v11473 = vpop.f32.mrf.mxu0
      %11474 = vmatprep.mubr.bf16.mxu0 0
      %11475 = vmatmul.mubr.bf16.gmra.mxu0 %v11232
      %v11476 = vpop.f32.mrf.mxu0
      %v11477 = vadd.f32 0.0, %v11476
      %v11478 = vpop.f32.mrf.mxu0
      %v11479 = vpop.f32.mrf.mxu0
      %v11480 = vadd.f32 0.0, %v11479
      %v11481 = vpop.f32.mrf.mxu0
      %11482 = vmatprep.mubr.bf16.mxu0 0
      %11483 = vmatmul.mubr.bf16.gmra.mxu0 %v11236
      %v11484 = vpop.f32.mrf.mxu0
      %v11485 = vadd.f32 0.0, %v11484
      %v11486 = vpop.f32.mrf.mxu0
      %v11487 = vpop.f32.mrf.mxu0
      %v11488 = vadd.f32 0.0, %v11487
      %v11489 = vpop.f32.mrf.mxu0
      %11490 = vmatprep.mubr.bf16.mxu0 0
      %11491 = vmatmul.mubr.bf16.gmra.mxu0 %v11240
      %v11492 = vpop.f32.mrf.mxu0
      %v11493 = vadd.f32 0.0, %v11492
      %v11494 = vpop.f32.mrf.mxu0
      %v11495 = vpop.f32.mrf.mxu0
      %v11496 = vadd.f32 0.0, %v11495
      %v11497 = vpop.f32.mrf.mxu0
      %11498 = vmatprep.mubr.bf16.mxu0 0
      %11499 = vmatmul.mubr.bf16.gmra.mxu0 %v11244
      %v11500 = vpop.f32.mrf.mxu0
      %v11501 = vadd.f32 0.0, %v11500
      %v11502 = vpop.f32.mrf.mxu0
      %v11503 = vpop.f32.mrf.mxu0
      %v11504 = vadd.f32 0.0, %v11503
      %v11505 = vpop.f32.mrf.mxu0
      %11506 = vmatprep.mubr.bf16.mxu0 0
      %11507 = vmatmul.mubr.bf16.gmra.mxu0 %v11248
      %v11508 = vpop.f32.mrf.mxu0
      %v11509 = vadd.f32 0.0, %v11508
      %v11510 = vpop.f32.mrf.mxu0
      %v11511 = vpop.f32.mrf.mxu0
      %v11512 = vadd.f32 0.0, %v11511
      %v11513 = vpop.f32.mrf.mxu0
      %11514 = vmatprep.mubr.bf16.mxu0 0
      %11515 = vmatmul.mubr.bf16.gmra.mxu0 %v11252
      %v11516 = vpop.f32.mrf.mxu0
      %v11517 = vadd.f32 0.0, %v11516
      %v11518 = vpop.f32.mrf.mxu0
      %v11519 = vpop.f32.mrf.mxu0
      %v11520 = vadd.f32 0.0, %v11519
      %v11521 = vpop.f32.mrf.mxu0
      %11522 = vmatprep.mubr.bf16.mxu0 0
      %11523 = vmatmul.mubr.bf16.gmra.mxu0 %v11256
      %v11524 = vpop.f32.mrf.mxu0
      %v11525 = vadd.f32 0.0, %v11524
      %v11526 = vpop.f32.mrf.mxu0
      %v11527 = vpop.f32.mrf.mxu0
      %v11528 = vadd.f32 0.0, %v11527
      %v11529 = vpop.f32.mrf.mxu0
      %11530 = vmatprep.mubr.bf16.mxu0 0
      %11531 = vmatmul.mubr.bf16.gmra.mxu0 %v11260
      %v11532 = vpop.f32.mrf.mxu0
      %v11533 = vadd.f32 0.0, %v11532
      %v11534 = vpop.f32.mrf.mxu0
      %v11535 = vpop.f32.mrf.mxu0
      %v11536 = vadd.f32 0.0, %v11535
      %v11537 = vpop.f32.mrf.mxu0
      %11538 = vmatprep.mubr.bf16.mxu0 0
      %11539 = vmatmul.mubr.bf16.gmra.mxu0 %v11264
      %v11540 = vpop.f32.mrf.mxu0
      %v11541 = vadd.f32 0.0, %v11540
      %v11542 = vpop.f32.mrf.mxu0
      %v11543 = vpop.f32.mrf.mxu0
      %v11544 = vadd.f32 0.0, %v11543
      %v11545 = vpop.f32.mrf.mxu0
      %11546 = vmatprep.mubr.bf16.mxu0 0
      %11547 = vmatmul.mubr.bf16.gmra.mxu0 %v11268
      %v11548 = vpop.f32.mrf.mxu0
      %v11549 = vadd.f32 0.0, %v11548
      %v11550 = vpop.f32.mrf.mxu0
      %v11551 = vpop.f32.mrf.mxu0
      %v11552 = vadd.f32 0.0, %v11551
      %v11553 = vpop.f32.mrf.mxu0
      %11554 = vmatprep.mubr.bf16.mxu0 0
      %11555 = vmatmul.mubr.bf16.gmra.mxu0 %v11272
      %v11556 = vpop.f32.mrf.mxu0
      %v11557 = vadd.f32 0.0, %v11556
      %v11558 = vpop.f32.mrf.mxu0
      %v11559 = vpop.f32.mrf.mxu0
      %v11560 = vadd.f32 0.0, %v11559
      %v11561 = vpop.f32.mrf.mxu0
      %11562 = vmatprep.mubr.bf16.mxu0 0
      %11563 = vmatmul.mubr.bf16.gmra.mxu0 %v11276
      %v11564 = vpop.f32.mrf.mxu0
      %v11565 = vadd.f32 0.0, %v11564
      %v11566 = vpop.f32.mrf.mxu0
      %v11567 = vpop.f32.mrf.mxu0
      %v11568 = vadd.f32 0.0, %v11567
      %v11569 = vpop.f32.mrf.mxu0
      %11570 = vmatprep.mubr.bf16.mxu0 0
      %11571 = vmatmul.mubr.bf16.gmra.mxu0 %v11280
      %v11572 = vpop.f32.mrf.mxu0
      %v11573 = vadd.f32 0.0, %v11572
      %v11574 = vpop.f32.mrf.mxu0
      %v11575 = vpop.f32.mrf.mxu0
      %v11576 = vadd.f32 0.0, %v11575
      %v11577 = vpop.f32.mrf.mxu0
      %11578 = vmatprep.mubr.bf16.mxu0 0
      %11579 = vmatmul.mubr.bf16.gmra.mxu0 %v11289
      %v11580 = vpop.f32.mrf.mxu0
      %v11581 = vadd.f32 0.0, %v11580
      %v11582 = vpop.f32.mrf.mxu0
      %v11583 = vpop.f32.mrf.mxu0
      %v11584 = vadd.f32 0.0, %v11583
      %v11585 = vpop.f32.mrf.mxu0
      %11586 = vdwg.mxu0
      %v11587 = vadd.f32 %v11111, %v11397
      %v11588 = vadd.f32 %v11112, %v11400
      %v11589 = vadd.f32 %v11113, %v11405
      %v11590 = vadd.f32 %v11114, %v11408
      %v11591 = vadd.f32 %v11115, %v11413
      %v11592 = vadd.f32 %v11116, %v11416
      %v11593 = vadd.f32 %v11117, %v11421
      %v11594 = vadd.f32 %v11118, %v11424
      %v11595 = vadd.f32 %v11119, %v11429
      %v11596 = vadd.f32 %v11120, %v11432
      %v11597 = vadd.f32 %v11121, %v11437
      %v11598 = vadd.f32 %v11122, %v11440
      %v11599 = vadd.f32 %v11123, %v11445
      %v11600 = vadd.f32 %v11124, %v11448
      %v11601 = vadd.f32 %v11125, %v11453
      %v11602 = vadd.f32 %v11126, %v11456
      %v11603 = vadd.f32 %v11127, %v11461
      %v11604 = vadd.f32 %v11128, %v11464
      %v11605 = vadd.f32 %v11129, %v11469
      %v11606 = vadd.f32 %v11130, %v11472
      %v11607 = vadd.f32 %v11131, %v11477
      %v11608 = vadd.f32 %v11132, %v11480
      %v11609 = vadd.f32 %v11133, %v11485
      %v11610 = vadd.f32 %v11134, %v11488
      %v11611 = vadd.f32 %v11135, %v11493
      %v11612 = vadd.f32 %v11136, %v11496
      %v11613 = vadd.f32 %v11137, %v11501
      %v11614 = vadd.f32 %v11138, %v11504
      %v11615 = vadd.f32 %v11139, %v11509
      %v11616 = vadd.f32 %v11140, %v11512
      %v11617 = vadd.f32 %v11141, %v11517
      %v11618 = vadd.f32 %v11142, %v11520
      %v11619 = vadd.f32 %v11143, %v11525
      %v11620 = vadd.f32 %v11144, %v11528
      %v11621 = vadd.f32 %v11145, %v11533
      %v11622 = vadd.f32 %v11146, %v11536
      %v11623 = vadd.f32 %v11147, %v11541
      %v11624 = vadd.f32 %v11148, %v11544
      %v11625 = vadd.f32 %v11149, %v11549
      %v11626 = vadd.f32 %v11150, %v11552
      %v11627 = vadd.f32 %v11151, %v11557
      %v11628 = vadd.f32 %v11152, %v11560
      %v11629 = vadd.f32 %v11153, %v11565
      %v11630 = vadd.f32 %v11154, %v11568
      %v11631 = vadd.f32 %v11155, %v11573
      %v11632 = vadd.f32 %v11156, %v11576
      %v11633 = vadd.f32 %v11157, %v11581
      %v11634 = vadd.f32 %v11158, %v11584
      %v11635 = vld [vmem:[%s5] sm:$0x1]
      %v11637 = vlaneseq
      %v11638 = vshrl.u32 %v11637, 7
      %v11639 = vsub.s32 0, %v11638
      %v11640 = vrot.slane %v11635, %v11639
      %v11642 = vmul.f32 %v11587, %v11640
      %v11643 = vmul.f32 %v11588, %v11640
      %v11644 = vmul.f32 %v11589, %v11640
      %v11645 = vmul.f32 %v11590, %v11640
      %v11646 = vmul.f32 %v11591, %v11640
      %v11647 = vmul.f32 %v11592, %v11640
      %v11648 = vmul.f32 %v11593, %v11640
      %v11649 = vmul.f32 %v11594, %v11640
      %v11650 = vmul.f32 %v11595, %v11640
      %v11651 = vmul.f32 %v11596, %v11640
      %v11652 = vmul.f32 %v11597, %v11640
      %v11653 = vmul.f32 %v11598, %v11640
      %v11654 = vmul.f32 %v11599, %v11640
      %v11655 = vmul.f32 %v11600, %v11640
      %v11656 = vmul.f32 %v11601, %v11640
      %v11657 = vmul.f32 %v11602, %v11640
      %v11658 = vmul.f32 %v11603, %v11640
      %v11659 = vmul.f32 %v11604, %v11640
      %v11660 = vmul.f32 %v11605, %v11640
      %v11661 = vmul.f32 %v11606, %v11640
      %v11662 = vmul.f32 %v11607, %v11640
      %v11663 = vmul.f32 %v11608, %v11640
      %v11664 = vmul.f32 %v11609, %v11640
      %v11665 = vmul.f32 %v11610, %v11640
      %v11666 = vmul.f32 %v11611, %v11640
      %v11667 = vmul.f32 %v11612, %v11640
      %v11668 = vmul.f32 %v11613, %v11640
      %v11669 = vmul.f32 %v11614, %v11640
      %v11670 = vmul.f32 %v11615, %v11640
      %v11671 = vmul.f32 %v11616, %v11640
      %v11672 = vmul.f32 %v11617, %v11640
      %v11673 = vmul.f32 %v11618, %v11640
      %v11674 = vmul.f32 %v11619, %v11640
      %v11675 = vmul.f32 %v11620, %v11640
      %v11676 = vmul.f32 %v11621, %v11640
      %v11677 = vmul.f32 %v11622, %v11640
      %v11678 = vmul.f32 %v11623, %v11640
      %v11679 = vmul.f32 %v11624, %v11640
      %v11680 = vmul.f32 %v11625, %v11640
      %v11681 = vmul.f32 %v11626, %v11640
      %v11682 = vmul.f32 %v11627, %v11640
      %v11683 = vmul.f32 %v11628, %v11640
      %v11684 = vmul.f32 %v11629, %v11640
      %v11685 = vmul.f32 %v11630, %v11640
      %v11686 = vmul.f32 %v11631, %v11640
      %v11687 = vmul.f32 %v11632, %v11640
      %v11688 = vmul.f32 %v11633, %v11640
      %v11689 = vmul.f32 %v11634, %v11640
      %v11690 = vld [vmem:[%s6] sm:$0x1]
      %v11692 = vlaneseq
      %v11693 = vshrl.u32 %v11692, 7
      %v11694 = vsub.s32 0, %v11693
      %v11695 = vrot.slane %v11690, %v11694
      %v11697 = vadd.f32 %v11642, %v11695
      %v11698 = vadd.f32 %v11643, %v11695
      %v11699 = vadd.f32 %v11644, %v11695
      %v11700 = vadd.f32 %v11645, %v11695
      %v11701 = vadd.f32 %v11646, %v11695
      %v11702 = vadd.f32 %v11647, %v11695
      %v11703 = vadd.f32 %v11648, %v11695
      %v11704 = vadd.f32 %v11649, %v11695
      %v11705 = vadd.f32 %v11650, %v11695
      %v11706 = vadd.f32 %v11651, %v11695
      %v11707 = vadd.f32 %v11652, %v11695
      %v11708 = vadd.f32 %v11653, %v11695
      %v11709 = vadd.f32 %v11654, %v11695
      %v11710 = vadd.f32 %v11655, %v11695
      %v11711 = vadd.f32 %v11656, %v11695
      %v11712 = vadd.f32 %v11657, %v11695
      %v11713 = vadd.f32 %v11658, %v11695
      %v11714 = vadd.f32 %v11659, %v11695
      %v11715 = vadd.f32 %v11660, %v11695
      %v11716 = vadd.f32 %v11661, %v11695
      %v11717 = vadd.f32 %v11662, %v11695
      %v11718 = vadd.f32 %v11663, %v11695
      %v11719 = vadd.f32 %v11664, %v11695
      %v11720 = vadd.f32 %v11665, %v11695
      %v11721 = vadd.f32 %v11666, %v11695
      %v11722 = vadd.f32 %v11667, %v11695
      %v11723 = vadd.f32 %v11668, %v11695
      %v11724 = vadd.f32 %v11669, %v11695
      %v11725 = vadd.f32 %v11670, %v11695
      %v11726 = vadd.f32 %v11671, %v11695
      %v11727 = vadd.f32 %v11672, %v11695
      %v11728 = vadd.f32 %v11673, %v11695
      %v11729 = vadd.f32 %v11674, %v11695
      %v11730 = vadd.f32 %v11675, %v11695
      %v11731 = vadd.f32 %v11676, %v11695
      %v11732 = vadd.f32 %v11677, %v11695
      %v11733 = vadd.f32 %v11678, %v11695
      %v11734 = vadd.f32 %v11679, %v11695
      %v11735 = vadd.f32 %v11680, %v11695
      %v11736 = vadd.f32 %v11681, %v11695
      %v11737 = vadd.f32 %v11682, %v11695
      %v11738 = vadd.f32 %v11683, %v11695
      %v11739 = vadd.f32 %v11684, %v11695
      %v11740 = vadd.f32 %v11685, %v11695
      %v11741 = vadd.f32 %v11686, %v11695
      %v11742 = vadd.f32 %v11687, %v11695
      %v11743 = vadd.f32 %v11688, %v11695
      %v11744 = vadd.f32 %v11689, %v11695
      %v11745 = vmax.f32 %v11697, 0.0
      %v11746 = vmax.f32 %v11698, 0.0
      %v11747 = vmax.f32 %v11699, 0.0
      %v11748 = vmax.f32 %v11700, 0.0
      %v11749 = vmax.f32 %v11701, 0.0
      %v11750 = vmax.f32 %v11702, 0.0
      %v11751 = vmax.f32 %v11703, 0.0
      %v11752 = vmax.f32 %v11704, 0.0
      %v11753 = vmax.f32 %v11705, 0.0
      %v11754 = vmax.f32 %v11706, 0.0
      %v11755 = vmax.f32 %v11707, 0.0
      %v11756 = vmax.f32 %v11708, 0.0
      %v11757 = vmax.f32 %v11709, 0.0
      %v11758 = vmax.f32 %v11710, 0.0
      %v11759 = vmax.f32 %v11711, 0.0
      %v11760 = vmax.f32 %v11712, 0.0
      %v11761 = vmax.f32 %v11713, 0.0
      %v11762 = vmax.f32 %v11714, 0.0
      %v11763 = vmax.f32 %v11715, 0.0
      %v11764 = vmax.f32 %v11716, 0.0
      %v11765 = vmax.f32 %v11717, 0.0
      %v11766 = vmax.f32 %v11718, 0.0
      %v11767 = vmax.f32 %v11719, 0.0
      %v11768 = vmax.f32 %v11720, 0.0
      %v11769 = vmax.f32 %v11721, 0.0
      %v11770 = vmax.f32 %v11722, 0.0
      %v11771 = vmax.f32 %v11723, 0.0
      %v11772 = vmax.f32 %v11724, 0.0
      %v11773 = vmax.f32 %v11725, 0.0
      %v11774 = vmax.f32 %v11726, 0.0
      %v11775 = vmax.f32 %v11727, 0.0
      %v11776 = vmax.f32 %v11728, 0.0
      %v11777 = vmax.f32 %v11729, 0.0
      %v11778 = vmax.f32 %v11730, 0.0
      %v11779 = vmax.f32 %v11731, 0.0
      %v11780 = vmax.f32 %v11732, 0.0
      %v11781 = vmax.f32 %v11733, 0.0
      %v11782 = vmax.f32 %v11734, 0.0
      %v11783 = vmax.f32 %v11735, 0.0
      %v11784 = vmax.f32 %v11736, 0.0
      %v11785 = vmax.f32 %v11737, 0.0
      %v11786 = vmax.f32 %v11738, 0.0
      %v11787 = vmax.f32 %v11739, 0.0
      %v11788 = vmax.f32 %v11740, 0.0
      %v11789 = vmax.f32 %v11741, 0.0
      %v11790 = vmax.f32 %v11742, 0.0
      %v11791 = vmax.f32 %v11743, 0.0
      %v11792 = vmax.f32 %v11744, 0.0
      %11793 = vxpose.xlu0.b32.start [1/16] %v11745, 128
      %11794 = vxpose.xlu0.b32.cont [2/16] %v11746, 128
      %11795 = vxpose.xlu0.b32.cont [3/16] %v11747, 128
      %11796 = vxpose.xlu0.b32.cont [4/16] %v11748, 128
      %11797 = vxpose.xlu0.b32.cont [5/16] %v11749, 128
      %11798 = vxpose.xlu0.b32.cont [6/16] %v11750, 128
      %11799 = vxpose.xlu0.b32.cont [7/16] %v11751, 128
      %11800 = vxpose.xlu0.b32.cont [8/16] %v11752, 128
      %11801 = vxpose.xlu0.b32.cont [9/16] %v11753, 128
      %11802 = vxpose.xlu0.b32.cont [10/16] %v11754, 128
      %11803 = vxpose.xlu0.b32.cont [11/16] %v11755, 128
      %11804 = vxpose.xlu0.b32.cont [12/16] %v11756, 128
      %11805 = vxpose.xlu0.b32.cont [13/16] %v11757, 128
      %11806 = vxpose.xlu0.b32.cont [14/16] %v11758, 128
      %11807 = vxpose.xlu0.b32.cont [15/16] %v11759, 128
      %11808 = vxpose.xlu0.b32.end [16/16] %v11760, 128
      %v11809 = vpop.trf.xlu0
      %v11810 = vpop.trf.xlu0
      %v11811 = vpop.trf.xlu0
      %v11812 = vpop.trf.xlu0
      %v11813 = vpop.trf.xlu0
      %v11814 = vpop.trf.xlu0
      %v11815 = vpop.trf.xlu0
      %v11816 = vpop.trf.xlu0
      %v11817 = vpop.trf.xlu0
      %v11818 = vpop.trf.xlu0
      %v11819 = vpop.trf.xlu0
      %v11820 = vpop.trf.xlu0
      %v11821 = vpop.trf.xlu0
      %v11822 = vpop.trf.xlu0
      %v11823 = vpop.trf.xlu0
      %v11824 = vpop.trf.xlu0
      %11825 = vxpose.xlu0.b32.start [1/16] %v11761, 128
      %11826 = vxpose.xlu0.b32.cont [2/16] %v11762, 128
      %11827 = vxpose.xlu0.b32.cont [3/16] %v11763, 128
      %11828 = vxpose.xlu0.b32.cont [4/16] %v11764, 128
      %11829 = vxpose.xlu0.b32.cont [5/16] %v11765, 128
      %11830 = vxpose.xlu0.b32.cont [6/16] %v11766, 128
      %11831 = vxpose.xlu0.b32.cont [7/16] %v11767, 128
      %11832 = vxpose.xlu0.b32.cont [8/16] %v11768, 128
      %11833 = vxpose.xlu0.b32.cont [9/16] %v11769, 128
      %11834 = vxpose.xlu0.b32.cont [10/16] %v11770, 128
      %11835 = vxpose.xlu0.b32.cont [11/16] %v11771, 128
      %11836 = vxpose.xlu0.b32.cont [12/16] %v11772, 128
      %11837 = vxpose.xlu0.b32.cont [13/16] %v11773, 128
      %11838 = vxpose.xlu0.b32.cont [14/16] %v11774, 128
      %11839 = vxpose.xlu0.b32.cont [15/16] %v11775, 128
      %11840 = vxpose.xlu0.b32.end [16/16] %v11776, 128
      %v11841 = vpop.trf.xlu0
      %v11842 = vpop.trf.xlu0
      %v11843 = vpop.trf.xlu0
      %v11844 = vpop.trf.xlu0
      %v11845 = vpop.trf.xlu0
      %v11846 = vpop.trf.xlu0
      %v11847 = vpop.trf.xlu0
      %v11848 = vpop.trf.xlu0
      %v11849 = vpop.trf.xlu0
      %v11850 = vpop.trf.xlu0
      %v11851 = vpop.trf.xlu0
      %v11852 = vpop.trf.xlu0
      %v11853 = vpop.trf.xlu0
      %v11854 = vpop.trf.xlu0
      %v11855 = vpop.trf.xlu0
      %v11856 = vpop.trf.xlu0
      %11857 = vxpose.xlu0.b32.start [1/16] %v11777, 128
      %11858 = vxpose.xlu0.b32.cont [2/16] %v11778, 128
      %11859 = vxpose.xlu0.b32.cont [3/16] %v11779, 128
      %11860 = vxpose.xlu0.b32.cont [4/16] %v11780, 128
      %11861 = vxpose.xlu0.b32.cont [5/16] %v11781, 128
      %11862 = vxpose.xlu0.b32.cont [6/16] %v11782, 128
      %11863 = vxpose.xlu0.b32.cont [7/16] %v11783, 128
      %11864 = vxpose.xlu0.b32.cont [8/16] %v11784, 128
      %11865 = vxpose.xlu0.b32.cont [9/16] %v11785, 128
      %11866 = vxpose.xlu0.b32.cont [10/16] %v11786, 128
      %11867 = vxpose.xlu0.b32.cont [11/16] %v11787, 128
      %11868 = vxpose.xlu0.b32.cont [12/16] %v11788, 128
      %11869 = vxpose.xlu0.b32.cont [13/16] %v11789, 128
      %11870 = vxpose.xlu0.b32.cont [14/16] %v11790, 128
      %11871 = vxpose.xlu0.b32.cont [15/16] %v11791, 128
      %11872 = vxpose.xlu0.b32.end [16/16] %v11792, 128
      %v11873 = vpop.trf.xlu0
      %v11874 = vpop.trf.xlu0
      %v11875 = vpop.trf.xlu0
      %v11876 = vpop.trf.xlu0
      %v11877 = vpop.trf.xlu0
      %v11878 = vpop.trf.xlu0
      %v11879 = vpop.trf.xlu0
      %v11880 = vpop.trf.xlu0
      %v11881 = vpop.trf.xlu0
      %v11882 = vpop.trf.xlu0
      %v11883 = vpop.trf.xlu0
      %v11884 = vpop.trf.xlu0
      %v11885 = vpop.trf.xlu0
      %v11886 = vpop.trf.xlu0
      %v11887 = vpop.trf.xlu0
      %v11888 = vpop.trf.xlu0
      %11889 = vst [vmem:[%s278] sm:$0xff] %v11809
      %11890 = vst [vmem:[%s278 + $0x8] sm:$0xff] %v11841
      %11891 = vst [vmem:[%s278 + $0x10] sm:$0xff] %v11873
      %p11892 = scmp.lt.s32.totalorder %s18, 1
      %s11893 = scalar_select %p11892, %s18, 1
      %s11894 = smul.addr %s11893, 3
      %s11895 = smul.addr %s11894, 8
      %s11896 = scalar_lea.vmem %s7, %s11895
      // Predicated region
      $region49: #{up_forward.1} parent=47 // pred_check
        %p11897 = pneg %p188
      $region50: #{up_forward.1} parent=47 // pred_check_branch
        %11899 = sbr.rel (%p11897) target = $region52
      $region51: #{up_forward.1} parent=47 // pred_region
        _
      $region52: #{up_forward.1} parent=47 // pred_fallthru
        _
    $region48: #{up_forward.1} parent=5 // pred_fallthru
      _
    %p11900 = scmp.le.s32.totalorder 2, %s13
    // Predicated region
    $region53: #{up_forward.1} parent=5 // pred_check
      %p11901 = pneg %p11900
    $region54: #{up_forward.1} parent=5 // pred_check_branch
      %11903 = sbr.rel (%p11901) target = $region56
    $region55: #{up_forward.1} parent=5 // pred_region
      %s11904 = ssub.s32 %s13, 2
      // Predicated region
      $region57: #{up_forward.1} parent=55 // pred_check
        %p11905 = pneg %p194
      $region58: #{up_forward.1} parent=55 // pred_check_branch
        %11907 = sbr.rel (%p11905) target = $region60
      $region59: #{up_forward.1} parent=55 // pred_region
        %p11908 = scmp.lt.s32.totalorder %s19, 1
        %s11909 = scalar_select %p11908, %s19, 1
        %s11910 = smul.addr %s11909, 3
        %s11911 = smul.addr %s11910, 8
        %s11912 = scalar_lea.vmem %s7, %s11911
      $region60: #{up_forward.1} parent=55 // pred_fallthru
        _
    $region56: #{up_forward.1} parent=5 // pred_fallthru
      _
  $region6: #{up_forward.1} parent=0 // loop_footer
    %s17 = sadd.s32 1, %s13
  $region7: #{up_forward.1} parent=0 // loop_footer_branch
    %12 = sbr.rel target = $region3
  $region8: #{up_forward.1} parent=0 // loop_exit
    _

</llo_original>
